<compile_context>
chip_gen: v6e
topology: v6e:2x2x1
jax: 0.10.0
libtpu: 0.0.40
codegen_flags: <defaults>
</compile_context>

<pallas_src>
import functools

import jax
import jax.numpy as jnp
from jax.experimental import pallas as pl
from jax.experimental.pallas import tpu as pltpu


def _round_up(n, m):
    return ((n + m - 1) // m) * m


# ----------------------------------------------------------------------------
# Fused kernel: all LSTM layers + FC head, activations resident in VMEM.
# ----------------------------------------------------------------------------
def _fused_lstm_kernel(*refs, num_layers, H_pad):
    # refs = [x, (wih, whh, bias) * num_layers, wfc, bfc, out,
    #         act_scr, gproj_scr, h_scr, c_scr]
    n_in = 1 + 3 * num_layers + 2
    x_ref = refs[0]
    wfc_ref = refs[n_in - 2]
    bfc_ref = refs[n_in - 1]
    out_ref = refs[n_in]
    act_scr, gproj_scr, h_scr, c_scr = refs[n_in + 1:n_in + 5]

    T = x_ref.shape[0]

    for layer in range(num_layers):
        wih_ref = refs[1 + 3 * layer]     # (in_pad, 4*H_pad)
        whh_ref = refs[2 + 3 * layer]     # (H_pad, 4*H_pad)
        b_ref = refs[3 + 3 * layer]       # (1, 4*H_pad)  (b_ih + b_hh)

        layer_in = x_ref[...] if layer == 0 else act_scr[...]
        Tn, Bp, In = layer_in.shape

        # (1) Hoisted input projection: one big MXU matmul over all timesteps.
        gproj = (jnp.dot(layer_in.reshape(Tn * Bp, In), wih_ref[...],
                         preferred_element_type=jnp.float32)
                 + b_ref[...])
        gproj_scr[...] = gproj.reshape(Tn, Bp, 4 * H_pad)

        # (2) Sequential recurrence: one small matmul per step, carried in VMEM.
        h_scr[...] = jnp.zeros_like(h_scr)
        c_scr[...] = jnp.zeros_like(c_scr)

        def step(t, carry, _whh_ref=whh_ref, _layer=layer):
            h_prev = h_scr[...]
            c_prev = c_scr[...]
            gates = gproj_scr[t] + jnp.dot(
                h_prev, _whh_ref[...], preferred_element_type=jnp.float32)
            # Gate slices are whole 128-lane tiles (H_pad multiple of 128).
            i_g = jax.nn.sigmoid(gates[:, 0 * H_pad:1 * H_pad])
            f_g = jax.nn.sigmoid(gates[:, 1 * H_pad:2 * H_pad])
            g_g = jnp.tanh(gates[:, 2 * H_pad:3 * H_pad])
            o_g = jax.nn.sigmoid(gates[:, 3 * H_pad:4 * H_pad])
            c_new = f_g * c_prev + i_g * g_g
            h_new = o_g * jnp.tanh(c_new)
            c_scr[...] = c_new
            h_scr[...] = h_new
            if _layer + 1 < num_layers:      # last layer only needs final h
                act_scr[t] = h_new
            return carry

        jax.lax.fori_loop(0, T, step, 0, unroll=True)

    # (3) FC head fused in, lane-dense padded output (B_pad, O_pad).
    out_ref[...] = (jnp.dot(h_scr[...], wfc_ref[...],
                            preferred_element_type=jnp.float32)
                    + bfc_ref[...])


def _fused_call(x_pad, prep):
    T, B_pad, I_pad = x_pad.shape
    H_pad = prep["H_pad"]
    O_pad = prep["O_pad"]
    num_layers = len(prep["layers"])

    inputs = [x_pad]
    in_specs = [pl.BlockSpec((T, B_pad, I_pad), lambda i: (0, 0, 0))]
    for (wih_t, whh_t, bias) in prep["layers"]:
        inputs += [wih_t, whh_t, bias]
        in_specs += [
            pl.BlockSpec(wih_t.shape, lambda i: (0, 0)),
            pl.BlockSpec(whh_t.shape, lambda i: (0, 0)),
            pl.BlockSpec(bias.shape, lambda i: (0, 0)),
        ]
    inputs += [prep["wfc"], prep["bfc"]]
    in_specs += [pl.BlockSpec(prep["wfc"].shape, lambda i: (0, 0)),
                 pl.BlockSpec(prep["bfc"].shape, lambda i: (0, 0))]

    kernel = functools.partial(_fused_lstm_kernel,
                               num_layers=num_layers, H_pad=H_pad)

    return pl.pallas_call(
        kernel,
        out_shape=jax.ShapeDtypeStruct((B_pad, O_pad), jnp.float32),
        grid_spec=pltpu.PrefetchScalarGridSpec(
            num_scalar_prefetch=0,
            grid=(1,),            # whole forward in a single grid step
            in_specs=in_specs,
            out_specs=pl.BlockSpec((B_pad, O_pad), lambda i: (0, 0)),
            scratch_shapes=[
                pltpu.VMEM((T, B_pad, H_pad), jnp.float32),      # inter-layer acts
                pltpu.VMEM((T, B_pad, 4 * H_pad), jnp.float32),  # hoisted projections
                pltpu.VMEM((B_pad, H_pad), jnp.float32),         # h carry
                pltpu.VMEM((B_pad, H_pad), jnp.float32),         # c carry
            ]),
        # Recurrence is inherently sequential; for realistic (large-H) models
        # on v7x also set vmem_limit_bytes and use bf16 weights here.
        compiler_params=pltpu.CompilerParams(
            dimension_semantics=("arbitrary",)),
    )(*inputs)


# ----------------------------------------------------------------------------
# One-time parameter preparation (transpose, gate-pad, combine biases).
# ----------------------------------------------------------------------------
def _pad_gate_weight(w, H, H_pad, in_sz, in_pad):
    """PyTorch (4H, in) -> transposed, gate-padded (in_pad, 4*H_pad)."""
    w4 = w.astype(jnp.float32).reshape(4, H, in_sz)
    out = jnp.zeros((4, H_pad, in_pad), jnp.float32).at[:, :H, :in_sz].set(w4)
    return jnp.transpose(out.reshape(4 * H_pad, in_pad))


def prepare_params(params, input_size, hidden_size, output_size):
    H = hidden_size
    H_pad = _round_up(H, 128)
    I_pad = _round_up(input_size, 128)
    O_pad = _round_up(output_size, 128)

    layers = []
    for li, (w_ih, w_hh, b_ih, b_hh) in enumerate(params["lstm"]):
        in_sz = input_size if li == 0 else H
        in_pad = I_pad if li == 0 else H_pad
        wih_t = _pad_gate_weight(w_ih, H, H_pad, in_sz, in_pad)
        whh_t = _pad_gate_weight(w_hh, H, H_pad, H, H_pad)
        b = (b_ih + b_hh).astype(jnp.float32).reshape(4, H)
        b_pad = jnp.zeros((4, H_pad), jnp.float32).at[:, :H].set(b)
        layers.append((wih_t, whh_t, b_pad.reshape(1, 4 * H_pad)))

    wfc = jnp.zeros((H_pad, O_pad), jnp.float32).at[:H, :output_size].set(
        jnp.transpose(params["fc_w"]).astype(jnp.float32))
    bfc = jnp.zeros((1, O_pad), jnp.float32).at[:, :output_size].set(
        params["fc_b"].astype(jnp.float32).reshape(1, output_size))

    return dict(layers=layers, wfc=wfc, bfc=bfc,
                H_pad=H_pad, I_pad=I_pad, O_pad=O_pad,
                hidden_size=H, output_size=output_size)


# ----------------------------------------------------------------------------
# Full model forward (mirrors LstmNeuralNetwork.forward)
# ----------------------------------------------------------------------------
def lstm_network_forward(x_btf, prep):
    """x_btf: (B, T, input_size) batch-first, like the PyTorch module."""
    x = jnp.transpose(x_btf, (1, 0, 2)).astype(jnp.float32)   # (T, B, I)
    T, B, I = x.shape
    B_pad = _round_up(max(B, 8), 8)
    I_pad = prep["I_pad"]
    x_pad = jnp.zeros((T, B_pad, I_pad), jnp.float32).at[:, :B, :I].set(x)
    out_pad = _fused_call(x_pad, prep)                         # (B_pad, O_pad)
    return out_pad[:B, :prep["output_size"]]


# ----------------------------------------------------------------------------
# Pure-JAX reference (for correctness check)
# ----------------------------------------------------------------------------
def lstm_network_reference(x_btf, params):
    x = jnp.transpose(x_btf, (1, 0, 2))
    for (w_ih, w_hh, b_ih, b_hh) in params["lstm"]:
        H = w_hh.shape[1]
        B = x.shape[1]

        def step(carry, x_t):
            h, c = carry
            gates = x_t @ w_ih.T + h @ w_hh.T + b_ih + b_hh
            i = jax.nn.sigmoid(gates[:, 0 * H:1 * H])
            f = jax.nn.sigmoid(gates[:, 1 * H:2 * H])
            g = jnp.tanh(gates[:, 2 * H:3 * H])
            o = jax.nn.sigmoid(gates[:, 3 * H:4 * H])
            c = f * c + i * g
            h = o * jnp.tanh(c)
            return (h, c), h

        init = (jnp.zeros((B, H), jnp.float32), jnp.zeros((B, H), jnp.float32))
        _, ys = jax.lax.scan(step, init, x)
        x = ys
    h_final = x[-1]
    return h_final @ params["fc_w"].T + params["fc_b"]


# ----------------------------------------------------------------------------
# Deterministic parameter construction (PyTorch-shaped)
# ----------------------------------------------------------------------------
def init_params(key, input_size, num_layers, hidden_size, output_size):
    params = {"lstm": []}
    scale = 1.0 / jnp.sqrt(hidden_size)
    for layer in range(num_layers):
        in_sz = input_size if layer == 0 else hidden_size
        key, k1, k2, k3, k4 = jax.random.split(key, 5)
        w_ih = jax.random.uniform(k1, (4 * hidden_size, in_sz),
                                  minval=-scale, maxval=scale, dtype=jnp.float32)
        w_hh = jax.random.uniform(k2, (4 * hidden_size, hidden_size),
                                  minval=-scale, maxval=scale, dtype=jnp.float32)
        b_ih = jax.random.uniform(k3, (4 * hidden_size,),
                                  minval=-scale, maxval=scale, dtype=jnp.float32)
        b_hh = jax.random.uniform(k4, (4 * hidden_size,),
                                  minval=-scale, maxval=scale, dtype=jnp.float32)
        params["lstm"].append((w_ih, w_hh, b_ih, b_hh))
    key, k1, k2 = jax.random.split(key, 3)
    params["fc_w"] = jax.random.uniform(k1, (output_size, hidden_size),
                                        minval=-scale, maxval=scale,
                                        dtype=jnp.float32)
    params["fc_b"] = jax.random.uniform(k2, (output_size,),
                                        minval=-scale, maxval=scale,
                                        dtype=jnp.float32)
    return params


if __name__ == "__main__":
    # Small shapes consistent with the module's forward:
    batch, seq_length, input_size = 2, 8, 4
    num_layers, hidden_size, output_size = 2, 32, 1

    key = jax.random.PRNGKey(0)
    key, kx = jax.random.split(key)
    x = jax.random.normal(kx, (batch, seq_length, input_size), dtype=jnp.float32)

    params = init_params(key, input_size, num_layers, hidden_size, output_size)
    prep = prepare_params(params, input_size, hidden_size, output_size)

    forward = jax.jit(functools.partial(lstm_network_forward, prep=prep))
    out = jax.block_until_ready(forward(x))

    ref = jax.block_until_ready(lstm_network_reference(x, params))

    assert out.shape == (batch, output_size)
    assert jnp.allclose(out, ref, atol=1e-5, rtol=1e-5), (out, ref)

    print("KERNEL_OK")
</pallas_src>

<mosaic_0001>
module attributes {stable_mosaic.version = 11 : i64} {
  func.func @_fused_lstm_kernel(%arg0: i32, %arg1: memref<8x8x128xf32, #tpu.memory_space<vmem>>, %arg2: memref<128x512xf32, #tpu.memory_space<vmem>>, %arg3: memref<128x512xf32, #tpu.memory_space<vmem>>, %arg4: memref<1x512xf32, #tpu.memory_space<vmem>>, %arg5: memref<128x512xf32, #tpu.memory_space<vmem>>, %arg6: memref<128x512xf32, #tpu.memory_space<vmem>>, %arg7: memref<1x512xf32, #tpu.memory_space<vmem>>, %arg8: memref<128x128xf32, #tpu.memory_space<vmem>>, %arg9: memref<1x128xf32, #tpu.memory_space<vmem>>, %arg10: memref<8x128xf32, #tpu.memory_space<vmem>>, %arg11: memref<8x8x128xf32, #tpu.memory_space<vmem>>, %arg12: memref<8x8x512xf32, #tpu.memory_space<vmem>>, %arg13: memref<8x128xf32, #tpu.memory_space<vmem>>, %arg14: memref<8x128xf32, #tpu.memory_space<vmem>>) attributes {dimension_semantics = [#tpu.dimension_semantics<arbitrary>], iteration_bounds = array<i64: 1>, scalar_prefetch = 0 : i64, scratch_operands = 4 : i64, tpu.core_type = #tpu.core_type<tc>, window_params = [{pipeline_mode = #tpu.pipeline_mode<synchronous>, transform_indices = @transform_0, window_bounds = array<i64: 8, 8, 128>}, {pipeline_mode = #tpu.pipeline_mode<synchronous>, transform_indices = @transform_1, window_bounds = array<i64: 128, 512>}, {pipeline_mode = #tpu.pipeline_mode<synchronous>, transform_indices = @transform_2, window_bounds = array<i64: 128, 512>}, {pipeline_mode = #tpu.pipeline_mode<synchronous>, transform_indices = @transform_3, window_bounds = array<i64: 1, 512>}, {pipeline_mode = #tpu.pipeline_mode<synchronous>, transform_indices = @transform_4, window_bounds = array<i64: 128, 512>}, {pipeline_mode = #tpu.pipeline_mode<synchronous>, transform_indices = @transform_5, window_bounds = array<i64: 128, 512>}, {pipeline_mode = #tpu.pipeline_mode<synchronous>, transform_indices = @transform_6, window_bounds = array<i64: 1, 512>}, {pipeline_mode = #tpu.pipeline_mode<synchronous>, transform_indices = @transform_7, window_bounds = array<i64: 128, 128>}, {pipeline_mode = #tpu.pipeline_mode<synchronous>, transform_indices = @transform_8, window_bounds = array<i64: 1, 128>}, {pipeline_mode = #tpu.pipeline_mode<synchronous>, transform_indices = @transform_9, window_bounds = array<i64: 8, 128>}]} {
    %c0 = arith.constant 0 : index
    %c0_0 = arith.constant 0 : index
    %c0_1 = arith.constant 0 : index
    %0 = vector.load %arg1[%c0, %c0_0, %c0_1] : memref<8x8x128xf32, #tpu.memory_space<vmem>>, vector<8x8x128xf32>
    %1 = vector.shape_cast %0 : vector<8x8x128xf32> to vector<64x128xf32>
    %c0_2 = arith.constant 0 : index
    %c0_3 = arith.constant 0 : index
    %2 = vector.load %arg2[%c0_2, %c0_3] : memref<128x512xf32, #tpu.memory_space<vmem>>, vector<128x512xf32>
    %cst = arith.constant dense<0.000000e+00> : vector<64x512xf32>
    %3 = tpu.matmul %1, %2, %cst {dimension_numbers = #tpu.dot_dimension_numbers<[1], [0], [0], [1], [0, 0, 1, 1], [], []>} : vector<64x128xf32>, vector<128x512xf32>, vector<64x512xf32> -> vector<64x512xf32>
    %c0_4 = arith.constant 0 : index
    %c0_5 = arith.constant 0 : index
    %4 = vector.load %arg4[%c0_4, %c0_5] : memref<1x512xf32, #tpu.memory_space<vmem>>, vector<1x512xf32>
    %5 = vector.broadcast %4 : vector<1x512xf32> to vector<64x512xf32>
    %6 = arith.addf %3, %5 : vector<64x512xf32>
    %7 = vector.shape_cast %6 : vector<64x512xf32> to vector<8x8x512xf32>
    %c0_6 = arith.constant 0 : index
    %c0_7 = arith.constant 0 : index
    %c0_8 = arith.constant 0 : index
    %8 = vector.load %arg12[%c0_6, %c0_7, %c0_8] : memref<8x8x512xf32, #tpu.memory_space<vmem>>, vector<8x8x512xf32>
    tpu.vector_store %arg12[%c0_6, %c0_7, %c0_8], %7 {strides = array<i32>} : memref<8x8x512xf32, #tpu.memory_space<vmem>>, vector<8x8x512xf32>,
    %cst_9 = arith.constant 0.000000e+00 : f32
    %9 = vector.broadcast %cst_9 : f32 to vector<8x128xf32>
    %c0_10 = arith.constant 0 : index
    %c0_11 = arith.constant 0 : index
    %10 = vector.load %arg13[%c0_10, %c0_11] : memref<8x128xf32, #tpu.memory_space<vmem>>, vector<8x128xf32>
    tpu.vector_store %arg13[%c0_10, %c0_11], %9 {strides = array<i32>} : memref<8x128xf32, #tpu.memory_space<vmem>>, vector<8x128xf32>,
    %cst_12 = arith.constant 0.000000e+00 : f32
    %11 = vector.broadcast %cst_12 : f32 to vector<8x128xf32>
    %c0_13 = arith.constant 0 : index
    %c0_14 = arith.constant 0 : index
    %12 = vector.load %arg14[%c0_13, %c0_14] : memref<8x128xf32, #tpu.memory_space<vmem>>, vector<8x128xf32>
    tpu.vector_store %arg14[%c0_13, %c0_14], %11 {strides = array<i32>} : memref<8x128xf32, #tpu.memory_space<vmem>>, vector<8x128xf32>,
    %c0_i32 = arith.constant 0 : i32
    %c0_15 = arith.constant 0 : index
    %c0_16 = arith.constant 0 : index
    %13 = vector.load %arg13[%c0_15, %c0_16] : memref<8x128xf32, #tpu.memory_space<vmem>>, vector<8x128xf32>
    %c0_17 = arith.constant 0 : index
    %c0_18 = arith.constant 0 : index
    %14 = vector.load %arg14[%c0_17, %c0_18] : memref<8x128xf32, #tpu.memory_space<vmem>>, vector<8x128xf32>
    %15 = arith.index_cast %c0_i32 : i32 to index
    %c0_19 = arith.constant 0 : index
    %c0_20 = arith.constant 0 : index
    %16 = vector.load %arg12[%15, %c0_19, %c0_20] : memref<8x8x512xf32, #tpu.memory_space<vmem>>, vector<1x8x512xf32>
    %17 = vector.shape_cast %16 : vector<1x8x512xf32> to vector<8x512xf32>
    %c0_21 = arith.constant 0 : index
    %c0_22 = arith.constant 0 : index
    %18 = vector.load %arg3[%c0_21, %c0_22] : memref<128x512xf32, #tpu.memory_space<vmem>>, vector<128x512xf32>
    %cst_23 = arith.constant dense<0.000000e+00> : vector<8x512xf32>
    %19 = tpu.matmul %13, %18, %cst_23 {dimension_numbers = #tpu.dot_dimension_numbers<[1], [0], [0], [1], [0, 0, 1, 1], [], []>} : vector<8x128xf32>, vector<128x512xf32>, vector<8x512xf32> -> vector<8x512xf32>
    %20 = arith.addf %17, %19 : vector<8x512xf32>
    %21 = vector.extract_strided_slice %20 {offsets = [0, 0], sizes = [8, 128], strides = [1, 1]} : vector<8x512xf32> to vector<8x128xf32>
    %22 = arith.negf %21 : vector<8x128xf32>
    %23 = math.exp %22 : vector<8x128xf32>
    %cst_24 = arith.constant 1.000000e+00 : f32
    %24 = vector.broadcast %cst_24 : f32 to vector<8x128xf32>
    %25 = arith.addf %24, %23 : vector<8x128xf32>
    %26 = arith.divf %24, %25 : vector<8x128xf32>
    %27 = vector.extract_strided_slice %20 {offsets = [0, 128], sizes = [8, 128], strides = [1, 1]} : vector<8x512xf32> to vector<8x128xf32>
    %28 = arith.negf %27 : vector<8x128xf32>
    %29 = math.exp %28 : vector<8x128xf32>
    %cst_25 = arith.constant 1.000000e+00 : f32
    %30 = vector.broadcast %cst_25 : f32 to vector<8x128xf32>
    %31 = arith.addf %30, %29 : vector<8x128xf32>
    %32 = arith.divf %30, %31 : vector<8x128xf32>
    %33 = vector.extract_strided_slice %20 {offsets = [0, 256], sizes = [8, 128], strides = [1, 1]} : vector<8x512xf32> to vector<8x128xf32>
    %34 = math.tanh %33 : vector<8x128xf32>
    %35 = vector.extract_strided_slice %20 {offsets = [0, 384], sizes = [8, 128], strides = [1, 1]} : vector<8x512xf32> to vector<8x128xf32>
    %36 = arith.negf %35 : vector<8x128xf32>
    %37 = math.exp %36 : vector<8x128xf32>
    %cst_26 = arith.constant 1.000000e+00 : f32
    %38 = vector.broadcast %cst_26 : f32 to vector<8x128xf32>
    %39 = arith.addf %38, %37 : vector<8x128xf32>
    %40 = arith.divf %38, %39 : vector<8x128xf32>
    %41 = arith.mulf %32, %14 : vector<8x128xf32>
    %42 = arith.mulf %26, %34 : vector<8x128xf32>
    %43 = arith.addf %41, %42 : vector<8x128xf32>
    %44 = math.tanh %43 : vector<8x128xf32>
    %45 = arith.mulf %40, %44 : vector<8x128xf32>
    %c0_27 = arith.constant 0 : index
    %c0_28 = arith.constant 0 : index
    %46 = vector.load %arg14[%c0_27, %c0_28] : memref<8x128xf32, #tpu.memory_space<vmem>>, vector<8x128xf32>
    tpu.vector_store %arg14[%c0_27, %c0_28], %43 {strides = array<i32>} : memref<8x128xf32, #tpu.memory_space<vmem>>, vector<8x128xf32>,
    %c0_29 = arith.constant 0 : index
    %c0_30 = arith.constant 0 : index
    %47 = vector.load %arg13[%c0_29, %c0_30] : memref<8x128xf32, #tpu.memory_space<vmem>>, vector<8x128xf32>
    tpu.vector_store %arg13[%c0_29, %c0_30], %45 {strides = array<i32>} : memref<8x128xf32, #tpu.memory_space<vmem>>, vector<8x128xf32>,
    %48 = arith.index_cast %c0_i32 : i32 to index
    %c0_31 = arith.constant 0 : index
    %c0_32 = arith.constant 0 : index
    %49 = vector.load %arg11[%48, %c0_31, %c0_32] : memref<8x8x128xf32, #tpu.memory_space<vmem>>, vector<1x8x128xf32>
    %50 = vector.shape_cast %49 : vector<1x8x128xf32> to vector<8x128xf32>
    %51 = vector.shape_cast %45 : vector<8x128xf32> to vector<1x8x128xf32>
    tpu.vector_store %arg11[%48, %c0_31, %c0_32], %51 {strides = array<i32>} : memref<8x8x128xf32, #tpu.memory_space<vmem>>, vector<1x8x128xf32>,
    %c1_i32 = arith.constant 1 : i32
    %c0_33 = arith.constant 0 : index
    %c0_34 = arith.constant 0 : index
    %52 = vector.load %arg13[%c0_33, %c0_34] : memref<8x128xf32, #tpu.memory_space<vmem>>, vector<8x128xf32>
    %c0_35 = arith.constant 0 : index
    %c0_36 = arith.constant 0 : index
    %53 = vector.load %arg14[%c0_35, %c0_36] : memref<8x128xf32, #tpu.memory_space<vmem>>, vector<8x128xf32>
    %54 = arith.index_cast %c1_i32 : i32 to index
    %c0_37 = arith.constant 0 : index
    %c0_38 = arith.constant 0 : index
    %55 = vector.load %arg12[%54, %c0_37, %c0_38] : memref<8x8x512xf32, #tpu.memory_space<vmem>>, vector<1x8x512xf32>
    %56 = vector.shape_cast %55 : vector<1x8x512xf32> to vector<8x512xf32>
    %c0_39 = arith.constant 0 : index
    %c0_40 = arith.constant 0 : index
    %57 = vector.load %arg3[%c0_39, %c0_40] : memref<128x512xf32, #tpu.memory_space<vmem>>, vector<128x512xf32>
    %cst_41 = arith.constant dense<0.000000e+00> : vector<8x512xf32>
    %58 = tpu.matmul %52, %57, %cst_41 {dimension_numbers = #tpu.dot_dimension_numbers<[1], [0], [0], [1], [0, 0, 1, 1], [], []>} : vector<8x128xf32>, vector<128x512xf32>, vector<8x512xf32> -> vector<8x512xf32>
    %59 = arith.addf %56, %58 : vector<8x512xf32>
    %60 = vector.extract_strided_slice %59 {offsets = [0, 0], sizes = [8, 128], strides = [1, 1]} : vector<8x512xf32> to vector<8x128xf32>
    %61 = arith.negf %60 : vector<8x128xf32>
    %62 = math.exp %61 : vector<8x128xf32>
    %cst_42 = arith.constant 1.000000e+00 : f32
    %63 = vector.broadcast %cst_42 : f32 to vector<8x128xf32>
    %64 = arith.addf %63, %62 : vector<8x128xf32>
    %65 = arith.divf %63, %64 : vector<8x128xf32>
    %66 = vector.extract_strided_slice %59 {offsets = [0, 128], sizes = [8, 128], strides = [1, 1]} : vector<8x512xf32> to vector<8x128xf32>
    %67 = arith.negf %66 : vector<8x128xf32>
    %68 = math.exp %67 : vector<8x128xf32>
    %cst_43 = arith.constant 1.000000e+00 : f32
    %69 = vector.broadcast %cst_43 : f32 to vector<8x128xf32>
    %70 = arith.addf %69, %68 : vector<8x128xf32>
    %71 = arith.divf %69, %70 : vector<8x128xf32>
    %72 = vector.extract_strided_slice %59 {offsets = [0, 256], sizes = [8, 128], strides = [1, 1]} : vector<8x512xf32> to vector<8x128xf32>
    %73 = math.tanh %72 : vector<8x128xf32>
    %74 = vector.extract_strided_slice %59 {offsets = [0, 384], sizes = [8, 128], strides = [1, 1]} : vector<8x512xf32> to vector<8x128xf32>
    %75 = arith.negf %74 : vector<8x128xf32>
    %76 = math.exp %75 : vector<8x128xf32>
    %cst_44 = arith.constant 1.000000e+00 : f32
    %77 = vector.broadcast %cst_44 : f32 to vector<8x128xf32>
    %78 = arith.addf %77, %76 : vector<8x128xf32>
    %79 = arith.divf %77, %78 : vector<8x128xf32>
    %80 = arith.mulf %71, %53 : vector<8x128xf32>
    %81 = arith.mulf %65, %73 : vector<8x128xf32>
    %82 = arith.addf %80, %81 : vector<8x128xf32>
    %83 = math.tanh %82 : vector<8x128xf32>
    %84 = arith.mulf %79, %83 : vector<8x128xf32>
    %c0_45 = arith.constant 0 : index
    %c0_46 = arith.constant 0 : index
    %85 = vector.load %arg14[%c0_45, %c0_46] : memref<8x128xf32, #tpu.memory_space<vmem>>, vector<8x128xf32>
    tpu.vector_store %arg14[%c0_45, %c0_46], %82 {strides = array<i32>} : memref<8x128xf32, #tpu.memory_space<vmem>>, vector<8x128xf32>,
    %c0_47 = arith.constant 0 : index
    %c0_48 = arith.constant 0 : index
    %86 = vector.load %arg13[%c0_47, %c0_48] : memref<8x128xf32, #tpu.memory_space<vmem>>, vector<8x128xf32>
    tpu.vector_store %arg13[%c0_47, %c0_48], %84 {strides = array<i32>} : memref<8x128xf32, #tpu.memory_space<vmem>>, vector<8x128xf32>,
    %87 = arith.index_cast %c1_i32 : i32 to index
    %c0_49 = arith.constant 0 : index
    %c0_50 = arith.constant 0 : index
    %88 = vector.load %arg11[%87, %c0_49, %c0_50] : memref<8x8x128xf32, #tpu.memory_space<vmem>>, vector<1x8x128xf32>
    %89 = vector.shape_cast %88 : vector<1x8x128xf32> to vector<8x128xf32>
    %90 = vector.shape_cast %84 : vector<8x128xf32> to vector<1x8x128xf32>
    tpu.vector_store %arg11[%87, %c0_49, %c0_50], %90 {strides = array<i32>} : memref<8x8x128xf32, #tpu.memory_space<vmem>>, vector<1x8x128xf32>,
    %c2_i32 = arith.constant 2 : i32
    %c0_51 = arith.constant 0 : index
    %c0_52 = arith.constant 0 : index
    %91 = vector.load %arg13[%c0_51, %c0_52] : memref<8x128xf32, #tpu.memory_space<vmem>>, vector<8x128xf32>
    %c0_53 = arith.constant 0 : index
    %c0_54 = arith.constant 0 : index
    %92 = vector.load %arg14[%c0_53, %c0_54] : memref<8x128xf32, #tpu.memory_space<vmem>>, vector<8x128xf32>
    %93 = arith.index_cast %c2_i32 : i32 to index
    %c0_55 = arith.constant 0 : index
    %c0_56 = arith.constant 0 : index
    %94 = vector.load %arg12[%93, %c0_55, %c0_56] : memref<8x8x512xf32, #tpu.memory_space<vmem>>, vector<1x8x512xf32>
    %95 = vector.shape_cast %94 : vector<1x8x512xf32> to vector<8x512xf32>
    %c0_57 = arith.constant 0 : index
    %c0_58 = arith.constant 0 : index
    %96 = vector.load %arg3[%c0_57, %c0_58] : memref<128x512xf32, #tpu.memory_space<vmem>>, vector<128x512xf32>
    %cst_59 = arith.constant dense<0.000000e+00> : vector<8x512xf32>
    %97 = tpu.matmul %91, %96, %cst_59 {dimension_numbers = #tpu.dot_dimension_numbers<[1], [0], [0], [1], [0, 0, 1, 1], [], []>} : vector<8x128xf32>, vector<128x512xf32>, vector<8x512xf32> -> vector<8x512xf32>
    %98 = arith.addf %95, %97 : vector<8x512xf32>
    %99 = vector.extract_strided_slice %98 {offsets = [0, 0], sizes = [8, 128], strides = [1, 1]} : vector<8x512xf32> to vector<8x128xf32>
    %100 = arith.negf %99 : vector<8x128xf32>
    %101 = math.exp %100 : vector<8x128xf32>
    %cst_60 = arith.constant 1.000000e+00 : f32
    %102 = vector.broadcast %cst_60 : f32 to vector<8x128xf32>
    %103 = arith.addf %102, %101 : vector<8x128xf32>
    %104 = arith.divf %102, %103 : vector<8x128xf32>
    %105 = vector.extract_strided_slice %98 {offsets = [0, 128], sizes = [8, 128], strides = [1, 1]} : vector<8x512xf32> to vector<8x128xf32>
    %106 = arith.negf %105 : vector<8x128xf32>
    %107 = math.exp %106 : vector<8x128xf32>
    %cst_61 = arith.constant 1.000000e+00 : f32
    %108 = vector.broadcast %cst_61 : f32 to vector<8x128xf32>
    %109 = arith.addf %108, %107 : vector<8x128xf32>
    %110 = arith.divf %108, %109 : vector<8x128xf32>
    %111 = vector.extract_strided_slice %98 {offsets = [0, 256], sizes = [8, 128], strides = [1, 1]} : vector<8x512xf32> to vector<8x128xf32>
    %112 = math.tanh %111 : vector<8x128xf32>
    %113 = vector.extract_strided_slice %98 {offsets = [0, 384], sizes = [8, 128], strides = [1, 1]} : vector<8x512xf32> to vector<8x128xf32>
    %114 = arith.negf %113 : vector<8x128xf32>
    %115 = math.exp %114 : vector<8x128xf32>
    %cst_62 = arith.constant 1.000000e+00 : f32
    %116 = vector.broadcast %cst_62 : f32 to vector<8x128xf32>
    %117 = arith.addf %116, %115 : vector<8x128xf32>
    %118 = arith.divf %116, %117 : vector<8x128xf32>
    %119 = arith.mulf %110, %92 : vector<8x128xf32>
    %120 = arith.mulf %104, %112 : vector<8x128xf32>
    %121 = arith.addf %119, %120 : vector<8x128xf32>
    %122 = math.tanh %121 : vector<8x128xf32>
    %123 = arith.mulf %118, %122 : vector<8x128xf32>
    %c0_63 = arith.constant 0 : index
    %c0_64 = arith.constant 0 : index
    %124 = vector.load %arg14[%c0_63, %c0_64] : memref<8x128xf32, #tpu.memory_space<vmem>>, vector<8x128xf32>
    tpu.vector_store %arg14[%c0_63, %c0_64], %121 {strides = array<i32>} : memref<8x128xf32, #tpu.memory_space<vmem>>, vector<8x128xf32>,
    %c0_65 = arith.constant 0 : index
    %c0_66 = arith.constant 0 : index
    %125 = vector.load %arg13[%c0_65, %c0_66] : memref<8x128xf32, #tpu.memory_space<vmem>>, vector<8x128xf32>
    tpu.vector_store %arg13[%c0_65, %c0_66], %123 {strides = array<i32>} : memref<8x128xf32, #tpu.memory_space<vmem>>, vector<8x128xf32>,
    %126 = arith.index_cast %c2_i32 : i32 to index
    %c0_67 = arith.constant 0 : index
    %c0_68 = arith.constant 0 : index
    %127 = vector.load %arg11[%126, %c0_67, %c0_68] : memref<8x8x128xf32, #tpu.memory_space<vmem>>, vector<1x8x128xf32>
    %128 = vector.shape_cast %127 : vector<1x8x128xf32> to vector<8x128xf32>
    %129 = vector.shape_cast %123 : vector<8x128xf32> to vector<1x8x128xf32>
    tpu.vector_store %arg11[%126, %c0_67, %c0_68], %129 {strides = array<i32>} : memref<8x8x128xf32, #tpu.memory_space<vmem>>, vector<1x8x128xf32>,
    %c3_i32 = arith.constant 3 : i32
    %c0_69 = arith.constant 0 : index
    %c0_70 = arith.constant 0 : index
    %130 = vector.load %arg13[%c0_69, %c0_70] : memref<8x128xf32, #tpu.memory_space<vmem>>, vector<8x128xf32>
    %c0_71 = arith.constant 0 : index
    %c0_72 = arith.constant 0 : index
    %131 = vector.load %arg14[%c0_71, %c0_72] : memref<8x128xf32, #tpu.memory_space<vmem>>, vector<8x128xf32>
    %132 = arith.index_cast %c3_i32 : i32 to index
    %c0_73 = arith.constant 0 : index
    %c0_74 = arith.constant 0 : index
    %133 = vector.load %arg12[%132, %c0_73, %c0_74] : memref<8x8x512xf32, #tpu.memory_space<vmem>>, vector<1x8x512xf32>
    %134 = vector.shape_cast %133 : vector<1x8x512xf32> to vector<8x512xf32>
    %c0_75 = arith.constant 0 : index
    %c0_76 = arith.constant 0 : index
    %135 = vector.load %arg3[%c0_75, %c0_76] : memref<128x512xf32, #tpu.memory_space<vmem>>, vector<128x512xf32>
    %cst_77 = arith.constant dense<0.000000e+00> : vector<8x512xf32>
    %136 = tpu.matmul %130, %135, %cst_77 {dimension_numbers = #tpu.dot_dimension_numbers<[1], [0], [0], [1], [0, 0, 1, 1], [], []>} : vector<8x128xf32>, vector<128x512xf32>, vector<8x512xf32> -> vector<8x512xf32>
    %137 = arith.addf %134, %136 : vector<8x512xf32>
    %138 = vector.extract_strided_slice %137 {offsets = [0, 0], sizes = [8, 128], strides = [1, 1]} : vector<8x512xf32> to vector<8x128xf32>
    %139 = arith.negf %138 : vector<8x128xf32>
    %140 = math.exp %139 : vector<8x128xf32>
    %cst_78 = arith.constant 1.000000e+00 : f32
    %141 = vector.broadcast %cst_78 : f32 to vector<8x128xf32>
    %142 = arith.addf %141, %140 : vector<8x128xf32>
    %143 = arith.divf %141, %142 : vector<8x128xf32>
    %144 = vector.extract_strided_slice %137 {offsets = [0, 128], sizes = [8, 128], strides = [1, 1]} : vector<8x512xf32> to vector<8x128xf32>
    %145 = arith.negf %144 : vector<8x128xf32>
    %146 = math.exp %145 : vector<8x128xf32>
    %cst_79 = arith.constant 1.000000e+00 : f32
    %147 = vector.broadcast %cst_79 : f32 to vector<8x128xf32>
    %148 = arith.addf %147, %146 : vector<8x128xf32>
    %149 = arith.divf %147, %148 : vector<8x128xf32>
    %150 = vector.extract_strided_slice %137 {offsets = [0, 256], sizes = [8, 128], strides = [1, 1]} : vector<8x512xf32> to vector<8x128xf32>
    %151 = math.tanh %150 : vector<8x128xf32>
    %152 = vector.extract_strided_slice %137 {offsets = [0, 384], sizes = [8, 128], strides = [1, 1]} : vector<8x512xf32> to vector<8x128xf32>
    %153 = arith.negf %152 : vector<8x128xf32>
    %154 = math.exp %153 : vector<8x128xf32>
    %cst_80 = arith.constant 1.000000e+00 : f32
    %155 = vector.broadcast %cst_80 : f32 to vector<8x128xf32>
    %156 = arith.addf %155, %154 : vector<8x128xf32>
    %157 = arith.divf %155, %156 : vector<8x128xf32>
    %158 = arith.mulf %149, %131 : vector<8x128xf32>
    %159 = arith.mulf %143, %151 : vector<8x128xf32>
    %160 = arith.addf %158, %159 : vector<8x128xf32>
    %161 = math.tanh %160 : vector<8x128xf32>
    %162 = arith.mulf %157, %161 : vector<8x128xf32>
    %c0_81 = arith.constant 0 : index
    %c0_82 = arith.constant 0 : index
    %163 = vector.load %arg14[%c0_81, %c0_82] : memref<8x128xf32, #tpu.memory_space<vmem>>, vector<8x128xf32>
    tpu.vector_store %arg14[%c0_81, %c0_82], %160 {strides = array<i32>} : memref<8x128xf32, #tpu.memory_space<vmem>>, vector<8x128xf32>,
    %c0_83 = arith.constant 0 : index
    %c0_84 = arith.constant 0 : index
    %164 = vector.load %arg13[%c0_83, %c0_84] : memref<8x128xf32, #tpu.memory_space<vmem>>, vector<8x128xf32>
    tpu.vector_store %arg13[%c0_83, %c0_84], %162 {strides = array<i32>} : memref<8x128xf32, #tpu.memory_space<vmem>>, vector<8x128xf32>,
    %165 = arith.index_cast %c3_i32 : i32 to index
    %c0_85 = arith.constant 0 : index
    %c0_86 = arith.constant 0 : index
    %166 = vector.load %arg11[%165, %c0_85, %c0_86] : memref<8x8x128xf32, #tpu.memory_space<vmem>>, vector<1x8x128xf32>
    %167 = vector.shape_cast %166 : vector<1x8x128xf32> to vector<8x128xf32>
    %168 = vector.shape_cast %162 : vector<8x128xf32> to vector<1x8x128xf32>
    tpu.vector_store %arg11[%165, %c0_85, %c0_86], %168 {strides = array<i32>} : memref<8x8x128xf32, #tpu.memory_space<vmem>>, vector<1x8x128xf32>,
    %c4_i32 = arith.constant 4 : i32
    %c0_87 = arith.constant 0 : index
    %c0_88 = arith.constant 0 : index
    %169 = vector.load %arg13[%c0_87, %c0_88] : memref<8x128xf32, #tpu.memory_space<vmem>>, vector<8x128xf32>
    %c0_89 = arith.constant 0 : index
    %c0_90 = arith.constant 0 : index
    %170 = vector.load %arg14[%c0_89, %c0_90] : memref<8x128xf32, #tpu.memory_space<vmem>>, vector<8x128xf32>
    %171 = arith.index_cast %c4_i32 : i32 to index
    %c0_91 = arith.constant 0 : index
    %c0_92 = arith.constant 0 : index
    %172 = vector.load %arg12[%171, %c0_91, %c0_92] : memref<8x8x512xf32, #tpu.memory_space<vmem>>, vector<1x8x512xf32>
    %173 = vector.shape_cast %172 : vector<1x8x512xf32> to vector<8x512xf32>
    %c0_93 = arith.constant 0 : index
    %c0_94 = arith.constant 0 : index
    %174 = vector.load %arg3[%c0_93, %c0_94] : memref<128x512xf32, #tpu.memory_space<vmem>>, vector<128x512xf32>
    %cst_95 = arith.constant dense<0.000000e+00> : vector<8x512xf32>
    %175 = tpu.matmul %169, %174, %cst_95 {dimension_numbers = #tpu.dot_dimension_numbers<[1], [0], [0], [1], [0, 0, 1, 1], [], []>} : vector<8x128xf32>, vector<128x512xf32>, vector<8x512xf32> -> vector<8x512xf32>
    %176 = arith.addf %173, %175 : vector<8x512xf32>
    %177 = vector.extract_strided_slice %176 {offsets = [0, 0], sizes = [8, 128], strides = [1, 1]} : vector<8x512xf32> to vector<8x128xf32>
    %178 = arith.negf %177 : vector<8x128xf32>
    %179 = math.exp %178 : vector<8x128xf32>
    %cst_96 = arith.constant 1.000000e+00 : f32
    %180 = vector.broadcast %cst_96 : f32 to vector<8x128xf32>
    %181 = arith.addf %180, %179 : vector<8x128xf32>
    %182 = arith.divf %180, %181 : vector<8x128xf32>
    %183 = vector.extract_strided_slice %176 {offsets = [0, 128], sizes = [8, 128], strides = [1, 1]} : vector<8x512xf32> to vector<8x128xf32>
    %184 = arith.negf %183 : vector<8x128xf32>
    %185 = math.exp %184 : vector<8x128xf32>
    %cst_97 = arith.constant 1.000000e+00 : f32
    %186 = vector.broadcast %cst_97 : f32 to vector<8x128xf32>
    %187 = arith.addf %186, %185 : vector<8x128xf32>
    %188 = arith.divf %186, %187 : vector<8x128xf32>
    %189 = vector.extract_strided_slice %176 {offsets = [0, 256], sizes = [8, 128], strides = [1, 1]} : vector<8x512xf32> to vector<8x128xf32>
    %190 = math.tanh %189 : vector<8x128xf32>
    %191 = vector.extract_strided_slice %176 {offsets = [0, 384], sizes = [8, 128], strides = [1, 1]} : vector<8x512xf32> to vector<8x128xf32>
    %192 = arith.negf %191 : vector<8x128xf32>
    %193 = math.exp %192 : vector<8x128xf32>
    %cst_98 = arith.constant 1.000000e+00 : f32
    %194 = vector.broadcast %cst_98 : f32 to vector<8x128xf32>
    %195 = arith.addf %194, %193 : vector<8x128xf32>
    %196 = arith.divf %194, %195 : vector<8x128xf32>
    %197 = arith.mulf %188, %170 : vector<8x128xf32>
    %198 = arith.mulf %182, %190 : vector<8x128xf32>
    %199 = arith.addf %197, %198 : vector<8x128xf32>
    %200 = math.tanh %199 : vector<8x128xf32>
    %201 = arith.mulf %196, %200 : vector<8x128xf32>
    %c0_99 = arith.constant 0 : index
    %c0_100 = arith.constant 0 : index
    %202 = vector.load %arg14[%c0_99, %c0_100] : memref<8x128xf32, #tpu.memory_space<vmem>>, vector<8x128xf32>
    tpu.vector_store %arg14[%c0_99, %c0_100], %199 {strides = array<i32>} : memref<8x128xf32, #tpu.memory_space<vmem>>, vector<8x128xf32>,
    %c0_101 = arith.constant 0 : index
    %c0_102 = arith.constant 0 : index
    %203 = vector.load %arg13[%c0_101, %c0_102] : memref<8x128xf32, #tpu.memory_space<vmem>>, vector<8x128xf32>
    tpu.vector_store %arg13[%c0_101, %c0_102], %201 {strides = array<i32>} : memref<8x128xf32, #tpu.memory_space<vmem>>, vector<8x128xf32>,
    %204 = arith.index_cast %c4_i32 : i32 to index
    %c0_103 = arith.constant 0 : index
    %c0_104 = arith.constant 0 : index
    %205 = vector.load %arg11[%204, %c0_103, %c0_104] : memref<8x8x128xf32, #tpu.memory_space<vmem>>, vector<1x8x128xf32>
    %206 = vector.shape_cast %205 : vector<1x8x128xf32> to vector<8x128xf32>
    %207 = vector.shape_cast %201 : vector<8x128xf32> to vector<1x8x128xf32>
    tpu.vector_store %arg11[%204, %c0_103, %c0_104], %207 {strides = array<i32>} : memref<8x8x128xf32, #tpu.memory_space<vmem>>, vector<1x8x128xf32>,
    %c5_i32 = arith.constant 5 : i32
    %c0_105 = arith.constant 0 : index
    %c0_106 = arith.constant 0 : index
    %208 = vector.load %arg13[%c0_105, %c0_106] : memref<8x128xf32, #tpu.memory_space<vmem>>, vector<8x128xf32>
    %c0_107 = arith.constant 0 : index
    %c0_108 = arith.constant 0 : index
    %209 = vector.load %arg14[%c0_107, %c0_108] : memref<8x128xf32, #tpu.memory_space<vmem>>, vector<8x128xf32>
    %210 = arith.index_cast %c5_i32 : i32 to index
    %c0_109 = arith.constant 0 : index
    %c0_110 = arith.constant 0 : index
    %211 = vector.load %arg12[%210, %c0_109, %c0_110] : memref<8x8x512xf32, #tpu.memory_space<vmem>>, vector<1x8x512xf32>
    %212 = vector.shape_cast %211 : vector<1x8x512xf32> to vector<8x512xf32>
    %c0_111 = arith.constant 0 : index
    %c0_112 = arith.constant 0 : index
    %213 = vector.load %arg3[%c0_111, %c0_112] : memref<128x512xf32, #tpu.memory_space<vmem>>, vector<128x512xf32>
    %cst_113 = arith.constant dense<0.000000e+00> : vector<8x512xf32>
    %214 = tpu.matmul %208, %213, %cst_113 {dimension_numbers = #tpu.dot_dimension_numbers<[1], [0], [0], [1], [0, 0, 1, 1], [], []>} : vector<8x128xf32>, vector<128x512xf32>, vector<8x512xf32> -> vector<8x512xf32>
    %215 = arith.addf %212, %214 : vector<8x512xf32>
    %216 = vector.extract_strided_slice %215 {offsets = [0, 0], sizes = [8, 128], strides = [1, 1]} : vector<8x512xf32> to vector<8x128xf32>
    %217 = arith.negf %216 : vector<8x128xf32>
    %218 = math.exp %217 : vector<8x128xf32>
    %cst_114 = arith.constant 1.000000e+00 : f32
    %219 = vector.broadcast %cst_114 : f32 to vector<8x128xf32>
    %220 = arith.addf %219, %218 : vector<8x128xf32>
    %221 = arith.divf %219, %220 : vector<8x128xf32>
    %222 = vector.extract_strided_slice %215 {offsets = [0, 128], sizes = [8, 128], strides = [1, 1]} : vector<8x512xf32> to vector<8x128xf32>
    %223 = arith.negf %222 : vector<8x128xf32>
    %224 = math.exp %223 : vector<8x128xf32>
    %cst_115 = arith.constant 1.000000e+00 : f32
    %225 = vector.broadcast %cst_115 : f32 to vector<8x128xf32>
    %226 = arith.addf %225, %224 : vector<8x128xf32>
    %227 = arith.divf %225, %226 : vector<8x128xf32>
    %228 = vector.extract_strided_slice %215 {offsets = [0, 256], sizes = [8, 128], strides = [1, 1]} : vector<8x512xf32> to vector<8x128xf32>
    %229 = math.tanh %228 : vector<8x128xf32>
    %230 = vector.extract_strided_slice %215 {offsets = [0, 384], sizes = [8, 128], strides = [1, 1]} : vector<8x512xf32> to vector<8x128xf32>
    %231 = arith.negf %230 : vector<8x128xf32>
    %232 = math.exp %231 : vector<8x128xf32>
    %cst_116 = arith.constant 1.000000e+00 : f32
    %233 = vector.broadcast %cst_116 : f32 to vector<8x128xf32>
    %234 = arith.addf %233, %232 : vector<8x128xf32>
    %235 = arith.divf %233, %234 : vector<8x128xf32>
    %236 = arith.mulf %227, %209 : vector<8x128xf32>
    %237 = arith.mulf %221, %229 : vector<8x128xf32>
    %238 = arith.addf %236, %237 : vector<8x128xf32>
    %239 = math.tanh %238 : vector<8x128xf32>
    %240 = arith.mulf %235, %239 : vector<8x128xf32>
    %c0_117 = arith.constant 0 : index
    %c0_118 = arith.constant 0 : index
    %241 = vector.load %arg14[%c0_117, %c0_118] : memref<8x128xf32, #tpu.memory_space<vmem>>, vector<8x128xf32>
    tpu.vector_store %arg14[%c0_117, %c0_118], %238 {strides = array<i32>} : memref<8x128xf32, #tpu.memory_space<vmem>>, vector<8x128xf32>,
    %c0_119 = arith.constant 0 : index
    %c0_120 = arith.constant 0 : index
    %242 = vector.load %arg13[%c0_119, %c0_120] : memref<8x128xf32, #tpu.memory_space<vmem>>, vector<8x128xf32>
    tpu.vector_store %arg13[%c0_119, %c0_120], %240 {strides = array<i32>} : memref<8x128xf32, #tpu.memory_space<vmem>>, vector<8x128xf32>,
    %243 = arith.index_cast %c5_i32 : i32 to index
    %c0_121 = arith.constant 0 : index
    %c0_122 = arith.constant 0 : index
    %244 = vector.load %arg11[%243, %c0_121, %c0_122] : memref<8x8x128xf32, #tpu.memory_space<vmem>>, vector<1x8x128xf32>
    %245 = vector.shape_cast %244 : vector<1x8x128xf32> to vector<8x128xf32>
    %246 = vector.shape_cast %240 : vector<8x128xf32> to vector<1x8x128xf32>
    tpu.vector_store %arg11[%243, %c0_121, %c0_122], %246 {strides = array<i32>} : memref<8x8x128xf32, #tpu.memory_space<vmem>>, vector<1x8x128xf32>,
    %c6_i32 = arith.constant 6 : i32
    %c0_123 = arith.constant 0 : index
    %c0_124 = arith.constant 0 : index
    %247 = vector.load %arg13[%c0_123, %c0_124] : memref<8x128xf32, #tpu.memory_space<vmem>>, vector<8x128xf32>
    %c0_125 = arith.constant 0 : index
    %c0_126 = arith.constant 0 : index
    %248 = vector.load %arg14[%c0_125, %c0_126] : memref<8x128xf32, #tpu.memory_space<vmem>>, vector<8x128xf32>
    %249 = arith.index_cast %c6_i32 : i32 to index
    %c0_127 = arith.constant 0 : index
    %c0_128 = arith.constant 0 : index
    %250 = vector.load %arg12[%249, %c0_127, %c0_128] : memref<8x8x512xf32, #tpu.memory_space<vmem>>, vector<1x8x512xf32>
    %251 = vector.shape_cast %250 : vector<1x8x512xf32> to vector<8x512xf32>
    %c0_129 = arith.constant 0 : index
    %c0_130 = arith.constant 0 : index
    %252 = vector.load %arg3[%c0_129, %c0_130] : memref<128x512xf32, #tpu.memory_space<vmem>>, vector<128x512xf32>
    %cst_131 = arith.constant dense<0.000000e+00> : vector<8x512xf32>
    %253 = tpu.matmul %247, %252, %cst_131 {dimension_numbers = #tpu.dot_dimension_numbers<[1], [0], [0], [1], [0, 0, 1, 1], [], []>} : vector<8x128xf32>, vector<128x512xf32>, vector<8x512xf32> -> vector<8x512xf32>
    %254 = arith.addf %251, %253 : vector<8x512xf32>
    %255 = vector.extract_strided_slice %254 {offsets = [0, 0], sizes = [8, 128], strides = [1, 1]} : vector<8x512xf32> to vector<8x128xf32>
    %256 = arith.negf %255 : vector<8x128xf32>
    %257 = math.exp %256 : vector<8x128xf32>
    %cst_132 = arith.constant 1.000000e+00 : f32
    %258 = vector.broadcast %cst_132 : f32 to vector<8x128xf32>
    %259 = arith.addf %258, %257 : vector<8x128xf32>
    %260 = arith.divf %258, %259 : vector<8x128xf32>
    %261 = vector.extract_strided_slice %254 {offsets = [0, 128], sizes = [8, 128], strides = [1, 1]} : vector<8x512xf32> to vector<8x128xf32>
    %262 = arith.negf %261 : vector<8x128xf32>
    %263 = math.exp %262 : vector<8x128xf32>
    %cst_133 = arith.constant 1.000000e+00 : f32
    %264 = vector.broadcast %cst_133 : f32 to vector<8x128xf32>
    %265 = arith.addf %264, %263 : vector<8x128xf32>
    %266 = arith.divf %264, %265 : vector<8x128xf32>
    %267 = vector.extract_strided_slice %254 {offsets = [0, 256], sizes = [8, 128], strides = [1, 1]} : vector<8x512xf32> to vector<8x128xf32>
    %268 = math.tanh %267 : vector<8x128xf32>
    %269 = vector.extract_strided_slice %254 {offsets = [0, 384], sizes = [8, 128], strides = [1, 1]} : vector<8x512xf32> to vector<8x128xf32>
    %270 = arith.negf %269 : vector<8x128xf32>
    %271 = math.exp %270 : vector<8x128xf32>
    %cst_134 = arith.constant 1.000000e+00 : f32
    %272 = vector.broadcast %cst_134 : f32 to vector<8x128xf32>
    %273 = arith.addf %272, %271 : vector<8x128xf32>
    %274 = arith.divf %272, %273 : vector<8x128xf32>
    %275 = arith.mulf %266, %248 : vector<8x128xf32>
    %276 = arith.mulf %260, %268 : vector<8x128xf32>
    %277 = arith.addf %275, %276 : vector<8x128xf32>
    %278 = math.tanh %277 : vector<8x128xf32>
    %279 = arith.mulf %274, %278 : vector<8x128xf32>
    %c0_135 = arith.constant 0 : index
    %c0_136 = arith.constant 0 : index
    %280 = vector.load %arg14[%c0_135, %c0_136] : memref<8x128xf32, #tpu.memory_space<vmem>>, vector<8x128xf32>
    tpu.vector_store %arg14[%c0_135, %c0_136], %277 {strides = array<i32>} : memref<8x128xf32, #tpu.memory_space<vmem>>, vector<8x128xf32>,
    %c0_137 = arith.constant 0 : index
    %c0_138 = arith.constant 0 : index
    %281 = vector.load %arg13[%c0_137, %c0_138] : memref<8x128xf32, #tpu.memory_space<vmem>>, vector<8x128xf32>
    tpu.vector_store %arg13[%c0_137, %c0_138], %279 {strides = array<i32>} : memref<8x128xf32, #tpu.memory_space<vmem>>, vector<8x128xf32>,
    %282 = arith.index_cast %c6_i32 : i32 to index
    %c0_139 = arith.constant 0 : index
    %c0_140 = arith.constant 0 : index
    %283 = vector.load %arg11[%282, %c0_139, %c0_140] : memref<8x8x128xf32, #tpu.memory_space<vmem>>, vector<1x8x128xf32>
    %284 = vector.shape_cast %283 : vector<1x8x128xf32> to vector<8x128xf32>
    %285 = vector.shape_cast %279 : vector<8x128xf32> to vector<1x8x128xf32>
    tpu.vector_store %arg11[%282, %c0_139, %c0_140], %285 {strides = array<i32>} : memref<8x8x128xf32, #tpu.memory_space<vmem>>, vector<1x8x128xf32>,
    %c7_i32 = arith.constant 7 : i32
    %c0_141 = arith.constant 0 : index
    %c0_142 = arith.constant 0 : index
    %286 = vector.load %arg13[%c0_141, %c0_142] : memref<8x128xf32, #tpu.memory_space<vmem>>, vector<8x128xf32>
    %c0_143 = arith.constant 0 : index
    %c0_144 = arith.constant 0 : index
    %287 = vector.load %arg14[%c0_143, %c0_144] : memref<8x128xf32, #tpu.memory_space<vmem>>, vector<8x128xf32>
    %288 = arith.index_cast %c7_i32 : i32 to index
    %c0_145 = arith.constant 0 : index
    %c0_146 = arith.constant 0 : index
    %289 = vector.load %arg12[%288, %c0_145, %c0_146] : memref<8x8x512xf32, #tpu.memory_space<vmem>>, vector<1x8x512xf32>
    %290 = vector.shape_cast %289 : vector<1x8x512xf32> to vector<8x512xf32>
    %c0_147 = arith.constant 0 : index
    %c0_148 = arith.constant 0 : index
    %291 = vector.load %arg3[%c0_147, %c0_148] : memref<128x512xf32, #tpu.memory_space<vmem>>, vector<128x512xf32>
    %cst_149 = arith.constant dense<0.000000e+00> : vector<8x512xf32>
    %292 = tpu.matmul %286, %291, %cst_149 {dimension_numbers = #tpu.dot_dimension_numbers<[1], [0], [0], [1], [0, 0, 1, 1], [], []>} : vector<8x128xf32>, vector<128x512xf32>, vector<8x512xf32> -> vector<8x512xf32>
    %293 = arith.addf %290, %292 : vector<8x512xf32>
    %294 = vector.extract_strided_slice %293 {offsets = [0, 0], sizes = [8, 128], strides = [1, 1]} : vector<8x512xf32> to vector<8x128xf32>
    %295 = arith.negf %294 : vector<8x128xf32>
    %296 = math.exp %295 : vector<8x128xf32>
    %cst_150 = arith.constant 1.000000e+00 : f32
    %297 = vector.broadcast %cst_150 : f32 to vector<8x128xf32>
    %298 = arith.addf %297, %296 : vector<8x128xf32>
    %299 = arith.divf %297, %298 : vector<8x128xf32>
    %300 = vector.extract_strided_slice %293 {offsets = [0, 128], sizes = [8, 128], strides = [1, 1]} : vector<8x512xf32> to vector<8x128xf32>
    %301 = arith.negf %300 : vector<8x128xf32>
    %302 = math.exp %301 : vector<8x128xf32>
    %cst_151 = arith.constant 1.000000e+00 : f32
    %303 = vector.broadcast %cst_151 : f32 to vector<8x128xf32>
    %304 = arith.addf %303, %302 : vector<8x128xf32>
    %305 = arith.divf %303, %304 : vector<8x128xf32>
    %306 = vector.extract_strided_slice %293 {offsets = [0, 256], sizes = [8, 128], strides = [1, 1]} : vector<8x512xf32> to vector<8x128xf32>
    %307 = math.tanh %306 : vector<8x128xf32>
    %308 = vector.extract_strided_slice %293 {offsets = [0, 384], sizes = [8, 128], strides = [1, 1]} : vector<8x512xf32> to vector<8x128xf32>
    %309 = arith.negf %308 : vector<8x128xf32>
    %310 = math.exp %309 : vector<8x128xf32>
    %cst_152 = arith.constant 1.000000e+00 : f32
    %311 = vector.broadcast %cst_152 : f32 to vector<8x128xf32>
    %312 = arith.addf %311, %310 : vector<8x128xf32>
    %313 = arith.divf %311, %312 : vector<8x128xf32>
    %314 = arith.mulf %305, %287 : vector<8x128xf32>
    %315 = arith.mulf %299, %307 : vector<8x128xf32>
    %316 = arith.addf %314, %315 : vector<8x128xf32>
    %317 = math.tanh %316 : vector<8x128xf32>
    %318 = arith.mulf %313, %317 : vector<8x128xf32>
    %c0_153 = arith.constant 0 : index
    %c0_154 = arith.constant 0 : index
    %319 = vector.load %arg14[%c0_153, %c0_154] : memref<8x128xf32, #tpu.memory_space<vmem>>, vector<8x128xf32>
    tpu.vector_store %arg14[%c0_153, %c0_154], %316 {strides = array<i32>} : memref<8x128xf32, #tpu.memory_space<vmem>>, vector<8x128xf32>,
    %c0_155 = arith.constant 0 : index
    %c0_156 = arith.constant 0 : index
    %320 = vector.load %arg13[%c0_155, %c0_156] : memref<8x128xf32, #tpu.memory_space<vmem>>, vector<8x128xf32>
    tpu.vector_store %arg13[%c0_155, %c0_156], %318 {strides = array<i32>} : memref<8x128xf32, #tpu.memory_space<vmem>>, vector<8x128xf32>,
    %321 = arith.index_cast %c7_i32 : i32 to index
    %c0_157 = arith.constant 0 : index
    %c0_158 = arith.constant 0 : index
    %322 = vector.load %arg11[%321, %c0_157, %c0_158] : memref<8x8x128xf32, #tpu.memory_space<vmem>>, vector<1x8x128xf32>
    %323 = vector.shape_cast %322 : vector<1x8x128xf32> to vector<8x128xf32>
    %324 = vector.shape_cast %318 : vector<8x128xf32> to vector<1x8x128xf32>
    tpu.vector_store %arg11[%321, %c0_157, %c0_158], %324 {strides = array<i32>} : memref<8x8x128xf32, #tpu.memory_space<vmem>>, vector<1x8x128xf32>,
    %c8_i32 = arith.constant 8 : i32
    %c0_159 = arith.constant 0 : index
    %c0_160 = arith.constant 0 : index
    %c0_161 = arith.constant 0 : index
    %325 = vector.load %arg11[%c0_159, %c0_160, %c0_161] : memref<8x8x128xf32, #tpu.memory_space<vmem>>, vector<8x8x128xf32>
    %326 = vector.shape_cast %325 : vector<8x8x128xf32> to vector<64x128xf32>
    %c0_162 = arith.constant 0 : index
    %c0_163 = arith.constant 0 : index
    %327 = vector.load %arg5[%c0_162, %c0_163] : memref<128x512xf32, #tpu.memory_space<vmem>>, vector<128x512xf32>
    %cst_164 = arith.constant dense<0.000000e+00> : vector<64x512xf32>
    %328 = tpu.matmul %326, %327, %cst_164 {dimension_numbers = #tpu.dot_dimension_numbers<[1], [0], [0], [1], [0, 0, 1, 1], [], []>} : vector<64x128xf32>, vector<128x512xf32>, vector<64x512xf32> -> vector<64x512xf32>
    %c0_165 = arith.constant 0 : index
    %c0_166 = arith.constant 0 : index
    %329 = vector.load %arg7[%c0_165, %c0_166] : memref<1x512xf32, #tpu.memory_space<vmem>>, vector<1x512xf32>
    %330 = vector.broadcast %329 : vector<1x512xf32> to vector<64x512xf32>
    %331 = arith.addf %328, %330 : vector<64x512xf32>
    %332 = vector.shape_cast %331 : vector<64x512xf32> to vector<8x8x512xf32>
    %c0_167 = arith.constant 0 : index
    %c0_168 = arith.constant 0 : index
    %c0_169 = arith.constant 0 : index
    %333 = vector.load %arg12[%c0_167, %c0_168, %c0_169] : memref<8x8x512xf32, #tpu.memory_space<vmem>>, vector<8x8x512xf32>
    tpu.vector_store %arg12[%c0_167, %c0_168, %c0_169], %332 {strides = array<i32>} : memref<8x8x512xf32, #tpu.memory_space<vmem>>, vector<8x8x512xf32>,
    %cst_170 = arith.constant 0.000000e+00 : f32
    %334 = vector.broadcast %cst_170 : f32 to vector<8x128xf32>
    %c0_171 = arith.constant 0 : index
    %c0_172 = arith.constant 0 : index
    %335 = vector.load %arg13[%c0_171, %c0_172] : memref<8x128xf32, #tpu.memory_space<vmem>>, vector<8x128xf32>
    tpu.vector_store %arg13[%c0_171, %c0_172], %334 {strides = array<i32>} : memref<8x128xf32, #tpu.memory_space<vmem>>, vector<8x128xf32>,
    %cst_173 = arith.constant 0.000000e+00 : f32
    %336 = vector.broadcast %cst_173 : f32 to vector<8x128xf32>
    %c0_174 = arith.constant 0 : index
    %c0_175 = arith.constant 0 : index
    %337 = vector.load %arg14[%c0_174, %c0_175] : memref<8x128xf32, #tpu.memory_space<vmem>>, vector<8x128xf32>
    tpu.vector_store %arg14[%c0_174, %c0_175], %336 {strides = array<i32>} : memref<8x128xf32, #tpu.memory_space<vmem>>, vector<8x128xf32>,
    %c0_i32_176 = arith.constant 0 : i32
    %c0_177 = arith.constant 0 : index
    %c0_178 = arith.constant 0 : index
    %338 = vector.load %arg13[%c0_177, %c0_178] : memref<8x128xf32, #tpu.memory_space<vmem>>, vector<8x128xf32>
    %c0_179 = arith.constant 0 : index
    %c0_180 = arith.constant 0 : index
    %339 = vector.load %arg14[%c0_179, %c0_180] : memref<8x128xf32, #tpu.memory_space<vmem>>, vector<8x128xf32>
    %340 = arith.index_cast %c0_i32_176 : i32 to index
    %c0_181 = arith.constant 0 : index
    %c0_182 = arith.constant 0 : index
    %341 = vector.load %arg12[%340, %c0_181, %c0_182] : memref<8x8x512xf32, #tpu.memory_space<vmem>>, vector<1x8x512xf32>
    %342 = vector.shape_cast %341 : vector<1x8x512xf32> to vector<8x512xf32>
    %c0_183 = arith.constant 0 : index
    %c0_184 = arith.constant 0 : index
    %343 = vector.load %arg6[%c0_183, %c0_184] : memref<128x512xf32, #tpu.memory_space<vmem>>, vector<128x512xf32>
    %cst_185 = arith.constant dense<0.000000e+00> : vector<8x512xf32>
    %344 = tpu.matmul %338, %343, %cst_185 {dimension_numbers = #tpu.dot_dimension_numbers<[1], [0], [0], [1], [0, 0, 1, 1], [], []>} : vector<8x128xf32>, vector<128x512xf32>, vector<8x512xf32> -> vector<8x512xf32>
    %345 = arith.addf %342, %344 : vector<8x512xf32>
    %346 = vector.extract_strided_slice %345 {offsets = [0, 0], sizes = [8, 128], strides = [1, 1]} : vector<8x512xf32> to vector<8x128xf32>
    %347 = arith.negf %346 : vector<8x128xf32>
    %348 = math.exp %347 : vector<8x128xf32>
    %cst_186 = arith.constant 1.000000e+00 : f32
    %349 = vector.broadcast %cst_186 : f32 to vector<8x128xf32>
    %350 = arith.addf %349, %348 : vector<8x128xf32>
    %351 = arith.divf %349, %350 : vector<8x128xf32>
    %352 = vector.extract_strided_slice %345 {offsets = [0, 128], sizes = [8, 128], strides = [1, 1]} : vector<8x512xf32> to vector<8x128xf32>
    %353 = arith.negf %352 : vector<8x128xf32>
    %354 = math.exp %353 : vector<8x128xf32>
    %cst_187 = arith.constant 1.000000e+00 : f32
    %355 = vector.broadcast %cst_187 : f32 to vector<8x128xf32>
    %356 = arith.addf %355, %354 : vector<8x128xf32>
    %357 = arith.divf %355, %356 : vector<8x128xf32>
    %358 = vector.extract_strided_slice %345 {offsets = [0, 256], sizes = [8, 128], strides = [1, 1]} : vector<8x512xf32> to vector<8x128xf32>
    %359 = math.tanh %358 : vector<8x128xf32>
    %360 = vector.extract_strided_slice %345 {offsets = [0, 384], sizes = [8, 128], strides = [1, 1]} : vector<8x512xf32> to vector<8x128xf32>
    %361 = arith.negf %360 : vector<8x128xf32>
    %362 = math.exp %361 : vector<8x128xf32>
    %cst_188 = arith.constant 1.000000e+00 : f32
    %363 = vector.broadcast %cst_188 : f32 to vector<8x128xf32>
    %364 = arith.addf %363, %362 : vector<8x128xf32>
    %365 = arith.divf %363, %364 : vector<8x128xf32>
    %366 = arith.mulf %357, %339 : vector<8x128xf32>
    %367 = arith.mulf %351, %359 : vector<8x128xf32>
    %368 = arith.addf %366, %367 : vector<8x128xf32>
    %369 = math.tanh %368 : vector<8x128xf32>
    %370 = arith.mulf %365, %369 : vector<8x128xf32>
    %c0_189 = arith.constant 0 : index
    %c0_190 = arith.constant 0 : index
    %371 = vector.load %arg14[%c0_189, %c0_190] : memref<8x128xf32, #tpu.memory_space<vmem>>, vector<8x128xf32>
    tpu.vector_store %arg14[%c0_189, %c0_190], %368 {strides = array<i32>} : memref<8x128xf32, #tpu.memory_space<vmem>>, vector<8x128xf32>,
    %c0_191 = arith.constant 0 : index
    %c0_192 = arith.constant 0 : index
    %372 = vector.load %arg13[%c0_191, %c0_192] : memref<8x128xf32, #tpu.memory_space<vmem>>, vector<8x128xf32>
    tpu.vector_store %arg13[%c0_191, %c0_192], %370 {strides = array<i32>} : memref<8x128xf32, #tpu.memory_space<vmem>>, vector<8x128xf32>,
    %c1_i32_193 = arith.constant 1 : i32
    %c0_194 = arith.constant 0 : index
    %c0_195 = arith.constant 0 : index
    %373 = vector.load %arg13[%c0_194, %c0_195] : memref<8x128xf32, #tpu.memory_space<vmem>>, vector<8x128xf32>
    %c0_196 = arith.constant 0 : index
    %c0_197 = arith.constant 0 : index
    %374 = vector.load %arg14[%c0_196, %c0_197] : memref<8x128xf32, #tpu.memory_space<vmem>>, vector<8x128xf32>
    %375 = arith.index_cast %c1_i32_193 : i32 to index
    %c0_198 = arith.constant 0 : index
    %c0_199 = arith.constant 0 : index
    %376 = vector.load %arg12[%375, %c0_198, %c0_199] : memref<8x8x512xf32, #tpu.memory_space<vmem>>, vector<1x8x512xf32>
    %377 = vector.shape_cast %376 : vector<1x8x512xf32> to vector<8x512xf32>
    %c0_200 = arith.constant 0 : index
    %c0_201 = arith.constant 0 : index
    %378 = vector.load %arg6[%c0_200, %c0_201] : memref<128x512xf32, #tpu.memory_space<vmem>>, vector<128x512xf32>
    %cst_202 = arith.constant dense<0.000000e+00> : vector<8x512xf32>
    %379 = tpu.matmul %373, %378, %cst_202 {dimension_numbers = #tpu.dot_dimension_numbers<[1], [0], [0], [1], [0, 0, 1, 1], [], []>} : vector<8x128xf32>, vector<128x512xf32>, vector<8x512xf32> -> vector<8x512xf32>
    %380 = arith.addf %377, %379 : vector<8x512xf32>
    %381 = vector.extract_strided_slice %380 {offsets = [0, 0], sizes = [8, 128], strides = [1, 1]} : vector<8x512xf32> to vector<8x128xf32>
    %382 = arith.negf %381 : vector<8x128xf32>
    %383 = math.exp %382 : vector<8x128xf32>
    %cst_203 = arith.constant 1.000000e+00 : f32
    %384 = vector.broadcast %cst_203 : f32 to vector<8x128xf32>
    %385 = arith.addf %384, %383 : vector<8x128xf32>
    %386 = arith.divf %384, %385 : vector<8x128xf32>
    %387 = vector.extract_strided_slice %380 {offsets = [0, 128], sizes = [8, 128], strides = [1, 1]} : vector<8x512xf32> to vector<8x128xf32>
    %388 = arith.negf %387 : vector<8x128xf32>
    %389 = math.exp %388 : vector<8x128xf32>
    %cst_204 = arith.constant 1.000000e+00 : f32
    %390 = vector.broadcast %cst_204 : f32 to vector<8x128xf32>
    %391 = arith.addf %390, %389 : vector<8x128xf32>
    %392 = arith.divf %390, %391 : vector<8x128xf32>
    %393 = vector.extract_strided_slice %380 {offsets = [0, 256], sizes = [8, 128], strides = [1, 1]} : vector<8x512xf32> to vector<8x128xf32>
    %394 = math.tanh %393 : vector<8x128xf32>
    %395 = vector.extract_strided_slice %380 {offsets = [0, 384], sizes = [8, 128], strides = [1, 1]} : vector<8x512xf32> to vector<8x128xf32>
    %396 = arith.negf %395 : vector<8x128xf32>
    %397 = math.exp %396 : vector<8x128xf32>
    %cst_205 = arith.constant 1.000000e+00 : f32
    %398 = vector.broadcast %cst_205 : f32 to vector<8x128xf32>
    %399 = arith.addf %398, %397 : vector<8x128xf32>
    %400 = arith.divf %398, %399 : vector<8x128xf32>
    %401 = arith.mulf %392, %374 : vector<8x128xf32>
    %402 = arith.mulf %386, %394 : vector<8x128xf32>
    %403 = arith.addf %401, %402 : vector<8x128xf32>
    %404 = math.tanh %403 : vector<8x128xf32>
    %405 = arith.mulf %400, %404 : vector<8x128xf32>
    %c0_206 = arith.constant 0 : index
    %c0_207 = arith.constant 0 : index
    %406 = vector.load %arg14[%c0_206, %c0_207] : memref<8x128xf32, #tpu.memory_space<vmem>>, vector<8x128xf32>
    tpu.vector_store %arg14[%c0_206, %c0_207], %403 {strides = array<i32>} : memref<8x128xf32, #tpu.memory_space<vmem>>, vector<8x128xf32>,
    %c0_208 = arith.constant 0 : index
    %c0_209 = arith.constant 0 : index
    %407 = vector.load %arg13[%c0_208, %c0_209] : memref<8x128xf32, #tpu.memory_space<vmem>>, vector<8x128xf32>
    tpu.vector_store %arg13[%c0_208, %c0_209], %405 {strides = array<i32>} : memref<8x128xf32, #tpu.memory_space<vmem>>, vector<8x128xf32>,
    %c2_i32_210 = arith.constant 2 : i32
    %c0_211 = arith.constant 0 : index
    %c0_212 = arith.constant 0 : index
    %408 = vector.load %arg13[%c0_211, %c0_212] : memref<8x128xf32, #tpu.memory_space<vmem>>, vector<8x128xf32>
    %c0_213 = arith.constant 0 : index
    %c0_214 = arith.constant 0 : index
    %409 = vector.load %arg14[%c0_213, %c0_214] : memref<8x128xf32, #tpu.memory_space<vmem>>, vector<8x128xf32>
    %410 = arith.index_cast %c2_i32_210 : i32 to index
    %c0_215 = arith.constant 0 : index
    %c0_216 = arith.constant 0 : index
    %411 = vector.load %arg12[%410, %c0_215, %c0_216] : memref<8x8x512xf32, #tpu.memory_space<vmem>>, vector<1x8x512xf32>
    %412 = vector.shape_cast %411 : vector<1x8x512xf32> to vector<8x512xf32>
    %c0_217 = arith.constant 0 : index
    %c0_218 = arith.constant 0 : index
    %413 = vector.load %arg6[%c0_217, %c0_218] : memref<128x512xf32, #tpu.memory_space<vmem>>, vector<128x512xf32>
    %cst_219 = arith.constant dense<0.000000e+00> : vector<8x512xf32>
    %414 = tpu.matmul %408, %413, %cst_219 {dimension_numbers = #tpu.dot_dimension_numbers<[1], [0], [0], [1], [0, 0, 1, 1], [], []>} : vector<8x128xf32>, vector<128x512xf32>, vector<8x512xf32> -> vector<8x512xf32>
    %415 = arith.addf %412, %414 : vector<8x512xf32>
    %416 = vector.extract_strided_slice %415 {offsets = [0, 0], sizes = [8, 128], strides = [1, 1]} : vector<8x512xf32> to vector<8x128xf32>
    %417 = arith.negf %416 : vector<8x128xf32>
    %418 = math.exp %417 : vector<8x128xf32>
    %cst_220 = arith.constant 1.000000e+00 : f32
    %419 = vector.broadcast %cst_220 : f32 to vector<8x128xf32>
    %420 = arith.addf %419, %418 : vector<8x128xf32>
    %421 = arith.divf %419, %420 : vector<8x128xf32>
    %422 = vector.extract_strided_slice %415 {offsets = [0, 128], sizes = [8, 128], strides = [1, 1]} : vector<8x512xf32> to vector<8x128xf32>
    %423 = arith.negf %422 : vector<8x128xf32>
    %424 = math.exp %423 : vector<8x128xf32>
    %cst_221 = arith.constant 1.000000e+00 : f32
    %425 = vector.broadcast %cst_221 : f32 to vector<8x128xf32>
    %426 = arith.addf %425, %424 : vector<8x128xf32>
    %427 = arith.divf %425, %426 : vector<8x128xf32>
    %428 = vector.extract_strided_slice %415 {offsets = [0, 256], sizes = [8, 128], strides = [1, 1]} : vector<8x512xf32> to vector<8x128xf32>
    %429 = math.tanh %428 : vector<8x128xf32>
    %430 = vector.extract_strided_slice %415 {offsets = [0, 384], sizes = [8, 128], strides = [1, 1]} : vector<8x512xf32> to vector<8x128xf32>
    %431 = arith.negf %430 : vector<8x128xf32>
    %432 = math.exp %431 : vector<8x128xf32>
    %cst_222 = arith.constant 1.000000e+00 : f32
    %433 = vector.broadcast %cst_222 : f32 to vector<8x128xf32>
    %434 = arith.addf %433, %432 : vector<8x128xf32>
    %435 = arith.divf %433, %434 : vector<8x128xf32>
    %436 = arith.mulf %427, %409 : vector<8x128xf32>
    %437 = arith.mulf %421, %429 : vector<8x128xf32>
    %438 = arith.addf %436, %437 : vector<8x128xf32>
    %439 = math.tanh %438 : vector<8x128xf32>
    %440 = arith.mulf %435, %439 : vector<8x128xf32>
    %c0_223 = arith.constant 0 : index
    %c0_224 = arith.constant 0 : index
    %441 = vector.load %arg14[%c0_223, %c0_224] : memref<8x128xf32, #tpu.memory_space<vmem>>, vector<8x128xf32>
    tpu.vector_store %arg14[%c0_223, %c0_224], %438 {strides = array<i32>} : memref<8x128xf32, #tpu.memory_space<vmem>>, vector<8x128xf32>,
    %c0_225 = arith.constant 0 : index
    %c0_226 = arith.constant 0 : index
    %442 = vector.load %arg13[%c0_225, %c0_226] : memref<8x128xf32, #tpu.memory_space<vmem>>, vector<8x128xf32>
    tpu.vector_store %arg13[%c0_225, %c0_226], %440 {strides = array<i32>} : memref<8x128xf32, #tpu.memory_space<vmem>>, vector<8x128xf32>,
    %c3_i32_227 = arith.constant 3 : i32
    %c0_228 = arith.constant 0 : index
    %c0_229 = arith.constant 0 : index
    %443 = vector.load %arg13[%c0_228, %c0_229] : memref<8x128xf32, #tpu.memory_space<vmem>>, vector<8x128xf32>
    %c0_230 = arith.constant 0 : index
    %c0_231 = arith.constant 0 : index
    %444 = vector.load %arg14[%c0_230, %c0_231] : memref<8x128xf32, #tpu.memory_space<vmem>>, vector<8x128xf32>
    %445 = arith.index_cast %c3_i32_227 : i32 to index
    %c0_232 = arith.constant 0 : index
    %c0_233 = arith.constant 0 : index
    %446 = vector.load %arg12[%445, %c0_232, %c0_233] : memref<8x8x512xf32, #tpu.memory_space<vmem>>, vector<1x8x512xf32>
    %447 = vector.shape_cast %446 : vector<1x8x512xf32> to vector<8x512xf32>
    %c0_234 = arith.constant 0 : index
    %c0_235 = arith.constant 0 : index
    %448 = vector.load %arg6[%c0_234, %c0_235] : memref<128x512xf32, #tpu.memory_space<vmem>>, vector<128x512xf32>
    %cst_236 = arith.constant dense<0.000000e+00> : vector<8x512xf32>
    %449 = tpu.matmul %443, %448, %cst_236 {dimension_numbers = #tpu.dot_dimension_numbers<[1], [0], [0], [1], [0, 0, 1, 1], [], []>} : vector<8x128xf32>, vector<128x512xf32>, vector<8x512xf32> -> vector<8x512xf32>
    %450 = arith.addf %447, %449 : vector<8x512xf32>
    %451 = vector.extract_strided_slice %450 {offsets = [0, 0], sizes = [8, 128], strides = [1, 1]} : vector<8x512xf32> to vector<8x128xf32>
    %452 = arith.negf %451 : vector<8x128xf32>
    %453 = math.exp %452 : vector<8x128xf32>
    %cst_237 = arith.constant 1.000000e+00 : f32
    %454 = vector.broadcast %cst_237 : f32 to vector<8x128xf32>
    %455 = arith.addf %454, %453 : vector<8x128xf32>
    %456 = arith.divf %454, %455 : vector<8x128xf32>
    %457 = vector.extract_strided_slice %450 {offsets = [0, 128], sizes = [8, 128], strides = [1, 1]} : vector<8x512xf32> to vector<8x128xf32>
    %458 = arith.negf %457 : vector<8x128xf32>
    %459 = math.exp %458 : vector<8x128xf32>
    %cst_238 = arith.constant 1.000000e+00 : f32
    %460 = vector.broadcast %cst_238 : f32 to vector<8x128xf32>
    %461 = arith.addf %460, %459 : vector<8x128xf32>
    %462 = arith.divf %460, %461 : vector<8x128xf32>
    %463 = vector.extract_strided_slice %450 {offsets = [0, 256], sizes = [8, 128], strides = [1, 1]} : vector<8x512xf32> to vector<8x128xf32>
    %464 = math.tanh %463 : vector<8x128xf32>
    %465 = vector.extract_strided_slice %450 {offsets = [0, 384], sizes = [8, 128], strides = [1, 1]} : vector<8x512xf32> to vector<8x128xf32>
    %466 = arith.negf %465 : vector<8x128xf32>
    %467 = math.exp %466 : vector<8x128xf32>
    %cst_239 = arith.constant 1.000000e+00 : f32
    %468 = vector.broadcast %cst_239 : f32 to vector<8x128xf32>
    %469 = arith.addf %468, %467 : vector<8x128xf32>
    %470 = arith.divf %468, %469 : vector<8x128xf32>
    %471 = arith.mulf %462, %444 : vector<8x128xf32>
    %472 = arith.mulf %456, %464 : vector<8x128xf32>
    %473 = arith.addf %471, %472 : vector<8x128xf32>
    %474 = math.tanh %473 : vector<8x128xf32>
    %475 = arith.mulf %470, %474 : vector<8x128xf32>
    %c0_240 = arith.constant 0 : index
    %c0_241 = arith.constant 0 : index
    %476 = vector.load %arg14[%c0_240, %c0_241] : memref<8x128xf32, #tpu.memory_space<vmem>>, vector<8x128xf32>
    tpu.vector_store %arg14[%c0_240, %c0_241], %473 {strides = array<i32>} : memref<8x128xf32, #tpu.memory_space<vmem>>, vector<8x128xf32>,
    %c0_242 = arith.constant 0 : index
    %c0_243 = arith.constant 0 : index
    %477 = vector.load %arg13[%c0_242, %c0_243] : memref<8x128xf32, #tpu.memory_space<vmem>>, vector<8x128xf32>
    tpu.vector_store %arg13[%c0_242, %c0_243], %475 {strides = array<i32>} : memref<8x128xf32, #tpu.memory_space<vmem>>, vector<8x128xf32>,
    %c4_i32_244 = arith.constant 4 : i32
    %c0_245 = arith.constant 0 : index
    %c0_246 = arith.constant 0 : index
    %478 = vector.load %arg13[%c0_245, %c0_246] : memref<8x128xf32, #tpu.memory_space<vmem>>, vector<8x128xf32>
    %c0_247 = arith.constant 0 : index
    %c0_248 = arith.constant 0 : index
    %479 = vector.load %arg14[%c0_247, %c0_248] : memref<8x128xf32, #tpu.memory_space<vmem>>, vector<8x128xf32>
    %480 = arith.index_cast %c4_i32_244 : i32 to index
    %c0_249 = arith.constant 0 : index
    %c0_250 = arith.constant 0 : index
    %481 = vector.load %arg12[%480, %c0_249, %c0_250] : memref<8x8x512xf32, #tpu.memory_space<vmem>>, vector<1x8x512xf32>
    %482 = vector.shape_cast %481 : vector<1x8x512xf32> to vector<8x512xf32>
    %c0_251 = arith.constant 0 : index
    %c0_252 = arith.constant 0 : index
    %483 = vector.load %arg6[%c0_251, %c0_252] : memref<128x512xf32, #tpu.memory_space<vmem>>, vector<128x512xf32>
    %cst_253 = arith.constant dense<0.000000e+00> : vector<8x512xf32>
    %484 = tpu.matmul %478, %483, %cst_253 {dimension_numbers = #tpu.dot_dimension_numbers<[1], [0], [0], [1], [0, 0, 1, 1], [], []>} : vector<8x128xf32>, vector<128x512xf32>, vector<8x512xf32> -> vector<8x512xf32>
    %485 = arith.addf %482, %484 : vector<8x512xf32>
    %486 = vector.extract_strided_slice %485 {offsets = [0, 0], sizes = [8, 128], strides = [1, 1]} : vector<8x512xf32> to vector<8x128xf32>
    %487 = arith.negf %486 : vector<8x128xf32>
    %488 = math.exp %487 : vector<8x128xf32>
    %cst_254 = arith.constant 1.000000e+00 : f32
    %489 = vector.broadcast %cst_254 : f32 to vector<8x128xf32>
    %490 = arith.addf %489, %488 : vector<8x128xf32>
    %491 = arith.divf %489, %490 : vector<8x128xf32>
    %492 = vector.extract_strided_slice %485 {offsets = [0, 128], sizes = [8, 128], strides = [1, 1]} : vector<8x512xf32> to vector<8x128xf32>
    %493 = arith.negf %492 : vector<8x128xf32>
    %494 = math.exp %493 : vector<8x128xf32>
    %cst_255 = arith.constant 1.000000e+00 : f32
    %495 = vector.broadcast %cst_255 : f32 to vector<8x128xf32>
    %496 = arith.addf %495, %494 : vector<8x128xf32>
    %497 = arith.divf %495, %496 : vector<8x128xf32>
    %498 = vector.extract_strided_slice %485 {offsets = [0, 256], sizes = [8, 128], strides = [1, 1]} : vector<8x512xf32> to vector<8x128xf32>
    %499 = math.tanh %498 : vector<8x128xf32>
    %500 = vector.extract_strided_slice %485 {offsets = [0, 384], sizes = [8, 128], strides = [1, 1]} : vector<8x512xf32> to vector<8x128xf32>
    %501 = arith.negf %500 : vector<8x128xf32>
    %502 = math.exp %501 : vector<8x128xf32>
    %cst_256 = arith.constant 1.000000e+00 : f32
    %503 = vector.broadcast %cst_256 : f32 to vector<8x128xf32>
    %504 = arith.addf %503, %502 : vector<8x128xf32>
    %505 = arith.divf %503, %504 : vector<8x128xf32>
    %506 = arith.mulf %497, %479 : vector<8x128xf32>
    %507 = arith.mulf %491, %499 : vector<8x128xf32>
    %508 = arith.addf %506, %507 : vector<8x128xf32>
    %509 = math.tanh %508 : vector<8x128xf32>
    %510 = arith.mulf %505, %509 : vector<8x128xf32>
    %c0_257 = arith.constant 0 : index
    %c0_258 = arith.constant 0 : index
    %511 = vector.load %arg14[%c0_257, %c0_258] : memref<8x128xf32, #tpu.memory_space<vmem>>, vector<8x128xf32>
    tpu.vector_store %arg14[%c0_257, %c0_258], %508 {strides = array<i32>} : memref<8x128xf32, #tpu.memory_space<vmem>>, vector<8x128xf32>,
    %c0_259 = arith.constant 0 : index
    %c0_260 = arith.constant 0 : index
    %512 = vector.load %arg13[%c0_259, %c0_260] : memref<8x128xf32, #tpu.memory_space<vmem>>, vector<8x128xf32>
    tpu.vector_store %arg13[%c0_259, %c0_260], %510 {strides = array<i32>} : memref<8x128xf32, #tpu.memory_space<vmem>>, vector<8x128xf32>,
    %c5_i32_261 = arith.constant 5 : i32
    %c0_262 = arith.constant 0 : index
    %c0_263 = arith.constant 0 : index
    %513 = vector.load %arg13[%c0_262, %c0_263] : memref<8x128xf32, #tpu.memory_space<vmem>>, vector<8x128xf32>
    %c0_264 = arith.constant 0 : index
    %c0_265 = arith.constant 0 : index
    %514 = vector.load %arg14[%c0_264, %c0_265] : memref<8x128xf32, #tpu.memory_space<vmem>>, vector<8x128xf32>
    %515 = arith.index_cast %c5_i32_261 : i32 to index
    %c0_266 = arith.constant 0 : index
    %c0_267 = arith.constant 0 : index
    %516 = vector.load %arg12[%515, %c0_266, %c0_267] : memref<8x8x512xf32, #tpu.memory_space<vmem>>, vector<1x8x512xf32>
    %517 = vector.shape_cast %516 : vector<1x8x512xf32> to vector<8x512xf32>
    %c0_268 = arith.constant 0 : index
    %c0_269 = arith.constant 0 : index
    %518 = vector.load %arg6[%c0_268, %c0_269] : memref<128x512xf32, #tpu.memory_space<vmem>>, vector<128x512xf32>
    %cst_270 = arith.constant dense<0.000000e+00> : vector<8x512xf32>
    %519 = tpu.matmul %513, %518, %cst_270 {dimension_numbers = #tpu.dot_dimension_numbers<[1], [0], [0], [1], [0, 0, 1, 1], [], []>} : vector<8x128xf32>, vector<128x512xf32>, vector<8x512xf32> -> vector<8x512xf32>
    %520 = arith.addf %517, %519 : vector<8x512xf32>
    %521 = vector.extract_strided_slice %520 {offsets = [0, 0], sizes = [8, 128], strides = [1, 1]} : vector<8x512xf32> to vector<8x128xf32>
    %522 = arith.negf %521 : vector<8x128xf32>
    %523 = math.exp %522 : vector<8x128xf32>
    %cst_271 = arith.constant 1.000000e+00 : f32
    %524 = vector.broadcast %cst_271 : f32 to vector<8x128xf32>
    %525 = arith.addf %524, %523 : vector<8x128xf32>
    %526 = arith.divf %524, %525 : vector<8x128xf32>
    %527 = vector.extract_strided_slice %520 {offsets = [0, 128], sizes = [8, 128], strides = [1, 1]} : vector<8x512xf32> to vector<8x128xf32>
    %528 = arith.negf %527 : vector<8x128xf32>
    %529 = math.exp %528 : vector<8x128xf32>
    %cst_272 = arith.constant 1.000000e+00 : f32
    %530 = vector.broadcast %cst_272 : f32 to vector<8x128xf32>
    %531 = arith.addf %530, %529 : vector<8x128xf32>
    %532 = arith.divf %530, %531 : vector<8x128xf32>
    %533 = vector.extract_strided_slice %520 {offsets = [0, 256], sizes = [8, 128], strides = [1, 1]} : vector<8x512xf32> to vector<8x128xf32>
    %534 = math.tanh %533 : vector<8x128xf32>
    %535 = vector.extract_strided_slice %520 {offsets = [0, 384], sizes = [8, 128], strides = [1, 1]} : vector<8x512xf32> to vector<8x128xf32>
    %536 = arith.negf %535 : vector<8x128xf32>
    %537 = math.exp %536 : vector<8x128xf32>
    %cst_273 = arith.constant 1.000000e+00 : f32
    %538 = vector.broadcast %cst_273 : f32 to vector<8x128xf32>
    %539 = arith.addf %538, %537 : vector<8x128xf32>
    %540 = arith.divf %538, %539 : vector<8x128xf32>
    %541 = arith.mulf %532, %514 : vector<8x128xf32>
    %542 = arith.mulf %526, %534 : vector<8x128xf32>
    %543 = arith.addf %541, %542 : vector<8x128xf32>
    %544 = math.tanh %543 : vector<8x128xf32>
    %545 = arith.mulf %540, %544 : vector<8x128xf32>
    %c0_274 = arith.constant 0 : index
    %c0_275 = arith.constant 0 : index
    %546 = vector.load %arg14[%c0_274, %c0_275] : memref<8x128xf32, #tpu.memory_space<vmem>>, vector<8x128xf32>
    tpu.vector_store %arg14[%c0_274, %c0_275], %543 {strides = array<i32>} : memref<8x128xf32, #tpu.memory_space<vmem>>, vector<8x128xf32>,
    %c0_276 = arith.constant 0 : index
    %c0_277 = arith.constant 0 : index
    %547 = vector.load %arg13[%c0_276, %c0_277] : memref<8x128xf32, #tpu.memory_space<vmem>>, vector<8x128xf32>
    tpu.vector_store %arg13[%c0_276, %c0_277], %545 {strides = array<i32>} : memref<8x128xf32, #tpu.memory_space<vmem>>, vector<8x128xf32>,
    %c6_i32_278 = arith.constant 6 : i32
    %c0_279 = arith.constant 0 : index
    %c0_280 = arith.constant 0 : index
    %548 = vector.load %arg13[%c0_279, %c0_280] : memref<8x128xf32, #tpu.memory_space<vmem>>, vector<8x128xf32>
    %c0_281 = arith.constant 0 : index
    %c0_282 = arith.constant 0 : index
    %549 = vector.load %arg14[%c0_281, %c0_282] : memref<8x128xf32, #tpu.memory_space<vmem>>, vector<8x128xf32>
    %550 = arith.index_cast %c6_i32_278 : i32 to index
    %c0_283 = arith.constant 0 : index
    %c0_284 = arith.constant 0 : index
    %551 = vector.load %arg12[%550, %c0_283, %c0_284] : memref<8x8x512xf32, #tpu.memory_space<vmem>>, vector<1x8x512xf32>
    %552 = vector.shape_cast %551 : vector<1x8x512xf32> to vector<8x512xf32>
    %c0_285 = arith.constant 0 : index
    %c0_286 = arith.constant 0 : index
    %553 = vector.load %arg6[%c0_285, %c0_286] : memref<128x512xf32, #tpu.memory_space<vmem>>, vector<128x512xf32>
    %cst_287 = arith.constant dense<0.000000e+00> : vector<8x512xf32>
    %554 = tpu.matmul %548, %553, %cst_287 {dimension_numbers = #tpu.dot_dimension_numbers<[1], [0], [0], [1], [0, 0, 1, 1], [], []>} : vector<8x128xf32>, vector<128x512xf32>, vector<8x512xf32> -> vector<8x512xf32>
    %555 = arith.addf %552, %554 : vector<8x512xf32>
    %556 = vector.extract_strided_slice %555 {offsets = [0, 0], sizes = [8, 128], strides = [1, 1]} : vector<8x512xf32> to vector<8x128xf32>
    %557 = arith.negf %556 : vector<8x128xf32>
    %558 = math.exp %557 : vector<8x128xf32>
    %cst_288 = arith.constant 1.000000e+00 : f32
    %559 = vector.broadcast %cst_288 : f32 to vector<8x128xf32>
    %560 = arith.addf %559, %558 : vector<8x128xf32>
    %561 = arith.divf %559, %560 : vector<8x128xf32>
    %562 = vector.extract_strided_slice %555 {offsets = [0, 128], sizes = [8, 128], strides = [1, 1]} : vector<8x512xf32> to vector<8x128xf32>
    %563 = arith.negf %562 : vector<8x128xf32>
    %564 = math.exp %563 : vector<8x128xf32>
    %cst_289 = arith.constant 1.000000e+00 : f32
    %565 = vector.broadcast %cst_289 : f32 to vector<8x128xf32>
    %566 = arith.addf %565, %564 : vector<8x128xf32>
    %567 = arith.divf %565, %566 : vector<8x128xf32>
    %568 = vector.extract_strided_slice %555 {offsets = [0, 256], sizes = [8, 128], strides = [1, 1]} : vector<8x512xf32> to vector<8x128xf32>
    %569 = math.tanh %568 : vector<8x128xf32>
    %570 = vector.extract_strided_slice %555 {offsets = [0, 384], sizes = [8, 128], strides = [1, 1]} : vector<8x512xf32> to vector<8x128xf32>
    %571 = arith.negf %570 : vector<8x128xf32>
    %572 = math.exp %571 : vector<8x128xf32>
    %cst_290 = arith.constant 1.000000e+00 : f32
    %573 = vector.broadcast %cst_290 : f32 to vector<8x128xf32>
    %574 = arith.addf %573, %572 : vector<8x128xf32>
    %575 = arith.divf %573, %574 : vector<8x128xf32>
    %576 = arith.mulf %567, %549 : vector<8x128xf32>
    %577 = arith.mulf %561, %569 : vector<8x128xf32>
    %578 = arith.addf %576, %577 : vector<8x128xf32>
    %579 = math.tanh %578 : vector<8x128xf32>
    %580 = arith.mulf %575, %579 : vector<8x128xf32>
    %c0_291 = arith.constant 0 : index
    %c0_292 = arith.constant 0 : index
    %581 = vector.load %arg14[%c0_291, %c0_292] : memref<8x128xf32, #tpu.memory_space<vmem>>, vector<8x128xf32>
    tpu.vector_store %arg14[%c0_291, %c0_292], %578 {strides = array<i32>} : memref<8x128xf32, #tpu.memory_space<vmem>>, vector<8x128xf32>,
    %c0_293 = arith.constant 0 : index
    %c0_294 = arith.constant 0 : index
    %582 = vector.load %arg13[%c0_293, %c0_294] : memref<8x128xf32, #tpu.memory_space<vmem>>, vector<8x128xf32>
    tpu.vector_store %arg13[%c0_293, %c0_294], %580 {strides = array<i32>} : memref<8x128xf32, #tpu.memory_space<vmem>>, vector<8x128xf32>,
    %c7_i32_295 = arith.constant 7 : i32
    %c0_296 = arith.constant 0 : index
    %c0_297 = arith.constant 0 : index
    %583 = vector.load %arg13[%c0_296, %c0_297] : memref<8x128xf32, #tpu.memory_space<vmem>>, vector<8x128xf32>
    %c0_298 = arith.constant 0 : index
    %c0_299 = arith.constant 0 : index
    %584 = vector.load %arg14[%c0_298, %c0_299] : memref<8x128xf32, #tpu.memory_space<vmem>>, vector<8x128xf32>
    %585 = arith.index_cast %c7_i32_295 : i32 to index
    %c0_300 = arith.constant 0 : index
    %c0_301 = arith.constant 0 : index
    %586 = vector.load %arg12[%585, %c0_300, %c0_301] : memref<8x8x512xf32, #tpu.memory_space<vmem>>, vector<1x8x512xf32>
    %587 = vector.shape_cast %586 : vector<1x8x512xf32> to vector<8x512xf32>
    %c0_302 = arith.constant 0 : index
    %c0_303 = arith.constant 0 : index
    %588 = vector.load %arg6[%c0_302, %c0_303] : memref<128x512xf32, #tpu.memory_space<vmem>>, vector<128x512xf32>
    %cst_304 = arith.constant dense<0.000000e+00> : vector<8x512xf32>
    %589 = tpu.matmul %583, %588, %cst_304 {dimension_numbers = #tpu.dot_dimension_numbers<[1], [0], [0], [1], [0, 0, 1, 1], [], []>} : vector<8x128xf32>, vector<128x512xf32>, vector<8x512xf32> -> vector<8x512xf32>
    %590 = arith.addf %587, %589 : vector<8x512xf32>
    %591 = vector.extract_strided_slice %590 {offsets = [0, 0], sizes = [8, 128], strides = [1, 1]} : vector<8x512xf32> to vector<8x128xf32>
    %592 = arith.negf %591 : vector<8x128xf32>
    %593 = math.exp %592 : vector<8x128xf32>
    %cst_305 = arith.constant 1.000000e+00 : f32
    %594 = vector.broadcast %cst_305 : f32 to vector<8x128xf32>
    %595 = arith.addf %594, %593 : vector<8x128xf32>
    %596 = arith.divf %594, %595 : vector<8x128xf32>
    %597 = vector.extract_strided_slice %590 {offsets = [0, 128], sizes = [8, 128], strides = [1, 1]} : vector<8x512xf32> to vector<8x128xf32>
    %598 = arith.negf %597 : vector<8x128xf32>
    %599 = math.exp %598 : vector<8x128xf32>
    %cst_306 = arith.constant 1.000000e+00 : f32
    %600 = vector.broadcast %cst_306 : f32 to vector<8x128xf32>
    %601 = arith.addf %600, %599 : vector<8x128xf32>
    %602 = arith.divf %600, %601 : vector<8x128xf32>
    %603 = vector.extract_strided_slice %590 {offsets = [0, 256], sizes = [8, 128], strides = [1, 1]} : vector<8x512xf32> to vector<8x128xf32>
    %604 = math.tanh %603 : vector<8x128xf32>
    %605 = vector.extract_strided_slice %590 {offsets = [0, 384], sizes = [8, 128], strides = [1, 1]} : vector<8x512xf32> to vector<8x128xf32>
    %606 = arith.negf %605 : vector<8x128xf32>
    %607 = math.exp %606 : vector<8x128xf32>
    %cst_307 = arith.constant 1.000000e+00 : f32
    %608 = vector.broadcast %cst_307 : f32 to vector<8x128xf32>
    %609 = arith.addf %608, %607 : vector<8x128xf32>
    %610 = arith.divf %608, %609 : vector<8x128xf32>
    %611 = arith.mulf %602, %584 : vector<8x128xf32>
    %612 = arith.mulf %596, %604 : vector<8x128xf32>
    %613 = arith.addf %611, %612 : vector<8x128xf32>
    %614 = math.tanh %613 : vector<8x128xf32>
    %615 = arith.mulf %610, %614 : vector<8x128xf32>
    %c0_308 = arith.constant 0 : index
    %c0_309 = arith.constant 0 : index
    %616 = vector.load %arg14[%c0_308, %c0_309] : memref<8x128xf32, #tpu.memory_space<vmem>>, vector<8x128xf32>
    tpu.vector_store %arg14[%c0_308, %c0_309], %613 {strides = array<i32>} : memref<8x128xf32, #tpu.memory_space<vmem>>, vector<8x128xf32>,
    %c0_310 = arith.constant 0 : index
    %c0_311 = arith.constant 0 : index
    %617 = vector.load %arg13[%c0_310, %c0_311] : memref<8x128xf32, #tpu.memory_space<vmem>>, vector<8x128xf32>
    tpu.vector_store %arg13[%c0_310, %c0_311], %615 {strides = array<i32>} : memref<8x128xf32, #tpu.memory_space<vmem>>, vector<8x128xf32>,
    %c8_i32_312 = arith.constant 8 : i32
    %c0_313 = arith.constant 0 : index
    %c0_314 = arith.constant 0 : index
    %618 = vector.load %arg13[%c0_313, %c0_314] : memref<8x128xf32, #tpu.memory_space<vmem>>, vector<8x128xf32>
    %c0_315 = arith.constant 0 : index
    %c0_316 = arith.constant 0 : index
    %619 = vector.load %arg8[%c0_315, %c0_316] : memref<128x128xf32, #tpu.memory_space<vmem>>, vector<128x128xf32>
    %cst_317 = arith.constant dense<0.000000e+00> : vector<8x128xf32>
    %620 = tpu.matmul %618, %619, %cst_317 {dimension_numbers = #tpu.dot_dimension_numbers<[1], [0], [0], [1], [0, 0, 1, 1], [], []>} : vector<8x128xf32>, vector<128x128xf32>, vector<8x128xf32> -> vector<8x128xf32>
    %c0_318 = arith.constant 0 : index
    %c0_319 = arith.constant 0 : index
    %621 = vector.load %arg9[%c0_318, %c0_319] : memref<1x128xf32, #tpu.memory_space<vmem>>, vector<1x128xf32>
    %622 = vector.broadcast %621 : vector<1x128xf32> to vector<8x128xf32>
    %623 = arith.addf %620, %622 : vector<8x128xf32>
    %c0_320 = arith.constant 0 : index
    %c0_321 = arith.constant 0 : index
    %624 = vector.load %arg10[%c0_320, %c0_321] : memref<8x128xf32, #tpu.memory_space<vmem>>, vector<8x128xf32>
    tpu.vector_store %arg10[%c0_320, %c0_321], %623 {strides = array<i32>} : memref<8x128xf32, #tpu.memory_space<vmem>>, vector<8x128xf32>,
    return
  }
  func.func @transform_0(%arg0: i32) -> (i32, i32, i32) {
    %c0_i32 = arith.constant 0 : i32
    %c0_i32_0 = arith.constant 0 : i32
    %c0_i32_1 = arith.constant 0 : i32
    %c0_i32_2 = arith.constant 0 : i32
    return %c0_i32, %c0_i32_0, %c0_i32_1 : i32, i32, i32
  }
  func.func @transform_1(%arg0: i32) -> (i32, i32) {
    %c0_i32 = arith.constant 0 : i32
    %c0_i32_0 = arith.constant 0 : i32
    %c0_i32_1 = arith.constant 0 : i32
    return %c0_i32, %c0_i32_0 : i32, i32
  }
  func.func @transform_2(%arg0: i32) -> (i32, i32) {
    %c0_i32 = arith.constant 0 : i32
    %c0_i32_0 = arith.constant 0 : i32
    %c0_i32_1 = arith.constant 0 : i32
    return %c0_i32, %c0_i32_0 : i32, i32
  }
  func.func @transform_3(%arg0: i32) -> (i32, i32) {
    %c0_i32 = arith.constant 0 : i32
    %c0_i32_0 = arith.constant 0 : i32
    %c0_i32_1 = arith.constant 0 : i32
    return %c0_i32, %c0_i32_0 : i32, i32
  }
  func.func @transform_4(%arg0: i32) -> (i32, i32) {
    %c0_i32 = arith.constant 0 : i32
    %c0_i32_0 = arith.constant 0 : i32
    %c0_i32_1 = arith.constant 0 : i32
    return %c0_i32, %c0_i32_0 : i32, i32
  }
  func.func @transform_5(%arg0: i32) -> (i32, i32) {
    %c0_i32 = arith.constant 0 : i32
    %c0_i32_0 = arith.constant 0 : i32
    %c0_i32_1 = arith.constant 0 : i32
    return %c0_i32, %c0_i32_0 : i32, i32
  }
  func.func @transform_6(%arg0: i32) -> (i32, i32) {
    %c0_i32 = arith.constant 0 : i32
    %c0_i32_0 = arith.constant 0 : i32
    %c0_i32_1 = arith.constant 0 : i32
    return %c0_i32, %c0_i32_0 : i32, i32
  }
  func.func @transform_7(%arg0: i32) -> (i32, i32) {
    %c0_i32 = arith.constant 0 : i32
    %c0_i32_0 = arith.constant 0 : i32
    %c0_i32_1 = arith.constant 0 : i32
    return %c0_i32, %c0_i32_0 : i32, i32
  }
  func.func @transform_8(%arg0: i32) -> (i32, i32) {
    %c0_i32 = arith.constant 0 : i32
    %c0_i32_0 = arith.constant 0 : i32
    %c0_i32_1 = arith.constant 0 : i32
    return %c0_i32, %c0_i32_0 : i32, i32
  }
  func.func @transform_9(%arg0: i32) -> (i32, i32) {
    %c0_i32 = arith.constant 0 : i32
    %c0_i32_0 = arith.constant 0 : i32
    %c0_i32_1 = arith.constant 0 : i32
    return %c0_i32, %c0_i32_0 : i32, i32
  }
}

</mosaic_0001>

<llo_original>
// kernel: lstm_network_forward.1
$region0: #{lstm_network_forward.1}
  #allocation0 [shape = 'u32[]', space=smem, size = 0x4, offset = 0x4, fixed_abs, tag = 'smem constant byte address 0x4 - core index']
  #allocation1 [shape = 'u32[144,128]{1,0:T(1,128)}', space=vmem, size = 0x12000, scoped, tag = 'internal scratch']
  #allocation2 [shape = 'f32[8,8,128]{2,1,0:T(8,128)}', space=vmem, size = 0x8000, scoped, tag = 'scratch operand']
  #allocation3 [shape = 'f32[8,8,512]{2,1,0:T(8,128)}', space=vmem, size = 0x20000, scoped, tag = 'scratch operand']
  #allocation4 [shape = 'f32[8,128]{1,0:T(8,128)}', space=vmem, size = 0x1000, scoped, tag = 'scratch operand']
  #allocation5 [shape = 'f32[8,128]{1,0:T(8,128)}', space=vmem, size = 0x1000, scoped, tag = 'scratch operand']
  %s0 = inlined_call_operand.vmem [shape: f32[8,8,128], index: 0, kind: input, shape index: {}]
  %s1 = inlined_call_operand.hbm [shape: f32[128,512], index: 1, kind: input, shape index: {}]
  %s2 = inlined_call_operand.hbm [shape: f32[128,512], index: 2, kind: input, shape index: {}]
  %s3 = inlined_call_operand.vmem [shape: f32[1,512], index: 3, kind: input, shape index: {}]
  %s4 = inlined_call_operand.hbm [shape: f32[128,512], index: 4, kind: input, shape index: {}]
  %s5 = inlined_call_operand.hbm [shape: f32[128,512], index: 5, kind: input, shape index: {}]
  %s6 = inlined_call_operand.vmem [shape: f32[1,512], index: 6, kind: input, shape index: {}]
  %s7 = inlined_call_operand.hbm [shape: f32[128,128], index: 7, kind: input, shape index: {}]
  %s8 = inlined_call_operand.vmem [shape: f32[1,128], index: 8, kind: input, shape index: {}]
  %s9 = inlined_call_operand.vmem [shape: f32[8,128], index: 9, kind: output, shape index: {}]
  %s10 = sld [smem:[#allocation0]]
  $region66: #{lstm_network_forward.1} parent=0
    _
  %s12 = ssub.s32 1, %s10
  %s13 = scalar_select 0, %s12, %s10
  $region1: #{lstm_network_forward.1} parent=0
    #allocation6 [shape = 'u8[262144]{0}', space=vmem, size = 0x40000, scoped, tag = 'input window, operand 1, single buffered']
    #allocation7 [shape = 's32[1]{0}', space=sflag, size = 0x4, scoped, tag = 'scoped memory for lstm_network_forward.1']
    #allocation8 [shape = 'u8[262144]{0}', space=vmem, size = 0x40000, scoped, tag = 'input window, operand 2, single buffered']
    #allocation9 [shape = 's32[1]{0}', space=sflag, size = 0x4, scoped, tag = 'scoped memory for lstm_network_forward.1']
    #allocation10 [shape = 'u8[262144]{0}', space=vmem, size = 0x40000, scoped, tag = 'input window, operand 4, single buffered']
    #allocation11 [shape = 'u8[262144]{0}', space=vmem, size = 0x40000, scoped, tag = 'input window, operand 5, single buffered']
    #allocation12 [shape = 's32[1]{0}', space=sflag, size = 0x4, scoped, tag = 'scoped memory for lstm_network_forward.1']
    #allocation13 [shape = 'u8[65536]{0}', space=vmem, size = 0x10000, scoped, tag = 'input window, operand 7, single buffered']
    %14 = vsyncpa [#allocation7], 0
    %15 = vsyncpa [#allocation9], 0
    %16 = vsyncpa [#allocation12], 0
    // Predicated region
    $region2: #{lstm_network_forward.1} parent=1 // pred_check
      _
    $region3: #{lstm_network_forward.1} parent=1 // pred_check_branch
      %18 = sbr.rel (0) target = $region5
    $region4: #{lstm_network_forward.1} parent=1 // pred_region
      _
    $region5: #{lstm_network_forward.1} parent=1 // pred_fallthru
      _
    // Predicated region
    $region6: #{lstm_network_forward.1} parent=1 // pred_check
      _
    $region7: #{lstm_network_forward.1} parent=1 // pred_check_branch
      %20 = sbr.rel (0) target = $region9
    $region8: #{lstm_network_forward.1} parent=1 // pred_region
      %s22 = ssub.s32 8192, 8192
      %23 = vsyncadd [#allocation7], %s22
      %s24 = sshll.u32 [#allocation6], 4
      %s25 = int_to_ptr.vmem [resolvable:$true] %s24
      %30 = dma.hbm_to_vmem [thread:$0]  %s1, 8192, %s25, [#allocation7], 512, 512, 32
    $region9: #{lstm_network_forward.1} parent=1 // pred_fallthru
      _
    // Predicated region
    $region10: #{lstm_network_forward.1} parent=1 // pred_check
      _
    $region11: #{lstm_network_forward.1} parent=1 // pred_check_branch
      %32 = sbr.rel (0) target = $region13
    $region12: #{lstm_network_forward.1} parent=1 // pred_region
      %s34 = ssub.s32 8192, 8192
      %35 = vsyncadd [#allocation9], %s34
      %s36 = sshll.u32 [#allocation8], 4
      %s37 = int_to_ptr.vmem [resolvable:$true] %s36
      %42 = dma.hbm_to_vmem [thread:$0]  %s2, 8192, %s37, [#allocation9], 512, 512, 32
    $region13: #{lstm_network_forward.1} parent=1 // pred_fallthru
      _
    // Predicated region
    $region14: #{lstm_network_forward.1} parent=1 // pred_check
      _
    $region15: #{lstm_network_forward.1} parent=1 // pred_check_branch
      %44 = sbr.rel (0) target = $region17
    $region16: #{lstm_network_forward.1} parent=1 // pred_region
      _
    $region17: #{lstm_network_forward.1} parent=1 // pred_fallthru
      _
    // Predicated region
    $region18: #{lstm_network_forward.1} parent=1 // pred_check
      _
    $region19: #{lstm_network_forward.1} parent=1 // pred_check_branch
      %46 = sbr.rel (0) target = $region21
    $region20: #{lstm_network_forward.1} parent=1 // pred_region
      %s48 = ssub.s32 8192, 8192
      %49 = vsyncadd [#allocation9], %s48
      %s50 = sshll.u32 [#allocation10], 4
      %s51 = int_to_ptr.vmem [resolvable:$true] %s50
      %56 = dma.hbm_to_vmem [thread:$0]  %s4, 8192, %s51, [#allocation9], 512, 512, 32
    $region21: #{lstm_network_forward.1} parent=1 // pred_fallthru
      _
    // Predicated region
    $region22: #{lstm_network_forward.1} parent=1 // pred_check
      _
    $region23: #{lstm_network_forward.1} parent=1 // pred_check_branch
      %58 = sbr.rel (0) target = $region25
    $region24: #{lstm_network_forward.1} parent=1 // pred_region
      %s60 = ssub.s32 8192, 8192
      %61 = vsyncadd [#allocation12], %s60
      %s62 = sshll.u32 [#allocation11], 4
      %s63 = int_to_ptr.vmem [resolvable:$true] %s62
      %68 = dma.hbm_to_vmem [thread:$0]  %s5, 8192, %s63, [#allocation12], 512, 512, 32
    $region25: #{lstm_network_forward.1} parent=1 // pred_fallthru
      _
    // Predicated region
    $region26: #{lstm_network_forward.1} parent=1 // pred_check
      _
    $region27: #{lstm_network_forward.1} parent=1 // pred_check_branch
      %70 = sbr.rel (0) target = $region29
    $region28: #{lstm_network_forward.1} parent=1 // pred_region
      _
    $region29: #{lstm_network_forward.1} parent=1 // pred_fallthru
      _
    // Predicated region
    $region30: #{lstm_network_forward.1} parent=1 // pred_check
      _
    $region31: #{lstm_network_forward.1} parent=1 // pred_check_branch
      %72 = sbr.rel (0) target = $region33
    $region32: #{lstm_network_forward.1} parent=1 // pred_region
      %s74 = ssub.s32 2048, 2048
      %75 = vsyncadd [#allocation12], %s74
      %s76 = sshll.u32 [#allocation13], 4
      %s77 = int_to_ptr.vmem [resolvable:$true] %s76
      %82 = dma.hbm_to_vmem [thread:$0]  %s7, 2048, %s77, [#allocation12], 128, 128, 8
    $region33: #{lstm_network_forward.1} parent=1 // pred_fallthru
      _
    // Predicated region
    $region34: #{lstm_network_forward.1} parent=1 // pred_check
      _
    $region35: #{lstm_network_forward.1} parent=1 // pred_check_branch
      %84 = sbr.rel (0) target = $region37
    $region36: #{lstm_network_forward.1} parent=1 // pred_region
      _
    $region37: #{lstm_network_forward.1} parent=1 // pred_fallthru
      _
    // Predicated region
    $region38: #{lstm_network_forward.1} parent=1 // pred_check
      _
    $region39: #{lstm_network_forward.1} parent=1 // pred_check_branch
      %86 = sbr.rel (0) target = $region41
    $region40: #{lstm_network_forward.1} parent=1 // pred_region
      %87 = dma.done [#allocation7], 8192
    $region41: #{lstm_network_forward.1} parent=1 // pred_fallthru
      _
    // Predicated region
    $region42: #{lstm_network_forward.1} parent=1 // pred_check
      _
    $region43: #{lstm_network_forward.1} parent=1 // pred_check_branch
      %89 = sbr.rel (0) target = $region45
    $region44: #{lstm_network_forward.1} parent=1 // pred_region
      %90 = dma.done [#allocation9], 8192
    $region45: #{lstm_network_forward.1} parent=1 // pred_fallthru
      _
    // Predicated region
    $region46: #{lstm_network_forward.1} parent=1 // pred_check
      _
    $region47: #{lstm_network_forward.1} parent=1 // pred_check_branch
      %92 = sbr.rel (0) target = $region49
    $region48: #{lstm_network_forward.1} parent=1 // pred_region
      %93 = dma.done [#allocation9], 8192
    $region49: #{lstm_network_forward.1} parent=1 // pred_fallthru
      _
    // Predicated region
    $region50: #{lstm_network_forward.1} parent=1 // pred_check
      _
    $region51: #{lstm_network_forward.1} parent=1 // pred_check_branch
      %95 = sbr.rel (0) target = $region53
    $region52: #{lstm_network_forward.1} parent=1 // pred_region
      %96 = dma.done [#allocation12], 8192
    $region53: #{lstm_network_forward.1} parent=1 // pred_fallthru
      _
    // Predicated region
    $region54: #{lstm_network_forward.1} parent=1 // pred_check
      _
    $region55: #{lstm_network_forward.1} parent=1 // pred_check_branch
      %98 = sbr.rel (0) target = $region57
    $region56: #{lstm_network_forward.1} parent=1 // pred_region
      %99 = dma.done [#allocation12], 2048
    $region57: #{lstm_network_forward.1} parent=1 // pred_fallthru
      _
    %v100 = vld [vmem:[%s0] sm:$0xff]
    %v101 = vld [vmem:[%s0 + $0x8] sm:$0xff]
    %v102 = vld [vmem:[%s0 + $0x10] sm:$0xff]
    %v103 = vld [vmem:[%s0 + $0x18] sm:$0xff]
    %v104 = vld [vmem:[%s0 + $0x20] sm:$0xff]
    %v105 = vld [vmem:[%s0 + $0x28] sm:$0xff]
    %v106 = vld [vmem:[%s0 + $0x30] sm:$0xff]
    %v107 = vld [vmem:[%s0 + $0x38] sm:$0xff]
    %v108 = vld [vmem:[#allocation6] sm:$0xff]
    %v109 = vld [vmem:[#allocation6 + $0x8] sm:$0xff]
    %v110 = vld [vmem:[#allocation6 + $0x10] sm:$0xff]
    %v111 = vld [vmem:[#allocation6 + $0x18] sm:$0xff]
    %v112 = vld [vmem:[#allocation6 + $0x20] sm:$0xff]
    %v113 = vld [vmem:[#allocation6 + $0x28] sm:$0xff]
    %v114 = vld [vmem:[#allocation6 + $0x30] sm:$0xff]
    %v115 = vld [vmem:[#allocation6 + $0x38] sm:$0xff]
    %v116 = vld [vmem:[#allocation6 + $0x40] sm:$0xff]
    %v117 = vld [vmem:[#allocation6 + $0x48] sm:$0xff]
    %v118 = vld [vmem:[#allocation6 + $0x50] sm:$0xff]
    %v119 = vld [vmem:[#allocation6 + $0x58] sm:$0xff]
    %v120 = vld [vmem:[#allocation6 + $0x60] sm:$0xff]
    %v121 = vld [vmem:[#allocation6 + $0x68] sm:$0xff]
    %v122 = vld [vmem:[#allocation6 + $0x70] sm:$0xff]
    %v123 = vld [vmem:[#allocation6 + $0x78] sm:$0xff]
    %v124 = vld [vmem:[#allocation6 + $0x80] sm:$0xff]
    %v125 = vld [vmem:[#allocation6 + $0x88] sm:$0xff]
    %v126 = vld [vmem:[#allocation6 + $0x90] sm:$0xff]
    %v127 = vld [vmem:[#allocation6 + $0x98] sm:$0xff]
    %v128 = vld [vmem:[#allocation6 + $0xa0] sm:$0xff]
    %v129 = vld [vmem:[#allocation6 + $0xa8] sm:$0xff]
    %v130 = vld [vmem:[#allocation6 + $0xb0] sm:$0xff]
    %v131 = vld [vmem:[#allocation6 + $0xb8] sm:$0xff]
    %v132 = vld [vmem:[#allocation6 + $0xc0] sm:$0xff]
    %v133 = vld [vmem:[#allocation6 + $0xc8] sm:$0xff]
    %v134 = vld [vmem:[#allocation6 + $0xd0] sm:$0xff]
    %v135 = vld [vmem:[#allocation6 + $0xd8] sm:$0xff]
    %v136 = vld [vmem:[#allocation6 + $0xe0] sm:$0xff]
    %v137 = vld [vmem:[#allocation6 + $0xe8] sm:$0xff]
    %v138 = vld [vmem:[#allocation6 + $0xf0] sm:$0xff]
    %v139 = vld [vmem:[#allocation6 + $0xf8] sm:$0xff]
    %v140 = vld [vmem:[#allocation6 + $0x100] sm:$0xff]
    %v141 = vld [vmem:[#allocation6 + $0x108] sm:$0xff]
    %v142 = vld [vmem:[#allocation6 + $0x110] sm:$0xff]
    %v143 = vld [vmem:[#allocation6 + $0x118] sm:$0xff]
    %v144 = vld [vmem:[#allocation6 + $0x120] sm:$0xff]
    %v145 = vld [vmem:[#allocation6 + $0x128] sm:$0xff]
    %v146 = vld [vmem:[#allocation6 + $0x130] sm:$0xff]
    %v147 = vld [vmem:[#allocation6 + $0x138] sm:$0xff]
    %v148 = vld [vmem:[#allocation6 + $0x140] sm:$0xff]
    %v149 = vld [vmem:[#allocation6 + $0x148] sm:$0xff]
    %v150 = vld [vmem:[#allocation6 + $0x150] sm:$0xff]
    %v151 = vld [vmem:[#allocation6 + $0x158] sm:$0xff]
    %v152 = vld [vmem:[#allocation6 + $0x160] sm:$0xff]
    %v153 = vld [vmem:[#allocation6 + $0x168] sm:$0xff]
    %v154 = vld [vmem:[#allocation6 + $0x170] sm:$0xff]
    %v155 = vld [vmem:[#allocation6 + $0x178] sm:$0xff]
    %v156 = vld [vmem:[#allocation6 + $0x180] sm:$0xff]
    %v157 = vld [vmem:[#allocation6 + $0x188] sm:$0xff]
    %v158 = vld [vmem:[#allocation6 + $0x190] sm:$0xff]
    %v159 = vld [vmem:[#allocation6 + $0x198] sm:$0xff]
    %v160 = vld [vmem:[#allocation6 + $0x1a0] sm:$0xff]
    %v161 = vld [vmem:[#allocation6 + $0x1a8] sm:$0xff]
    %v162 = vld [vmem:[#allocation6 + $0x1b0] sm:$0xff]
    %v163 = vld [vmem:[#allocation6 + $0x1b8] sm:$0xff]
    %v164 = vld [vmem:[#allocation6 + $0x1c0] sm:$0xff]
    %v165 = vld [vmem:[#allocation6 + $0x1c8] sm:$0xff]
    %v166 = vld [vmem:[#allocation6 + $0x1d0] sm:$0xff]
    %v167 = vld [vmem:[#allocation6 + $0x1d8] sm:$0xff]
    %v168 = vld [vmem:[#allocation6 + $0x1e0] sm:$0xff]
    %v169 = vld [vmem:[#allocation6 + $0x1e8] sm:$0xff]
    %v170 = vld [vmem:[#allocation6 + $0x1f0] sm:$0xff]
    %v171 = vld [vmem:[#allocation6 + $0x1f8] sm:$0xff]
    %v172 = vld [vmem:[%s3] sm:$0xf]
    %v174 = vlaneseq
    %v175 = vshrl.u32 %v174, 7
    %v176 = vsub.s32 0, %v175
    %v177 = vrot.slane %v172, %v176
    %v178 = vlaneseq
    %v179 = vshrl.u32 %v178, 7
    %v180 = vsub.s32 1, %v179
    %v181 = vrot.slane %v172, %v180
    %v182 = vlaneseq
    %v183 = vshrl.u32 %v182, 7
    %v184 = vsub.s32 2, %v183
    %v185 = vrot.slane %v172, %v184
    %v186 = vlaneseq
    %v187 = vshrl.u32 %v186, 7
    %v188 = vsub.s32 3, %v187
    %v189 = vrot.slane %v172, %v188
    %194 = vmatprep.subr.mxu0 %v169
    %195 = vmatpush1.msra.mxu0 %v168
    %196 = vmatprep.subr.mxu0 %v165
    %197 = vmatpush1.msra.mxu0 %v164
    %198 = vmatprep.subr.mxu0 %v161
    %199 = vmatpush1.msra.mxu0 %v160
    %200 = vmatprep.subr.mxu0 %v157
    %201 = vmatpush1.msra.mxu0 %v156
    %202 = vmatprep.subr.mxu0 %v153
    %203 = vmatpush1.msra.mxu0 %v152
    %204 = vmatprep.subr.mxu0 %v149
    %205 = vmatpush1.msra.mxu0 %v148
    %206 = vmatprep.subr.mxu0 %v145
    %207 = vmatpush1.msra.mxu0 %v144
    %208 = vmatprep.subr.mxu0 %v141
    %209 = vmatpush1.msra.mxu0 %v140
    %210 = vmatprep.subr.mxu0 %v137
    %211 = vmatpush1.msra.mxu0 %v136
    %212 = vmatprep.subr.mxu0 %v133
    %213 = vmatpush1.msra.mxu0 %v132
    %214 = vmatprep.subr.mxu0 %v129
    %215 = vmatpush1.msra.mxu0 %v128
    %216 = vmatprep.subr.mxu0 %v125
    %217 = vmatpush1.msra.mxu0 %v124
    %218 = vmatprep.subr.mxu0 %v121
    %219 = vmatpush1.msra.mxu0 %v120
    %220 = vmatprep.subr.mxu0 %v117
    %221 = vmatpush1.msra.mxu0 %v116
    %222 = vmatprep.subr.mxu0 %v113
    %223 = vmatpush1.msra.mxu0 %v112
    %224 = vmatprep.subr.mxu0 %v109
    %225 = vmatpush1.msra.mxu0 %v108
    %226 = vmatprep.subr.mxu0 0.0
    %227 = vmatpush2.msra.mxu0 0.0
    %228 = vmatprep.subr.mxu0 0.0
    %229 = vmatpush2.msra.mxu0 0.0
    %230 = vmatprep.subr.mxu0 0.0
    %231 = vmatpush2.msra.mxu0 0.0
    %232 = vmatprep.subr.mxu0 0.0
    %233 = vmatpush2.msra.mxu0 0.0
    %234 = vmatprep.subr.mxu0 0.0
    %235 = vmatpush2.msra.mxu0 0.0
    %236 = vmatprep.subr.mxu0 0.0
    %237 = vmatpush2.msra.mxu0 0.0
    %238 = vmatprep.subr.mxu0 0.0
    %239 = vmatpush2.msra.mxu0 0.0
    %240 = vmatprep.subr.mxu0 0.0
    %241 = vmatpush2.msra.mxu0 0.0
    %242 = vmatprep.subr.mxu0 0.0
    %243 = vmatpush2.msra.mxu0 0.0
    %244 = vmatprep.subr.mxu0 0.0
    %245 = vmatpush2.msra.mxu0 0.0
    %246 = vmatprep.subr.mxu0 0.0
    %247 = vmatpush2.msra.mxu0 0.0
    %248 = vmatprep.subr.mxu0 0.0
    %249 = vmatpush2.msra.mxu0 0.0
    %250 = vmatprep.subr.mxu0 0.0
    %251 = vmatpush2.msra.mxu0 0.0
    %252 = vmatprep.subr.mxu0 0.0
    %253 = vmatpush2.msra.mxu0 0.0
    %254 = vmatprep.subr.mxu0 0.0
    %255 = vmatpush2.msra.mxu0 0.0
    %256 = vmatprep.subr.mxu0 0.0
    %257 = vmatpush2.msra.mxu0 0.0
    %258 = vmatprep.mubr.f32.mxu0 0.0
    %259 = vmatmul.mubr.f32.gmra.mxu0 %v100
    %v260 = vpop.f32.mrf.mxu0
    %v261 = vadd.f32 %v177, %v260
    %v262 = vpop.f32.mrf.mxu0
    %v263 = vadd.f32 %v181, %v262
    %264 = vmatprep.mubr.f32.mxu0 0.0
    %265 = vmatmul.mubr.f32.gmra.mxu0 %v101
    %v266 = vpop.f32.mrf.mxu0
    %v267 = vadd.f32 %v177, %v266
    %v268 = vpop.f32.mrf.mxu0
    %v269 = vadd.f32 %v181, %v268
    %270 = vmatprep.mubr.f32.mxu0 0.0
    %271 = vmatmul.mubr.f32.gmra.mxu0 %v102
    %v272 = vpop.f32.mrf.mxu0
    %v273 = vadd.f32 %v177, %v272
    %v274 = vpop.f32.mrf.mxu0
    %v275 = vadd.f32 %v181, %v274
    %276 = vmatprep.mubr.f32.mxu0 0.0
    %277 = vmatmul.mubr.f32.gmra.mxu0 %v103
    %v278 = vpop.f32.mrf.mxu0
    %v279 = vadd.f32 %v177, %v278
    %v280 = vpop.f32.mrf.mxu0
    %v281 = vadd.f32 %v181, %v280
    %282 = vmatprep.mubr.f32.mxu0 0.0
    %283 = vmatmul.mubr.f32.gmra.mxu0 %v104
    %v284 = vpop.f32.mrf.mxu0
    %v285 = vadd.f32 %v177, %v284
    %v286 = vpop.f32.mrf.mxu0
    %v287 = vadd.f32 %v181, %v286
    %288 = vmatprep.mubr.f32.mxu0 0.0
    %289 = vmatmul.mubr.f32.gmra.mxu0 %v105
    %v290 = vpop.f32.mrf.mxu0
    %v291 = vadd.f32 %v177, %v290
    %v292 = vpop.f32.mrf.mxu0
    %v293 = vadd.f32 %v181, %v292
    %294 = vmatprep.mubr.f32.mxu0 0.0
    %295 = vmatmul.mubr.f32.gmra.mxu0 %v106
    %v296 = vpop.f32.mrf.mxu0
    %v297 = vadd.f32 %v177, %v296
    %v298 = vpop.f32.mrf.mxu0
    %v299 = vadd.f32 %v181, %v298
    %300 = vmatprep.mubr.f32.mxu0 0.0
    %301 = vmatmul.mubr.f32.gmra.mxu0 %v107
    %v302 = vpop.f32.mrf.mxu0
    %v303 = vadd.f32 %v177, %v302
    %v304 = vpop.f32.mrf.mxu0
    %v305 = vadd.f32 %v181, %v304
    %306 = vdwg.mxu0
    %307 = vmatprep.subr.mxu0 %v171
    %308 = vmatpush1.msra.mxu0 %v170
    %309 = vmatprep.subr.mxu0 %v167
    %310 = vmatpush1.msra.mxu0 %v166
    %311 = vmatprep.subr.mxu0 %v163
    %312 = vmatpush1.msra.mxu0 %v162
    %313 = vmatprep.subr.mxu0 %v159
    %314 = vmatpush1.msra.mxu0 %v158
    %315 = vmatprep.subr.mxu0 %v155
    %316 = vmatpush1.msra.mxu0 %v154
    %317 = vmatprep.subr.mxu0 %v151
    %318 = vmatpush1.msra.mxu0 %v150
    %319 = vmatprep.subr.mxu0 %v147
    %320 = vmatpush1.msra.mxu0 %v146
    %321 = vmatprep.subr.mxu0 %v143
    %322 = vmatpush1.msra.mxu0 %v142
    %323 = vmatprep.subr.mxu0 %v139
    %324 = vmatpush1.msra.mxu0 %v138
    %325 = vmatprep.subr.mxu0 %v135
    %326 = vmatpush1.msra.mxu0 %v134
    %327 = vmatprep.subr.mxu0 %v131
    %328 = vmatpush1.msra.mxu0 %v130
    %329 = vmatprep.subr.mxu0 %v127
    %330 = vmatpush1.msra.mxu0 %v126
    %331 = vmatprep.subr.mxu0 %v123
    %332 = vmatpush1.msra.mxu0 %v122
    %333 = vmatprep.subr.mxu0 %v119
    %334 = vmatpush1.msra.mxu0 %v118
    %335 = vmatprep.subr.mxu0 %v115
    %336 = vmatpush1.msra.mxu0 %v114
    %337 = vmatprep.subr.mxu0 %v111
    %338 = vmatpush1.msra.mxu0 %v110
    %339 = vmatprep.subr.mxu0 0.0
    %340 = vmatpush2.msra.mxu0 0.0
    %341 = vmatprep.subr.mxu0 0.0
    %342 = vmatpush2.msra.mxu0 0.0
    %343 = vmatprep.subr.mxu0 0.0
    %344 = vmatpush2.msra.mxu0 0.0
    %345 = vmatprep.subr.mxu0 0.0
    %346 = vmatpush2.msra.mxu0 0.0
    %347 = vmatprep.subr.mxu0 0.0
    %348 = vmatpush2.msra.mxu0 0.0
    %349 = vmatprep.subr.mxu0 0.0
    %350 = vmatpush2.msra.mxu0 0.0
    %351 = vmatprep.subr.mxu0 0.0
    %352 = vmatpush2.msra.mxu0 0.0
    %353 = vmatprep.subr.mxu0 0.0
    %354 = vmatpush2.msra.mxu0 0.0
    %355 = vmatprep.subr.mxu0 0.0
    %356 = vmatpush2.msra.mxu0 0.0
    %357 = vmatprep.subr.mxu0 0.0
    %358 = vmatpush2.msra.mxu0 0.0
    %359 = vmatprep.subr.mxu0 0.0
    %360 = vmatpush2.msra.mxu0 0.0
    %361 = vmatprep.subr.mxu0 0.0
    %362 = vmatpush2.msra.mxu0 0.0
    %363 = vmatprep.subr.mxu0 0.0
    %364 = vmatpush2.msra.mxu0 0.0
    %365 = vmatprep.subr.mxu0 0.0
    %366 = vmatpush2.msra.mxu0 0.0
    %367 = vmatprep.subr.mxu0 0.0
    %368 = vmatpush2.msra.mxu0 0.0
    %369 = vmatprep.subr.mxu0 0.0
    %370 = vmatpush2.msra.mxu0 0.0
    %371 = vmatprep.mubr.f32.mxu0 0.0
    %372 = vmatmul.mubr.f32.gmra.mxu0 %v100
    %v373 = vpop.f32.mrf.mxu0
    %v374 = vadd.f32 %v185, %v373
    %v375 = vpop.f32.mrf.mxu0
    %v376 = vadd.f32 %v189, %v375
    %377 = vmatprep.mubr.f32.mxu0 0.0
    %378 = vmatmul.mubr.f32.gmra.mxu0 %v101
    %v379 = vpop.f32.mrf.mxu0
    %v380 = vadd.f32 %v185, %v379
    %v381 = vpop.f32.mrf.mxu0
    %v382 = vadd.f32 %v189, %v381
    %383 = vmatprep.mubr.f32.mxu0 0.0
    %384 = vmatmul.mubr.f32.gmra.mxu0 %v102
    %v385 = vpop.f32.mrf.mxu0
    %v386 = vadd.f32 %v185, %v385
    %v387 = vpop.f32.mrf.mxu0
    %v388 = vadd.f32 %v189, %v387
    %389 = vmatprep.mubr.f32.mxu0 0.0
    %390 = vmatmul.mubr.f32.gmra.mxu0 %v103
    %v391 = vpop.f32.mrf.mxu0
    %v392 = vadd.f32 %v185, %v391
    %v393 = vpop.f32.mrf.mxu0
    %v394 = vadd.f32 %v189, %v393
    %395 = vmatprep.mubr.f32.mxu0 0.0
    %396 = vmatmul.mubr.f32.gmra.mxu0 %v104
    %v397 = vpop.f32.mrf.mxu0
    %v398 = vadd.f32 %v185, %v397
    %v399 = vpop.f32.mrf.mxu0
    %v400 = vadd.f32 %v189, %v399
    %401 = vmatprep.mubr.f32.mxu0 0.0
    %402 = vmatmul.mubr.f32.gmra.mxu0 %v105
    %v403 = vpop.f32.mrf.mxu0
    %v404 = vadd.f32 %v185, %v403
    %v405 = vpop.f32.mrf.mxu0
    %v406 = vadd.f32 %v189, %v405
    %407 = vmatprep.mubr.f32.mxu0 0.0
    %408 = vmatmul.mubr.f32.gmra.mxu0 %v106
    %v409 = vpop.f32.mrf.mxu0
    %v410 = vadd.f32 %v185, %v409
    %v411 = vpop.f32.mrf.mxu0
    %v412 = vadd.f32 %v189, %v411
    %413 = vmatprep.mubr.f32.mxu0 0.0
    %414 = vmatmul.mubr.f32.gmra.mxu0 %v107
    %v415 = vpop.f32.mrf.mxu0
    %v416 = vadd.f32 %v185, %v415
    %v417 = vpop.f32.mrf.mxu0
    %v418 = vadd.f32 %v189, %v417
    %419 = vdwg.mxu0
    %420 = vst [vmem:[#allocation3] sm:$0xff] %v261
    %421 = vst [vmem:[#allocation3 + $0x8] sm:$0xff] %v263
    %422 = vst [vmem:[#allocation3 + $0x10] sm:$0xff] %v374
    %423 = vst [vmem:[#allocation3 + $0x18] sm:$0xff] %v376
    %424 = vst [vmem:[#allocation3 + $0x20] sm:$0xff] %v267
    %425 = vst [vmem:[#allocation3 + $0x28] sm:$0xff] %v269
    %426 = vst [vmem:[#allocation3 + $0x30] sm:$0xff] %v380
    %427 = vst [vmem:[#allocation3 + $0x38] sm:$0xff] %v382
    %428 = vst [vmem:[#allocation3 + $0x40] sm:$0xff] %v273
    %429 = vst [vmem:[#allocation3 + $0x48] sm:$0xff] %v275
    %430 = vst [vmem:[#allocation3 + $0x50] sm:$0xff] %v386
    %431 = vst [vmem:[#allocation3 + $0x58] sm:$0xff] %v388
    %432 = vst [vmem:[#allocation3 + $0x60] sm:$0xff] %v279
    %433 = vst [vmem:[#allocation3 + $0x68] sm:$0xff] %v281
    %434 = vst [vmem:[#allocation3 + $0x70] sm:$0xff] %v392
    %435 = vst [vmem:[#allocation3 + $0x78] sm:$0xff] %v394
    %436 = vst [vmem:[#allocation3 + $0x80] sm:$0xff] %v285
    %437 = vst [vmem:[#allocation3 + $0x88] sm:$0xff] %v287
    %438 = vst [vmem:[#allocation3 + $0x90] sm:$0xff] %v398
    %439 = vst [vmem:[#allocation3 + $0x98] sm:$0xff] %v400
    %440 = vst [vmem:[#allocation3 + $0xa0] sm:$0xff] %v291
    %441 = vst [vmem:[#allocation3 + $0xa8] sm:$0xff] %v293
    %442 = vst [vmem:[#allocation3 + $0xb0] sm:$0xff] %v404
    %443 = vst [vmem:[#allocation3 + $0xb8] sm:$0xff] %v406
    %444 = vst [vmem:[#allocation3 + $0xc0] sm:$0xff] %v297
    %445 = vst [vmem:[#allocation3 + $0xc8] sm:$0xff] %v299
    %446 = vst [vmem:[#allocation3 + $0xd0] sm:$0xff] %v410
    %447 = vst [vmem:[#allocation3 + $0xd8] sm:$0xff] %v412
    %448 = vst [vmem:[#allocation3 + $0xe0] sm:$0xff] %v303
    %449 = vst [vmem:[#allocation3 + $0xe8] sm:$0xff] %v305
    %450 = vst [vmem:[#allocation3 + $0xf0] sm:$0xff] %v416
    %451 = vst [vmem:[#allocation3 + $0xf8] sm:$0xff] %v418
    %452 = vst [vmem:[#allocation4] sm:$0xff] 0.0
    %453 = vst [vmem:[#allocation5] sm:$0xff] 0.0
    %v454 = vld [vmem:[#allocation4] sm:$0xff]
    %v455 = vld [vmem:[#allocation5] sm:$0xff]
    %v456 = vld [vmem:[#allocation3] sm:$0xff]
    %v457 = vld [vmem:[#allocation3 + $0x8] sm:$0xff]
    %v458 = vld [vmem:[#allocation3 + $0x10] sm:$0xff]
    %v459 = vld [vmem:[#allocation3 + $0x18] sm:$0xff]
    %v460 = vld [vmem:[#allocation8] sm:$0xff]
    %v461 = vld [vmem:[#allocation8 + $0x8] sm:$0xff]
    %v462 = vld [vmem:[#allocation8 + $0x10] sm:$0xff]
    %v463 = vld [vmem:[#allocation8 + $0x18] sm:$0xff]
    %v464 = vld [vmem:[#allocation8 + $0x20] sm:$0xff]
    %v465 = vld [vmem:[#allocation8 + $0x28] sm:$0xff]
    %v466 = vld [vmem:[#allocation8 + $0x30] sm:$0xff]
    %v467 = vld [vmem:[#allocation8 + $0x38] sm:$0xff]
    %v468 = vld [vmem:[#allocation8 + $0x40] sm:$0xff]
    %v469 = vld [vmem:[#allocation8 + $0x48] sm:$0xff]
    %v470 = vld [vmem:[#allocation8 + $0x50] sm:$0xff]
    %v471 = vld [vmem:[#allocation8 + $0x58] sm:$0xff]
    %v472 = vld [vmem:[#allocation8 + $0x60] sm:$0xff]
    %v473 = vld [vmem:[#allocation8 + $0x68] sm:$0xff]
    %v474 = vld [vmem:[#allocation8 + $0x70] sm:$0xff]
    %v475 = vld [vmem:[#allocation8 + $0x78] sm:$0xff]
    %v476 = vld [vmem:[#allocation8 + $0x80] sm:$0xff]
    %v477 = vld [vmem:[#allocation8 + $0x88] sm:$0xff]
    %v478 = vld [vmem:[#allocation8 + $0x90] sm:$0xff]
    %v479 = vld [vmem:[#allocation8 + $0x98] sm:$0xff]
    %v480 = vld [vmem:[#allocation8 + $0xa0] sm:$0xff]
    %v481 = vld [vmem:[#allocation8 + $0xa8] sm:$0xff]
    %v482 = vld [vmem:[#allocation8 + $0xb0] sm:$0xff]
    %v483 = vld [vmem:[#allocation8 + $0xb8] sm:$0xff]
    %v484 = vld [vmem:[#allocation8 + $0xc0] sm:$0xff]
    %v485 = vld [vmem:[#allocation8 + $0xc8] sm:$0xff]
    %v486 = vld [vmem:[#allocation8 + $0xd0] sm:$0xff]
    %v487 = vld [vmem:[#allocation8 + $0xd8] sm:$0xff]
    %v488 = vld [vmem:[#allocation8 + $0xe0] sm:$0xff]
    %v489 = vld [vmem:[#allocation8 + $0xe8] sm:$0xff]
    %v490 = vld [vmem:[#allocation8 + $0xf0] sm:$0xff]
    %v491 = vld [vmem:[#allocation8 + $0xf8] sm:$0xff]
    %v492 = vld [vmem:[#allocation8 + $0x100] sm:$0xff]
    %v493 = vld [vmem:[#allocation8 + $0x108] sm:$0xff]
    %v494 = vld [vmem:[#allocation8 + $0x110] sm:$0xff]
    %v495 = vld [vmem:[#allocation8 + $0x118] sm:$0xff]
    %v496 = vld [vmem:[#allocation8 + $0x120] sm:$0xff]
    %v497 = vld [vmem:[#allocation8 + $0x128] sm:$0xff]
    %v498 = vld [vmem:[#allocation8 + $0x130] sm:$0xff]
    %v499 = vld [vmem:[#allocation8 + $0x138] sm:$0xff]
    %v500 = vld [vmem:[#allocation8 + $0x140] sm:$0xff]
    %v501 = vld [vmem:[#allocation8 + $0x148] sm:$0xff]
    %v502 = vld [vmem:[#allocation8 + $0x150] sm:$0xff]
    %v503 = vld [vmem:[#allocation8 + $0x158] sm:$0xff]
    %v504 = vld [vmem:[#allocation8 + $0x160] sm:$0xff]
    %v505 = vld [vmem:[#allocation8 + $0x168] sm:$0xff]
    %v506 = vld [vmem:[#allocation8 + $0x170] sm:$0xff]
    %v507 = vld [vmem:[#allocation8 + $0x178] sm:$0xff]
    %v508 = vld [vmem:[#allocation8 + $0x180] sm:$0xff]
    %v509 = vld [vmem:[#allocation8 + $0x188] sm:$0xff]
    %v510 = vld [vmem:[#allocation8 + $0x190] sm:$0xff]
    %v511 = vld [vmem:[#allocation8 + $0x198] sm:$0xff]
    %v512 = vld [vmem:[#allocation8 + $0x1a0] sm:$0xff]
    %v513 = vld [vmem:[#allocation8 + $0x1a8] sm:$0xff]
    %v514 = vld [vmem:[#allocation8 + $0x1b0] sm:$0xff]
    %v515 = vld [vmem:[#allocation8 + $0x1b8] sm:$0xff]
    %v516 = vld [vmem:[#allocation8 + $0x1c0] sm:$0xff]
    %v517 = vld [vmem:[#allocation8 + $0x1c8] sm:$0xff]
    %v518 = vld [vmem:[#allocation8 + $0x1d0] sm:$0xff]
    %v519 = vld [vmem:[#allocation8 + $0x1d8] sm:$0xff]
    %v520 = vld [vmem:[#allocation8 + $0x1e0] sm:$0xff]
    %v521 = vld [vmem:[#allocation8 + $0x1e8] sm:$0xff]
    %v522 = vld [vmem:[#allocation8 + $0x1f0] sm:$0xff]
    %v523 = vld [vmem:[#allocation8 + $0x1f8] sm:$0xff]
    %524 = vmatprep.subr.mxu0 %v521
    %525 = vmatpush1.msra.mxu0 %v520
    %526 = vmatprep.subr.mxu0 %v517
    %527 = vmatpush1.msra.mxu0 %v516
    %528 = vmatprep.subr.mxu0 %v513
    %529 = vmatpush1.msra.mxu0 %v512
    %530 = vmatprep.subr.mxu0 %v509
    %531 = vmatpush1.msra.mxu0 %v508
    %532 = vmatprep.subr.mxu0 %v505
    %533 = vmatpush1.msra.mxu0 %v504
    %534 = vmatprep.subr.mxu0 %v501
    %535 = vmatpush1.msra.mxu0 %v500
    %536 = vmatprep.subr.mxu0 %v497
    %537 = vmatpush1.msra.mxu0 %v496
    %538 = vmatprep.subr.mxu0 %v493
    %539 = vmatpush1.msra.mxu0 %v492
    %540 = vmatprep.subr.mxu0 %v489
    %541 = vmatpush1.msra.mxu0 %v488
    %542 = vmatprep.subr.mxu0 %v485
    %543 = vmatpush1.msra.mxu0 %v484
    %544 = vmatprep.subr.mxu0 %v481
    %545 = vmatpush1.msra.mxu0 %v480
    %546 = vmatprep.subr.mxu0 %v477
    %547 = vmatpush1.msra.mxu0 %v476
    %548 = vmatprep.subr.mxu0 %v473
    %549 = vmatpush1.msra.mxu0 %v472
    %550 = vmatprep.subr.mxu0 %v469
    %551 = vmatpush1.msra.mxu0 %v468
    %552 = vmatprep.subr.mxu0 %v465
    %553 = vmatpush1.msra.mxu0 %v464
    %554 = vmatprep.subr.mxu0 %v461
    %555 = vmatpush1.msra.mxu0 %v460
    %556 = vmatprep.subr.mxu0 0.0
    %557 = vmatpush2.msra.mxu0 0.0
    %558 = vmatprep.subr.mxu0 0.0
    %559 = vmatpush2.msra.mxu0 0.0
    %560 = vmatprep.subr.mxu0 0.0
    %561 = vmatpush2.msra.mxu0 0.0
    %562 = vmatprep.subr.mxu0 0.0
    %563 = vmatpush2.msra.mxu0 0.0
    %564 = vmatprep.subr.mxu0 0.0
    %565 = vmatpush2.msra.mxu0 0.0
    %566 = vmatprep.subr.mxu0 0.0
    %567 = vmatpush2.msra.mxu0 0.0
    %568 = vmatprep.subr.mxu0 0.0
    %569 = vmatpush2.msra.mxu0 0.0
    %570 = vmatprep.subr.mxu0 0.0
    %571 = vmatpush2.msra.mxu0 0.0
    %572 = vmatprep.subr.mxu0 0.0
    %573 = vmatpush2.msra.mxu0 0.0
    %574 = vmatprep.subr.mxu0 0.0
    %575 = vmatpush2.msra.mxu0 0.0
    %576 = vmatprep.subr.mxu0 0.0
    %577 = vmatpush2.msra.mxu0 0.0
    %578 = vmatprep.subr.mxu0 0.0
    %579 = vmatpush2.msra.mxu0 0.0
    %580 = vmatprep.subr.mxu0 0.0
    %581 = vmatpush2.msra.mxu0 0.0
    %582 = vmatprep.subr.mxu0 0.0
    %583 = vmatpush2.msra.mxu0 0.0
    %584 = vmatprep.subr.mxu0 0.0
    %585 = vmatpush2.msra.mxu0 0.0
    %586 = vmatprep.subr.mxu0 0.0
    %587 = vmatpush2.msra.mxu0 0.0
    %588 = vmatprep.mubr.f32.mxu0 0.0
    %589 = vmatmul.mubr.f32.gmra.mxu0 %v454
    %v590 = vpop.f32.mrf.mxu0
    %v591 = vadd.f32 0.0, %v590
    %v592 = vpop.f32.mrf.mxu0
    %v593 = vadd.f32 0.0, %v592
    %594 = vdwg.mxu0
    %595 = vmatprep.subr.mxu0 %v523
    %596 = vmatpush1.msra.mxu0 %v522
    %597 = vmatprep.subr.mxu0 %v519
    %598 = vmatpush1.msra.mxu0 %v518
    %599 = vmatprep.subr.mxu0 %v515
    %600 = vmatpush1.msra.mxu0 %v514
    %601 = vmatprep.subr.mxu0 %v511
    %602 = vmatpush1.msra.mxu0 %v510
    %603 = vmatprep.subr.mxu0 %v507
    %604 = vmatpush1.msra.mxu0 %v506
    %605 = vmatprep.subr.mxu0 %v503
    %606 = vmatpush1.msra.mxu0 %v502
    %607 = vmatprep.subr.mxu0 %v499
    %608 = vmatpush1.msra.mxu0 %v498
    %609 = vmatprep.subr.mxu0 %v495
    %610 = vmatpush1.msra.mxu0 %v494
    %611 = vmatprep.subr.mxu0 %v491
    %612 = vmatpush1.msra.mxu0 %v490
    %613 = vmatprep.subr.mxu0 %v487
    %614 = vmatpush1.msra.mxu0 %v486
    %615 = vmatprep.subr.mxu0 %v483
    %616 = vmatpush1.msra.mxu0 %v482
    %617 = vmatprep.subr.mxu0 %v479
    %618 = vmatpush1.msra.mxu0 %v478
    %619 = vmatprep.subr.mxu0 %v475
    %620 = vmatpush1.msra.mxu0 %v474
    %621 = vmatprep.subr.mxu0 %v471
    %622 = vmatpush1.msra.mxu0 %v470
    %623 = vmatprep.subr.mxu0 %v467
    %624 = vmatpush1.msra.mxu0 %v466
    %625 = vmatprep.subr.mxu0 %v463
    %626 = vmatpush1.msra.mxu0 %v462
    %627 = vmatprep.subr.mxu0 0.0
    %628 = vmatpush2.msra.mxu0 0.0
    %629 = vmatprep.subr.mxu0 0.0
    %630 = vmatpush2.msra.mxu0 0.0
    %631 = vmatprep.subr.mxu0 0.0
    %632 = vmatpush2.msra.mxu0 0.0
    %633 = vmatprep.subr.mxu0 0.0
    %634 = vmatpush2.msra.mxu0 0.0
    %635 = vmatprep.subr.mxu0 0.0
    %636 = vmatpush2.msra.mxu0 0.0
    %637 = vmatprep.subr.mxu0 0.0
    %638 = vmatpush2.msra.mxu0 0.0
    %639 = vmatprep.subr.mxu0 0.0
    %640 = vmatpush2.msra.mxu0 0.0
    %641 = vmatprep.subr.mxu0 0.0
    %642 = vmatpush2.msra.mxu0 0.0
    %643 = vmatprep.subr.mxu0 0.0
    %644 = vmatpush2.msra.mxu0 0.0
    %645 = vmatprep.subr.mxu0 0.0
    %646 = vmatpush2.msra.mxu0 0.0
    %647 = vmatprep.subr.mxu0 0.0
    %648 = vmatpush2.msra.mxu0 0.0
    %649 = vmatprep.subr.mxu0 0.0
    %650 = vmatpush2.msra.mxu0 0.0
    %651 = vmatprep.subr.mxu0 0.0
    %652 = vmatpush2.msra.mxu0 0.0
    %653 = vmatprep.subr.mxu0 0.0
    %654 = vmatpush2.msra.mxu0 0.0
    %655 = vmatprep.subr.mxu0 0.0
    %656 = vmatpush2.msra.mxu0 0.0
    %657 = vmatprep.subr.mxu0 0.0
    %658 = vmatpush2.msra.mxu0 0.0
    %659 = vmatprep.mubr.f32.mxu0 0.0
    %660 = vmatmul.mubr.f32.gmra.mxu0 %v454
    %v661 = vpop.f32.mrf.mxu0
    %v662 = vadd.f32 0.0, %v661
    %v663 = vpop.f32.mrf.mxu0
    %v664 = vadd.f32 0.0, %v663
    %665 = vdwg.mxu0
    %v666 = vadd.f32 %v456, %v591
    %v667 = vadd.f32 %v457, %v593
    %v668 = vadd.f32 %v458, %v662
    %v669 = vadd.f32 %v459, %v664
    %v670 = vxor.u32 %v666, 2147483648
    %v671 = vmul.f32 %v670, 1.442695
    %v672 = vpow.pop %v671
    %v673 = vadd.f32 %v672, 1.0
    %v674 = vrcp.pop %v673
    %v675 = vmul.f32 1.0, %v674
    %v676 = vxor.u32 %v667, 2147483648
    %v677 = vmul.f32 %v676, 1.442695
    %v678 = vpow.pop %v677
    %v679 = vadd.f32 %v678, 1.0
    %v680 = vrcp.pop %v679
    %v681 = vmul.f32 1.0, %v680
    %v682 = vtanh.pop %v668
    %v683 = vxor.u32 %v669, 2147483648
    %v684 = vmul.f32 %v683, 1.442695
    %v685 = vpow.pop %v684
    %v686 = vadd.f32 %v685, 1.0
    %v687 = vrcp.pop %v686
    %v688 = vmul.f32 1.0, %v687
    %v689 = vmul.f32 %v681, %v455
    %v690 = vmul.f32 %v675, %v682
    %v691 = vadd.f32 %v689, %v690
    %v692 = vtanh.pop %v691
    %v693 = vmul.f32 %v688, %v692
    %694 = vst [vmem:[#allocation5] sm:$0xff] %v691
    %695 = vst [vmem:[#allocation4] sm:$0xff] %v693
    %696 = vst [vmem:[#allocation2] sm:$0xff] %v693
    %v697 = vld [vmem:[#allocation4] sm:$0xff]
    %v698 = vld [vmem:[#allocation5] sm:$0xff]
    %s699 = scalar_lea.vmem [#allocation3], 32
    %v700 = vld [vmem:[%s699] sm:$0xff]
    %v701 = vld [vmem:[%s699 + $0x8] sm:$0xff]
    %v702 = vld [vmem:[%s699 + $0x10] sm:$0xff]
    %v703 = vld [vmem:[%s699 + $0x18] sm:$0xff]
    %v704 = vld [vmem:[#allocation8] sm:$0xff]
    %v705 = vld [vmem:[#allocation8 + $0x8] sm:$0xff]
    %v706 = vld [vmem:[#allocation8 + $0x10] sm:$0xff]
    %v707 = vld [vmem:[#allocation8 + $0x18] sm:$0xff]
    %v708 = vld [vmem:[#allocation8 + $0x20] sm:$0xff]
    %v709 = vld [vmem:[#allocation8 + $0x28] sm:$0xff]
    %v710 = vld [vmem:[#allocation8 + $0x30] sm:$0xff]
    %v711 = vld [vmem:[#allocation8 + $0x38] sm:$0xff]
    %v712 = vld [vmem:[#allocation8 + $0x40] sm:$0xff]
    %v713 = vld [vmem:[#allocation8 + $0x48] sm:$0xff]
    %v714 = vld [vmem:[#allocation8 + $0x50] sm:$0xff]
    %v715 = vld [vmem:[#allocation8 + $0x58] sm:$0xff]
    %v716 = vld [vmem:[#allocation8 + $0x60] sm:$0xff]
    %v717 = vld [vmem:[#allocation8 + $0x68] sm:$0xff]
    %v718 = vld [vmem:[#allocation8 + $0x70] sm:$0xff]
    %v719 = vld [vmem:[#allocation8 + $0x78] sm:$0xff]
    %v720 = vld [vmem:[#allocation8 + $0x80] sm:$0xff]
    %v721 = vld [vmem:[#allocation8 + $0x88] sm:$0xff]
    %v722 = vld [vmem:[#allocation8 + $0x90] sm:$0xff]
    %v723 = vld [vmem:[#allocation8 + $0x98] sm:$0xff]
    %v724 = vld [vmem:[#allocation8 + $0xa0] sm:$0xff]
    %v725 = vld [vmem:[#allocation8 + $0xa8] sm:$0xff]
    %v726 = vld [vmem:[#allocation8 + $0xb0] sm:$0xff]
    %v727 = vld [vmem:[#allocation8 + $0xb8] sm:$0xff]
    %v728 = vld [vmem:[#allocation8 + $0xc0] sm:$0xff]
    %v729 = vld [vmem:[#allocation8 + $0xc8] sm:$0xff]
    %v730 = vld [vmem:[#allocation8 + $0xd0] sm:$0xff]
    %v731 = vld [vmem:[#allocation8 + $0xd8] sm:$0xff]
    %v732 = vld [vmem:[#allocation8 + $0xe0] sm:$0xff]
    %v733 = vld [vmem:[#allocation8 + $0xe8] sm:$0xff]
    %v734 = vld [vmem:[#allocation8 + $0xf0] sm:$0xff]
    %v735 = vld [vmem:[#allocation8 + $0xf8] sm:$0xff]
    %v736 = vld [vmem:[#allocation8 + $0x100] sm:$0xff]
    %v737 = vld [vmem:[#allocation8 + $0x108] sm:$0xff]
    %v738 = vld [vmem:[#allocation8 + $0x110] sm:$0xff]
    %v739 = vld [vmem:[#allocation8 + $0x118] sm:$0xff]
    %v740 = vld [vmem:[#allocation8 + $0x120] sm:$0xff]
    %v741 = vld [vmem:[#allocation8 + $0x128] sm:$0xff]
    %v742 = vld [vmem:[#allocation8 + $0x130] sm:$0xff]
    %v743 = vld [vmem:[#allocation8 + $0x138] sm:$0xff]
    %v744 = vld [vmem:[#allocation8 + $0x140] sm:$0xff]
    %v745 = vld [vmem:[#allocation8 + $0x148] sm:$0xff]
    %v746 = vld [vmem:[#allocation8 + $0x150] sm:$0xff]
    %v747 = vld [vmem:[#allocation8 + $0x158] sm:$0xff]
    %v748 = vld [vmem:[#allocation8 + $0x160] sm:$0xff]
    %v749 = vld [vmem:[#allocation8 + $0x168] sm:$0xff]
    %v750 = vld [vmem:[#allocation8 + $0x170] sm:$0xff]
    %v751 = vld [vmem:[#allocation8 + $0x178] sm:$0xff]
    %v752 = vld [vmem:[#allocation8 + $0x180] sm:$0xff]
    %v753 = vld [vmem:[#allocation8 + $0x188] sm:$0xff]
    %v754 = vld [vmem:[#allocation8 + $0x190] sm:$0xff]
    %v755 = vld [vmem:[#allocation8 + $0x198] sm:$0xff]
    %v756 = vld [vmem:[#allocation8 + $0x1a0] sm:$0xff]
    %v757 = vld [vmem:[#allocation8 + $0x1a8] sm:$0xff]
    %v758 = vld [vmem:[#allocation8 + $0x1b0] sm:$0xff]
    %v759 = vld [vmem:[#allocation8 + $0x1b8] sm:$0xff]
    %v760 = vld [vmem:[#allocation8 + $0x1c0] sm:$0xff]
    %v761 = vld [vmem:[#allocation8 + $0x1c8] sm:$0xff]
    %v762 = vld [vmem:[#allocation8 + $0x1d0] sm:$0xff]
    %v763 = vld [vmem:[#allocation8 + $0x1d8] sm:$0xff]
    %v764 = vld [vmem:[#allocation8 + $0x1e0] sm:$0xff]
    %v765 = vld [vmem:[#allocation8 + $0x1e8] sm:$0xff]
    %v766 = vld [vmem:[#allocation8 + $0x1f0] sm:$0xff]
    %v767 = vld [vmem:[#allocation8 + $0x1f8] sm:$0xff]
    %768 = vmatprep.subr.mxu0 %v765
    %769 = vmatpush1.msra.mxu0 %v764
    %770 = vmatprep.subr.mxu0 %v761
    %771 = vmatpush1.msra.mxu0 %v760
    %772 = vmatprep.subr.mxu0 %v757
    %773 = vmatpush1.msra.mxu0 %v756
    %774 = vmatprep.subr.mxu0 %v753
    %775 = vmatpush1.msra.mxu0 %v752
    %776 = vmatprep.subr.mxu0 %v749
    %777 = vmatpush1.msra.mxu0 %v748
    %778 = vmatprep.subr.mxu0 %v745
    %779 = vmatpush1.msra.mxu0 %v744
    %780 = vmatprep.subr.mxu0 %v741
    %781 = vmatpush1.msra.mxu0 %v740
    %782 = vmatprep.subr.mxu0 %v737
    %783 = vmatpush1.msra.mxu0 %v736
    %784 = vmatprep.subr.mxu0 %v733
    %785 = vmatpush1.msra.mxu0 %v732
    %786 = vmatprep.subr.mxu0 %v729
    %787 = vmatpush1.msra.mxu0 %v728
    %788 = vmatprep.subr.mxu0 %v725
    %789 = vmatpush1.msra.mxu0 %v724
    %790 = vmatprep.subr.mxu0 %v721
    %791 = vmatpush1.msra.mxu0 %v720
    %792 = vmatprep.subr.mxu0 %v717
    %793 = vmatpush1.msra.mxu0 %v716
    %794 = vmatprep.subr.mxu0 %v713
    %795 = vmatpush1.msra.mxu0 %v712
    %796 = vmatprep.subr.mxu0 %v709
    %797 = vmatpush1.msra.mxu0 %v708
    %798 = vmatprep.subr.mxu0 %v705
    %799 = vmatpush1.msra.mxu0 %v704
    %800 = vmatprep.subr.mxu0 0.0
    %801 = vmatpush2.msra.mxu0 0.0
    %802 = vmatprep.subr.mxu0 0.0
    %803 = vmatpush2.msra.mxu0 0.0
    %804 = vmatprep.subr.mxu0 0.0
    %805 = vmatpush2.msra.mxu0 0.0
    %806 = vmatprep.subr.mxu0 0.0
    %807 = vmatpush2.msra.mxu0 0.0
    %808 = vmatprep.subr.mxu0 0.0
    %809 = vmatpush2.msra.mxu0 0.0
    %810 = vmatprep.subr.mxu0 0.0
    %811 = vmatpush2.msra.mxu0 0.0
    %812 = vmatprep.subr.mxu0 0.0
    %813 = vmatpush2.msra.mxu0 0.0
    %814 = vmatprep.subr.mxu0 0.0
    %815 = vmatpush2.msra.mxu0 0.0
    %816 = vmatprep.subr.mxu0 0.0
    %817 = vmatpush2.msra.mxu0 0.0
    %818 = vmatprep.subr.mxu0 0.0
    %819 = vmatpush2.msra.mxu0 0.0
    %820 = vmatprep.subr.mxu0 0.0
    %821 = vmatpush2.msra.mxu0 0.0
    %822 = vmatprep.subr.mxu0 0.0
    %823 = vmatpush2.msra.mxu0 0.0
    %824 = vmatprep.subr.mxu0 0.0
    %825 = vmatpush2.msra.mxu0 0.0
    %826 = vmatprep.subr.mxu0 0.0
    %827 = vmatpush2.msra.mxu0 0.0
    %828 = vmatprep.subr.mxu0 0.0
    %829 = vmatpush2.msra.mxu0 0.0
    %830 = vmatprep.subr.mxu0 0.0
    %831 = vmatpush2.msra.mxu0 0.0
    %832 = vmatprep.mubr.f32.mxu0 0.0
    %833 = vmatmul.mubr.f32.gmra.mxu0 %v697
    %v834 = vpop.f32.mrf.mxu0
    %v835 = vadd.f32 0.0, %v834
    %v836 = vpop.f32.mrf.mxu0
    %v837 = vadd.f32 0.0, %v836
    %838 = vdwg.mxu0
    %839 = vmatprep.subr.mxu0 %v767
    %840 = vmatpush1.msra.mxu0 %v766
    %841 = vmatprep.subr.mxu0 %v763
    %842 = vmatpush1.msra.mxu0 %v762
    %843 = vmatprep.subr.mxu0 %v759
    %844 = vmatpush1.msra.mxu0 %v758
    %845 = vmatprep.subr.mxu0 %v755
    %846 = vmatpush1.msra.mxu0 %v754
    %847 = vmatprep.subr.mxu0 %v751
    %848 = vmatpush1.msra.mxu0 %v750
    %849 = vmatprep.subr.mxu0 %v747
    %850 = vmatpush1.msra.mxu0 %v746
    %851 = vmatprep.subr.mxu0 %v743
    %852 = vmatpush1.msra.mxu0 %v742
    %853 = vmatprep.subr.mxu0 %v739
    %854 = vmatpush1.msra.mxu0 %v738
    %855 = vmatprep.subr.mxu0 %v735
    %856 = vmatpush1.msra.mxu0 %v734
    %857 = vmatprep.subr.mxu0 %v731
    %858 = vmatpush1.msra.mxu0 %v730
    %859 = vmatprep.subr.mxu0 %v727
    %860 = vmatpush1.msra.mxu0 %v726
    %861 = vmatprep.subr.mxu0 %v723
    %862 = vmatpush1.msra.mxu0 %v722
    %863 = vmatprep.subr.mxu0 %v719
    %864 = vmatpush1.msra.mxu0 %v718
    %865 = vmatprep.subr.mxu0 %v715
    %866 = vmatpush1.msra.mxu0 %v714
    %867 = vmatprep.subr.mxu0 %v711
    %868 = vmatpush1.msra.mxu0 %v710
    %869 = vmatprep.subr.mxu0 %v707
    %870 = vmatpush1.msra.mxu0 %v706
    %871 = vmatprep.subr.mxu0 0.0
    %872 = vmatpush2.msra.mxu0 0.0
    %873 = vmatprep.subr.mxu0 0.0
    %874 = vmatpush2.msra.mxu0 0.0
    %875 = vmatprep.subr.mxu0 0.0
    %876 = vmatpush2.msra.mxu0 0.0
    %877 = vmatprep.subr.mxu0 0.0
    %878 = vmatpush2.msra.mxu0 0.0
    %879 = vmatprep.subr.mxu0 0.0
    %880 = vmatpush2.msra.mxu0 0.0
    %881 = vmatprep.subr.mxu0 0.0
    %882 = vmatpush2.msra.mxu0 0.0
    %883 = vmatprep.subr.mxu0 0.0
    %884 = vmatpush2.msra.mxu0 0.0
    %885 = vmatprep.subr.mxu0 0.0
    %886 = vmatpush2.msra.mxu0 0.0
    %887 = vmatprep.subr.mxu0 0.0
    %888 = vmatpush2.msra.mxu0 0.0
    %889 = vmatprep.subr.mxu0 0.0
    %890 = vmatpush2.msra.mxu0 0.0
    %891 = vmatprep.subr.mxu0 0.0
    %892 = vmatpush2.msra.mxu0 0.0
    %893 = vmatprep.subr.mxu0 0.0
    %894 = vmatpush2.msra.mxu0 0.0
    %895 = vmatprep.subr.mxu0 0.0
    %896 = vmatpush2.msra.mxu0 0.0
    %897 = vmatprep.subr.mxu0 0.0
    %898 = vmatpush2.msra.mxu0 0.0
    %899 = vmatprep.subr.mxu0 0.0
    %900 = vmatpush2.msra.mxu0 0.0
    %901 = vmatprep.subr.mxu0 0.0
    %902 = vmatpush2.msra.mxu0 0.0
    %903 = vmatprep.mubr.f32.mxu0 0.0
    %904 = vmatmul.mubr.f32.gmra.mxu0 %v697
    %v905 = vpop.f32.mrf.mxu0
    %v906 = vadd.f32 0.0, %v905
    %v907 = vpop.f32.mrf.mxu0
    %v908 = vadd.f32 0.0, %v907
    %909 = vdwg.mxu0
    %v910 = vadd.f32 %v700, %v835
    %v911 = vadd.f32 %v701, %v837
    %v912 = vadd.f32 %v702, %v906
    %v913 = vadd.f32 %v703, %v908
    %v914 = vxor.u32 %v910, 2147483648
    %v915 = vmul.f32 %v914, 1.442695
    %v916 = vpow.pop %v915
    %v917 = vadd.f32 %v916, 1.0
    %v918 = vrcp.pop %v917
    %v919 = vmul.f32 1.0, %v918
    %v920 = vxor.u32 %v911, 2147483648
    %v921 = vmul.f32 %v920, 1.442695
    %v922 = vpow.pop %v921
    %v923 = vadd.f32 %v922, 1.0
    %v924 = vrcp.pop %v923
    %v925 = vmul.f32 1.0, %v924
    %v926 = vtanh.pop %v912
    %v927 = vxor.u32 %v913, 2147483648
    %v928 = vmul.f32 %v927, 1.442695
    %v929 = vpow.pop %v928
    %v930 = vadd.f32 %v929, 1.0
    %v931 = vrcp.pop %v930
    %v932 = vmul.f32 1.0, %v931
    %v933 = vmul.f32 %v925, %v698
    %v934 = vmul.f32 %v919, %v926
    %v935 = vadd.f32 %v933, %v934
    %v936 = vtanh.pop %v935
    %v937 = vmul.f32 %v932, %v936
    %938 = vst [vmem:[#allocation5] sm:$0xff] %v935
    %939 = vst [vmem:[#allocation4] sm:$0xff] %v937
    %s940 = scalar_lea.vmem [#allocation2], 8
    %941 = vst [vmem:[%s940] sm:$0xff] %v937
    %v942 = vld [vmem:[#allocation4] sm:$0xff]
    %v943 = vld [vmem:[#allocation5] sm:$0xff]
    %s944 = scalar_lea.vmem [#allocation3], 64
    %v945 = vld [vmem:[%s944] sm:$0xff]
    %v946 = vld [vmem:[%s944 + $0x8] sm:$0xff]
    %v947 = vld [vmem:[%s944 + $0x10] sm:$0xff]
    %v948 = vld [vmem:[%s944 + $0x18] sm:$0xff]
    %v949 = vld [vmem:[#allocation8] sm:$0xff]
    %v950 = vld [vmem:[#allocation8 + $0x8] sm:$0xff]
    %v951 = vld [vmem:[#allocation8 + $0x10] sm:$0xff]
    %v952 = vld [vmem:[#allocation8 + $0x18] sm:$0xff]
    %v953 = vld [vmem:[#allocation8 + $0x20] sm:$0xff]
    %v954 = vld [vmem:[#allocation8 + $0x28] sm:$0xff]
    %v955 = vld [vmem:[#allocation8 + $0x30] sm:$0xff]
    %v956 = vld [vmem:[#allocation8 + $0x38] sm:$0xff]
    %v957 = vld [vmem:[#allocation8 + $0x40] sm:$0xff]
    %v958 = vld [vmem:[#allocation8 + $0x48] sm:$0xff]
    %v959 = vld [vmem:[#allocation8 + $0x50] sm:$0xff]
    %v960 = vld [vmem:[#allocation8 + $0x58] sm:$0xff]
    %v961 = vld [vmem:[#allocation8 + $0x60] sm:$0xff]
    %v962 = vld [vmem:[#allocation8 + $0x68] sm:$0xff]
    %v963 = vld [vmem:[#allocation8 + $0x70] sm:$0xff]
    %v964 = vld [vmem:[#allocation8 + $0x78] sm:$0xff]
    %v965 = vld [vmem:[#allocation8 + $0x80] sm:$0xff]
    %v966 = vld [vmem:[#allocation8 + $0x88] sm:$0xff]
    %v967 = vld [vmem:[#allocation8 + $0x90] sm:$0xff]
    %v968 = vld [vmem:[#allocation8 + $0x98] sm:$0xff]
    %v969 = vld [vmem:[#allocation8 + $0xa0] sm:$0xff]
    %v970 = vld [vmem:[#allocation8 + $0xa8] sm:$0xff]
    %v971 = vld [vmem:[#allocation8 + $0xb0] sm:$0xff]
    %v972 = vld [vmem:[#allocation8 + $0xb8] sm:$0xff]
    %v973 = vld [vmem:[#allocation8 + $0xc0] sm:$0xff]
    %v974 = vld [vmem:[#allocation8 + $0xc8] sm:$0xff]
    %v975 = vld [vmem:[#allocation8 + $0xd0] sm:$0xff]
    %v976 = vld [vmem:[#allocation8 + $0xd8] sm:$0xff]
    %v977 = vld [vmem:[#allocation8 + $0xe0] sm:$0xff]
    %v978 = vld [vmem:[#allocation8 + $0xe8] sm:$0xff]
    %v979 = vld [vmem:[#allocation8 + $0xf0] sm:$0xff]
    %v980 = vld [vmem:[#allocation8 + $0xf8] sm:$0xff]
    %v981 = vld [vmem:[#allocation8 + $0x100] sm:$0xff]
    %v982 = vld [vmem:[#allocation8 + $0x108] sm:$0xff]
    %v983 = vld [vmem:[#allocation8 + $0x110] sm:$0xff]
    %v984 = vld [vmem:[#allocation8 + $0x118] sm:$0xff]
    %v985 = vld [vmem:[#allocation8 + $0x120] sm:$0xff]
    %v986 = vld [vmem:[#allocation8 + $0x128] sm:$0xff]
    %v987 = vld [vmem:[#allocation8 + $0x130] sm:$0xff]
    %v988 = vld [vmem:[#allocation8 + $0x138] sm:$0xff]
    %v989 = vld [vmem:[#allocation8 + $0x140] sm:$0xff]
    %v990 = vld [vmem:[#allocation8 + $0x148] sm:$0xff]
    %v991 = vld [vmem:[#allocation8 + $0x150] sm:$0xff]
    %v992 = vld [vmem:[#allocation8 + $0x158] sm:$0xff]
    %v993 = vld [vmem:[#allocation8 + $0x160] sm:$0xff]
    %v994 = vld [vmem:[#allocation8 + $0x168] sm:$0xff]
    %v995 = vld [vmem:[#allocation8 + $0x170] sm:$0xff]
    %v996 = vld [vmem:[#allocation8 + $0x178] sm:$0xff]
    %v997 = vld [vmem:[#allocation8 + $0x180] sm:$0xff]
    %v998 = vld [vmem:[#allocation8 + $0x188] sm:$0xff]
    %v999 = vld [vmem:[#allocation8 + $0x190] sm:$0xff]
    %v1000 = vld [vmem:[#allocation8 + $0x198] sm:$0xff]
    %v1001 = vld [vmem:[#allocation8 + $0x1a0] sm:$0xff]
    %v1002 = vld [vmem:[#allocation8 + $0x1a8] sm:$0xff]
    %v1003 = vld [vmem:[#allocation8 + $0x1b0] sm:$0xff]
    %v1004 = vld [vmem:[#allocation8 + $0x1b8] sm:$0xff]
    %v1005 = vld [vmem:[#allocation8 + $0x1c0] sm:$0xff]
    %v1006 = vld [vmem:[#allocation8 + $0x1c8] sm:$0xff]
    %v1007 = vld [vmem:[#allocation8 + $0x1d0] sm:$0xff]
    %v1008 = vld [vmem:[#allocation8 + $0x1d8] sm:$0xff]
    %v1009 = vld [vmem:[#allocation8 + $0x1e0] sm:$0xff]
    %v1010 = vld [vmem:[#allocation8 + $0x1e8] sm:$0xff]
    %v1011 = vld [vmem:[#allocation8 + $0x1f0] sm:$0xff]
    %v1012 = vld [vmem:[#allocation8 + $0x1f8] sm:$0xff]
    %1013 = vmatprep.subr.mxu0 %v1010
    %1014 = vmatpush1.msra.mxu0 %v1009
    %1015 = vmatprep.subr.mxu0 %v1006
    %1016 = vmatpush1.msra.mxu0 %v1005
    %1017 = vmatprep.subr.mxu0 %v1002
    %1018 = vmatpush1.msra.mxu0 %v1001
    %1019 = vmatprep.subr.mxu0 %v998
    %1020 = vmatpush1.msra.mxu0 %v997
    %1021 = vmatprep.subr.mxu0 %v994
    %1022 = vmatpush1.msra.mxu0 %v993
    %1023 = vmatprep.subr.mxu0 %v990
    %1024 = vmatpush1.msra.mxu0 %v989
    %1025 = vmatprep.subr.mxu0 %v986
    %1026 = vmatpush1.msra.mxu0 %v985
    %1027 = vmatprep.subr.mxu0 %v982
    %1028 = vmatpush1.msra.mxu0 %v981
    %1029 = vmatprep.subr.mxu0 %v978
    %1030 = vmatpush1.msra.mxu0 %v977
    %1031 = vmatprep.subr.mxu0 %v974
    %1032 = vmatpush1.msra.mxu0 %v973
    %1033 = vmatprep.subr.mxu0 %v970
    %1034 = vmatpush1.msra.mxu0 %v969
    %1035 = vmatprep.subr.mxu0 %v966
    %1036 = vmatpush1.msra.mxu0 %v965
    %1037 = vmatprep.subr.mxu0 %v962
    %1038 = vmatpush1.msra.mxu0 %v961
    %1039 = vmatprep.subr.mxu0 %v958
    %1040 = vmatpush1.msra.mxu0 %v957
    %1041 = vmatprep.subr.mxu0 %v954
    %1042 = vmatpush1.msra.mxu0 %v953
    %1043 = vmatprep.subr.mxu0 %v950
    %1044 = vmatpush1.msra.mxu0 %v949
    %1045 = vmatprep.subr.mxu0 0.0
    %1046 = vmatpush2.msra.mxu0 0.0
    %1047 = vmatprep.subr.mxu0 0.0
    %1048 = vmatpush2.msra.mxu0 0.0
    %1049 = vmatprep.subr.mxu0 0.0
    %1050 = vmatpush2.msra.mxu0 0.0
    %1051 = vmatprep.subr.mxu0 0.0
    %1052 = vmatpush2.msra.mxu0 0.0
    %1053 = vmatprep.subr.mxu0 0.0
    %1054 = vmatpush2.msra.mxu0 0.0
    %1055 = vmatprep.subr.mxu0 0.0
    %1056 = vmatpush2.msra.mxu0 0.0
    %1057 = vmatprep.subr.mxu0 0.0
    %1058 = vmatpush2.msra.mxu0 0.0
    %1059 = vmatprep.subr.mxu0 0.0
    %1060 = vmatpush2.msra.mxu0 0.0
    %1061 = vmatprep.subr.mxu0 0.0
    %1062 = vmatpush2.msra.mxu0 0.0
    %1063 = vmatprep.subr.mxu0 0.0
    %1064 = vmatpush2.msra.mxu0 0.0
    %1065 = vmatprep.subr.mxu0 0.0
    %1066 = vmatpush2.msra.mxu0 0.0
    %1067 = vmatprep.subr.mxu0 0.0
    %1068 = vmatpush2.msra.mxu0 0.0
    %1069 = vmatprep.subr.mxu0 0.0
    %1070 = vmatpush2.msra.mxu0 0.0
    %1071 = vmatprep.subr.mxu0 0.0
    %1072 = vmatpush2.msra.mxu0 0.0
    %1073 = vmatprep.subr.mxu0 0.0
    %1074 = vmatpush2.msra.mxu0 0.0
    %1075 = vmatprep.subr.mxu0 0.0
    %1076 = vmatpush2.msra.mxu0 0.0
    %1077 = vmatprep.mubr.f32.mxu0 0.0
    %1078 = vmatmul.mubr.f32.gmra.mxu0 %v942
    %v1079 = vpop.f32.mrf.mxu0
    %v1080 = vadd.f32 0.0, %v1079
    %v1081 = vpop.f32.mrf.mxu0
    %v1082 = vadd.f32 0.0, %v1081
    %1083 = vdwg.mxu0
    %1084 = vmatprep.subr.mxu0 %v1012
    %1085 = vmatpush1.msra.mxu0 %v1011
    %1086 = vmatprep.subr.mxu0 %v1008
    %1087 = vmatpush1.msra.mxu0 %v1007
    %1088 = vmatprep.subr.mxu0 %v1004
    %1089 = vmatpush1.msra.mxu0 %v1003
    %1090 = vmatprep.subr.mxu0 %v1000
    %1091 = vmatpush1.msra.mxu0 %v999
    %1092 = vmatprep.subr.mxu0 %v996
    %1093 = vmatpush1.msra.mxu0 %v995
    %1094 = vmatprep.subr.mxu0 %v992
    %1095 = vmatpush1.msra.mxu0 %v991
    %1096 = vmatprep.subr.mxu0 %v988
    %1097 = vmatpush1.msra.mxu0 %v987
    %1098 = vmatprep.subr.mxu0 %v984
    %1099 = vmatpush1.msra.mxu0 %v983
    %1100 = vmatprep.subr.mxu0 %v980
    %1101 = vmatpush1.msra.mxu0 %v979
    %1102 = vmatprep.subr.mxu0 %v976
    %1103 = vmatpush1.msra.mxu0 %v975
    %1104 = vmatprep.subr.mxu0 %v972
    %1105 = vmatpush1.msra.mxu0 %v971
    %1106 = vmatprep.subr.mxu0 %v968
    %1107 = vmatpush1.msra.mxu0 %v967
    %1108 = vmatprep.subr.mxu0 %v964
    %1109 = vmatpush1.msra.mxu0 %v963
    %1110 = vmatprep.subr.mxu0 %v960
    %1111 = vmatpush1.msra.mxu0 %v959
    %1112 = vmatprep.subr.mxu0 %v956
    %1113 = vmatpush1.msra.mxu0 %v955
    %1114 = vmatprep.subr.mxu0 %v952
    %1115 = vmatpush1.msra.mxu0 %v951
    %1116 = vmatprep.subr.mxu0 0.0
    %1117 = vmatpush2.msra.mxu0 0.0
    %1118 = vmatprep.subr.mxu0 0.0
    %1119 = vmatpush2.msra.mxu0 0.0
    %1120 = vmatprep.subr.mxu0 0.0
    %1121 = vmatpush2.msra.mxu0 0.0
    %1122 = vmatprep.subr.mxu0 0.0
    %1123 = vmatpush2.msra.mxu0 0.0
    %1124 = vmatprep.subr.mxu0 0.0
    %1125 = vmatpush2.msra.mxu0 0.0
    %1126 = vmatprep.subr.mxu0 0.0
    %1127 = vmatpush2.msra.mxu0 0.0
    %1128 = vmatprep.subr.mxu0 0.0
    %1129 = vmatpush2.msra.mxu0 0.0
    %1130 = vmatprep.subr.mxu0 0.0
    %1131 = vmatpush2.msra.mxu0 0.0
    %1132 = vmatprep.subr.mxu0 0.0
    %1133 = vmatpush2.msra.mxu0 0.0
    %1134 = vmatprep.subr.mxu0 0.0
    %1135 = vmatpush2.msra.mxu0 0.0
    %1136 = vmatprep.subr.mxu0 0.0
    %1137 = vmatpush2.msra.mxu0 0.0
    %1138 = vmatprep.subr.mxu0 0.0
    %1139 = vmatpush2.msra.mxu0 0.0
    %1140 = vmatprep.subr.mxu0 0.0
    %1141 = vmatpush2.msra.mxu0 0.0
    %1142 = vmatprep.subr.mxu0 0.0
    %1143 = vmatpush2.msra.mxu0 0.0
    %1144 = vmatprep.subr.mxu0 0.0
    %1145 = vmatpush2.msra.mxu0 0.0
    %1146 = vmatprep.subr.mxu0 0.0
    %1147 = vmatpush2.msra.mxu0 0.0
    %1148 = vmatprep.mubr.f32.mxu0 0.0
    %1149 = vmatmul.mubr.f32.gmra.mxu0 %v942
    %v1150 = vpop.f32.mrf.mxu0
    %v1151 = vadd.f32 0.0, %v1150
    %v1152 = vpop.f32.mrf.mxu0
    %v1153 = vadd.f32 0.0, %v1152
    %1154 = vdwg.mxu0
    %v1155 = vadd.f32 %v945, %v1080
    %v1156 = vadd.f32 %v946, %v1082
    %v1157 = vadd.f32 %v947, %v1151
    %v1158 = vadd.f32 %v948, %v1153
    %v1159 = vxor.u32 %v1155, 2147483648
    %v1160 = vmul.f32 %v1159, 1.442695
    %v1161 = vpow.pop %v1160
    %v1162 = vadd.f32 %v1161, 1.0
    %v1163 = vrcp.pop %v1162
    %v1164 = vmul.f32 1.0, %v1163
    %v1165 = vxor.u32 %v1156, 2147483648
    %v1166 = vmul.f32 %v1165, 1.442695
    %v1167 = vpow.pop %v1166
    %v1168 = vadd.f32 %v1167, 1.0
    %v1169 = vrcp.pop %v1168
    %v1170 = vmul.f32 1.0, %v1169
    %v1171 = vtanh.pop %v1157
    %v1172 = vxor.u32 %v1158, 2147483648
    %v1173 = vmul.f32 %v1172, 1.442695
    %v1174 = vpow.pop %v1173
    %v1175 = vadd.f32 %v1174, 1.0
    %v1176 = vrcp.pop %v1175
    %v1177 = vmul.f32 1.0, %v1176
    %v1178 = vmul.f32 %v1170, %v943
    %v1179 = vmul.f32 %v1164, %v1171
    %v1180 = vadd.f32 %v1178, %v1179
    %v1181 = vtanh.pop %v1180
    %v1182 = vmul.f32 %v1177, %v1181
    %1183 = vst [vmem:[#allocation5] sm:$0xff] %v1180
    %1184 = vst [vmem:[#allocation4] sm:$0xff] %v1182
    %s1185 = scalar_lea.vmem [#allocation2], 16
    %1186 = vst [vmem:[%s1185] sm:$0xff] %v1182
    %v1187 = vld [vmem:[#allocation4] sm:$0xff]
    %v1188 = vld [vmem:[#allocation5] sm:$0xff]
    %s1189 = scalar_lea.vmem [#allocation3], 96
    %v1190 = vld [vmem:[%s1189] sm:$0xff]
    %v1191 = vld [vmem:[%s1189 + $0x8] sm:$0xff]
    %v1192 = vld [vmem:[%s1189 + $0x10] sm:$0xff]
    %v1193 = vld [vmem:[%s1189 + $0x18] sm:$0xff]
    %v1194 = vld [vmem:[#allocation8] sm:$0xff]
    %v1195 = vld [vmem:[#allocation8 + $0x8] sm:$0xff]
    %v1196 = vld [vmem:[#allocation8 + $0x10] sm:$0xff]
    %v1197 = vld [vmem:[#allocation8 + $0x18] sm:$0xff]
    %v1198 = vld [vmem:[#allocation8 + $0x20] sm:$0xff]
    %v1199 = vld [vmem:[#allocation8 + $0x28] sm:$0xff]
    %v1200 = vld [vmem:[#allocation8 + $0x30] sm:$0xff]
    %v1201 = vld [vmem:[#allocation8 + $0x38] sm:$0xff]
    %v1202 = vld [vmem:[#allocation8 + $0x40] sm:$0xff]
    %v1203 = vld [vmem:[#allocation8 + $0x48] sm:$0xff]
    %v1204 = vld [vmem:[#allocation8 + $0x50] sm:$0xff]
    %v1205 = vld [vmem:[#allocation8 + $0x58] sm:$0xff]
    %v1206 = vld [vmem:[#allocation8 + $0x60] sm:$0xff]
    %v1207 = vld [vmem:[#allocation8 + $0x68] sm:$0xff]
    %v1208 = vld [vmem:[#allocation8 + $0x70] sm:$0xff]
    %v1209 = vld [vmem:[#allocation8 + $0x78] sm:$0xff]
    %v1210 = vld [vmem:[#allocation8 + $0x80] sm:$0xff]
    %v1211 = vld [vmem:[#allocation8 + $0x88] sm:$0xff]
    %v1212 = vld [vmem:[#allocation8 + $0x90] sm:$0xff]
    %v1213 = vld [vmem:[#allocation8 + $0x98] sm:$0xff]
    %v1214 = vld [vmem:[#allocation8 + $0xa0] sm:$0xff]
    %v1215 = vld [vmem:[#allocation8 + $0xa8] sm:$0xff]
    %v1216 = vld [vmem:[#allocation8 + $0xb0] sm:$0xff]
    %v1217 = vld [vmem:[#allocation8 + $0xb8] sm:$0xff]
    %v1218 = vld [vmem:[#allocation8 + $0xc0] sm:$0xff]
    %v1219 = vld [vmem:[#allocation8 + $0xc8] sm:$0xff]
    %v1220 = vld [vmem:[#allocation8 + $0xd0] sm:$0xff]
    %v1221 = vld [vmem:[#allocation8 + $0xd8] sm:$0xff]
    %v1222 = vld [vmem:[#allocation8 + $0xe0] sm:$0xff]
    %v1223 = vld [vmem:[#allocation8 + $0xe8] sm:$0xff]
    %v1224 = vld [vmem:[#allocation8 + $0xf0] sm:$0xff]
    %v1225 = vld [vmem:[#allocation8 + $0xf8] sm:$0xff]
    %v1226 = vld [vmem:[#allocation8 + $0x100] sm:$0xff]
    %v1227 = vld [vmem:[#allocation8 + $0x108] sm:$0xff]
    %v1228 = vld [vmem:[#allocation8 + $0x110] sm:$0xff]
    %v1229 = vld [vmem:[#allocation8 + $0x118] sm:$0xff]
    %v1230 = vld [vmem:[#allocation8 + $0x120] sm:$0xff]
    %v1231 = vld [vmem:[#allocation8 + $0x128] sm:$0xff]
    %v1232 = vld [vmem:[#allocation8 + $0x130] sm:$0xff]
    %v1233 = vld [vmem:[#allocation8 + $0x138] sm:$0xff]
    %v1234 = vld [vmem:[#allocation8 + $0x140] sm:$0xff]
    %v1235 = vld [vmem:[#allocation8 + $0x148] sm:$0xff]
    %v1236 = vld [vmem:[#allocation8 + $0x150] sm:$0xff]
    %v1237 = vld [vmem:[#allocation8 + $0x158] sm:$0xff]
    %v1238 = vld [vmem:[#allocation8 + $0x160] sm:$0xff]
    %v1239 = vld [vmem:[#allocation8 + $0x168] sm:$0xff]
    %v1240 = vld [vmem:[#allocation8 + $0x170] sm:$0xff]
    %v1241 = vld [vmem:[#allocation8 + $0x178] sm:$0xff]
    %v1242 = vld [vmem:[#allocation8 + $0x180] sm:$0xff]
    %v1243 = vld [vmem:[#allocation8 + $0x188] sm:$0xff]
    %v1244 = vld [vmem:[#allocation8 + $0x190] sm:$0xff]
    %v1245 = vld [vmem:[#allocation8 + $0x198] sm:$0xff]
    %v1246 = vld [vmem:[#allocation8 + $0x1a0] sm:$0xff]
    %v1247 = vld [vmem:[#allocation8 + $0x1a8] sm:$0xff]
    %v1248 = vld [vmem:[#allocation8 + $0x1b0] sm:$0xff]
    %v1249 = vld [vmem:[#allocation8 + $0x1b8] sm:$0xff]
    %v1250 = vld [vmem:[#allocation8 + $0x1c0] sm:$0xff]
    %v1251 = vld [vmem:[#allocation8 + $0x1c8] sm:$0xff]
    %v1252 = vld [vmem:[#allocation8 + $0x1d0] sm:$0xff]
    %v1253 = vld [vmem:[#allocation8 + $0x1d8] sm:$0xff]
    %v1254 = vld [vmem:[#allocation8 + $0x1e0] sm:$0xff]
    %v1255 = vld [vmem:[#allocation8 + $0x1e8] sm:$0xff]
    %v1256 = vld [vmem:[#allocation8 + $0x1f0] sm:$0xff]
    %v1257 = vld [vmem:[#allocation8 + $0x1f8] sm:$0xff]
    %1258 = vmatprep.subr.mxu0 %v1255
    %1259 = vmatpush1.msra.mxu0 %v1254
    %1260 = vmatprep.subr.mxu0 %v1251
    %1261 = vmatpush1.msra.mxu0 %v1250
    %1262 = vmatprep.subr.mxu0 %v1247
    %1263 = vmatpush1.msra.mxu0 %v1246
    %1264 = vmatprep.subr.mxu0 %v1243
    %1265 = vmatpush1.msra.mxu0 %v1242
    %1266 = vmatprep.subr.mxu0 %v1239
    %1267 = vmatpush1.msra.mxu0 %v1238
    %1268 = vmatprep.subr.mxu0 %v1235
    %1269 = vmatpush1.msra.mxu0 %v1234
    %1270 = vmatprep.subr.mxu0 %v1231
    %1271 = vmatpush1.msra.mxu0 %v1230
    %1272 = vmatprep.subr.mxu0 %v1227
    %1273 = vmatpush1.msra.mxu0 %v1226
    %1274 = vmatprep.subr.mxu0 %v1223
    %1275 = vmatpush1.msra.mxu0 %v1222
    %1276 = vmatprep.subr.mxu0 %v1219
    %1277 = vmatpush1.msra.mxu0 %v1218
    %1278 = vmatprep.subr.mxu0 %v1215
    %1279 = vmatpush1.msra.mxu0 %v1214
    %1280 = vmatprep.subr.mxu0 %v1211
    %1281 = vmatpush1.msra.mxu0 %v1210
    %1282 = vmatprep.subr.mxu0 %v1207
    %1283 = vmatpush1.msra.mxu0 %v1206
    %1284 = vmatprep.subr.mxu0 %v1203
    %1285 = vmatpush1.msra.mxu0 %v1202
    %1286 = vmatprep.subr.mxu0 %v1199
    %1287 = vmatpush1.msra.mxu0 %v1198
    %1288 = vmatprep.subr.mxu0 %v1195
    %1289 = vmatpush1.msra.mxu0 %v1194
    %1290 = vmatprep.subr.mxu0 0.0
    %1291 = vmatpush2.msra.mxu0 0.0
    %1292 = vmatprep.subr.mxu0 0.0
    %1293 = vmatpush2.msra.mxu0 0.0
    %1294 = vmatprep.subr.mxu0 0.0
    %1295 = vmatpush2.msra.mxu0 0.0
    %1296 = vmatprep.subr.mxu0 0.0
    %1297 = vmatpush2.msra.mxu0 0.0
    %1298 = vmatprep.subr.mxu0 0.0
    %1299 = vmatpush2.msra.mxu0 0.0
    %1300 = vmatprep.subr.mxu0 0.0
    %1301 = vmatpush2.msra.mxu0 0.0
    %1302 = vmatprep.subr.mxu0 0.0
    %1303 = vmatpush2.msra.mxu0 0.0
    %1304 = vmatprep.subr.mxu0 0.0
    %1305 = vmatpush2.msra.mxu0 0.0
    %1306 = vmatprep.subr.mxu0 0.0
    %1307 = vmatpush2.msra.mxu0 0.0
    %1308 = vmatprep.subr.mxu0 0.0
    %1309 = vmatpush2.msra.mxu0 0.0
    %1310 = vmatprep.subr.mxu0 0.0
    %1311 = vmatpush2.msra.mxu0 0.0
    %1312 = vmatprep.subr.mxu0 0.0
    %1313 = vmatpush2.msra.mxu0 0.0
    %1314 = vmatprep.subr.mxu0 0.0
    %1315 = vmatpush2.msra.mxu0 0.0
    %1316 = vmatprep.subr.mxu0 0.0
    %1317 = vmatpush2.msra.mxu0 0.0
    %1318 = vmatprep.subr.mxu0 0.0
    %1319 = vmatpush2.msra.mxu0 0.0
    %1320 = vmatprep.subr.mxu0 0.0
    %1321 = vmatpush2.msra.mxu0 0.0
    %1322 = vmatprep.mubr.f32.mxu0 0.0
    %1323 = vmatmul.mubr.f32.gmra.mxu0 %v1187
    %v1324 = vpop.f32.mrf.mxu0
    %v1325 = vadd.f32 0.0, %v1324
    %v1326 = vpop.f32.mrf.mxu0
    %v1327 = vadd.f32 0.0, %v1326
    %1328 = vdwg.mxu0
    %1329 = vmatprep.subr.mxu0 %v1257
    %1330 = vmatpush1.msra.mxu0 %v1256
    %1331 = vmatprep.subr.mxu0 %v1253
    %1332 = vmatpush1.msra.mxu0 %v1252
    %1333 = vmatprep.subr.mxu0 %v1249
    %1334 = vmatpush1.msra.mxu0 %v1248
    %1335 = vmatprep.subr.mxu0 %v1245
    %1336 = vmatpush1.msra.mxu0 %v1244
    %1337 = vmatprep.subr.mxu0 %v1241
    %1338 = vmatpush1.msra.mxu0 %v1240
    %1339 = vmatprep.subr.mxu0 %v1237
    %1340 = vmatpush1.msra.mxu0 %v1236
    %1341 = vmatprep.subr.mxu0 %v1233
    %1342 = vmatpush1.msra.mxu0 %v1232
    %1343 = vmatprep.subr.mxu0 %v1229
    %1344 = vmatpush1.msra.mxu0 %v1228
    %1345 = vmatprep.subr.mxu0 %v1225
    %1346 = vmatpush1.msra.mxu0 %v1224
    %1347 = vmatprep.subr.mxu0 %v1221
    %1348 = vmatpush1.msra.mxu0 %v1220
    %1349 = vmatprep.subr.mxu0 %v1217
    %1350 = vmatpush1.msra.mxu0 %v1216
    %1351 = vmatprep.subr.mxu0 %v1213
    %1352 = vmatpush1.msra.mxu0 %v1212
    %1353 = vmatprep.subr.mxu0 %v1209
    %1354 = vmatpush1.msra.mxu0 %v1208
    %1355 = vmatprep.subr.mxu0 %v1205
    %1356 = vmatpush1.msra.mxu0 %v1204
    %1357 = vmatprep.subr.mxu0 %v1201
    %1358 = vmatpush1.msra.mxu0 %v1200
    %1359 = vmatprep.subr.mxu0 %v1197
    %1360 = vmatpush1.msra.mxu0 %v1196
    %1361 = vmatprep.subr.mxu0 0.0
    %1362 = vmatpush2.msra.mxu0 0.0
    %1363 = vmatprep.subr.mxu0 0.0
    %1364 = vmatpush2.msra.mxu0 0.0
    %1365 = vmatprep.subr.mxu0 0.0
    %1366 = vmatpush2.msra.mxu0 0.0
    %1367 = vmatprep.subr.mxu0 0.0
    %1368 = vmatpush2.msra.mxu0 0.0
    %1369 = vmatprep.subr.mxu0 0.0
    %1370 = vmatpush2.msra.mxu0 0.0
    %1371 = vmatprep.subr.mxu0 0.0
    %1372 = vmatpush2.msra.mxu0 0.0
    %1373 = vmatprep.subr.mxu0 0.0
    %1374 = vmatpush2.msra.mxu0 0.0
    %1375 = vmatprep.subr.mxu0 0.0
    %1376 = vmatpush2.msra.mxu0 0.0
    %1377 = vmatprep.subr.mxu0 0.0
    %1378 = vmatpush2.msra.mxu0 0.0
    %1379 = vmatprep.subr.mxu0 0.0
    %1380 = vmatpush2.msra.mxu0 0.0
    %1381 = vmatprep.subr.mxu0 0.0
    %1382 = vmatpush2.msra.mxu0 0.0
    %1383 = vmatprep.subr.mxu0 0.0
    %1384 = vmatpush2.msra.mxu0 0.0
    %1385 = vmatprep.subr.mxu0 0.0
    %1386 = vmatpush2.msra.mxu0 0.0
    %1387 = vmatprep.subr.mxu0 0.0
    %1388 = vmatpush2.msra.mxu0 0.0
    %1389 = vmatprep.subr.mxu0 0.0
    %1390 = vmatpush2.msra.mxu0 0.0
    %1391 = vmatprep.subr.mxu0 0.0
    %1392 = vmatpush2.msra.mxu0 0.0
    %1393 = vmatprep.mubr.f32.mxu0 0.0
    %1394 = vmatmul.mubr.f32.gmra.mxu0 %v1187
    %v1395 = vpop.f32.mrf.mxu0
    %v1396 = vadd.f32 0.0, %v1395
    %v1397 = vpop.f32.mrf.mxu0
    %v1398 = vadd.f32 0.0, %v1397
    %1399 = vdwg.mxu0
    %v1400 = vadd.f32 %v1190, %v1325
    %v1401 = vadd.f32 %v1191, %v1327
    %v1402 = vadd.f32 %v1192, %v1396
    %v1403 = vadd.f32 %v1193, %v1398
    %v1404 = vxor.u32 %v1400, 2147483648
    %v1405 = vmul.f32 %v1404, 1.442695
    %v1406 = vpow.pop %v1405
    %v1407 = vadd.f32 %v1406, 1.0
    %v1408 = vrcp.pop %v1407
    %v1409 = vmul.f32 1.0, %v1408
    %v1410 = vxor.u32 %v1401, 2147483648
    %v1411 = vmul.f32 %v1410, 1.442695
    %v1412 = vpow.pop %v1411
    %v1413 = vadd.f32 %v1412, 1.0
    %v1414 = vrcp.pop %v1413
    %v1415 = vmul.f32 1.0, %v1414
    %v1416 = vtanh.pop %v1402
    %v1417 = vxor.u32 %v1403, 2147483648
    %v1418 = vmul.f32 %v1417, 1.442695
    %v1419 = vpow.pop %v1418
    %v1420 = vadd.f32 %v1419, 1.0
    %v1421 = vrcp.pop %v1420
    %v1422 = vmul.f32 1.0, %v1421
    %v1423 = vmul.f32 %v1415, %v1188
    %v1424 = vmul.f32 %v1409, %v1416
    %v1425 = vadd.f32 %v1423, %v1424
    %v1426 = vtanh.pop %v1425
    %v1427 = vmul.f32 %v1422, %v1426
    %1428 = vst [vmem:[#allocation5] sm:$0xff] %v1425
    %1429 = vst [vmem:[#allocation4] sm:$0xff] %v1427
    %s1430 = scalar_lea.vmem [#allocation2], 24
    %1431 = vst [vmem:[%s1430] sm:$0xff] %v1427
    %v1432 = vld [vmem:[#allocation4] sm:$0xff]
    %v1433 = vld [vmem:[#allocation5] sm:$0xff]
    %s1434 = scalar_lea.vmem [#allocation3], 128
    %v1435 = vld [vmem:[%s1434] sm:$0xff]
    %v1436 = vld [vmem:[%s1434 + $0x8] sm:$0xff]
    %v1437 = vld [vmem:[%s1434 + $0x10] sm:$0xff]
    %v1438 = vld [vmem:[%s1434 + $0x18] sm:$0xff]
    %v1439 = vld [vmem:[#allocation8] sm:$0xff]
    %v1440 = vld [vmem:[#allocation8 + $0x8] sm:$0xff]
    %v1441 = vld [vmem:[#allocation8 + $0x10] sm:$0xff]
    %v1442 = vld [vmem:[#allocation8 + $0x18] sm:$0xff]
    %v1443 = vld [vmem:[#allocation8 + $0x20] sm:$0xff]
    %v1444 = vld [vmem:[#allocation8 + $0x28] sm:$0xff]
    %v1445 = vld [vmem:[#allocation8 + $0x30] sm:$0xff]
    %v1446 = vld [vmem:[#allocation8 + $0x38] sm:$0xff]
    %v1447 = vld [vmem:[#allocation8 + $0x40] sm:$0xff]
    %v1448 = vld [vmem:[#allocation8 + $0x48] sm:$0xff]
    %v1449 = vld [vmem:[#allocation8 + $0x50] sm:$0xff]
    %v1450 = vld [vmem:[#allocation8 + $0x58] sm:$0xff]
    %v1451 = vld [vmem:[#allocation8 + $0x60] sm:$0xff]
    %v1452 = vld [vmem:[#allocation8 + $0x68] sm:$0xff]
    %v1453 = vld [vmem:[#allocation8 + $0x70] sm:$0xff]
    %v1454 = vld [vmem:[#allocation8 + $0x78] sm:$0xff]
    %v1455 = vld [vmem:[#allocation8 + $0x80] sm:$0xff]
    %v1456 = vld [vmem:[#allocation8 + $0x88] sm:$0xff]
    %v1457 = vld [vmem:[#allocation8 + $0x90] sm:$0xff]
    %v1458 = vld [vmem:[#allocation8 + $0x98] sm:$0xff]
    %v1459 = vld [vmem:[#allocation8 + $0xa0] sm:$0xff]
    %v1460 = vld [vmem:[#allocation8 + $0xa8] sm:$0xff]
    %v1461 = vld [vmem:[#allocation8 + $0xb0] sm:$0xff]
    %v1462 = vld [vmem:[#allocation8 + $0xb8] sm:$0xff]
    %v1463 = vld [vmem:[#allocation8 + $0xc0] sm:$0xff]
    %v1464 = vld [vmem:[#allocation8 + $0xc8] sm:$0xff]
    %v1465 = vld [vmem:[#allocation8 + $0xd0] sm:$0xff]
    %v1466 = vld [vmem:[#allocation8 + $0xd8] sm:$0xff]
    %v1467 = vld [vmem:[#allocation8 + $0xe0] sm:$0xff]
    %v1468 = vld [vmem:[#allocation8 + $0xe8] sm:$0xff]
    %v1469 = vld [vmem:[#allocation8 + $0xf0] sm:$0xff]
    %v1470 = vld [vmem:[#allocation8 + $0xf8] sm:$0xff]
    %v1471 = vld [vmem:[#allocation8 + $0x100] sm:$0xff]
    %v1472 = vld [vmem:[#allocation8 + $0x108] sm:$0xff]
    %v1473 = vld [vmem:[#allocation8 + $0x110] sm:$0xff]
    %v1474 = vld [vmem:[#allocation8 + $0x118] sm:$0xff]
    %v1475 = vld [vmem:[#allocation8 + $0x120] sm:$0xff]
    %v1476 = vld [vmem:[#allocation8 + $0x128] sm:$0xff]
    %v1477 = vld [vmem:[#allocation8 + $0x130] sm:$0xff]
    %v1478 = vld [vmem:[#allocation8 + $0x138] sm:$0xff]
    %v1479 = vld [vmem:[#allocation8 + $0x140] sm:$0xff]
    %v1480 = vld [vmem:[#allocation8 + $0x148] sm:$0xff]
    %v1481 = vld [vmem:[#allocation8 + $0x150] sm:$0xff]
    %v1482 = vld [vmem:[#allocation8 + $0x158] sm:$0xff]
    %v1483 = vld [vmem:[#allocation8 + $0x160] sm:$0xff]
    %v1484 = vld [vmem:[#allocation8 + $0x168] sm:$0xff]
    %v1485 = vld [vmem:[#allocation8 + $0x170] sm:$0xff]
    %v1486 = vld [vmem:[#allocation8 + $0x178] sm:$0xff]
    %v1487 = vld [vmem:[#allocation8 + $0x180] sm:$0xff]
    %v1488 = vld [vmem:[#allocation8 + $0x188] sm:$0xff]
    %v1489 = vld [vmem:[#allocation8 + $0x190] sm:$0xff]
    %v1490 = vld [vmem:[#allocation8 + $0x198] sm:$0xff]
    %v1491 = vld [vmem:[#allocation8 + $0x1a0] sm:$0xff]
    %v1492 = vld [vmem:[#allocation8 + $0x1a8] sm:$0xff]
    %v1493 = vld [vmem:[#allocation8 + $0x1b0] sm:$0xff]
    %v1494 = vld [vmem:[#allocation8 + $0x1b8] sm:$0xff]
    %v1495 = vld [vmem:[#allocation8 + $0x1c0] sm:$0xff]
    %v1496 = vld [vmem:[#allocation8 + $0x1c8] sm:$0xff]
    %v1497 = vld [vmem:[#allocation8 + $0x1d0] sm:$0xff]
    %v1498 = vld [vmem:[#allocation8 + $0x1d8] sm:$0xff]
    %v1499 = vld [vmem:[#allocation8 + $0x1e0] sm:$0xff]
    %v1500 = vld [vmem:[#allocation8 + $0x1e8] sm:$0xff]
    %v1501 = vld [vmem:[#allocation8 + $0x1f0] sm:$0xff]
    %v1502 = vld [vmem:[#allocation8 + $0x1f8] sm:$0xff]
    %1503 = vmatprep.subr.mxu0 %v1500
    %1504 = vmatpush1.msra.mxu0 %v1499
    %1505 = vmatprep.subr.mxu0 %v1496
    %1506 = vmatpush1.msra.mxu0 %v1495
    %1507 = vmatprep.subr.mxu0 %v1492
    %1508 = vmatpush1.msra.mxu0 %v1491
    %1509 = vmatprep.subr.mxu0 %v1488
    %1510 = vmatpush1.msra.mxu0 %v1487
    %1511 = vmatprep.subr.mxu0 %v1484
    %1512 = vmatpush1.msra.mxu0 %v1483
    %1513 = vmatprep.subr.mxu0 %v1480
    %1514 = vmatpush1.msra.mxu0 %v1479
    %1515 = vmatprep.subr.mxu0 %v1476
    %1516 = vmatpush1.msra.mxu0 %v1475
    %1517 = vmatprep.subr.mxu0 %v1472
    %1518 = vmatpush1.msra.mxu0 %v1471
    %1519 = vmatprep.subr.mxu0 %v1468
    %1520 = vmatpush1.msra.mxu0 %v1467
    %1521 = vmatprep.subr.mxu0 %v1464
    %1522 = vmatpush1.msra.mxu0 %v1463
    %1523 = vmatprep.subr.mxu0 %v1460
    %1524 = vmatpush1.msra.mxu0 %v1459
    %1525 = vmatprep.subr.mxu0 %v1456
    %1526 = vmatpush1.msra.mxu0 %v1455
    %1527 = vmatprep.subr.mxu0 %v1452
    %1528 = vmatpush1.msra.mxu0 %v1451
    %1529 = vmatprep.subr.mxu0 %v1448
    %1530 = vmatpush1.msra.mxu0 %v1447
    %1531 = vmatprep.subr.mxu0 %v1444
    %1532 = vmatpush1.msra.mxu0 %v1443
    %1533 = vmatprep.subr.mxu0 %v1440
    %1534 = vmatpush1.msra.mxu0 %v1439
    %1535 = vmatprep.subr.mxu0 0.0
    %1536 = vmatpush2.msra.mxu0 0.0
    %1537 = vmatprep.subr.mxu0 0.0
    %1538 = vmatpush2.msra.mxu0 0.0
    %1539 = vmatprep.subr.mxu0 0.0
    %1540 = vmatpush2.msra.mxu0 0.0
    %1541 = vmatprep.subr.mxu0 0.0
    %1542 = vmatpush2.msra.mxu0 0.0
    %1543 = vmatprep.subr.mxu0 0.0
    %1544 = vmatpush2.msra.mxu0 0.0
    %1545 = vmatprep.subr.mxu0 0.0
    %1546 = vmatpush2.msra.mxu0 0.0
    %1547 = vmatprep.subr.mxu0 0.0
    %1548 = vmatpush2.msra.mxu0 0.0
    %1549 = vmatprep.subr.mxu0 0.0
    %1550 = vmatpush2.msra.mxu0 0.0
    %1551 = vmatprep.subr.mxu0 0.0
    %1552 = vmatpush2.msra.mxu0 0.0
    %1553 = vmatprep.subr.mxu0 0.0
    %1554 = vmatpush2.msra.mxu0 0.0
    %1555 = vmatprep.subr.mxu0 0.0
    %1556 = vmatpush2.msra.mxu0 0.0
    %1557 = vmatprep.subr.mxu0 0.0
    %1558 = vmatpush2.msra.mxu0 0.0
    %1559 = vmatprep.subr.mxu0 0.0
    %1560 = vmatpush2.msra.mxu0 0.0
    %1561 = vmatprep.subr.mxu0 0.0
    %1562 = vmatpush2.msra.mxu0 0.0
    %1563 = vmatprep.subr.mxu0 0.0
    %1564 = vmatpush2.msra.mxu0 0.0
    %1565 = vmatprep.subr.mxu0 0.0
    %1566 = vmatpush2.msra.mxu0 0.0
    %1567 = vmatprep.mubr.f32.mxu0 0.0
    %1568 = vmatmul.mubr.f32.gmra.mxu0 %v1432
    %v1569 = vpop.f32.mrf.mxu0
    %v1570 = vadd.f32 0.0, %v1569
    %v1571 = vpop.f32.mrf.mxu0
    %v1572 = vadd.f32 0.0, %v1571
    %1573 = vdwg.mxu0
    %1574 = vmatprep.subr.mxu0 %v1502
    %1575 = vmatpush1.msra.mxu0 %v1501
    %1576 = vmatprep.subr.mxu0 %v1498
    %1577 = vmatpush1.msra.mxu0 %v1497
    %1578 = vmatprep.subr.mxu0 %v1494
    %1579 = vmatpush1.msra.mxu0 %v1493
    %1580 = vmatprep.subr.mxu0 %v1490
    %1581 = vmatpush1.msra.mxu0 %v1489
    %1582 = vmatprep.subr.mxu0 %v1486
    %1583 = vmatpush1.msra.mxu0 %v1485
    %1584 = vmatprep.subr.mxu0 %v1482
    %1585 = vmatpush1.msra.mxu0 %v1481
    %1586 = vmatprep.subr.mxu0 %v1478
    %1587 = vmatpush1.msra.mxu0 %v1477
    %1588 = vmatprep.subr.mxu0 %v1474
    %1589 = vmatpush1.msra.mxu0 %v1473
    %1590 = vmatprep.subr.mxu0 %v1470
    %1591 = vmatpush1.msra.mxu0 %v1469
    %1592 = vmatprep.subr.mxu0 %v1466
    %1593 = vmatpush1.msra.mxu0 %v1465
    %1594 = vmatprep.subr.mxu0 %v1462
    %1595 = vmatpush1.msra.mxu0 %v1461
    %1596 = vmatprep.subr.mxu0 %v1458
    %1597 = vmatpush1.msra.mxu0 %v1457
    %1598 = vmatprep.subr.mxu0 %v1454
    %1599 = vmatpush1.msra.mxu0 %v1453
    %1600 = vmatprep.subr.mxu0 %v1450
    %1601 = vmatpush1.msra.mxu0 %v1449
    %1602 = vmatprep.subr.mxu0 %v1446
    %1603 = vmatpush1.msra.mxu0 %v1445
    %1604 = vmatprep.subr.mxu0 %v1442
    %1605 = vmatpush1.msra.mxu0 %v1441
    %1606 = vmatprep.subr.mxu0 0.0
    %1607 = vmatpush2.msra.mxu0 0.0
    %1608 = vmatprep.subr.mxu0 0.0
    %1609 = vmatpush2.msra.mxu0 0.0
    %1610 = vmatprep.subr.mxu0 0.0
    %1611 = vmatpush2.msra.mxu0 0.0
    %1612 = vmatprep.subr.mxu0 0.0
    %1613 = vmatpush2.msra.mxu0 0.0
    %1614 = vmatprep.subr.mxu0 0.0
    %1615 = vmatpush2.msra.mxu0 0.0
    %1616 = vmatprep.subr.mxu0 0.0
    %1617 = vmatpush2.msra.mxu0 0.0
    %1618 = vmatprep.subr.mxu0 0.0
    %1619 = vmatpush2.msra.mxu0 0.0
    %1620 = vmatprep.subr.mxu0 0.0
    %1621 = vmatpush2.msra.mxu0 0.0
    %1622 = vmatprep.subr.mxu0 0.0
    %1623 = vmatpush2.msra.mxu0 0.0
    %1624 = vmatprep.subr.mxu0 0.0
    %1625 = vmatpush2.msra.mxu0 0.0
    %1626 = vmatprep.subr.mxu0 0.0
    %1627 = vmatpush2.msra.mxu0 0.0
    %1628 = vmatprep.subr.mxu0 0.0
    %1629 = vmatpush2.msra.mxu0 0.0
    %1630 = vmatprep.subr.mxu0 0.0
    %1631 = vmatpush2.msra.mxu0 0.0
    %1632 = vmatprep.subr.mxu0 0.0
    %1633 = vmatpush2.msra.mxu0 0.0
    %1634 = vmatprep.subr.mxu0 0.0
    %1635 = vmatpush2.msra.mxu0 0.0
    %1636 = vmatprep.subr.mxu0 0.0
    %1637 = vmatpush2.msra.mxu0 0.0
    %1638 = vmatprep.mubr.f32.mxu0 0.0
    %1639 = vmatmul.mubr.f32.gmra.mxu0 %v1432
    %v1640 = vpop.f32.mrf.mxu0
    %v1641 = vadd.f32 0.0, %v1640
    %v1642 = vpop.f32.mrf.mxu0
    %v1643 = vadd.f32 0.0, %v1642
    %1644 = vdwg.mxu0
    %v1645 = vadd.f32 %v1435, %v1570
    %v1646 = vadd.f32 %v1436, %v1572
    %v1647 = vadd.f32 %v1437, %v1641
    %v1648 = vadd.f32 %v1438, %v1643
    %v1649 = vxor.u32 %v1645, 2147483648
    %v1650 = vmul.f32 %v1649, 1.442695
    %v1651 = vpow.pop %v1650
    %v1652 = vadd.f32 %v1651, 1.0
    %v1653 = vrcp.pop %v1652
    %v1654 = vmul.f32 1.0, %v1653
    %v1655 = vxor.u32 %v1646, 2147483648
    %v1656 = vmul.f32 %v1655, 1.442695
    %v1657 = vpow.pop %v1656
    %v1658 = vadd.f32 %v1657, 1.0
    %v1659 = vrcp.pop %v1658
    %v1660 = vmul.f32 1.0, %v1659
    %v1661 = vtanh.pop %v1647
    %v1662 = vxor.u32 %v1648, 2147483648
    %v1663 = vmul.f32 %v1662, 1.442695
    %v1664 = vpow.pop %v1663
    %v1665 = vadd.f32 %v1664, 1.0
    %v1666 = vrcp.pop %v1665
    %v1667 = vmul.f32 1.0, %v1666
    %v1668 = vmul.f32 %v1660, %v1433
    %v1669 = vmul.f32 %v1654, %v1661
    %v1670 = vadd.f32 %v1668, %v1669
    %v1671 = vtanh.pop %v1670
    %v1672 = vmul.f32 %v1667, %v1671
    %1673 = vst [vmem:[#allocation5] sm:$0xff] %v1670
    %1674 = vst [vmem:[#allocation4] sm:$0xff] %v1672
    %s1675 = scalar_lea.vmem [#allocation2], 32
    %1676 = vst [vmem:[%s1675] sm:$0xff] %v1672
    %v1677 = vld [vmem:[#allocation4] sm:$0xff]
    %v1678 = vld [vmem:[#allocation5] sm:$0xff]
    %s1679 = scalar_lea.vmem [#allocation3], 160
    %v1680 = vld [vmem:[%s1679] sm:$0xff]
    %v1681 = vld [vmem:[%s1679 + $0x8] sm:$0xff]
    %v1682 = vld [vmem:[%s1679 + $0x10] sm:$0xff]
    %v1683 = vld [vmem:[%s1679 + $0x18] sm:$0xff]
    %v1684 = vld [vmem:[#allocation8] sm:$0xff]
    %v1685 = vld [vmem:[#allocation8 + $0x8] sm:$0xff]
    %v1686 = vld [vmem:[#allocation8 + $0x10] sm:$0xff]
    %v1687 = vld [vmem:[#allocation8 + $0x18] sm:$0xff]
    %v1688 = vld [vmem:[#allocation8 + $0x20] sm:$0xff]
    %v1689 = vld [vmem:[#allocation8 + $0x28] sm:$0xff]
    %v1690 = vld [vmem:[#allocation8 + $0x30] sm:$0xff]
    %v1691 = vld [vmem:[#allocation8 + $0x38] sm:$0xff]
    %v1692 = vld [vmem:[#allocation8 + $0x40] sm:$0xff]
    %v1693 = vld [vmem:[#allocation8 + $0x48] sm:$0xff]
    %v1694 = vld [vmem:[#allocation8 + $0x50] sm:$0xff]
    %v1695 = vld [vmem:[#allocation8 + $0x58] sm:$0xff]
    %v1696 = vld [vmem:[#allocation8 + $0x60] sm:$0xff]
    %v1697 = vld [vmem:[#allocation8 + $0x68] sm:$0xff]
    %v1698 = vld [vmem:[#allocation8 + $0x70] sm:$0xff]
    %v1699 = vld [vmem:[#allocation8 + $0x78] sm:$0xff]
    %v1700 = vld [vmem:[#allocation8 + $0x80] sm:$0xff]
    %v1701 = vld [vmem:[#allocation8 + $0x88] sm:$0xff]
    %v1702 = vld [vmem:[#allocation8 + $0x90] sm:$0xff]
    %v1703 = vld [vmem:[#allocation8 + $0x98] sm:$0xff]
    %v1704 = vld [vmem:[#allocation8 + $0xa0] sm:$0xff]
    %v1705 = vld [vmem:[#allocation8 + $0xa8] sm:$0xff]
    %v1706 = vld [vmem:[#allocation8 + $0xb0] sm:$0xff]
    %v1707 = vld [vmem:[#allocation8 + $0xb8] sm:$0xff]
    %v1708 = vld [vmem:[#allocation8 + $0xc0] sm:$0xff]
    %v1709 = vld [vmem:[#allocation8 + $0xc8] sm:$0xff]
    %v1710 = vld [vmem:[#allocation8 + $0xd0] sm:$0xff]
    %v1711 = vld [vmem:[#allocation8 + $0xd8] sm:$0xff]
    %v1712 = vld [vmem:[#allocation8 + $0xe0] sm:$0xff]
    %v1713 = vld [vmem:[#allocation8 + $0xe8] sm:$0xff]
    %v1714 = vld [vmem:[#allocation8 + $0xf0] sm:$0xff]
    %v1715 = vld [vmem:[#allocation8 + $0xf8] sm:$0xff]
    %v1716 = vld [vmem:[#allocation8 + $0x100] sm:$0xff]
    %v1717 = vld [vmem:[#allocation8 + $0x108] sm:$0xff]
    %v1718 = vld [vmem:[#allocation8 + $0x110] sm:$0xff]
    %v1719 = vld [vmem:[#allocation8 + $0x118] sm:$0xff]
    %v1720 = vld [vmem:[#allocation8 + $0x120] sm:$0xff]
    %v1721 = vld [vmem:[#allocation8 + $0x128] sm:$0xff]
    %v1722 = vld [vmem:[#allocation8 + $0x130] sm:$0xff]
    %v1723 = vld [vmem:[#allocation8 + $0x138] sm:$0xff]
    %v1724 = vld [vmem:[#allocation8 + $0x140] sm:$0xff]
    %v1725 = vld [vmem:[#allocation8 + $0x148] sm:$0xff]
    %v1726 = vld [vmem:[#allocation8 + $0x150] sm:$0xff]
    %v1727 = vld [vmem:[#allocation8 + $0x158] sm:$0xff]
    %v1728 = vld [vmem:[#allocation8 + $0x160] sm:$0xff]
    %v1729 = vld [vmem:[#allocation8 + $0x168] sm:$0xff]
    %v1730 = vld [vmem:[#allocation8 + $0x170] sm:$0xff]
    %v1731 = vld [vmem:[#allocation8 + $0x178] sm:$0xff]
    %v1732 = vld [vmem:[#allocation8 + $0x180] sm:$0xff]
    %v1733 = vld [vmem:[#allocation8 + $0x188] sm:$0xff]
    %v1734 = vld [vmem:[#allocation8 + $0x190] sm:$0xff]
    %v1735 = vld [vmem:[#allocation8 + $0x198] sm:$0xff]
    %v1736 = vld [vmem:[#allocation8 + $0x1a0] sm:$0xff]
    %v1737 = vld [vmem:[#allocation8 + $0x1a8] sm:$0xff]
    %v1738 = vld [vmem:[#allocation8 + $0x1b0] sm:$0xff]
    %v1739 = vld [vmem:[#allocation8 + $0x1b8] sm:$0xff]
    %v1740 = vld [vmem:[#allocation8 + $0x1c0] sm:$0xff]
    %v1741 = vld [vmem:[#allocation8 + $0x1c8] sm:$0xff]
    %v1742 = vld [vmem:[#allocation8 + $0x1d0] sm:$0xff]
    %v1743 = vld [vmem:[#allocation8 + $0x1d8] sm:$0xff]
    %v1744 = vld [vmem:[#allocation8 + $0x1e0] sm:$0xff]
    %v1745 = vld [vmem:[#allocation8 + $0x1e8] sm:$0xff]
    %v1746 = vld [vmem:[#allocation8 + $0x1f0] sm:$0xff]
    %v1747 = vld [vmem:[#allocation8 + $0x1f8] sm:$0xff]
    %1748 = vmatprep.subr.mxu0 %v1745
    %1749 = vmatpush1.msra.mxu0 %v1744
    %1750 = vmatprep.subr.mxu0 %v1741
    %1751 = vmatpush1.msra.mxu0 %v1740
    %1752 = vmatprep.subr.mxu0 %v1737
    %1753 = vmatpush1.msra.mxu0 %v1736
    %1754 = vmatprep.subr.mxu0 %v1733
    %1755 = vmatpush1.msra.mxu0 %v1732
    %1756 = vmatprep.subr.mxu0 %v1729
    %1757 = vmatpush1.msra.mxu0 %v1728
    %1758 = vmatprep.subr.mxu0 %v1725
    %1759 = vmatpush1.msra.mxu0 %v1724
    %1760 = vmatprep.subr.mxu0 %v1721
    %1761 = vmatpush1.msra.mxu0 %v1720
    %1762 = vmatprep.subr.mxu0 %v1717
    %1763 = vmatpush1.msra.mxu0 %v1716
    %1764 = vmatprep.subr.mxu0 %v1713
    %1765 = vmatpush1.msra.mxu0 %v1712
    %1766 = vmatprep.subr.mxu0 %v1709
    %1767 = vmatpush1.msra.mxu0 %v1708
    %1768 = vmatprep.subr.mxu0 %v1705
    %1769 = vmatpush1.msra.mxu0 %v1704
    %1770 = vmatprep.subr.mxu0 %v1701
    %1771 = vmatpush1.msra.mxu0 %v1700
    %1772 = vmatprep.subr.mxu0 %v1697
    %1773 = vmatpush1.msra.mxu0 %v1696
    %1774 = vmatprep.subr.mxu0 %v1693
    %1775 = vmatpush1.msra.mxu0 %v1692
    %1776 = vmatprep.subr.mxu0 %v1689
    %1777 = vmatpush1.msra.mxu0 %v1688
    %1778 = vmatprep.subr.mxu0 %v1685
    %1779 = vmatpush1.msra.mxu0 %v1684
    %1780 = vmatprep.subr.mxu0 0.0
    %1781 = vmatpush2.msra.mxu0 0.0
    %1782 = vmatprep.subr.mxu0 0.0
    %1783 = vmatpush2.msra.mxu0 0.0
    %1784 = vmatprep.subr.mxu0 0.0
    %1785 = vmatpush2.msra.mxu0 0.0
    %1786 = vmatprep.subr.mxu0 0.0
    %1787 = vmatpush2.msra.mxu0 0.0
    %1788 = vmatprep.subr.mxu0 0.0
    %1789 = vmatpush2.msra.mxu0 0.0
    %1790 = vmatprep.subr.mxu0 0.0
    %1791 = vmatpush2.msra.mxu0 0.0
    %1792 = vmatprep.subr.mxu0 0.0
    %1793 = vmatpush2.msra.mxu0 0.0
    %1794 = vmatprep.subr.mxu0 0.0
    %1795 = vmatpush2.msra.mxu0 0.0
    %1796 = vmatprep.subr.mxu0 0.0
    %1797 = vmatpush2.msra.mxu0 0.0
    %1798 = vmatprep.subr.mxu0 0.0
    %1799 = vmatpush2.msra.mxu0 0.0
    %1800 = vmatprep.subr.mxu0 0.0
    %1801 = vmatpush2.msra.mxu0 0.0
    %1802 = vmatprep.subr.mxu0 0.0
    %1803 = vmatpush2.msra.mxu0 0.0
    %1804 = vmatprep.subr.mxu0 0.0
    %1805 = vmatpush2.msra.mxu0 0.0
    %1806 = vmatprep.subr.mxu0 0.0
    %1807 = vmatpush2.msra.mxu0 0.0
    %1808 = vmatprep.subr.mxu0 0.0
    %1809 = vmatpush2.msra.mxu0 0.0
    %1810 = vmatprep.subr.mxu0 0.0
    %1811 = vmatpush2.msra.mxu0 0.0
    %1812 = vmatprep.mubr.f32.mxu0 0.0
    %1813 = vmatmul.mubr.f32.gmra.mxu0 %v1677
    %v1814 = vpop.f32.mrf.mxu0
    %v1815 = vadd.f32 0.0, %v1814
    %v1816 = vpop.f32.mrf.mxu0
    %v1817 = vadd.f32 0.0, %v1816
    %1818 = vdwg.mxu0
    %1819 = vmatprep.subr.mxu0 %v1747
    %1820 = vmatpush1.msra.mxu0 %v1746
    %1821 = vmatprep.subr.mxu0 %v1743
    %1822 = vmatpush1.msra.mxu0 %v1742
    %1823 = vmatprep.subr.mxu0 %v1739
    %1824 = vmatpush1.msra.mxu0 %v1738
    %1825 = vmatprep.subr.mxu0 %v1735
    %1826 = vmatpush1.msra.mxu0 %v1734
    %1827 = vmatprep.subr.mxu0 %v1731
    %1828 = vmatpush1.msra.mxu0 %v1730
    %1829 = vmatprep.subr.mxu0 %v1727
    %1830 = vmatpush1.msra.mxu0 %v1726
    %1831 = vmatprep.subr.mxu0 %v1723
    %1832 = vmatpush1.msra.mxu0 %v1722
    %1833 = vmatprep.subr.mxu0 %v1719
    %1834 = vmatpush1.msra.mxu0 %v1718
    %1835 = vmatprep.subr.mxu0 %v1715
    %1836 = vmatpush1.msra.mxu0 %v1714
    %1837 = vmatprep.subr.mxu0 %v1711
    %1838 = vmatpush1.msra.mxu0 %v1710
    %1839 = vmatprep.subr.mxu0 %v1707
    %1840 = vmatpush1.msra.mxu0 %v1706
    %1841 = vmatprep.subr.mxu0 %v1703
    %1842 = vmatpush1.msra.mxu0 %v1702
    %1843 = vmatprep.subr.mxu0 %v1699
    %1844 = vmatpush1.msra.mxu0 %v1698
    %1845 = vmatprep.subr.mxu0 %v1695
    %1846 = vmatpush1.msra.mxu0 %v1694
    %1847 = vmatprep.subr.mxu0 %v1691
    %1848 = vmatpush1.msra.mxu0 %v1690
    %1849 = vmatprep.subr.mxu0 %v1687
    %1850 = vmatpush1.msra.mxu0 %v1686
    %1851 = vmatprep.subr.mxu0 0.0
    %1852 = vmatpush2.msra.mxu0 0.0
    %1853 = vmatprep.subr.mxu0 0.0
    %1854 = vmatpush2.msra.mxu0 0.0
    %1855 = vmatprep.subr.mxu0 0.0
    %1856 = vmatpush2.msra.mxu0 0.0
    %1857 = vmatprep.subr.mxu0 0.0
    %1858 = vmatpush2.msra.mxu0 0.0
    %1859 = vmatprep.subr.mxu0 0.0
    %1860 = vmatpush2.msra.mxu0 0.0
    %1861 = vmatprep.subr.mxu0 0.0
    %1862 = vmatpush2.msra.mxu0 0.0
    %1863 = vmatprep.subr.mxu0 0.0
    %1864 = vmatpush2.msra.mxu0 0.0
    %1865 = vmatprep.subr.mxu0 0.0
    %1866 = vmatpush2.msra.mxu0 0.0
    %1867 = vmatprep.subr.mxu0 0.0
    %1868 = vmatpush2.msra.mxu0 0.0
    %1869 = vmatprep.subr.mxu0 0.0
    %1870 = vmatpush2.msra.mxu0 0.0
    %1871 = vmatprep.subr.mxu0 0.0
    %1872 = vmatpush2.msra.mxu0 0.0
    %1873 = vmatprep.subr.mxu0 0.0
    %1874 = vmatpush2.msra.mxu0 0.0
    %1875 = vmatprep.subr.mxu0 0.0
    %1876 = vmatpush2.msra.mxu0 0.0
    %1877 = vmatprep.subr.mxu0 0.0
    %1878 = vmatpush2.msra.mxu0 0.0
    %1879 = vmatprep.subr.mxu0 0.0
    %1880 = vmatpush2.msra.mxu0 0.0
    %1881 = vmatprep.subr.mxu0 0.0
    %1882 = vmatpush2.msra.mxu0 0.0
    %1883 = vmatprep.mubr.f32.mxu0 0.0
    %1884 = vmatmul.mubr.f32.gmra.mxu0 %v1677
    %v1885 = vpop.f32.mrf.mxu0
    %v1886 = vadd.f32 0.0, %v1885
    %v1887 = vpop.f32.mrf.mxu0
    %v1888 = vadd.f32 0.0, %v1887
    %1889 = vdwg.mxu0
    %v1890 = vadd.f32 %v1680, %v1815
    %v1891 = vadd.f32 %v1681, %v1817
    %v1892 = vadd.f32 %v1682, %v1886
    %v1893 = vadd.f32 %v1683, %v1888
    %v1894 = vxor.u32 %v1890, 2147483648
    %v1895 = vmul.f32 %v1894, 1.442695
    %v1896 = vpow.pop %v1895
    %v1897 = vadd.f32 %v1896, 1.0
    %v1898 = vrcp.pop %v1897
    %v1899 = vmul.f32 1.0, %v1898
    %v1900 = vxor.u32 %v1891, 2147483648
    %v1901 = vmul.f32 %v1900, 1.442695
    %v1902 = vpow.pop %v1901
    %v1903 = vadd.f32 %v1902, 1.0
    %v1904 = vrcp.pop %v1903
    %v1905 = vmul.f32 1.0, %v1904
    %v1906 = vtanh.pop %v1892
    %v1907 = vxor.u32 %v1893, 2147483648
    %v1908 = vmul.f32 %v1907, 1.442695
    %v1909 = vpow.pop %v1908
    %v1910 = vadd.f32 %v1909, 1.0
    %v1911 = vrcp.pop %v1910
    %v1912 = vmul.f32 1.0, %v1911
    %v1913 = vmul.f32 %v1905, %v1678
    %v1914 = vmul.f32 %v1899, %v1906
    %v1915 = vadd.f32 %v1913, %v1914
    %v1916 = vtanh.pop %v1915
    %v1917 = vmul.f32 %v1912, %v1916
    %1918 = vst [vmem:[#allocation5] sm:$0xff] %v1915
    %1919 = vst [vmem:[#allocation4] sm:$0xff] %v1917
    %s1920 = scalar_lea.vmem [#allocation2], 40
    %1921 = vst [vmem:[%s1920] sm:$0xff] %v1917
    %v1922 = vld [vmem:[#allocation4] sm:$0xff]
    %v1923 = vld [vmem:[#allocation5] sm:$0xff]
    %s1924 = scalar_lea.vmem [#allocation3], 192
    %v1925 = vld [vmem:[%s1924] sm:$0xff]
    %v1926 = vld [vmem:[%s1924 + $0x8] sm:$0xff]
    %v1927 = vld [vmem:[%s1924 + $0x10] sm:$0xff]
    %v1928 = vld [vmem:[%s1924 + $0x18] sm:$0xff]
    %v1929 = vld [vmem:[#allocation8] sm:$0xff]
    %v1930 = vld [vmem:[#allocation8 + $0x8] sm:$0xff]
    %v1931 = vld [vmem:[#allocation8 + $0x10] sm:$0xff]
    %v1932 = vld [vmem:[#allocation8 + $0x18] sm:$0xff]
    %v1933 = vld [vmem:[#allocation8 + $0x20] sm:$0xff]
    %v1934 = vld [vmem:[#allocation8 + $0x28] sm:$0xff]
    %v1935 = vld [vmem:[#allocation8 + $0x30] sm:$0xff]
    %v1936 = vld [vmem:[#allocation8 + $0x38] sm:$0xff]
    %v1937 = vld [vmem:[#allocation8 + $0x40] sm:$0xff]
    %v1938 = vld [vmem:[#allocation8 + $0x48] sm:$0xff]
    %v1939 = vld [vmem:[#allocation8 + $0x50] sm:$0xff]
    %v1940 = vld [vmem:[#allocation8 + $0x58] sm:$0xff]
    %v1941 = vld [vmem:[#allocation8 + $0x60] sm:$0xff]
    %v1942 = vld [vmem:[#allocation8 + $0x68] sm:$0xff]
    %v1943 = vld [vmem:[#allocation8 + $0x70] sm:$0xff]
    %v1944 = vld [vmem:[#allocation8 + $0x78] sm:$0xff]
    %v1945 = vld [vmem:[#allocation8 + $0x80] sm:$0xff]
    %v1946 = vld [vmem:[#allocation8 + $0x88] sm:$0xff]
    %v1947 = vld [vmem:[#allocation8 + $0x90] sm:$0xff]
    %v1948 = vld [vmem:[#allocation8 + $0x98] sm:$0xff]
    %v1949 = vld [vmem:[#allocation8 + $0xa0] sm:$0xff]
    %v1950 = vld [vmem:[#allocation8 + $0xa8] sm:$0xff]
    %v1951 = vld [vmem:[#allocation8 + $0xb0] sm:$0xff]
    %v1952 = vld [vmem:[#allocation8 + $0xb8] sm:$0xff]
    %v1953 = vld [vmem:[#allocation8 + $0xc0] sm:$0xff]
    %v1954 = vld [vmem:[#allocation8 + $0xc8] sm:$0xff]
    %v1955 = vld [vmem:[#allocation8 + $0xd0] sm:$0xff]
    %v1956 = vld [vmem:[#allocation8 + $0xd8] sm:$0xff]
    %v1957 = vld [vmem:[#allocation8 + $0xe0] sm:$0xff]
    %v1958 = vld [vmem:[#allocation8 + $0xe8] sm:$0xff]
    %v1959 = vld [vmem:[#allocation8 + $0xf0] sm:$0xff]
    %v1960 = vld [vmem:[#allocation8 + $0xf8] sm:$0xff]
    %v1961 = vld [vmem:[#allocation8 + $0x100] sm:$0xff]
    %v1962 = vld [vmem:[#allocation8 + $0x108] sm:$0xff]
    %v1963 = vld [vmem:[#allocation8 + $0x110] sm:$0xff]
    %v1964 = vld [vmem:[#allocation8 + $0x118] sm:$0xff]
    %v1965 = vld [vmem:[#allocation8 + $0x120] sm:$0xff]
    %v1966 = vld [vmem:[#allocation8 + $0x128] sm:$0xff]
    %v1967 = vld [vmem:[#allocation8 + $0x130] sm:$0xff]
    %v1968 = vld [vmem:[#allocation8 + $0x138] sm:$0xff]
    %v1969 = vld [vmem:[#allocation8 + $0x140] sm:$0xff]
    %v1970 = vld [vmem:[#allocation8 + $0x148] sm:$0xff]
    %v1971 = vld [vmem:[#allocation8 + $0x150] sm:$0xff]
    %v1972 = vld [vmem:[#allocation8 + $0x158] sm:$0xff]
    %v1973 = vld [vmem:[#allocation8 + $0x160] sm:$0xff]
    %v1974 = vld [vmem:[#allocation8 + $0x168] sm:$0xff]
    %v1975 = vld [vmem:[#allocation8 + $0x170] sm:$0xff]
    %v1976 = vld [vmem:[#allocation8 + $0x178] sm:$0xff]
    %v1977 = vld [vmem:[#allocation8 + $0x180] sm:$0xff]
    %v1978 = vld [vmem:[#allocation8 + $0x188] sm:$0xff]
    %v1979 = vld [vmem:[#allocation8 + $0x190] sm:$0xff]
    %v1980 = vld [vmem:[#allocation8 + $0x198] sm:$0xff]
    %v1981 = vld [vmem:[#allocation8 + $0x1a0] sm:$0xff]
    %v1982 = vld [vmem:[#allocation8 + $0x1a8] sm:$0xff]
    %v1983 = vld [vmem:[#allocation8 + $0x1b0] sm:$0xff]
    %v1984 = vld [vmem:[#allocation8 + $0x1b8] sm:$0xff]
    %v1985 = vld [vmem:[#allocation8 + $0x1c0] sm:$0xff]
    %v1986 = vld [vmem:[#allocation8 + $0x1c8] sm:$0xff]
    %v1987 = vld [vmem:[#allocation8 + $0x1d0] sm:$0xff]
    %v1988 = vld [vmem:[#allocation8 + $0x1d8] sm:$0xff]
    %v1989 = vld [vmem:[#allocation8 + $0x1e0] sm:$0xff]
    %v1990 = vld [vmem:[#allocation8 + $0x1e8] sm:$0xff]
    %v1991 = vld [vmem:[#allocation8 + $0x1f0] sm:$0xff]
    %v1992 = vld [vmem:[#allocation8 + $0x1f8] sm:$0xff]
    %1993 = vmatprep.subr.mxu0 %v1990
    %1994 = vmatpush1.msra.mxu0 %v1989
    %1995 = vmatprep.subr.mxu0 %v1986
    %1996 = vmatpush1.msra.mxu0 %v1985
    %1997 = vmatprep.subr.mxu0 %v1982
    %1998 = vmatpush1.msra.mxu0 %v1981
    %1999 = vmatprep.subr.mxu0 %v1978
    %2000 = vmatpush1.msra.mxu0 %v1977
    %2001 = vmatprep.subr.mxu0 %v1974
    %2002 = vmatpush1.msra.mxu0 %v1973
    %2003 = vmatprep.subr.mxu0 %v1970
    %2004 = vmatpush1.msra.mxu0 %v1969
    %2005 = vmatprep.subr.mxu0 %v1966
    %2006 = vmatpush1.msra.mxu0 %v1965
    %2007 = vmatprep.subr.mxu0 %v1962
    %2008 = vmatpush1.msra.mxu0 %v1961
    %2009 = vmatprep.subr.mxu0 %v1958
    %2010 = vmatpush1.msra.mxu0 %v1957
    %2011 = vmatprep.subr.mxu0 %v1954
    %2012 = vmatpush1.msra.mxu0 %v1953
    %2013 = vmatprep.subr.mxu0 %v1950
    %2014 = vmatpush1.msra.mxu0 %v1949
    %2015 = vmatprep.subr.mxu0 %v1946
    %2016 = vmatpush1.msra.mxu0 %v1945
    %2017 = vmatprep.subr.mxu0 %v1942
    %2018 = vmatpush1.msra.mxu0 %v1941
    %2019 = vmatprep.subr.mxu0 %v1938
    %2020 = vmatpush1.msra.mxu0 %v1937
    %2021 = vmatprep.subr.mxu0 %v1934
    %2022 = vmatpush1.msra.mxu0 %v1933
    %2023 = vmatprep.subr.mxu0 %v1930
    %2024 = vmatpush1.msra.mxu0 %v1929
    %2025 = vmatprep.subr.mxu0 0.0
    %2026 = vmatpush2.msra.mxu0 0.0
    %2027 = vmatprep.subr.mxu0 0.0
    %2028 = vmatpush2.msra.mxu0 0.0
    %2029 = vmatprep.subr.mxu0 0.0
    %2030 = vmatpush2.msra.mxu0 0.0
    %2031 = vmatprep.subr.mxu0 0.0
    %2032 = vmatpush2.msra.mxu0 0.0
    %2033 = vmatprep.subr.mxu0 0.0
    %2034 = vmatpush2.msra.mxu0 0.0
    %2035 = vmatprep.subr.mxu0 0.0
    %2036 = vmatpush2.msra.mxu0 0.0
    %2037 = vmatprep.subr.mxu0 0.0
    %2038 = vmatpush2.msra.mxu0 0.0
    %2039 = vmatprep.subr.mxu0 0.0
    %2040 = vmatpush2.msra.mxu0 0.0
    %2041 = vmatprep.subr.mxu0 0.0
    %2042 = vmatpush2.msra.mxu0 0.0
    %2043 = vmatprep.subr.mxu0 0.0
    %2044 = vmatpush2.msra.mxu0 0.0
    %2045 = vmatprep.subr.mxu0 0.0
    %2046 = vmatpush2.msra.mxu0 0.0
    %2047 = vmatprep.subr.mxu0 0.0
    %2048 = vmatpush2.msra.mxu0 0.0
    %2049 = vmatprep.subr.mxu0 0.0
    %2050 = vmatpush2.msra.mxu0 0.0
    %2051 = vmatprep.subr.mxu0 0.0
    %2052 = vmatpush2.msra.mxu0 0.0
    %2053 = vmatprep.subr.mxu0 0.0
    %2054 = vmatpush2.msra.mxu0 0.0
    %2055 = vmatprep.subr.mxu0 0.0
    %2056 = vmatpush2.msra.mxu0 0.0
    %2057 = vmatprep.mubr.f32.mxu0 0.0
    %2058 = vmatmul.mubr.f32.gmra.mxu0 %v1922
    %v2059 = vpop.f32.mrf.mxu0
    %v2060 = vadd.f32 0.0, %v2059
    %v2061 = vpop.f32.mrf.mxu0
    %v2062 = vadd.f32 0.0, %v2061
    %2063 = vdwg.mxu0
    %2064 = vmatprep.subr.mxu0 %v1992
    %2065 = vmatpush1.msra.mxu0 %v1991
    %2066 = vmatprep.subr.mxu0 %v1988
    %2067 = vmatpush1.msra.mxu0 %v1987
    %2068 = vmatprep.subr.mxu0 %v1984
    %2069 = vmatpush1.msra.mxu0 %v1983
    %2070 = vmatprep.subr.mxu0 %v1980
    %2071 = vmatpush1.msra.mxu0 %v1979
    %2072 = vmatprep.subr.mxu0 %v1976
    %2073 = vmatpush1.msra.mxu0 %v1975
    %2074 = vmatprep.subr.mxu0 %v1972
    %2075 = vmatpush1.msra.mxu0 %v1971
    %2076 = vmatprep.subr.mxu0 %v1968
    %2077 = vmatpush1.msra.mxu0 %v1967
    %2078 = vmatprep.subr.mxu0 %v1964
    %2079 = vmatpush1.msra.mxu0 %v1963
    %2080 = vmatprep.subr.mxu0 %v1960
    %2081 = vmatpush1.msra.mxu0 %v1959
    %2082 = vmatprep.subr.mxu0 %v1956
    %2083 = vmatpush1.msra.mxu0 %v1955
    %2084 = vmatprep.subr.mxu0 %v1952
    %2085 = vmatpush1.msra.mxu0 %v1951
    %2086 = vmatprep.subr.mxu0 %v1948
    %2087 = vmatpush1.msra.mxu0 %v1947
    %2088 = vmatprep.subr.mxu0 %v1944
    %2089 = vmatpush1.msra.mxu0 %v1943
    %2090 = vmatprep.subr.mxu0 %v1940
    %2091 = vmatpush1.msra.mxu0 %v1939
    %2092 = vmatprep.subr.mxu0 %v1936
    %2093 = vmatpush1.msra.mxu0 %v1935
    %2094 = vmatprep.subr.mxu0 %v1932
    %2095 = vmatpush1.msra.mxu0 %v1931
    %2096 = vmatprep.subr.mxu0 0.0
    %2097 = vmatpush2.msra.mxu0 0.0
    %2098 = vmatprep.subr.mxu0 0.0
    %2099 = vmatpush2.msra.mxu0 0.0
    %2100 = vmatprep.subr.mxu0 0.0
    %2101 = vmatpush2.msra.mxu0 0.0
    %2102 = vmatprep.subr.mxu0 0.0
    %2103 = vmatpush2.msra.mxu0 0.0
    %2104 = vmatprep.subr.mxu0 0.0
    %2105 = vmatpush2.msra.mxu0 0.0
    %2106 = vmatprep.subr.mxu0 0.0
    %2107 = vmatpush2.msra.mxu0 0.0
    %2108 = vmatprep.subr.mxu0 0.0
    %2109 = vmatpush2.msra.mxu0 0.0
    %2110 = vmatprep.subr.mxu0 0.0
    %2111 = vmatpush2.msra.mxu0 0.0
    %2112 = vmatprep.subr.mxu0 0.0
    %2113 = vmatpush2.msra.mxu0 0.0
    %2114 = vmatprep.subr.mxu0 0.0
    %2115 = vmatpush2.msra.mxu0 0.0
    %2116 = vmatprep.subr.mxu0 0.0
    %2117 = vmatpush2.msra.mxu0 0.0
    %2118 = vmatprep.subr.mxu0 0.0
    %2119 = vmatpush2.msra.mxu0 0.0
    %2120 = vmatprep.subr.mxu0 0.0
    %2121 = vmatpush2.msra.mxu0 0.0
    %2122 = vmatprep.subr.mxu0 0.0
    %2123 = vmatpush2.msra.mxu0 0.0
    %2124 = vmatprep.subr.mxu0 0.0
    %2125 = vmatpush2.msra.mxu0 0.0
    %2126 = vmatprep.subr.mxu0 0.0
    %2127 = vmatpush2.msra.mxu0 0.0
    %2128 = vmatprep.mubr.f32.mxu0 0.0
    %2129 = vmatmul.mubr.f32.gmra.mxu0 %v1922
    %v2130 = vpop.f32.mrf.mxu0
    %v2131 = vadd.f32 0.0, %v2130
    %v2132 = vpop.f32.mrf.mxu0
    %v2133 = vadd.f32 0.0, %v2132
    %2134 = vdwg.mxu0
    %v2135 = vadd.f32 %v1925, %v2060
    %v2136 = vadd.f32 %v1926, %v2062
    %v2137 = vadd.f32 %v1927, %v2131
    %v2138 = vadd.f32 %v1928, %v2133
    %v2139 = vxor.u32 %v2135, 2147483648
    %v2140 = vmul.f32 %v2139, 1.442695
    %v2141 = vpow.pop %v2140
    %v2142 = vadd.f32 %v2141, 1.0
    %v2143 = vrcp.pop %v2142
    %v2144 = vmul.f32 1.0, %v2143
    %v2145 = vxor.u32 %v2136, 2147483648
    %v2146 = vmul.f32 %v2145, 1.442695
    %v2147 = vpow.pop %v2146
    %v2148 = vadd.f32 %v2147, 1.0
    %v2149 = vrcp.pop %v2148
    %v2150 = vmul.f32 1.0, %v2149
    %v2151 = vtanh.pop %v2137
    %v2152 = vxor.u32 %v2138, 2147483648
    %v2153 = vmul.f32 %v2152, 1.442695
    %v2154 = vpow.pop %v2153
    %v2155 = vadd.f32 %v2154, 1.0
    %v2156 = vrcp.pop %v2155
    %v2157 = vmul.f32 1.0, %v2156
    %v2158 = vmul.f32 %v2150, %v1923
    %v2159 = vmul.f32 %v2144, %v2151
    %v2160 = vadd.f32 %v2158, %v2159
    %v2161 = vtanh.pop %v2160
    %v2162 = vmul.f32 %v2157, %v2161
    %2163 = vst [vmem:[#allocation5] sm:$0xff] %v2160
    %2164 = vst [vmem:[#allocation4] sm:$0xff] %v2162
    %s2165 = scalar_lea.vmem [#allocation2], 48
    %2166 = vst [vmem:[%s2165] sm:$0xff] %v2162
    %v2167 = vld [vmem:[#allocation4] sm:$0xff]
    %v2168 = vld [vmem:[#allocation5] sm:$0xff]
    %s2169 = scalar_lea.vmem [#allocation3], 224
    %v2170 = vld [vmem:[%s2169] sm:$0xff]
    %v2171 = vld [vmem:[%s2169 + $0x8] sm:$0xff]
    %v2172 = vld [vmem:[%s2169 + $0x10] sm:$0xff]
    %v2173 = vld [vmem:[%s2169 + $0x18] sm:$0xff]
    %v2174 = vld [vmem:[#allocation8] sm:$0xff]
    %v2175 = vld [vmem:[#allocation8 + $0x8] sm:$0xff]
    %v2176 = vld [vmem:[#allocation8 + $0x10] sm:$0xff]
    %v2177 = vld [vmem:[#allocation8 + $0x18] sm:$0xff]
    %v2178 = vld [vmem:[#allocation8 + $0x20] sm:$0xff]
    %v2179 = vld [vmem:[#allocation8 + $0x28] sm:$0xff]
    %v2180 = vld [vmem:[#allocation8 + $0x30] sm:$0xff]
    %v2181 = vld [vmem:[#allocation8 + $0x38] sm:$0xff]
    %v2182 = vld [vmem:[#allocation8 + $0x40] sm:$0xff]
    %v2183 = vld [vmem:[#allocation8 + $0x48] sm:$0xff]
    %v2184 = vld [vmem:[#allocation8 + $0x50] sm:$0xff]
    %v2185 = vld [vmem:[#allocation8 + $0x58] sm:$0xff]
    %v2186 = vld [vmem:[#allocation8 + $0x60] sm:$0xff]
    %v2187 = vld [vmem:[#allocation8 + $0x68] sm:$0xff]
    %v2188 = vld [vmem:[#allocation8 + $0x70] sm:$0xff]
    %v2189 = vld [vmem:[#allocation8 + $0x78] sm:$0xff]
    %v2190 = vld [vmem:[#allocation8 + $0x80] sm:$0xff]
    %v2191 = vld [vmem:[#allocation8 + $0x88] sm:$0xff]
    %v2192 = vld [vmem:[#allocation8 + $0x90] sm:$0xff]
    %v2193 = vld [vmem:[#allocation8 + $0x98] sm:$0xff]
    %v2194 = vld [vmem:[#allocation8 + $0xa0] sm:$0xff]
    %v2195 = vld [vmem:[#allocation8 + $0xa8] sm:$0xff]
    %v2196 = vld [vmem:[#allocation8 + $0xb0] sm:$0xff]
    %v2197 = vld [vmem:[#allocation8 + $0xb8] sm:$0xff]
    %v2198 = vld [vmem:[#allocation8 + $0xc0] sm:$0xff]
    %v2199 = vld [vmem:[#allocation8 + $0xc8] sm:$0xff]
    %v2200 = vld [vmem:[#allocation8 + $0xd0] sm:$0xff]
    %v2201 = vld [vmem:[#allocation8 + $0xd8] sm:$0xff]
    %v2202 = vld [vmem:[#allocation8 + $0xe0] sm:$0xff]
    %v2203 = vld [vmem:[#allocation8 + $0xe8] sm:$0xff]
    %v2204 = vld [vmem:[#allocation8 + $0xf0] sm:$0xff]
    %v2205 = vld [vmem:[#allocation8 + $0xf8] sm:$0xff]
    %v2206 = vld [vmem:[#allocation8 + $0x100] sm:$0xff]
    %v2207 = vld [vmem:[#allocation8 + $0x108] sm:$0xff]
    %v2208 = vld [vmem:[#allocation8 + $0x110] sm:$0xff]
    %v2209 = vld [vmem:[#allocation8 + $0x118] sm:$0xff]
    %v2210 = vld [vmem:[#allocation8 + $0x120] sm:$0xff]
    %v2211 = vld [vmem:[#allocation8 + $0x128] sm:$0xff]
    %v2212 = vld [vmem:[#allocation8 + $0x130] sm:$0xff]
    %v2213 = vld [vmem:[#allocation8 + $0x138] sm:$0xff]
    %v2214 = vld [vmem:[#allocation8 + $0x140] sm:$0xff]
    %v2215 = vld [vmem:[#allocation8 + $0x148] sm:$0xff]
    %v2216 = vld [vmem:[#allocation8 + $0x150] sm:$0xff]
    %v2217 = vld [vmem:[#allocation8 + $0x158] sm:$0xff]
    %v2218 = vld [vmem:[#allocation8 + $0x160] sm:$0xff]
    %v2219 = vld [vmem:[#allocation8 + $0x168] sm:$0xff]
    %v2220 = vld [vmem:[#allocation8 + $0x170] sm:$0xff]
    %v2221 = vld [vmem:[#allocation8 + $0x178] sm:$0xff]
    %v2222 = vld [vmem:[#allocation8 + $0x180] sm:$0xff]
    %v2223 = vld [vmem:[#allocation8 + $0x188] sm:$0xff]
    %v2224 = vld [vmem:[#allocation8 + $0x190] sm:$0xff]
    %v2225 = vld [vmem:[#allocation8 + $0x198] sm:$0xff]
    %v2226 = vld [vmem:[#allocation8 + $0x1a0] sm:$0xff]
    %v2227 = vld [vmem:[#allocation8 + $0x1a8] sm:$0xff]
    %v2228 = vld [vmem:[#allocation8 + $0x1b0] sm:$0xff]
    %v2229 = vld [vmem:[#allocation8 + $0x1b8] sm:$0xff]
    %v2230 = vld [vmem:[#allocation8 + $0x1c0] sm:$0xff]
    %v2231 = vld [vmem:[#allocation8 + $0x1c8] sm:$0xff]
    %v2232 = vld [vmem:[#allocation8 + $0x1d0] sm:$0xff]
    %v2233 = vld [vmem:[#allocation8 + $0x1d8] sm:$0xff]
    %v2234 = vld [vmem:[#allocation8 + $0x1e0] sm:$0xff]
    %v2235 = vld [vmem:[#allocation8 + $0x1e8] sm:$0xff]
    %v2236 = vld [vmem:[#allocation8 + $0x1f0] sm:$0xff]
    %v2237 = vld [vmem:[#allocation8 + $0x1f8] sm:$0xff]
    %2238 = vmatprep.subr.mxu0 %v2235
    %2239 = vmatpush1.msra.mxu0 %v2234
    %2240 = vmatprep.subr.mxu0 %v2231
    %2241 = vmatpush1.msra.mxu0 %v2230
    %2242 = vmatprep.subr.mxu0 %v2227
    %2243 = vmatpush1.msra.mxu0 %v2226
    %2244 = vmatprep.subr.mxu0 %v2223
    %2245 = vmatpush1.msra.mxu0 %v2222
    %2246 = vmatprep.subr.mxu0 %v2219
    %2247 = vmatpush1.msra.mxu0 %v2218
    %2248 = vmatprep.subr.mxu0 %v2215
    %2249 = vmatpush1.msra.mxu0 %v2214
    %2250 = vmatprep.subr.mxu0 %v2211
    %2251 = vmatpush1.msra.mxu0 %v2210
    %2252 = vmatprep.subr.mxu0 %v2207
    %2253 = vmatpush1.msra.mxu0 %v2206
    %2254 = vmatprep.subr.mxu0 %v2203
    %2255 = vmatpush1.msra.mxu0 %v2202
    %2256 = vmatprep.subr.mxu0 %v2199
    %2257 = vmatpush1.msra.mxu0 %v2198
    %2258 = vmatprep.subr.mxu0 %v2195
    %2259 = vmatpush1.msra.mxu0 %v2194
    %2260 = vmatprep.subr.mxu0 %v2191
    %2261 = vmatpush1.msra.mxu0 %v2190
    %2262 = vmatprep.subr.mxu0 %v2187
    %2263 = vmatpush1.msra.mxu0 %v2186
    %2264 = vmatprep.subr.mxu0 %v2183
    %2265 = vmatpush1.msra.mxu0 %v2182
    %2266 = vmatprep.subr.mxu0 %v2179
    %2267 = vmatpush1.msra.mxu0 %v2178
    %2268 = vmatprep.subr.mxu0 %v2175
    %2269 = vmatpush1.msra.mxu0 %v2174
    %2270 = vmatprep.subr.mxu0 0.0
    %2271 = vmatpush2.msra.mxu0 0.0
    %2272 = vmatprep.subr.mxu0 0.0
    %2273 = vmatpush2.msra.mxu0 0.0
    %2274 = vmatprep.subr.mxu0 0.0
    %2275 = vmatpush2.msra.mxu0 0.0
    %2276 = vmatprep.subr.mxu0 0.0
    %2277 = vmatpush2.msra.mxu0 0.0
    %2278 = vmatprep.subr.mxu0 0.0
    %2279 = vmatpush2.msra.mxu0 0.0
    %2280 = vmatprep.subr.mxu0 0.0
    %2281 = vmatpush2.msra.mxu0 0.0
    %2282 = vmatprep.subr.mxu0 0.0
    %2283 = vmatpush2.msra.mxu0 0.0
    %2284 = vmatprep.subr.mxu0 0.0
    %2285 = vmatpush2.msra.mxu0 0.0
    %2286 = vmatprep.subr.mxu0 0.0
    %2287 = vmatpush2.msra.mxu0 0.0
    %2288 = vmatprep.subr.mxu0 0.0
    %2289 = vmatpush2.msra.mxu0 0.0
    %2290 = vmatprep.subr.mxu0 0.0
    %2291 = vmatpush2.msra.mxu0 0.0
    %2292 = vmatprep.subr.mxu0 0.0
    %2293 = vmatpush2.msra.mxu0 0.0
    %2294 = vmatprep.subr.mxu0 0.0
    %2295 = vmatpush2.msra.mxu0 0.0
    %2296 = vmatprep.subr.mxu0 0.0
    %2297 = vmatpush2.msra.mxu0 0.0
    %2298 = vmatprep.subr.mxu0 0.0
    %2299 = vmatpush2.msra.mxu0 0.0
    %2300 = vmatprep.subr.mxu0 0.0
    %2301 = vmatpush2.msra.mxu0 0.0
    %2302 = vmatprep.mubr.f32.mxu0 0.0
    %2303 = vmatmul.mubr.f32.gmra.mxu0 %v2167
    %v2304 = vpop.f32.mrf.mxu0
    %v2305 = vadd.f32 0.0, %v2304
    %v2306 = vpop.f32.mrf.mxu0
    %v2307 = vadd.f32 0.0, %v2306
    %2308 = vdwg.mxu0
    %2309 = vmatprep.subr.mxu0 %v2237
    %2310 = vmatpush1.msra.mxu0 %v2236
    %2311 = vmatprep.subr.mxu0 %v2233
    %2312 = vmatpush1.msra.mxu0 %v2232
    %2313 = vmatprep.subr.mxu0 %v2229
    %2314 = vmatpush1.msra.mxu0 %v2228
    %2315 = vmatprep.subr.mxu0 %v2225
    %2316 = vmatpush1.msra.mxu0 %v2224
    %2317 = vmatprep.subr.mxu0 %v2221
    %2318 = vmatpush1.msra.mxu0 %v2220
    %2319 = vmatprep.subr.mxu0 %v2217
    %2320 = vmatpush1.msra.mxu0 %v2216
    %2321 = vmatprep.subr.mxu0 %v2213
    %2322 = vmatpush1.msra.mxu0 %v2212
    %2323 = vmatprep.subr.mxu0 %v2209
    %2324 = vmatpush1.msra.mxu0 %v2208
    %2325 = vmatprep.subr.mxu0 %v2205
    %2326 = vmatpush1.msra.mxu0 %v2204
    %2327 = vmatprep.subr.mxu0 %v2201
    %2328 = vmatpush1.msra.mxu0 %v2200
    %2329 = vmatprep.subr.mxu0 %v2197
    %2330 = vmatpush1.msra.mxu0 %v2196
    %2331 = vmatprep.subr.mxu0 %v2193
    %2332 = vmatpush1.msra.mxu0 %v2192
    %2333 = vmatprep.subr.mxu0 %v2189
    %2334 = vmatpush1.msra.mxu0 %v2188
    %2335 = vmatprep.subr.mxu0 %v2185
    %2336 = vmatpush1.msra.mxu0 %v2184
    %2337 = vmatprep.subr.mxu0 %v2181
    %2338 = vmatpush1.msra.mxu0 %v2180
    %2339 = vmatprep.subr.mxu0 %v2177
    %2340 = vmatpush1.msra.mxu0 %v2176
    %2341 = vmatprep.subr.mxu0 0.0
    %2342 = vmatpush2.msra.mxu0 0.0
    %2343 = vmatprep.subr.mxu0 0.0
    %2344 = vmatpush2.msra.mxu0 0.0
    %2345 = vmatprep.subr.mxu0 0.0
    %2346 = vmatpush2.msra.mxu0 0.0
    %2347 = vmatprep.subr.mxu0 0.0
    %2348 = vmatpush2.msra.mxu0 0.0
    %2349 = vmatprep.subr.mxu0 0.0
    %2350 = vmatpush2.msra.mxu0 0.0
    %2351 = vmatprep.subr.mxu0 0.0
    %2352 = vmatpush2.msra.mxu0 0.0
    %2353 = vmatprep.subr.mxu0 0.0
    %2354 = vmatpush2.msra.mxu0 0.0
    %2355 = vmatprep.subr.mxu0 0.0
    %2356 = vmatpush2.msra.mxu0 0.0
    %2357 = vmatprep.subr.mxu0 0.0
    %2358 = vmatpush2.msra.mxu0 0.0
    %2359 = vmatprep.subr.mxu0 0.0
    %2360 = vmatpush2.msra.mxu0 0.0
    %2361 = vmatprep.subr.mxu0 0.0
    %2362 = vmatpush2.msra.mxu0 0.0
    %2363 = vmatprep.subr.mxu0 0.0
    %2364 = vmatpush2.msra.mxu0 0.0
    %2365 = vmatprep.subr.mxu0 0.0
    %2366 = vmatpush2.msra.mxu0 0.0
    %2367 = vmatprep.subr.mxu0 0.0
    %2368 = vmatpush2.msra.mxu0 0.0
    %2369 = vmatprep.subr.mxu0 0.0
    %2370 = vmatpush2.msra.mxu0 0.0
    %2371 = vmatprep.subr.mxu0 0.0
    %2372 = vmatpush2.msra.mxu0 0.0
    %2373 = vmatprep.mubr.f32.mxu0 0.0
    %2374 = vmatmul.mubr.f32.gmra.mxu0 %v2167
    %v2375 = vpop.f32.mrf.mxu0
    %v2376 = vadd.f32 0.0, %v2375
    %v2377 = vpop.f32.mrf.mxu0
    %v2378 = vadd.f32 0.0, %v2377
    %2379 = vdwg.mxu0
    %v2380 = vadd.f32 %v2170, %v2305
    %v2381 = vadd.f32 %v2171, %v2307
    %v2382 = vadd.f32 %v2172, %v2376
    %v2383 = vadd.f32 %v2173, %v2378
    %v2384 = vxor.u32 %v2380, 2147483648
    %v2385 = vmul.f32 %v2384, 1.442695
    %v2386 = vpow.pop %v2385
    %v2387 = vadd.f32 %v2386, 1.0
    %v2388 = vrcp.pop %v2387
    %v2389 = vmul.f32 1.0, %v2388
    %v2390 = vxor.u32 %v2381, 2147483648
    %v2391 = vmul.f32 %v2390, 1.442695
    %v2392 = vpow.pop %v2391
    %v2393 = vadd.f32 %v2392, 1.0
    %v2394 = vrcp.pop %v2393
    %v2395 = vmul.f32 1.0, %v2394
    %v2396 = vtanh.pop %v2382
    %v2397 = vxor.u32 %v2383, 2147483648
    %v2398 = vmul.f32 %v2397, 1.442695
    %v2399 = vpow.pop %v2398
    %v2400 = vadd.f32 %v2399, 1.0
    %v2401 = vrcp.pop %v2400
    %v2402 = vmul.f32 1.0, %v2401
    %v2403 = vmul.f32 %v2395, %v2168
    %v2404 = vmul.f32 %v2389, %v2396
    %v2405 = vadd.f32 %v2403, %v2404
    %v2406 = vtanh.pop %v2405
    %v2407 = vmul.f32 %v2402, %v2406
    %2408 = vst [vmem:[#allocation5] sm:$0xff] %v2405
    %2409 = vst [vmem:[#allocation4] sm:$0xff] %v2407
    %s2410 = scalar_lea.vmem [#allocation2], 56
    %2411 = vst [vmem:[%s2410] sm:$0xff] %v2407
    %v2412 = vld [vmem:[#allocation2] sm:$0xff]
    %v2413 = vld [vmem:[#allocation2 + $0x8] sm:$0xff]
    %v2414 = vld [vmem:[#allocation2 + $0x10] sm:$0xff]
    %v2415 = vld [vmem:[#allocation2 + $0x18] sm:$0xff]
    %v2416 = vld [vmem:[#allocation2 + $0x20] sm:$0xff]
    %v2417 = vld [vmem:[#allocation2 + $0x28] sm:$0xff]
    %v2418 = vld [vmem:[#allocation2 + $0x30] sm:$0xff]
    %v2419 = vld [vmem:[#allocation2 + $0x38] sm:$0xff]
    %v2420 = vld [vmem:[#allocation10] sm:$0xff]
    %v2421 = vld [vmem:[#allocation10 + $0x8] sm:$0xff]
    %v2422 = vld [vmem:[#allocation10 + $0x10] sm:$0xff]
    %v2423 = vld [vmem:[#allocation10 + $0x18] sm:$0xff]
    %v2424 = vld [vmem:[#allocation10 + $0x20] sm:$0xff]
    %v2425 = vld [vmem:[#allocation10 + $0x28] sm:$0xff]
    %v2426 = vld [vmem:[#allocation10 + $0x30] sm:$0xff]
    %v2427 = vld [vmem:[#allocation10 + $0x38] sm:$0xff]
    %v2428 = vld [vmem:[#allocation10 + $0x40] sm:$0xff]
    %v2429 = vld [vmem:[#allocation10 + $0x48] sm:$0xff]
    %v2430 = vld [vmem:[#allocation10 + $0x50] sm:$0xff]
    %v2431 = vld [vmem:[#allocation10 + $0x58] sm:$0xff]
    %v2432 = vld [vmem:[#allocation10 + $0x60] sm:$0xff]
    %v2433 = vld [vmem:[#allocation10 + $0x68] sm:$0xff]
    %v2434 = vld [vmem:[#allocation10 + $0x70] sm:$0xff]
    %v2435 = vld [vmem:[#allocation10 + $0x78] sm:$0xff]
    %v2436 = vld [vmem:[#allocation10 + $0x80] sm:$0xff]
    %v2437 = vld [vmem:[#allocation10 + $0x88] sm:$0xff]
    %v2438 = vld [vmem:[#allocation10 + $0x90] sm:$0xff]
    %v2439 = vld [vmem:[#allocation10 + $0x98] sm:$0xff]
    %v2440 = vld [vmem:[#allocation10 + $0xa0] sm:$0xff]
    %v2441 = vld [vmem:[#allocation10 + $0xa8] sm:$0xff]
    %v2442 = vld [vmem:[#allocation10 + $0xb0] sm:$0xff]
    %v2443 = vld [vmem:[#allocation10 + $0xb8] sm:$0xff]
    %v2444 = vld [vmem:[#allocation10 + $0xc0] sm:$0xff]
    %v2445 = vld [vmem:[#allocation10 + $0xc8] sm:$0xff]
    %v2446 = vld [vmem:[#allocation10 + $0xd0] sm:$0xff]
    %v2447 = vld [vmem:[#allocation10 + $0xd8] sm:$0xff]
    %v2448 = vld [vmem:[#allocation10 + $0xe0] sm:$0xff]
    %v2449 = vld [vmem:[#allocation10 + $0xe8] sm:$0xff]
    %v2450 = vld [vmem:[#allocation10 + $0xf0] sm:$0xff]
    %v2451 = vld [vmem:[#allocation10 + $0xf8] sm:$0xff]
    %v2452 = vld [vmem:[#allocation10 + $0x100] sm:$0xff]
    %v2453 = vld [vmem:[#allocation10 + $0x108] sm:$0xff]
    %v2454 = vld [vmem:[#allocation10 + $0x110] sm:$0xff]
    %v2455 = vld [vmem:[#allocation10 + $0x118] sm:$0xff]
    %v2456 = vld [vmem:[#allocation10 + $0x120] sm:$0xff]
    %v2457 = vld [vmem:[#allocation10 + $0x128] sm:$0xff]
    %v2458 = vld [vmem:[#allocation10 + $0x130] sm:$0xff]
    %v2459 = vld [vmem:[#allocation10 + $0x138] sm:$0xff]
    %v2460 = vld [vmem:[#allocation10 + $0x140] sm:$0xff]
    %v2461 = vld [vmem:[#allocation10 + $0x148] sm:$0xff]
    %v2462 = vld [vmem:[#allocation10 + $0x150] sm:$0xff]
    %v2463 = vld [vmem:[#allocation10 + $0x158] sm:$0xff]
    %v2464 = vld [vmem:[#allocation10 + $0x160] sm:$0xff]
    %v2465 = vld [vmem:[#allocation10 + $0x168] sm:$0xff]
    %v2466 = vld [vmem:[#allocation10 + $0x170] sm:$0xff]
    %v2467 = vld [vmem:[#allocation10 + $0x178] sm:$0xff]
    %v2468 = vld [vmem:[#allocation10 + $0x180] sm:$0xff]
    %v2469 = vld [vmem:[#allocation10 + $0x188] sm:$0xff]
    %v2470 = vld [vmem:[#allocation10 + $0x190] sm:$0xff]
    %v2471 = vld [vmem:[#allocation10 + $0x198] sm:$0xff]
    %v2472 = vld [vmem:[#allocation10 + $0x1a0] sm:$0xff]
    %v2473 = vld [vmem:[#allocation10 + $0x1a8] sm:$0xff]
    %v2474 = vld [vmem:[#allocation10 + $0x1b0] sm:$0xff]
    %v2475 = vld [vmem:[#allocation10 + $0x1b8] sm:$0xff]
    %v2476 = vld [vmem:[#allocation10 + $0x1c0] sm:$0xff]
    %v2477 = vld [vmem:[#allocation10 + $0x1c8] sm:$0xff]
    %v2478 = vld [vmem:[#allocation10 + $0x1d0] sm:$0xff]
    %v2479 = vld [vmem:[#allocation10 + $0x1d8] sm:$0xff]
    %v2480 = vld [vmem:[#allocation10 + $0x1e0] sm:$0xff]
    %v2481 = vld [vmem:[#allocation10 + $0x1e8] sm:$0xff]
    %v2482 = vld [vmem:[#allocation10 + $0x1f0] sm:$0xff]
    %v2483 = vld [vmem:[#allocation10 + $0x1f8] sm:$0xff]
    %v2484 = vld [vmem:[%s6] sm:$0xf]
    %v2486 = vlaneseq
    %v2487 = vshrl.u32 %v2486, 7
    %v2488 = vsub.s32 0, %v2487
    %v2489 = vrot.slane %v2484, %v2488
    %v2490 = vlaneseq
    %v2491 = vshrl.u32 %v2490, 7
    %v2492 = vsub.s32 1, %v2491
    %v2493 = vrot.slane %v2484, %v2492
    %v2494 = vlaneseq
    %v2495 = vshrl.u32 %v2494, 7
    %v2496 = vsub.s32 2, %v2495
    %v2497 = vrot.slane %v2484, %v2496
    %v2498 = vlaneseq
    %v2499 = vshrl.u32 %v2498, 7
    %v2500 = vsub.s32 3, %v2499
    %v2501 = vrot.slane %v2484, %v2500
    %2506 = vmatprep.subr.mxu0 %v2481
    %2507 = vmatpush1.msra.mxu0 %v2480
    %2508 = vmatprep.subr.mxu0 %v2477
    %2509 = vmatpush1.msra.mxu0 %v2476
    %2510 = vmatprep.subr.mxu0 %v2473
    %2511 = vmatpush1.msra.mxu0 %v2472
    %2512 = vmatprep.subr.mxu0 %v2469
    %2513 = vmatpush1.msra.mxu0 %v2468
    %2514 = vmatprep.subr.mxu0 %v2465
    %2515 = vmatpush1.msra.mxu0 %v2464
    %2516 = vmatprep.subr.mxu0 %v2461
    %2517 = vmatpush1.msra.mxu0 %v2460
    %2518 = vmatprep.subr.mxu0 %v2457
    %2519 = vmatpush1.msra.mxu0 %v2456
    %2520 = vmatprep.subr.mxu0 %v2453
    %2521 = vmatpush1.msra.mxu0 %v2452
    %2522 = vmatprep.subr.mxu0 %v2449
    %2523 = vmatpush1.msra.mxu0 %v2448
    %2524 = vmatprep.subr.mxu0 %v2445
    %2525 = vmatpush1.msra.mxu0 %v2444
    %2526 = vmatprep.subr.mxu0 %v2441
    %2527 = vmatpush1.msra.mxu0 %v2440
    %2528 = vmatprep.subr.mxu0 %v2437
    %2529 = vmatpush1.msra.mxu0 %v2436
    %2530 = vmatprep.subr.mxu0 %v2433
    %2531 = vmatpush1.msra.mxu0 %v2432
    %2532 = vmatprep.subr.mxu0 %v2429
    %2533 = vmatpush1.msra.mxu0 %v2428
    %2534 = vmatprep.subr.mxu0 %v2425
    %2535 = vmatpush1.msra.mxu0 %v2424
    %2536 = vmatprep.subr.mxu0 %v2421
    %2537 = vmatpush1.msra.mxu0 %v2420
    %2538 = vmatprep.subr.mxu0 0.0
    %2539 = vmatpush2.msra.mxu0 0.0
    %2540 = vmatprep.subr.mxu0 0.0
    %2541 = vmatpush2.msra.mxu0 0.0
    %2542 = vmatprep.subr.mxu0 0.0
    %2543 = vmatpush2.msra.mxu0 0.0
    %2544 = vmatprep.subr.mxu0 0.0
    %2545 = vmatpush2.msra.mxu0 0.0
    %2546 = vmatprep.subr.mxu0 0.0
    %2547 = vmatpush2.msra.mxu0 0.0
    %2548 = vmatprep.subr.mxu0 0.0
    %2549 = vmatpush2.msra.mxu0 0.0
    %2550 = vmatprep.subr.mxu0 0.0
    %2551 = vmatpush2.msra.mxu0 0.0
    %2552 = vmatprep.subr.mxu0 0.0
    %2553 = vmatpush2.msra.mxu0 0.0
    %2554 = vmatprep.subr.mxu0 0.0
    %2555 = vmatpush2.msra.mxu0 0.0
    %2556 = vmatprep.subr.mxu0 0.0
    %2557 = vmatpush2.msra.mxu0 0.0
    %2558 = vmatprep.subr.mxu0 0.0
    %2559 = vmatpush2.msra.mxu0 0.0
    %2560 = vmatprep.subr.mxu0 0.0
    %2561 = vmatpush2.msra.mxu0 0.0
    %2562 = vmatprep.subr.mxu0 0.0
    %2563 = vmatpush2.msra.mxu0 0.0
    %2564 = vmatprep.subr.mxu0 0.0
    %2565 = vmatpush2.msra.mxu0 0.0
    %2566 = vmatprep.subr.mxu0 0.0
    %2567 = vmatpush2.msra.mxu0 0.0
    %2568 = vmatprep.subr.mxu0 0.0
    %2569 = vmatpush2.msra.mxu0 0.0
    %2570 = vmatprep.mubr.f32.mxu0 0.0
    %2571 = vmatmul.mubr.f32.gmra.mxu0 %v2412
    %v2572 = vpop.f32.mrf.mxu0
    %v2573 = vadd.f32 %v2489, %v2572
    %v2574 = vpop.f32.mrf.mxu0
    %v2575 = vadd.f32 %v2493, %v2574
    %2576 = vmatprep.mubr.f32.mxu0 0.0
    %2577 = vmatmul.mubr.f32.gmra.mxu0 %v2413
    %v2578 = vpop.f32.mrf.mxu0
    %v2579 = vadd.f32 %v2489, %v2578
    %v2580 = vpop.f32.mrf.mxu0
    %v2581 = vadd.f32 %v2493, %v2580
    %2582 = vmatprep.mubr.f32.mxu0 0.0
    %2583 = vmatmul.mubr.f32.gmra.mxu0 %v2414
    %v2584 = vpop.f32.mrf.mxu0
    %v2585 = vadd.f32 %v2489, %v2584
    %v2586 = vpop.f32.mrf.mxu0
    %v2587 = vadd.f32 %v2493, %v2586
    %2588 = vmatprep.mubr.f32.mxu0 0.0
    %2589 = vmatmul.mubr.f32.gmra.mxu0 %v2415
    %v2590 = vpop.f32.mrf.mxu0
    %v2591 = vadd.f32 %v2489, %v2590
    %v2592 = vpop.f32.mrf.mxu0
    %v2593 = vadd.f32 %v2493, %v2592
    %2594 = vmatprep.mubr.f32.mxu0 0.0
    %2595 = vmatmul.mubr.f32.gmra.mxu0 %v2416
    %v2596 = vpop.f32.mrf.mxu0
    %v2597 = vadd.f32 %v2489, %v2596
    %v2598 = vpop.f32.mrf.mxu0
    %v2599 = vadd.f32 %v2493, %v2598
    %2600 = vmatprep.mubr.f32.mxu0 0.0
    %2601 = vmatmul.mubr.f32.gmra.mxu0 %v2417
    %v2602 = vpop.f32.mrf.mxu0
    %v2603 = vadd.f32 %v2489, %v2602
    %v2604 = vpop.f32.mrf.mxu0
    %v2605 = vadd.f32 %v2493, %v2604
    %2606 = vmatprep.mubr.f32.mxu0 0.0
    %2607 = vmatmul.mubr.f32.gmra.mxu0 %v2418
    %v2608 = vpop.f32.mrf.mxu0
    %v2609 = vadd.f32 %v2489, %v2608
    %v2610 = vpop.f32.mrf.mxu0
    %v2611 = vadd.f32 %v2493, %v2610
    %2612 = vmatprep.mubr.f32.mxu0 0.0
    %2613 = vmatmul.mubr.f32.gmra.mxu0 %v2419
    %v2614 = vpop.f32.mrf.mxu0
    %v2615 = vadd.f32 %v2489, %v2614
    %v2616 = vpop.f32.mrf.mxu0
    %v2617 = vadd.f32 %v2493, %v2616
    %2618 = vdwg.mxu0
    %2619 = vmatprep.subr.mxu0 %v2483
    %2620 = vmatpush1.msra.mxu0 %v2482
    %2621 = vmatprep.subr.mxu0 %v2479
    %2622 = vmatpush1.msra.mxu0 %v2478
    %2623 = vmatprep.subr.mxu0 %v2475
    %2624 = vmatpush1.msra.mxu0 %v2474
    %2625 = vmatprep.subr.mxu0 %v2471
    %2626 = vmatpush1.msra.mxu0 %v2470
    %2627 = vmatprep.subr.mxu0 %v2467
    %2628 = vmatpush1.msra.mxu0 %v2466
    %2629 = vmatprep.subr.mxu0 %v2463
    %2630 = vmatpush1.msra.mxu0 %v2462
    %2631 = vmatprep.subr.mxu0 %v2459
    %2632 = vmatpush1.msra.mxu0 %v2458
    %2633 = vmatprep.subr.mxu0 %v2455
    %2634 = vmatpush1.msra.mxu0 %v2454
    %2635 = vmatprep.subr.mxu0 %v2451
    %2636 = vmatpush1.msra.mxu0 %v2450
    %2637 = vmatprep.subr.mxu0 %v2447
    %2638 = vmatpush1.msra.mxu0 %v2446
    %2639 = vmatprep.subr.mxu0 %v2443
    %2640 = vmatpush1.msra.mxu0 %v2442
    %2641 = vmatprep.subr.mxu0 %v2439
    %2642 = vmatpush1.msra.mxu0 %v2438
    %2643 = vmatprep.subr.mxu0 %v2435
    %2644 = vmatpush1.msra.mxu0 %v2434
    %2645 = vmatprep.subr.mxu0 %v2431
    %2646 = vmatpush1.msra.mxu0 %v2430
    %2647 = vmatprep.subr.mxu0 %v2427
    %2648 = vmatpush1.msra.mxu0 %v2426
    %2649 = vmatprep.subr.mxu0 %v2423
    %2650 = vmatpush1.msra.mxu0 %v2422
    %2651 = vmatprep.subr.mxu0 0.0
    %2652 = vmatpush2.msra.mxu0 0.0
    %2653 = vmatprep.subr.mxu0 0.0
    %2654 = vmatpush2.msra.mxu0 0.0
    %2655 = vmatprep.subr.mxu0 0.0
    %2656 = vmatpush2.msra.mxu0 0.0
    %2657 = vmatprep.subr.mxu0 0.0
    %2658 = vmatpush2.msra.mxu0 0.0
    %2659 = vmatprep.subr.mxu0 0.0
    %2660 = vmatpush2.msra.mxu0 0.0
    %2661 = vmatprep.subr.mxu0 0.0
    %2662 = vmatpush2.msra.mxu0 0.0
    %2663 = vmatprep.subr.mxu0 0.0
    %2664 = vmatpush2.msra.mxu0 0.0
    %2665 = vmatprep.subr.mxu0 0.0
    %2666 = vmatpush2.msra.mxu0 0.0
    %2667 = vmatprep.subr.mxu0 0.0
    %2668 = vmatpush2.msra.mxu0 0.0
    %2669 = vmatprep.subr.mxu0 0.0
    %2670 = vmatpush2.msra.mxu0 0.0
    %2671 = vmatprep.subr.mxu0 0.0
    %2672 = vmatpush2.msra.mxu0 0.0
    %2673 = vmatprep.subr.mxu0 0.0
    %2674 = vmatpush2.msra.mxu0 0.0
    %2675 = vmatprep.subr.mxu0 0.0
    %2676 = vmatpush2.msra.mxu0 0.0
    %2677 = vmatprep.subr.mxu0 0.0
    %2678 = vmatpush2.msra.mxu0 0.0
    %2679 = vmatprep.subr.mxu0 0.0
    %2680 = vmatpush2.msra.mxu0 0.0
    %2681 = vmatprep.subr.mxu0 0.0
    %2682 = vmatpush2.msra.mxu0 0.0
    %2683 = vmatprep.mubr.f32.mxu0 0.0
    %2684 = vmatmul.mubr.f32.gmra.mxu0 %v2412
    %v2685 = vpop.f32.mrf.mxu0
    %v2686 = vadd.f32 %v2497, %v2685
    %v2687 = vpop.f32.mrf.mxu0
    %v2688 = vadd.f32 %v2501, %v2687
    %2689 = vmatprep.mubr.f32.mxu0 0.0
    %2690 = vmatmul.mubr.f32.gmra.mxu0 %v2413
    %v2691 = vpop.f32.mrf.mxu0
    %v2692 = vadd.f32 %v2497, %v2691
    %v2693 = vpop.f32.mrf.mxu0
    %v2694 = vadd.f32 %v2501, %v2693
    %2695 = vmatprep.mubr.f32.mxu0 0.0
    %2696 = vmatmul.mubr.f32.gmra.mxu0 %v2414
    %v2697 = vpop.f32.mrf.mxu0
    %v2698 = vadd.f32 %v2497, %v2697
    %v2699 = vpop.f32.mrf.mxu0
    %v2700 = vadd.f32 %v2501, %v2699
    %2701 = vmatprep.mubr.f32.mxu0 0.0
    %2702 = vmatmul.mubr.f32.gmra.mxu0 %v2415
    %v2703 = vpop.f32.mrf.mxu0
    %v2704 = vadd.f32 %v2497, %v2703
    %v2705 = vpop.f32.mrf.mxu0
    %v2706 = vadd.f32 %v2501, %v2705
    %2707 = vmatprep.mubr.f32.mxu0 0.0
    %2708 = vmatmul.mubr.f32.gmra.mxu0 %v2416
    %v2709 = vpop.f32.mrf.mxu0
    %v2710 = vadd.f32 %v2497, %v2709
    %v2711 = vpop.f32.mrf.mxu0
    %v2712 = vadd.f32 %v2501, %v2711
    %2713 = vmatprep.mubr.f32.mxu0 0.0
    %2714 = vmatmul.mubr.f32.gmra.mxu0 %v2417
    %v2715 = vpop.f32.mrf.mxu0
    %v2716 = vadd.f32 %v2497, %v2715
    %v2717 = vpop.f32.mrf.mxu0
    %v2718 = vadd.f32 %v2501, %v2717
    %2719 = vmatprep.mubr.f32.mxu0 0.0
    %2720 = vmatmul.mubr.f32.gmra.mxu0 %v2418
    %v2721 = vpop.f32.mrf.mxu0
    %v2722 = vadd.f32 %v2497, %v2721
    %v2723 = vpop.f32.mrf.mxu0
    %v2724 = vadd.f32 %v2501, %v2723
    %2725 = vmatprep.mubr.f32.mxu0 0.0
    %2726 = vmatmul.mubr.f32.gmra.mxu0 %v2419
    %v2727 = vpop.f32.mrf.mxu0
    %v2728 = vadd.f32 %v2497, %v2727
    %v2729 = vpop.f32.mrf.mxu0
    %v2730 = vadd.f32 %v2501, %v2729
    %2731 = vdwg.mxu0
    %2732 = vst [vmem:[#allocation3] sm:$0xff] %v2573
    %2733 = vst [vmem:[#allocation3 + $0x8] sm:$0xff] %v2575
    %2734 = vst [vmem:[#allocation3 + $0x10] sm:$0xff] %v2686
    %2735 = vst [vmem:[#allocation3 + $0x18] sm:$0xff] %v2688
    %2736 = vst [vmem:[#allocation3 + $0x20] sm:$0xff] %v2579
    %2737 = vst [vmem:[#allocation3 + $0x28] sm:$0xff] %v2581
    %2738 = vst [vmem:[#allocation3 + $0x30] sm:$0xff] %v2692
    %2739 = vst [vmem:[#allocation3 + $0x38] sm:$0xff] %v2694
    %2740 = vst [vmem:[#allocation3 + $0x40] sm:$0xff] %v2585
    %2741 = vst [vmem:[#allocation3 + $0x48] sm:$0xff] %v2587
    %2742 = vst [vmem:[#allocation3 + $0x50] sm:$0xff] %v2698
    %2743 = vst [vmem:[#allocation3 + $0x58] sm:$0xff] %v2700
    %2744 = vst [vmem:[#allocation3 + $0x60] sm:$0xff] %v2591
    %2745 = vst [vmem:[#allocation3 + $0x68] sm:$0xff] %v2593
    %2746 = vst [vmem:[#allocation3 + $0x70] sm:$0xff] %v2704
    %2747 = vst [vmem:[#allocation3 + $0x78] sm:$0xff] %v2706
    %2748 = vst [vmem:[#allocation3 + $0x80] sm:$0xff] %v2597
    %2749 = vst [vmem:[#allocation3 + $0x88] sm:$0xff] %v2599
    %2750 = vst [vmem:[#allocation3 + $0x90] sm:$0xff] %v2710
    %2751 = vst [vmem:[#allocation3 + $0x98] sm:$0xff] %v2712
    %2752 = vst [vmem:[#allocation3 + $0xa0] sm:$0xff] %v2603
    %2753 = vst [vmem:[#allocation3 + $0xa8] sm:$0xff] %v2605
    %2754 = vst [vmem:[#allocation3 + $0xb0] sm:$0xff] %v2716
    %2755 = vst [vmem:[#allocation3 + $0xb8] sm:$0xff] %v2718
    %2756 = vst [vmem:[#allocation3 + $0xc0] sm:$0xff] %v2609
    %2757 = vst [vmem:[#allocation3 + $0xc8] sm:$0xff] %v2611
    %2758 = vst [vmem:[#allocation3 + $0xd0] sm:$0xff] %v2722
    %2759 = vst [vmem:[#allocation3 + $0xd8] sm:$0xff] %v2724
    %2760 = vst [vmem:[#allocation3 + $0xe0] sm:$0xff] %v2615
    %2761 = vst [vmem:[#allocation3 + $0xe8] sm:$0xff] %v2617
    %2762 = vst [vmem:[#allocation3 + $0xf0] sm:$0xff] %v2728
    %2763 = vst [vmem:[#allocation3 + $0xf8] sm:$0xff] %v2730
    %2764 = vst [vmem:[#allocation4] sm:$0xff] 0.0
    %2765 = vst [vmem:[#allocation5] sm:$0xff] 0.0
    %v2766 = vld [vmem:[#allocation4] sm:$0xff]
    %v2767 = vld [vmem:[#allocation5] sm:$0xff]
    %v2768 = vld [vmem:[#allocation3] sm:$0xff]
    %v2769 = vld [vmem:[#allocation3 + $0x8] sm:$0xff]
    %v2770 = vld [vmem:[#allocation3 + $0x10] sm:$0xff]
    %v2771 = vld [vmem:[#allocation3 + $0x18] sm:$0xff]
    %v2772 = vld [vmem:[#allocation11] sm:$0xff]
    %v2773 = vld [vmem:[#allocation11 + $0x8] sm:$0xff]
    %v2774 = vld [vmem:[#allocation11 + $0x10] sm:$0xff]
    %v2775 = vld [vmem:[#allocation11 + $0x18] sm:$0xff]
    %v2776 = vld [vmem:[#allocation11 + $0x20] sm:$0xff]
    %v2777 = vld [vmem:[#allocation11 + $0x28] sm:$0xff]
    %v2778 = vld [vmem:[#allocation11 + $0x30] sm:$0xff]
    %v2779 = vld [vmem:[#allocation11 + $0x38] sm:$0xff]
    %v2780 = vld [vmem:[#allocation11 + $0x40] sm:$0xff]
    %v2781 = vld [vmem:[#allocation11 + $0x48] sm:$0xff]
    %v2782 = vld [vmem:[#allocation11 + $0x50] sm:$0xff]
    %v2783 = vld [vmem:[#allocation11 + $0x58] sm:$0xff]
    %v2784 = vld [vmem:[#allocation11 + $0x60] sm:$0xff]
    %v2785 = vld [vmem:[#allocation11 + $0x68] sm:$0xff]
    %v2786 = vld [vmem:[#allocation11 + $0x70] sm:$0xff]
    %v2787 = vld [vmem:[#allocation11 + $0x78] sm:$0xff]
    %v2788 = vld [vmem:[#allocation11 + $0x80] sm:$0xff]
    %v2789 = vld [vmem:[#allocation11 + $0x88] sm:$0xff]
    %v2790 = vld [vmem:[#allocation11 + $0x90] sm:$0xff]
    %v2791 = vld [vmem:[#allocation11 + $0x98] sm:$0xff]
    %v2792 = vld [vmem:[#allocation11 + $0xa0] sm:$0xff]
    %v2793 = vld [vmem:[#allocation11 + $0xa8] sm:$0xff]
    %v2794 = vld [vmem:[#allocation11 + $0xb0] sm:$0xff]
    %v2795 = vld [vmem:[#allocation11 + $0xb8] sm:$0xff]
    %v2796 = vld [vmem:[#allocation11 + $0xc0] sm:$0xff]
    %v2797 = vld [vmem:[#allocation11 + $0xc8] sm:$0xff]
    %v2798 = vld [vmem:[#allocation11 + $0xd0] sm:$0xff]
    %v2799 = vld [vmem:[#allocation11 + $0xd8] sm:$0xff]
    %v2800 = vld [vmem:[#allocation11 + $0xe0] sm:$0xff]
    %v2801 = vld [vmem:[#allocation11 + $0xe8] sm:$0xff]
    %v2802 = vld [vmem:[#allocation11 + $0xf0] sm:$0xff]
    %v2803 = vld [vmem:[#allocation11 + $0xf8] sm:$0xff]
    %v2804 = vld [vmem:[#allocation11 + $0x100] sm:$0xff]
    %v2805 = vld [vmem:[#allocation11 + $0x108] sm:$0xff]
    %v2806 = vld [vmem:[#allocation11 + $0x110] sm:$0xff]
    %v2807 = vld [vmem:[#allocation11 + $0x118] sm:$0xff]
    %v2808 = vld [vmem:[#allocation11 + $0x120] sm:$0xff]
    %v2809 = vld [vmem:[#allocation11 + $0x128] sm:$0xff]
    %v2810 = vld [vmem:[#allocation11 + $0x130] sm:$0xff]
    %v2811 = vld [vmem:[#allocation11 + $0x138] sm:$0xff]
    %v2812 = vld [vmem:[#allocation11 + $0x140] sm:$0xff]
    %v2813 = vld [vmem:[#allocation11 + $0x148] sm:$0xff]
    %v2814 = vld [vmem:[#allocation11 + $0x150] sm:$0xff]
    %v2815 = vld [vmem:[#allocation11 + $0x158] sm:$0xff]
    %v2816 = vld [vmem:[#allocation11 + $0x160] sm:$0xff]
    %v2817 = vld [vmem:[#allocation11 + $0x168] sm:$0xff]
    %v2818 = vld [vmem:[#allocation11 + $0x170] sm:$0xff]
    %v2819 = vld [vmem:[#allocation11 + $0x178] sm:$0xff]
    %v2820 = vld [vmem:[#allocation11 + $0x180] sm:$0xff]
    %v2821 = vld [vmem:[#allocation11 + $0x188] sm:$0xff]
    %v2822 = vld [vmem:[#allocation11 + $0x190] sm:$0xff]
    %v2823 = vld [vmem:[#allocation11 + $0x198] sm:$0xff]
    %v2824 = vld [vmem:[#allocation11 + $0x1a0] sm:$0xff]
    %v2825 = vld [vmem:[#allocation11 + $0x1a8] sm:$0xff]
    %v2826 = vld [vmem:[#allocation11 + $0x1b0] sm:$0xff]
    %v2827 = vld [vmem:[#allocation11 + $0x1b8] sm:$0xff]
    %v2828 = vld [vmem:[#allocation11 + $0x1c0] sm:$0xff]
    %v2829 = vld [vmem:[#allocation11 + $0x1c8] sm:$0xff]
    %v2830 = vld [vmem:[#allocation11 + $0x1d0] sm:$0xff]
    %v2831 = vld [vmem:[#allocation11 + $0x1d8] sm:$0xff]
    %v2832 = vld [vmem:[#allocation11 + $0x1e0] sm:$0xff]
    %v2833 = vld [vmem:[#allocation11 + $0x1e8] sm:$0xff]
    %v2834 = vld [vmem:[#allocation11 + $0x1f0] sm:$0xff]
    %v2835 = vld [vmem:[#allocation11 + $0x1f8] sm:$0xff]
    %2836 = vmatprep.subr.mxu0 %v2833
    %2837 = vmatpush1.msra.mxu0 %v2832
    %2838 = vmatprep.subr.mxu0 %v2829
    %2839 = vmatpush1.msra.mxu0 %v2828
    %2840 = vmatprep.subr.mxu0 %v2825
    %2841 = vmatpush1.msra.mxu0 %v2824
    %2842 = vmatprep.subr.mxu0 %v2821
    %2843 = vmatpush1.msra.mxu0 %v2820
    %2844 = vmatprep.subr.mxu0 %v2817
    %2845 = vmatpush1.msra.mxu0 %v2816
    %2846 = vmatprep.subr.mxu0 %v2813
    %2847 = vmatpush1.msra.mxu0 %v2812
    %2848 = vmatprep.subr.mxu0 %v2809
    %2849 = vmatpush1.msra.mxu0 %v2808
    %2850 = vmatprep.subr.mxu0 %v2805
    %2851 = vmatpush1.msra.mxu0 %v2804
    %2852 = vmatprep.subr.mxu0 %v2801
    %2853 = vmatpush1.msra.mxu0 %v2800
    %2854 = vmatprep.subr.mxu0 %v2797
    %2855 = vmatpush1.msra.mxu0 %v2796
    %2856 = vmatprep.subr.mxu0 %v2793
    %2857 = vmatpush1.msra.mxu0 %v2792
    %2858 = vmatprep.subr.mxu0 %v2789
    %2859 = vmatpush1.msra.mxu0 %v2788
    %2860 = vmatprep.subr.mxu0 %v2785
    %2861 = vmatpush1.msra.mxu0 %v2784
    %2862 = vmatprep.subr.mxu0 %v2781
    %2863 = vmatpush1.msra.mxu0 %v2780
    %2864 = vmatprep.subr.mxu0 %v2777
    %2865 = vmatpush1.msra.mxu0 %v2776
    %2866 = vmatprep.subr.mxu0 %v2773
    %2867 = vmatpush1.msra.mxu0 %v2772
    %2868 = vmatprep.subr.mxu0 0.0
    %2869 = vmatpush2.msra.mxu0 0.0
    %2870 = vmatprep.subr.mxu0 0.0
    %2871 = vmatpush2.msra.mxu0 0.0
    %2872 = vmatprep.subr.mxu0 0.0
    %2873 = vmatpush2.msra.mxu0 0.0
    %2874 = vmatprep.subr.mxu0 0.0
    %2875 = vmatpush2.msra.mxu0 0.0
    %2876 = vmatprep.subr.mxu0 0.0
    %2877 = vmatpush2.msra.mxu0 0.0
    %2878 = vmatprep.subr.mxu0 0.0
    %2879 = vmatpush2.msra.mxu0 0.0
    %2880 = vmatprep.subr.mxu0 0.0
    %2881 = vmatpush2.msra.mxu0 0.0
    %2882 = vmatprep.subr.mxu0 0.0
    %2883 = vmatpush2.msra.mxu0 0.0
    %2884 = vmatprep.subr.mxu0 0.0
    %2885 = vmatpush2.msra.mxu0 0.0
    %2886 = vmatprep.subr.mxu0 0.0
    %2887 = vmatpush2.msra.mxu0 0.0
    %2888 = vmatprep.subr.mxu0 0.0
    %2889 = vmatpush2.msra.mxu0 0.0
    %2890 = vmatprep.subr.mxu0 0.0
    %2891 = vmatpush2.msra.mxu0 0.0
    %2892 = vmatprep.subr.mxu0 0.0
    %2893 = vmatpush2.msra.mxu0 0.0
    %2894 = vmatprep.subr.mxu0 0.0
    %2895 = vmatpush2.msra.mxu0 0.0
    %2896 = vmatprep.subr.mxu0 0.0
    %2897 = vmatpush2.msra.mxu0 0.0
    %2898 = vmatprep.subr.mxu0 0.0
    %2899 = vmatpush2.msra.mxu0 0.0
    %2900 = vmatprep.mubr.f32.mxu0 0.0
    %2901 = vmatmul.mubr.f32.gmra.mxu0 %v2766
    %v2902 = vpop.f32.mrf.mxu0
    %v2903 = vadd.f32 0.0, %v2902
    %v2904 = vpop.f32.mrf.mxu0
    %v2905 = vadd.f32 0.0, %v2904
    %2906 = vdwg.mxu0
    %2907 = vmatprep.subr.mxu0 %v2835
    %2908 = vmatpush1.msra.mxu0 %v2834
    %2909 = vmatprep.subr.mxu0 %v2831
    %2910 = vmatpush1.msra.mxu0 %v2830
    %2911 = vmatprep.subr.mxu0 %v2827
    %2912 = vmatpush1.msra.mxu0 %v2826
    %2913 = vmatprep.subr.mxu0 %v2823
    %2914 = vmatpush1.msra.mxu0 %v2822
    %2915 = vmatprep.subr.mxu0 %v2819
    %2916 = vmatpush1.msra.mxu0 %v2818
    %2917 = vmatprep.subr.mxu0 %v2815
    %2918 = vmatpush1.msra.mxu0 %v2814
    %2919 = vmatprep.subr.mxu0 %v2811
    %2920 = vmatpush1.msra.mxu0 %v2810
    %2921 = vmatprep.subr.mxu0 %v2807
    %2922 = vmatpush1.msra.mxu0 %v2806
    %2923 = vmatprep.subr.mxu0 %v2803
    %2924 = vmatpush1.msra.mxu0 %v2802
    %2925 = vmatprep.subr.mxu0 %v2799
    %2926 = vmatpush1.msra.mxu0 %v2798
    %2927 = vmatprep.subr.mxu0 %v2795
    %2928 = vmatpush1.msra.mxu0 %v2794
    %2929 = vmatprep.subr.mxu0 %v2791
    %2930 = vmatpush1.msra.mxu0 %v2790
    %2931 = vmatprep.subr.mxu0 %v2787
    %2932 = vmatpush1.msra.mxu0 %v2786
    %2933 = vmatprep.subr.mxu0 %v2783
    %2934 = vmatpush1.msra.mxu0 %v2782
    %2935 = vmatprep.subr.mxu0 %v2779
    %2936 = vmatpush1.msra.mxu0 %v2778
    %2937 = vmatprep.subr.mxu0 %v2775
    %2938 = vmatpush1.msra.mxu0 %v2774
    %2939 = vmatprep.subr.mxu0 0.0
    %2940 = vmatpush2.msra.mxu0 0.0
    %2941 = vmatprep.subr.mxu0 0.0
    %2942 = vmatpush2.msra.mxu0 0.0
    %2943 = vmatprep.subr.mxu0 0.0
    %2944 = vmatpush2.msra.mxu0 0.0
    %2945 = vmatprep.subr.mxu0 0.0
    %2946 = vmatpush2.msra.mxu0 0.0
    %2947 = vmatprep.subr.mxu0 0.0
    %2948 = vmatpush2.msra.mxu0 0.0
    %2949 = vmatprep.subr.mxu0 0.0
    %2950 = vmatpush2.msra.mxu0 0.0
    %2951 = vmatprep.subr.mxu0 0.0
    %2952 = vmatpush2.msra.mxu0 0.0
    %2953 = vmatprep.subr.mxu0 0.0
    %2954 = vmatpush2.msra.mxu0 0.0
    %2955 = vmatprep.subr.mxu0 0.0
    %2956 = vmatpush2.msra.mxu0 0.0
    %2957 = vmatprep.subr.mxu0 0.0
    %2958 = vmatpush2.msra.mxu0 0.0
    %2959 = vmatprep.subr.mxu0 0.0
    %2960 = vmatpush2.msra.mxu0 0.0
    %2961 = vmatprep.subr.mxu0 0.0
    %2962 = vmatpush2.msra.mxu0 0.0
    %2963 = vmatprep.subr.mxu0 0.0
    %2964 = vmatpush2.msra.mxu0 0.0
    %2965 = vmatprep.subr.mxu0 0.0
    %2966 = vmatpush2.msra.mxu0 0.0
    %2967 = vmatprep.subr.mxu0 0.0
    %2968 = vmatpush2.msra.mxu0 0.0
    %2969 = vmatprep.subr.mxu0 0.0
    %2970 = vmatpush2.msra.mxu0 0.0
    %2971 = vmatprep.mubr.f32.mxu0 0.0
    %2972 = vmatmul.mubr.f32.gmra.mxu0 %v2766
    %v2973 = vpop.f32.mrf.mxu0
    %v2974 = vadd.f32 0.0, %v2973
    %v2975 = vpop.f32.mrf.mxu0
    %v2976 = vadd.f32 0.0, %v2975
    %2977 = vdwg.mxu0
    %v2978 = vadd.f32 %v2768, %v2903
    %v2979 = vadd.f32 %v2769, %v2905
    %v2980 = vadd.f32 %v2770, %v2974
    %v2981 = vadd.f32 %v2771, %v2976
    %v2982 = vxor.u32 %v2978, 2147483648
    %v2983 = vmul.f32 %v2982, 1.442695
    %v2984 = vpow.pop %v2983
    %v2985 = vadd.f32 %v2984, 1.0
    %v2986 = vrcp.pop %v2985
    %v2987 = vmul.f32 1.0, %v2986
    %v2988 = vxor.u32 %v2979, 2147483648
    %v2989 = vmul.f32 %v2988, 1.442695
    %v2990 = vpow.pop %v2989
    %v2991 = vadd.f32 %v2990, 1.0
    %v2992 = vrcp.pop %v2991
    %v2993 = vmul.f32 1.0, %v2992
    %v2994 = vtanh.pop %v2980
    %v2995 = vxor.u32 %v2981, 2147483648
    %v2996 = vmul.f32 %v2995, 1.442695
    %v2997 = vpow.pop %v2996
    %v2998 = vadd.f32 %v2997, 1.0
    %v2999 = vrcp.pop %v2998
    %v3000 = vmul.f32 1.0, %v2999
    %v3001 = vmul.f32 %v2993, %v2767
    %v3002 = vmul.f32 %v2987, %v2994
    %v3003 = vadd.f32 %v3001, %v3002
    %v3004 = vtanh.pop %v3003
    %v3005 = vmul.f32 %v3000, %v3004
    %3006 = vst [vmem:[#allocation5] sm:$0xff] %v3003
    %3007 = vst [vmem:[#allocation4] sm:$0xff] %v3005
    %v3008 = vld [vmem:[#allocation4] sm:$0xff]
    %v3009 = vld [vmem:[#allocation5] sm:$0xff]
    %v3010 = vld [vmem:[%s699] sm:$0xff]
    %v3011 = vld [vmem:[%s699 + $0x8] sm:$0xff]
    %v3012 = vld [vmem:[%s699 + $0x10] sm:$0xff]
    %v3013 = vld [vmem:[%s699 + $0x18] sm:$0xff]
    %v3014 = vld [vmem:[#allocation11] sm:$0xff]
    %v3015 = vld [vmem:[#allocation11 + $0x8] sm:$0xff]
    %v3016 = vld [vmem:[#allocation11 + $0x10] sm:$0xff]
    %v3017 = vld [vmem:[#allocation11 + $0x18] sm:$0xff]
    %v3018 = vld [vmem:[#allocation11 + $0x20] sm:$0xff]
    %v3019 = vld [vmem:[#allocation11 + $0x28] sm:$0xff]
    %v3020 = vld [vmem:[#allocation11 + $0x30] sm:$0xff]
    %v3021 = vld [vmem:[#allocation11 + $0x38] sm:$0xff]
    %v3022 = vld [vmem:[#allocation11 + $0x40] sm:$0xff]
    %v3023 = vld [vmem:[#allocation11 + $0x48] sm:$0xff]
    %v3024 = vld [vmem:[#allocation11 + $0x50] sm:$0xff]
    %v3025 = vld [vmem:[#allocation11 + $0x58] sm:$0xff]
    %v3026 = vld [vmem:[#allocation11 + $0x60] sm:$0xff]
    %v3027 = vld [vmem:[#allocation11 + $0x68] sm:$0xff]
    %v3028 = vld [vmem:[#allocation11 + $0x70] sm:$0xff]
    %v3029 = vld [vmem:[#allocation11 + $0x78] sm:$0xff]
    %v3030 = vld [vmem:[#allocation11 + $0x80] sm:$0xff]
    %v3031 = vld [vmem:[#allocation11 + $0x88] sm:$0xff]
    %v3032 = vld [vmem:[#allocation11 + $0x90] sm:$0xff]
    %v3033 = vld [vmem:[#allocation11 + $0x98] sm:$0xff]
    %v3034 = vld [vmem:[#allocation11 + $0xa0] sm:$0xff]
    %v3035 = vld [vmem:[#allocation11 + $0xa8] sm:$0xff]
    %v3036 = vld [vmem:[#allocation11 + $0xb0] sm:$0xff]
    %v3037 = vld [vmem:[#allocation11 + $0xb8] sm:$0xff]
    %v3038 = vld [vmem:[#allocation11 + $0xc0] sm:$0xff]
    %v3039 = vld [vmem:[#allocation11 + $0xc8] sm:$0xff]
    %v3040 = vld [vmem:[#allocation11 + $0xd0] sm:$0xff]
    %v3041 = vld [vmem:[#allocation11 + $0xd8] sm:$0xff]
    %v3042 = vld [vmem:[#allocation11 + $0xe0] sm:$0xff]
    %v3043 = vld [vmem:[#allocation11 + $0xe8] sm:$0xff]
    %v3044 = vld [vmem:[#allocation11 + $0xf0] sm:$0xff]
    %v3045 = vld [vmem:[#allocation11 + $0xf8] sm:$0xff]
    %v3046 = vld [vmem:[#allocation11 + $0x100] sm:$0xff]
    %v3047 = vld [vmem:[#allocation11 + $0x108] sm:$0xff]
    %v3048 = vld [vmem:[#allocation11 + $0x110] sm:$0xff]
    %v3049 = vld [vmem:[#allocation11 + $0x118] sm:$0xff]
    %v3050 = vld [vmem:[#allocation11 + $0x120] sm:$0xff]
    %v3051 = vld [vmem:[#allocation11 + $0x128] sm:$0xff]
    %v3052 = vld [vmem:[#allocation11 + $0x130] sm:$0xff]
    %v3053 = vld [vmem:[#allocation11 + $0x138] sm:$0xff]
    %v3054 = vld [vmem:[#allocation11 + $0x140] sm:$0xff]
    %v3055 = vld [vmem:[#allocation11 + $0x148] sm:$0xff]
    %v3056 = vld [vmem:[#allocation11 + $0x150] sm:$0xff]
    %v3057 = vld [vmem:[#allocation11 + $0x158] sm:$0xff]
    %v3058 = vld [vmem:[#allocation11 + $0x160] sm:$0xff]
    %v3059 = vld [vmem:[#allocation11 + $0x168] sm:$0xff]
    %v3060 = vld [vmem:[#allocation11 + $0x170] sm:$0xff]
    %v3061 = vld [vmem:[#allocation11 + $0x178] sm:$0xff]
    %v3062 = vld [vmem:[#allocation11 + $0x180] sm:$0xff]
    %v3063 = vld [vmem:[#allocation11 + $0x188] sm:$0xff]
    %v3064 = vld [vmem:[#allocation11 + $0x190] sm:$0xff]
    %v3065 = vld [vmem:[#allocation11 + $0x198] sm:$0xff]
    %v3066 = vld [vmem:[#allocation11 + $0x1a0] sm:$0xff]
    %v3067 = vld [vmem:[#allocation11 + $0x1a8] sm:$0xff]
    %v3068 = vld [vmem:[#allocation11 + $0x1b0] sm:$0xff]
    %v3069 = vld [vmem:[#allocation11 + $0x1b8] sm:$0xff]
    %v3070 = vld [vmem:[#allocation11 + $0x1c0] sm:$0xff]
    %v3071 = vld [vmem:[#allocation11 + $0x1c8] sm:$0xff]
    %v3072 = vld [vmem:[#allocation11 + $0x1d0] sm:$0xff]
    %v3073 = vld [vmem:[#allocation11 + $0x1d8] sm:$0xff]
    %v3074 = vld [vmem:[#allocation11 + $0x1e0] sm:$0xff]
    %v3075 = vld [vmem:[#allocation11 + $0x1e8] sm:$0xff]
    %v3076 = vld [vmem:[#allocation11 + $0x1f0] sm:$0xff]
    %v3077 = vld [vmem:[#allocation11 + $0x1f8] sm:$0xff]
    %3078 = vmatprep.subr.mxu0 %v3075
    %3079 = vmatpush1.msra.mxu0 %v3074
    %3080 = vmatprep.subr.mxu0 %v3071
    %3081 = vmatpush1.msra.mxu0 %v3070
    %3082 = vmatprep.subr.mxu0 %v3067
    %3083 = vmatpush1.msra.mxu0 %v3066
    %3084 = vmatprep.subr.mxu0 %v3063
    %3085 = vmatpush1.msra.mxu0 %v3062
    %3086 = vmatprep.subr.mxu0 %v3059
    %3087 = vmatpush1.msra.mxu0 %v3058
    %3088 = vmatprep.subr.mxu0 %v3055
    %3089 = vmatpush1.msra.mxu0 %v3054
    %3090 = vmatprep.subr.mxu0 %v3051
    %3091 = vmatpush1.msra.mxu0 %v3050
    %3092 = vmatprep.subr.mxu0 %v3047
    %3093 = vmatpush1.msra.mxu0 %v3046
    %3094 = vmatprep.subr.mxu0 %v3043
    %3095 = vmatpush1.msra.mxu0 %v3042
    %3096 = vmatprep.subr.mxu0 %v3039
    %3097 = vmatpush1.msra.mxu0 %v3038
    %3098 = vmatprep.subr.mxu0 %v3035
    %3099 = vmatpush1.msra.mxu0 %v3034
    %3100 = vmatprep.subr.mxu0 %v3031
    %3101 = vmatpush1.msra.mxu0 %v3030
    %3102 = vmatprep.subr.mxu0 %v3027
    %3103 = vmatpush1.msra.mxu0 %v3026
    %3104 = vmatprep.subr.mxu0 %v3023
    %3105 = vmatpush1.msra.mxu0 %v3022
    %3106 = vmatprep.subr.mxu0 %v3019
    %3107 = vmatpush1.msra.mxu0 %v3018
    %3108 = vmatprep.subr.mxu0 %v3015
    %3109 = vmatpush1.msra.mxu0 %v3014
    %3110 = vmatprep.subr.mxu0 0.0
    %3111 = vmatpush2.msra.mxu0 0.0
    %3112 = vmatprep.subr.mxu0 0.0
    %3113 = vmatpush2.msra.mxu0 0.0
    %3114 = vmatprep.subr.mxu0 0.0
    %3115 = vmatpush2.msra.mxu0 0.0
    %3116 = vmatprep.subr.mxu0 0.0
    %3117 = vmatpush2.msra.mxu0 0.0
    %3118 = vmatprep.subr.mxu0 0.0
    %3119 = vmatpush2.msra.mxu0 0.0
    %3120 = vmatprep.subr.mxu0 0.0
    %3121 = vmatpush2.msra.mxu0 0.0
    %3122 = vmatprep.subr.mxu0 0.0
    %3123 = vmatpush2.msra.mxu0 0.0
    %3124 = vmatprep.subr.mxu0 0.0
    %3125 = vmatpush2.msra.mxu0 0.0
    %3126 = vmatprep.subr.mxu0 0.0
    %3127 = vmatpush2.msra.mxu0 0.0
    %3128 = vmatprep.subr.mxu0 0.0
    %3129 = vmatpush2.msra.mxu0 0.0
    %3130 = vmatprep.subr.mxu0 0.0
    %3131 = vmatpush2.msra.mxu0 0.0
    %3132 = vmatprep.subr.mxu0 0.0
    %3133 = vmatpush2.msra.mxu0 0.0
    %3134 = vmatprep.subr.mxu0 0.0
    %3135 = vmatpush2.msra.mxu0 0.0
    %3136 = vmatprep.subr.mxu0 0.0
    %3137 = vmatpush2.msra.mxu0 0.0
    %3138 = vmatprep.subr.mxu0 0.0
    %3139 = vmatpush2.msra.mxu0 0.0
    %3140 = vmatprep.subr.mxu0 0.0
    %3141 = vmatpush2.msra.mxu0 0.0
    %3142 = vmatprep.mubr.f32.mxu0 0.0
    %3143 = vmatmul.mubr.f32.gmra.mxu0 %v3008
    %v3144 = vpop.f32.mrf.mxu0
    %v3145 = vadd.f32 0.0, %v3144
    %v3146 = vpop.f32.mrf.mxu0
    %v3147 = vadd.f32 0.0, %v3146
    %3148 = vdwg.mxu0
    %3149 = vmatprep.subr.mxu0 %v3077
    %3150 = vmatpush1.msra.mxu0 %v3076
    %3151 = vmatprep.subr.mxu0 %v3073
    %3152 = vmatpush1.msra.mxu0 %v3072
    %3153 = vmatprep.subr.mxu0 %v3069
    %3154 = vmatpush1.msra.mxu0 %v3068
    %3155 = vmatprep.subr.mxu0 %v3065
    %3156 = vmatpush1.msra.mxu0 %v3064
    %3157 = vmatprep.subr.mxu0 %v3061
    %3158 = vmatpush1.msra.mxu0 %v3060
    %3159 = vmatprep.subr.mxu0 %v3057
    %3160 = vmatpush1.msra.mxu0 %v3056
    %3161 = vmatprep.subr.mxu0 %v3053
    %3162 = vmatpush1.msra.mxu0 %v3052
    %3163 = vmatprep.subr.mxu0 %v3049
    %3164 = vmatpush1.msra.mxu0 %v3048
    %3165 = vmatprep.subr.mxu0 %v3045
    %3166 = vmatpush1.msra.mxu0 %v3044
    %3167 = vmatprep.subr.mxu0 %v3041
    %3168 = vmatpush1.msra.mxu0 %v3040
    %3169 = vmatprep.subr.mxu0 %v3037
    %3170 = vmatpush1.msra.mxu0 %v3036
    %3171 = vmatprep.subr.mxu0 %v3033
    %3172 = vmatpush1.msra.mxu0 %v3032
    %3173 = vmatprep.subr.mxu0 %v3029
    %3174 = vmatpush1.msra.mxu0 %v3028
    %3175 = vmatprep.subr.mxu0 %v3025
    %3176 = vmatpush1.msra.mxu0 %v3024
    %3177 = vmatprep.subr.mxu0 %v3021
    %3178 = vmatpush1.msra.mxu0 %v3020
    %3179 = vmatprep.subr.mxu0 %v3017
    %3180 = vmatpush1.msra.mxu0 %v3016
    %3181 = vmatprep.subr.mxu0 0.0
    %3182 = vmatpush2.msra.mxu0 0.0
    %3183 = vmatprep.subr.mxu0 0.0
    %3184 = vmatpush2.msra.mxu0 0.0
    %3185 = vmatprep.subr.mxu0 0.0
    %3186 = vmatpush2.msra.mxu0 0.0
    %3187 = vmatprep.subr.mxu0 0.0
    %3188 = vmatpush2.msra.mxu0 0.0
    %3189 = vmatprep.subr.mxu0 0.0
    %3190 = vmatpush2.msra.mxu0 0.0
    %3191 = vmatprep.subr.mxu0 0.0
    %3192 = vmatpush2.msra.mxu0 0.0
    %3193 = vmatprep.subr.mxu0 0.0
    %3194 = vmatpush2.msra.mxu0 0.0
    %3195 = vmatprep.subr.mxu0 0.0
    %3196 = vmatpush2.msra.mxu0 0.0
    %3197 = vmatprep.subr.mxu0 0.0
    %3198 = vmatpush2.msra.mxu0 0.0
    %3199 = vmatprep.subr.mxu0 0.0
    %3200 = vmatpush2.msra.mxu0 0.0
    %3201 = vmatprep.subr.mxu0 0.0
    %3202 = vmatpush2.msra.mxu0 0.0
    %3203 = vmatprep.subr.mxu0 0.0
    %3204 = vmatpush2.msra.mxu0 0.0
    %3205 = vmatprep.subr.mxu0 0.0
    %3206 = vmatpush2.msra.mxu0 0.0
    %3207 = vmatprep.subr.mxu0 0.0
    %3208 = vmatpush2.msra.mxu0 0.0
    %3209 = vmatprep.subr.mxu0 0.0
    %3210 = vmatpush2.msra.mxu0 0.0
    %3211 = vmatprep.subr.mxu0 0.0
    %3212 = vmatpush2.msra.mxu0 0.0
    %3213 = vmatprep.mubr.f32.mxu0 0.0
    %3214 = vmatmul.mubr.f32.gmra.mxu0 %v3008
    %v3215 = vpop.f32.mrf.mxu0
    %v3216 = vadd.f32 0.0, %v3215
    %v3217 = vpop.f32.mrf.mxu0
    %v3218 = vadd.f32 0.0, %v3217
    %3219 = vdwg.mxu0
    %v3220 = vadd.f32 %v3010, %v3145
    %v3221 = vadd.f32 %v3011, %v3147
    %v3222 = vadd.f32 %v3012, %v3216
    %v3223 = vadd.f32 %v3013, %v3218
    %v3224 = vxor.u32 %v3220, 2147483648
    %v3225 = vmul.f32 %v3224, 1.442695
    %v3226 = vpow.pop %v3225
    %v3227 = vadd.f32 %v3226, 1.0
    %v3228 = vrcp.pop %v3227
    %v3229 = vmul.f32 1.0, %v3228
    %v3230 = vxor.u32 %v3221, 2147483648
    %v3231 = vmul.f32 %v3230, 1.442695
    %v3232 = vpow.pop %v3231
    %v3233 = vadd.f32 %v3232, 1.0
    %v3234 = vrcp.pop %v3233
    %v3235 = vmul.f32 1.0, %v3234
    %v3236 = vtanh.pop %v3222
    %v3237 = vxor.u32 %v3223, 2147483648
    %v3238 = vmul.f32 %v3237, 1.442695
    %v3239 = vpow.pop %v3238
    %v3240 = vadd.f32 %v3239, 1.0
    %v3241 = vrcp.pop %v3240
    %v3242 = vmul.f32 1.0, %v3241
    %v3243 = vmul.f32 %v3235, %v3009
    %v3244 = vmul.f32 %v3229, %v3236
    %v3245 = vadd.f32 %v3243, %v3244
    %v3246 = vtanh.pop %v3245
    %v3247 = vmul.f32 %v3242, %v3246
    %3248 = vst [vmem:[#allocation5] sm:$0xff] %v3245
    %3249 = vst [vmem:[#allocation4] sm:$0xff] %v3247
    %v3250 = vld [vmem:[#allocation4] sm:$0xff]
    %v3251 = vld [vmem:[#allocation5] sm:$0xff]
    %v3252 = vld [vmem:[%s944] sm:$0xff]
    %v3253 = vld [vmem:[%s944 + $0x8] sm:$0xff]
    %v3254 = vld [vmem:[%s944 + $0x10] sm:$0xff]
    %v3255 = vld [vmem:[%s944 + $0x18] sm:$0xff]
    %v3256 = vld [vmem:[#allocation11] sm:$0xff]
    %v3257 = vld [vmem:[#allocation11 + $0x8] sm:$0xff]
    %v3258 = vld [vmem:[#allocation11 + $0x10] sm:$0xff]
    %v3259 = vld [vmem:[#allocation11 + $0x18] sm:$0xff]
    %v3260 = vld [vmem:[#allocation11 + $0x20] sm:$0xff]
    %v3261 = vld [vmem:[#allocation11 + $0x28] sm:$0xff]
    %v3262 = vld [vmem:[#allocation11 + $0x30] sm:$0xff]
    %v3263 = vld [vmem:[#allocation11 + $0x38] sm:$0xff]
    %v3264 = vld [vmem:[#allocation11 + $0x40] sm:$0xff]
    %v3265 = vld [vmem:[#allocation11 + $0x48] sm:$0xff]
    %v3266 = vld [vmem:[#allocation11 + $0x50] sm:$0xff]
    %v3267 = vld [vmem:[#allocation11 + $0x58] sm:$0xff]
    %v3268 = vld [vmem:[#allocation11 + $0x60] sm:$0xff]
    %v3269 = vld [vmem:[#allocation11 + $0x68] sm:$0xff]
    %v3270 = vld [vmem:[#allocation11 + $0x70] sm:$0xff]
    %v3271 = vld [vmem:[#allocation11 + $0x78] sm:$0xff]
    %v3272 = vld [vmem:[#allocation11 + $0x80] sm:$0xff]
    %v3273 = vld [vmem:[#allocation11 + $0x88] sm:$0xff]
    %v3274 = vld [vmem:[#allocation11 + $0x90] sm:$0xff]
    %v3275 = vld [vmem:[#allocation11 + $0x98] sm:$0xff]
    %v3276 = vld [vmem:[#allocation11 + $0xa0] sm:$0xff]
    %v3277 = vld [vmem:[#allocation11 + $0xa8] sm:$0xff]
    %v3278 = vld [vmem:[#allocation11 + $0xb0] sm:$0xff]
    %v3279 = vld [vmem:[#allocation11 + $0xb8] sm:$0xff]
    %v3280 = vld [vmem:[#allocation11 + $0xc0] sm:$0xff]
    %v3281 = vld [vmem:[#allocation11 + $0xc8] sm:$0xff]
    %v3282 = vld [vmem:[#allocation11 + $0xd0] sm:$0xff]
    %v3283 = vld [vmem:[#allocation11 + $0xd8] sm:$0xff]
    %v3284 = vld [vmem:[#allocation11 + $0xe0] sm:$0xff]
    %v3285 = vld [vmem:[#allocation11 + $0xe8] sm:$0xff]
    %v3286 = vld [vmem:[#allocation11 + $0xf0] sm:$0xff]
    %v3287 = vld [vmem:[#allocation11 + $0xf8] sm:$0xff]
    %v3288 = vld [vmem:[#allocation11 + $0x100] sm:$0xff]
    %v3289 = vld [vmem:[#allocation11 + $0x108] sm:$0xff]
    %v3290 = vld [vmem:[#allocation11 + $0x110] sm:$0xff]
    %v3291 = vld [vmem:[#allocation11 + $0x118] sm:$0xff]
    %v3292 = vld [vmem:[#allocation11 + $0x120] sm:$0xff]
    %v3293 = vld [vmem:[#allocation11 + $0x128] sm:$0xff]
    %v3294 = vld [vmem:[#allocation11 + $0x130] sm:$0xff]
    %v3295 = vld [vmem:[#allocation11 + $0x138] sm:$0xff]
    %v3296 = vld [vmem:[#allocation11 + $0x140] sm:$0xff]
    %v3297 = vld [vmem:[#allocation11 + $0x148] sm:$0xff]
    %v3298 = vld [vmem:[#allocation11 + $0x150] sm:$0xff]
    %v3299 = vld [vmem:[#allocation11 + $0x158] sm:$0xff]
    %v3300 = vld [vmem:[#allocation11 + $0x160] sm:$0xff]
    %v3301 = vld [vmem:[#allocation11 + $0x168] sm:$0xff]
    %v3302 = vld [vmem:[#allocation11 + $0x170] sm:$0xff]
    %v3303 = vld [vmem:[#allocation11 + $0x178] sm:$0xff]
    %v3304 = vld [vmem:[#allocation11 + $0x180] sm:$0xff]
    %v3305 = vld [vmem:[#allocation11 + $0x188] sm:$0xff]
    %v3306 = vld [vmem:[#allocation11 + $0x190] sm:$0xff]
    %v3307 = vld [vmem:[#allocation11 + $0x198] sm:$0xff]
    %v3308 = vld [vmem:[#allocation11 + $0x1a0] sm:$0xff]
    %v3309 = vld [vmem:[#allocation11 + $0x1a8] sm:$0xff]
    %v3310 = vld [vmem:[#allocation11 + $0x1b0] sm:$0xff]
    %v3311 = vld [vmem:[#allocation11 + $0x1b8] sm:$0xff]
    %v3312 = vld [vmem:[#allocation11 + $0x1c0] sm:$0xff]
    %v3313 = vld [vmem:[#allocation11 + $0x1c8] sm:$0xff]
    %v3314 = vld [vmem:[#allocation11 + $0x1d0] sm:$0xff]
    %v3315 = vld [vmem:[#allocation11 + $0x1d8] sm:$0xff]
    %v3316 = vld [vmem:[#allocation11 + $0x1e0] sm:$0xff]
    %v3317 = vld [vmem:[#allocation11 + $0x1e8] sm:$0xff]
    %v3318 = vld [vmem:[#allocation11 + $0x1f0] sm:$0xff]
    %v3319 = vld [vmem:[#allocation11 + $0x1f8] sm:$0xff]
    %3320 = vmatprep.subr.mxu0 %v3317
    %3321 = vmatpush1.msra.mxu0 %v3316
    %3322 = vmatprep.subr.mxu0 %v3313
    %3323 = vmatpush1.msra.mxu0 %v3312
    %3324 = vmatprep.subr.mxu0 %v3309
    %3325 = vmatpush1.msra.mxu0 %v3308
    %3326 = vmatprep.subr.mxu0 %v3305
    %3327 = vmatpush1.msra.mxu0 %v3304
    %3328 = vmatprep.subr.mxu0 %v3301
    %3329 = vmatpush1.msra.mxu0 %v3300
    %3330 = vmatprep.subr.mxu0 %v3297
    %3331 = vmatpush1.msra.mxu0 %v3296
    %3332 = vmatprep.subr.mxu0 %v3293
    %3333 = vmatpush1.msra.mxu0 %v3292
    %3334 = vmatprep.subr.mxu0 %v3289
    %3335 = vmatpush1.msra.mxu0 %v3288
    %3336 = vmatprep.subr.mxu0 %v3285
    %3337 = vmatpush1.msra.mxu0 %v3284
    %3338 = vmatprep.subr.mxu0 %v3281
    %3339 = vmatpush1.msra.mxu0 %v3280
    %3340 = vmatprep.subr.mxu0 %v3277
    %3341 = vmatpush1.msra.mxu0 %v3276
    %3342 = vmatprep.subr.mxu0 %v3273
    %3343 = vmatpush1.msra.mxu0 %v3272
    %3344 = vmatprep.subr.mxu0 %v3269
    %3345 = vmatpush1.msra.mxu0 %v3268
    %3346 = vmatprep.subr.mxu0 %v3265
    %3347 = vmatpush1.msra.mxu0 %v3264
    %3348 = vmatprep.subr.mxu0 %v3261
    %3349 = vmatpush1.msra.mxu0 %v3260
    %3350 = vmatprep.subr.mxu0 %v3257
    %3351 = vmatpush1.msra.mxu0 %v3256
    %3352 = vmatprep.subr.mxu0 0.0
    %3353 = vmatpush2.msra.mxu0 0.0
    %3354 = vmatprep.subr.mxu0 0.0
    %3355 = vmatpush2.msra.mxu0 0.0
    %3356 = vmatprep.subr.mxu0 0.0
    %3357 = vmatpush2.msra.mxu0 0.0
    %3358 = vmatprep.subr.mxu0 0.0
    %3359 = vmatpush2.msra.mxu0 0.0
    %3360 = vmatprep.subr.mxu0 0.0
    %3361 = vmatpush2.msra.mxu0 0.0
    %3362 = vmatprep.subr.mxu0 0.0
    %3363 = vmatpush2.msra.mxu0 0.0
    %3364 = vmatprep.subr.mxu0 0.0
    %3365 = vmatpush2.msra.mxu0 0.0
    %3366 = vmatprep.subr.mxu0 0.0
    %3367 = vmatpush2.msra.mxu0 0.0
    %3368 = vmatprep.subr.mxu0 0.0
    %3369 = vmatpush2.msra.mxu0 0.0
    %3370 = vmatprep.subr.mxu0 0.0
    %3371 = vmatpush2.msra.mxu0 0.0
    %3372 = vmatprep.subr.mxu0 0.0
    %3373 = vmatpush2.msra.mxu0 0.0
    %3374 = vmatprep.subr.mxu0 0.0
    %3375 = vmatpush2.msra.mxu0 0.0
    %3376 = vmatprep.subr.mxu0 0.0
    %3377 = vmatpush2.msra.mxu0 0.0
    %3378 = vmatprep.subr.mxu0 0.0
    %3379 = vmatpush2.msra.mxu0 0.0
    %3380 = vmatprep.subr.mxu0 0.0
    %3381 = vmatpush2.msra.mxu0 0.0
    %3382 = vmatprep.subr.mxu0 0.0
    %3383 = vmatpush2.msra.mxu0 0.0
    %3384 = vmatprep.mubr.f32.mxu0 0.0
    %3385 = vmatmul.mubr.f32.gmra.mxu0 %v3250
    %v3386 = vpop.f32.mrf.mxu0
    %v3387 = vadd.f32 0.0, %v3386
    %v3388 = vpop.f32.mrf.mxu0
    %v3389 = vadd.f32 0.0, %v3388
    %3390 = vdwg.mxu0
    %3391 = vmatprep.subr.mxu0 %v3319
    %3392 = vmatpush1.msra.mxu0 %v3318
    %3393 = vmatprep.subr.mxu0 %v3315
    %3394 = vmatpush1.msra.mxu0 %v3314
    %3395 = vmatprep.subr.mxu0 %v3311
    %3396 = vmatpush1.msra.mxu0 %v3310
    %3397 = vmatprep.subr.mxu0 %v3307
    %3398 = vmatpush1.msra.mxu0 %v3306
    %3399 = vmatprep.subr.mxu0 %v3303
    %3400 = vmatpush1.msra.mxu0 %v3302
    %3401 = vmatprep.subr.mxu0 %v3299
    %3402 = vmatpush1.msra.mxu0 %v3298
    %3403 = vmatprep.subr.mxu0 %v3295
    %3404 = vmatpush1.msra.mxu0 %v3294
    %3405 = vmatprep.subr.mxu0 %v3291
    %3406 = vmatpush1.msra.mxu0 %v3290
    %3407 = vmatprep.subr.mxu0 %v3287
    %3408 = vmatpush1.msra.mxu0 %v3286
    %3409 = vmatprep.subr.mxu0 %v3283
    %3410 = vmatpush1.msra.mxu0 %v3282
    %3411 = vmatprep.subr.mxu0 %v3279
    %3412 = vmatpush1.msra.mxu0 %v3278
    %3413 = vmatprep.subr.mxu0 %v3275
    %3414 = vmatpush1.msra.mxu0 %v3274
    %3415 = vmatprep.subr.mxu0 %v3271
    %3416 = vmatpush1.msra.mxu0 %v3270
    %3417 = vmatprep.subr.mxu0 %v3267
    %3418 = vmatpush1.msra.mxu0 %v3266
    %3419 = vmatprep.subr.mxu0 %v3263
    %3420 = vmatpush1.msra.mxu0 %v3262
    %3421 = vmatprep.subr.mxu0 %v3259
    %3422 = vmatpush1.msra.mxu0 %v3258
    %3423 = vmatprep.subr.mxu0 0.0
    %3424 = vmatpush2.msra.mxu0 0.0
    %3425 = vmatprep.subr.mxu0 0.0
    %3426 = vmatpush2.msra.mxu0 0.0
    %3427 = vmatprep.subr.mxu0 0.0
    %3428 = vmatpush2.msra.mxu0 0.0
    %3429 = vmatprep.subr.mxu0 0.0
    %3430 = vmatpush2.msra.mxu0 0.0
    %3431 = vmatprep.subr.mxu0 0.0
    %3432 = vmatpush2.msra.mxu0 0.0
    %3433 = vmatprep.subr.mxu0 0.0
    %3434 = vmatpush2.msra.mxu0 0.0
    %3435 = vmatprep.subr.mxu0 0.0
    %3436 = vmatpush2.msra.mxu0 0.0
    %3437 = vmatprep.subr.mxu0 0.0
    %3438 = vmatpush2.msra.mxu0 0.0
    %3439 = vmatprep.subr.mxu0 0.0
    %3440 = vmatpush2.msra.mxu0 0.0
    %3441 = vmatprep.subr.mxu0 0.0
    %3442 = vmatpush2.msra.mxu0 0.0
    %3443 = vmatprep.subr.mxu0 0.0
    %3444 = vmatpush2.msra.mxu0 0.0
    %3445 = vmatprep.subr.mxu0 0.0
    %3446 = vmatpush2.msra.mxu0 0.0
    %3447 = vmatprep.subr.mxu0 0.0
    %3448 = vmatpush2.msra.mxu0 0.0
    %3449 = vmatprep.subr.mxu0 0.0
    %3450 = vmatpush2.msra.mxu0 0.0
    %3451 = vmatprep.subr.mxu0 0.0
    %3452 = vmatpush2.msra.mxu0 0.0
    %3453 = vmatprep.subr.mxu0 0.0
    %3454 = vmatpush2.msra.mxu0 0.0
    %3455 = vmatprep.mubr.f32.mxu0 0.0
    %3456 = vmatmul.mubr.f32.gmra.mxu0 %v3250
    %v3457 = vpop.f32.mrf.mxu0
    %v3458 = vadd.f32 0.0, %v3457
    %v3459 = vpop.f32.mrf.mxu0
    %v3460 = vadd.f32 0.0, %v3459
    %3461 = vdwg.mxu0
    %v3462 = vadd.f32 %v3252, %v3387
    %v3463 = vadd.f32 %v3253, %v3389
    %v3464 = vadd.f32 %v3254, %v3458
    %v3465 = vadd.f32 %v3255, %v3460
    %v3466 = vxor.u32 %v3462, 2147483648
    %v3467 = vmul.f32 %v3466, 1.442695
    %v3468 = vpow.pop %v3467
    %v3469 = vadd.f32 %v3468, 1.0
    %v3470 = vrcp.pop %v3469
    %v3471 = vmul.f32 1.0, %v3470
    %v3472 = vxor.u32 %v3463, 2147483648
    %v3473 = vmul.f32 %v3472, 1.442695
    %v3474 = vpow.pop %v3473
    %v3475 = vadd.f32 %v3474, 1.0
    %v3476 = vrcp.pop %v3475
    %v3477 = vmul.f32 1.0, %v3476
    %v3478 = vtanh.pop %v3464
    %v3479 = vxor.u32 %v3465, 2147483648
    %v3480 = vmul.f32 %v3479, 1.442695
    %v3481 = vpow.pop %v3480
    %v3482 = vadd.f32 %v3481, 1.0
    %v3483 = vrcp.pop %v3482
    %v3484 = vmul.f32 1.0, %v3483
    %v3485 = vmul.f32 %v3477, %v3251
    %v3486 = vmul.f32 %v3471, %v3478
    %v3487 = vadd.f32 %v3485, %v3486
    %v3488 = vtanh.pop %v3487
    %v3489 = vmul.f32 %v3484, %v3488
    %3490 = vst [vmem:[#allocation5] sm:$0xff] %v3487
    %3491 = vst [vmem:[#allocation4] sm:$0xff] %v3489
    %v3492 = vld [vmem:[#allocation4] sm:$0xff]
    %v3493 = vld [vmem:[#allocation5] sm:$0xff]
    %v3494 = vld [vmem:[%s1189] sm:$0xff]
    %v3495 = vld [vmem:[%s1189 + $0x8] sm:$0xff]
    %v3496 = vld [vmem:[%s1189 + $0x10] sm:$0xff]
    %v3497 = vld [vmem:[%s1189 + $0x18] sm:$0xff]
    %v3498 = vld [vmem:[#allocation11] sm:$0xff]
    %v3499 = vld [vmem:[#allocation11 + $0x8] sm:$0xff]
    %v3500 = vld [vmem:[#allocation11 + $0x10] sm:$0xff]
    %v3501 = vld [vmem:[#allocation11 + $0x18] sm:$0xff]
    %v3502 = vld [vmem:[#allocation11 + $0x20] sm:$0xff]
    %v3503 = vld [vmem:[#allocation11 + $0x28] sm:$0xff]
    %v3504 = vld [vmem:[#allocation11 + $0x30] sm:$0xff]
    %v3505 = vld [vmem:[#allocation11 + $0x38] sm:$0xff]
    %v3506 = vld [vmem:[#allocation11 + $0x40] sm:$0xff]
    %v3507 = vld [vmem:[#allocation11 + $0x48] sm:$0xff]
    %v3508 = vld [vmem:[#allocation11 + $0x50] sm:$0xff]
    %v3509 = vld [vmem:[#allocation11 + $0x58] sm:$0xff]
    %v3510 = vld [vmem:[#allocation11 + $0x60] sm:$0xff]
    %v3511 = vld [vmem:[#allocation11 + $0x68] sm:$0xff]
    %v3512 = vld [vmem:[#allocation11 + $0x70] sm:$0xff]
    %v3513 = vld [vmem:[#allocation11 + $0x78] sm:$0xff]
    %v3514 = vld [vmem:[#allocation11 + $0x80] sm:$0xff]
    %v3515 = vld [vmem:[#allocation11 + $0x88] sm:$0xff]
    %v3516 = vld [vmem:[#allocation11 + $0x90] sm:$0xff]
    %v3517 = vld [vmem:[#allocation11 + $0x98] sm:$0xff]
    %v3518 = vld [vmem:[#allocation11 + $0xa0] sm:$0xff]
    %v3519 = vld [vmem:[#allocation11 + $0xa8] sm:$0xff]
    %v3520 = vld [vmem:[#allocation11 + $0xb0] sm:$0xff]
    %v3521 = vld [vmem:[#allocation11 + $0xb8] sm:$0xff]
    %v3522 = vld [vmem:[#allocation11 + $0xc0] sm:$0xff]
    %v3523 = vld [vmem:[#allocation11 + $0xc8] sm:$0xff]
    %v3524 = vld [vmem:[#allocation11 + $0xd0] sm:$0xff]
    %v3525 = vld [vmem:[#allocation11 + $0xd8] sm:$0xff]
    %v3526 = vld [vmem:[#allocation11 + $0xe0] sm:$0xff]
    %v3527 = vld [vmem:[#allocation11 + $0xe8] sm:$0xff]
    %v3528 = vld [vmem:[#allocation11 + $0xf0] sm:$0xff]
    %v3529 = vld [vmem:[#allocation11 + $0xf8] sm:$0xff]
    %v3530 = vld [vmem:[#allocation11 + $0x100] sm:$0xff]
    %v3531 = vld [vmem:[#allocation11 + $0x108] sm:$0xff]
    %v3532 = vld [vmem:[#allocation11 + $0x110] sm:$0xff]
    %v3533 = vld [vmem:[#allocation11 + $0x118] sm:$0xff]
    %v3534 = vld [vmem:[#allocation11 + $0x120] sm:$0xff]
    %v3535 = vld [vmem:[#allocation11 + $0x128] sm:$0xff]
    %v3536 = vld [vmem:[#allocation11 + $0x130] sm:$0xff]
    %v3537 = vld [vmem:[#allocation11 + $0x138] sm:$0xff]
    %v3538 = vld [vmem:[#allocation11 + $0x140] sm:$0xff]
    %v3539 = vld [vmem:[#allocation11 + $0x148] sm:$0xff]
    %v3540 = vld [vmem:[#allocation11 + $0x150] sm:$0xff]
    %v3541 = vld [vmem:[#allocation11 + $0x158] sm:$0xff]
    %v3542 = vld [vmem:[#allocation11 + $0x160] sm:$0xff]
    %v3543 = vld [vmem:[#allocation11 + $0x168] sm:$0xff]
    %v3544 = vld [vmem:[#allocation11 + $0x170] sm:$0xff]
    %v3545 = vld [vmem:[#allocation11 + $0x178] sm:$0xff]
    %v3546 = vld [vmem:[#allocation11 + $0x180] sm:$0xff]
    %v3547 = vld [vmem:[#allocation11 + $0x188] sm:$0xff]
    %v3548 = vld [vmem:[#allocation11 + $0x190] sm:$0xff]
    %v3549 = vld [vmem:[#allocation11 + $0x198] sm:$0xff]
    %v3550 = vld [vmem:[#allocation11 + $0x1a0] sm:$0xff]
    %v3551 = vld [vmem:[#allocation11 + $0x1a8] sm:$0xff]
    %v3552 = vld [vmem:[#allocation11 + $0x1b0] sm:$0xff]
    %v3553 = vld [vmem:[#allocation11 + $0x1b8] sm:$0xff]
    %v3554 = vld [vmem:[#allocation11 + $0x1c0] sm:$0xff]
    %v3555 = vld [vmem:[#allocation11 + $0x1c8] sm:$0xff]
    %v3556 = vld [vmem:[#allocation11 + $0x1d0] sm:$0xff]
    %v3557 = vld [vmem:[#allocation11 + $0x1d8] sm:$0xff]
    %v3558 = vld [vmem:[#allocation11 + $0x1e0] sm:$0xff]
    %v3559 = vld [vmem:[#allocation11 + $0x1e8] sm:$0xff]
    %v3560 = vld [vmem:[#allocation11 + $0x1f0] sm:$0xff]
    %v3561 = vld [vmem:[#allocation11 + $0x1f8] sm:$0xff]
    %3562 = vmatprep.subr.mxu0 %v3559
    %3563 = vmatpush1.msra.mxu0 %v3558
    %3564 = vmatprep.subr.mxu0 %v3555
    %3565 = vmatpush1.msra.mxu0 %v3554
    %3566 = vmatprep.subr.mxu0 %v3551
    %3567 = vmatpush1.msra.mxu0 %v3550
    %3568 = vmatprep.subr.mxu0 %v3547
    %3569 = vmatpush1.msra.mxu0 %v3546
    %3570 = vmatprep.subr.mxu0 %v3543
    %3571 = vmatpush1.msra.mxu0 %v3542
    %3572 = vmatprep.subr.mxu0 %v3539
    %3573 = vmatpush1.msra.mxu0 %v3538
    %3574 = vmatprep.subr.mxu0 %v3535
    %3575 = vmatpush1.msra.mxu0 %v3534
    %3576 = vmatprep.subr.mxu0 %v3531
    %3577 = vmatpush1.msra.mxu0 %v3530
    %3578 = vmatprep.subr.mxu0 %v3527
    %3579 = vmatpush1.msra.mxu0 %v3526
    %3580 = vmatprep.subr.mxu0 %v3523
    %3581 = vmatpush1.msra.mxu0 %v3522
    %3582 = vmatprep.subr.mxu0 %v3519
    %3583 = vmatpush1.msra.mxu0 %v3518
    %3584 = vmatprep.subr.mxu0 %v3515
    %3585 = vmatpush1.msra.mxu0 %v3514
    %3586 = vmatprep.subr.mxu0 %v3511
    %3587 = vmatpush1.msra.mxu0 %v3510
    %3588 = vmatprep.subr.mxu0 %v3507
    %3589 = vmatpush1.msra.mxu0 %v3506
    %3590 = vmatprep.subr.mxu0 %v3503
    %3591 = vmatpush1.msra.mxu0 %v3502
    %3592 = vmatprep.subr.mxu0 %v3499
    %3593 = vmatpush1.msra.mxu0 %v3498
    %3594 = vmatprep.subr.mxu0 0.0
    %3595 = vmatpush2.msra.mxu0 0.0
    %3596 = vmatprep.subr.mxu0 0.0
    %3597 = vmatpush2.msra.mxu0 0.0
    %3598 = vmatprep.subr.mxu0 0.0
    %3599 = vmatpush2.msra.mxu0 0.0
    %3600 = vmatprep.subr.mxu0 0.0
    %3601 = vmatpush2.msra.mxu0 0.0
    %3602 = vmatprep.subr.mxu0 0.0
    %3603 = vmatpush2.msra.mxu0 0.0
    %3604 = vmatprep.subr.mxu0 0.0
    %3605 = vmatpush2.msra.mxu0 0.0
    %3606 = vmatprep.subr.mxu0 0.0
    %3607 = vmatpush2.msra.mxu0 0.0
    %3608 = vmatprep.subr.mxu0 0.0
    %3609 = vmatpush2.msra.mxu0 0.0
    %3610 = vmatprep.subr.mxu0 0.0
    %3611 = vmatpush2.msra.mxu0 0.0
    %3612 = vmatprep.subr.mxu0 0.0
    %3613 = vmatpush2.msra.mxu0 0.0
    %3614 = vmatprep.subr.mxu0 0.0
    %3615 = vmatpush2.msra.mxu0 0.0
    %3616 = vmatprep.subr.mxu0 0.0
    %3617 = vmatpush2.msra.mxu0 0.0
    %3618 = vmatprep.subr.mxu0 0.0
    %3619 = vmatpush2.msra.mxu0 0.0
    %3620 = vmatprep.subr.mxu0 0.0
    %3621 = vmatpush2.msra.mxu0 0.0
    %3622 = vmatprep.subr.mxu0 0.0
    %3623 = vmatpush2.msra.mxu0 0.0
    %3624 = vmatprep.subr.mxu0 0.0
    %3625 = vmatpush2.msra.mxu0 0.0
    %3626 = vmatprep.mubr.f32.mxu0 0.0
    %3627 = vmatmul.mubr.f32.gmra.mxu0 %v3492
    %v3628 = vpop.f32.mrf.mxu0
    %v3629 = vadd.f32 0.0, %v3628
    %v3630 = vpop.f32.mrf.mxu0
    %v3631 = vadd.f32 0.0, %v3630
    %3632 = vdwg.mxu0
    %3633 = vmatprep.subr.mxu0 %v3561
    %3634 = vmatpush1.msra.mxu0 %v3560
    %3635 = vmatprep.subr.mxu0 %v3557
    %3636 = vmatpush1.msra.mxu0 %v3556
    %3637 = vmatprep.subr.mxu0 %v3553
    %3638 = vmatpush1.msra.mxu0 %v3552
    %3639 = vmatprep.subr.mxu0 %v3549
    %3640 = vmatpush1.msra.mxu0 %v3548
    %3641 = vmatprep.subr.mxu0 %v3545
    %3642 = vmatpush1.msra.mxu0 %v3544
    %3643 = vmatprep.subr.mxu0 %v3541
    %3644 = vmatpush1.msra.mxu0 %v3540
    %3645 = vmatprep.subr.mxu0 %v3537
    %3646 = vmatpush1.msra.mxu0 %v3536
    %3647 = vmatprep.subr.mxu0 %v3533
    %3648 = vmatpush1.msra.mxu0 %v3532
    %3649 = vmatprep.subr.mxu0 %v3529
    %3650 = vmatpush1.msra.mxu0 %v3528
    %3651 = vmatprep.subr.mxu0 %v3525
    %3652 = vmatpush1.msra.mxu0 %v3524
    %3653 = vmatprep.subr.mxu0 %v3521
    %3654 = vmatpush1.msra.mxu0 %v3520
    %3655 = vmatprep.subr.mxu0 %v3517
    %3656 = vmatpush1.msra.mxu0 %v3516
    %3657 = vmatprep.subr.mxu0 %v3513
    %3658 = vmatpush1.msra.mxu0 %v3512
    %3659 = vmatprep.subr.mxu0 %v3509
    %3660 = vmatpush1.msra.mxu0 %v3508
    %3661 = vmatprep.subr.mxu0 %v3505
    %3662 = vmatpush1.msra.mxu0 %v3504
    %3663 = vmatprep.subr.mxu0 %v3501
    %3664 = vmatpush1.msra.mxu0 %v3500
    %3665 = vmatprep.subr.mxu0 0.0
    %3666 = vmatpush2.msra.mxu0 0.0
    %3667 = vmatprep.subr.mxu0 0.0
    %3668 = vmatpush2.msra.mxu0 0.0
    %3669 = vmatprep.subr.mxu0 0.0
    %3670 = vmatpush2.msra.mxu0 0.0
    %3671 = vmatprep.subr.mxu0 0.0
    %3672 = vmatpush2.msra.mxu0 0.0
    %3673 = vmatprep.subr.mxu0 0.0
    %3674 = vmatpush2.msra.mxu0 0.0
    %3675 = vmatprep.subr.mxu0 0.0
    %3676 = vmatpush2.msra.mxu0 0.0
    %3677 = vmatprep.subr.mxu0 0.0
    %3678 = vmatpush2.msra.mxu0 0.0
    %3679 = vmatprep.subr.mxu0 0.0
    %3680 = vmatpush2.msra.mxu0 0.0
    %3681 = vmatprep.subr.mxu0 0.0
    %3682 = vmatpush2.msra.mxu0 0.0
    %3683 = vmatprep.subr.mxu0 0.0
    %3684 = vmatpush2.msra.mxu0 0.0
    %3685 = vmatprep.subr.mxu0 0.0
    %3686 = vmatpush2.msra.mxu0 0.0
    %3687 = vmatprep.subr.mxu0 0.0
    %3688 = vmatpush2.msra.mxu0 0.0
    %3689 = vmatprep.subr.mxu0 0.0
    %3690 = vmatpush2.msra.mxu0 0.0
    %3691 = vmatprep.subr.mxu0 0.0
    %3692 = vmatpush2.msra.mxu0 0.0
    %3693 = vmatprep.subr.mxu0 0.0
    %3694 = vmatpush2.msra.mxu0 0.0
    %3695 = vmatprep.subr.mxu0 0.0
    %3696 = vmatpush2.msra.mxu0 0.0
    %3697 = vmatprep.mubr.f32.mxu0 0.0
    %3698 = vmatmul.mubr.f32.gmra.mxu0 %v3492
    %v3699 = vpop.f32.mrf.mxu0
    %v3700 = vadd.f32 0.0, %v3699
    %v3701 = vpop.f32.mrf.mxu0
    %v3702 = vadd.f32 0.0, %v3701
    %3703 = vdwg.mxu0
    %v3704 = vadd.f32 %v3494, %v3629
    %v3705 = vadd.f32 %v3495, %v3631
    %v3706 = vadd.f32 %v3496, %v3700
    %v3707 = vadd.f32 %v3497, %v3702
    %v3708 = vxor.u32 %v3704, 2147483648
    %v3709 = vmul.f32 %v3708, 1.442695
    %v3710 = vpow.pop %v3709
    %v3711 = vadd.f32 %v3710, 1.0
    %v3712 = vrcp.pop %v3711
    %v3713 = vmul.f32 1.0, %v3712
    %v3714 = vxor.u32 %v3705, 2147483648
    %v3715 = vmul.f32 %v3714, 1.442695
    %v3716 = vpow.pop %v3715
    %v3717 = vadd.f32 %v3716, 1.0
    %v3718 = vrcp.pop %v3717
    %v3719 = vmul.f32 1.0, %v3718
    %v3720 = vtanh.pop %v3706
    %v3721 = vxor.u32 %v3707, 2147483648
    %v3722 = vmul.f32 %v3721, 1.442695
    %v3723 = vpow.pop %v3722
    %v3724 = vadd.f32 %v3723, 1.0
    %v3725 = vrcp.pop %v3724
    %v3726 = vmul.f32 1.0, %v3725
    %v3727 = vmul.f32 %v3719, %v3493
    %v3728 = vmul.f32 %v3713, %v3720
    %v3729 = vadd.f32 %v3727, %v3728
    %v3730 = vtanh.pop %v3729
    %v3731 = vmul.f32 %v3726, %v3730
    %3732 = vst [vmem:[#allocation5] sm:$0xff] %v3729
    %3733 = vst [vmem:[#allocation4] sm:$0xff] %v3731
    %v3734 = vld [vmem:[#allocation4] sm:$0xff]
    %v3735 = vld [vmem:[#allocation5] sm:$0xff]
    %v3736 = vld [vmem:[%s1434] sm:$0xff]
    %v3737 = vld [vmem:[%s1434 + $0x8] sm:$0xff]
    %v3738 = vld [vmem:[%s1434 + $0x10] sm:$0xff]
    %v3739 = vld [vmem:[%s1434 + $0x18] sm:$0xff]
    %v3740 = vld [vmem:[#allocation11] sm:$0xff]
    %v3741 = vld [vmem:[#allocation11 + $0x8] sm:$0xff]
    %v3742 = vld [vmem:[#allocation11 + $0x10] sm:$0xff]
    %v3743 = vld [vmem:[#allocation11 + $0x18] sm:$0xff]
    %v3744 = vld [vmem:[#allocation11 + $0x20] sm:$0xff]
    %v3745 = vld [vmem:[#allocation11 + $0x28] sm:$0xff]
    %v3746 = vld [vmem:[#allocation11 + $0x30] sm:$0xff]
    %v3747 = vld [vmem:[#allocation11 + $0x38] sm:$0xff]
    %v3748 = vld [vmem:[#allocation11 + $0x40] sm:$0xff]
    %v3749 = vld [vmem:[#allocation11 + $0x48] sm:$0xff]
    %v3750 = vld [vmem:[#allocation11 + $0x50] sm:$0xff]
    %v3751 = vld [vmem:[#allocation11 + $0x58] sm:$0xff]
    %v3752 = vld [vmem:[#allocation11 + $0x60] sm:$0xff]
    %v3753 = vld [vmem:[#allocation11 + $0x68] sm:$0xff]
    %v3754 = vld [vmem:[#allocation11 + $0x70] sm:$0xff]
    %v3755 = vld [vmem:[#allocation11 + $0x78] sm:$0xff]
    %v3756 = vld [vmem:[#allocation11 + $0x80] sm:$0xff]
    %v3757 = vld [vmem:[#allocation11 + $0x88] sm:$0xff]
    %v3758 = vld [vmem:[#allocation11 + $0x90] sm:$0xff]
    %v3759 = vld [vmem:[#allocation11 + $0x98] sm:$0xff]
    %v3760 = vld [vmem:[#allocation11 + $0xa0] sm:$0xff]
    %v3761 = vld [vmem:[#allocation11 + $0xa8] sm:$0xff]
    %v3762 = vld [vmem:[#allocation11 + $0xb0] sm:$0xff]
    %v3763 = vld [vmem:[#allocation11 + $0xb8] sm:$0xff]
    %v3764 = vld [vmem:[#allocation11 + $0xc0] sm:$0xff]
    %v3765 = vld [vmem:[#allocation11 + $0xc8] sm:$0xff]
    %v3766 = vld [vmem:[#allocation11 + $0xd0] sm:$0xff]
    %v3767 = vld [vmem:[#allocation11 + $0xd8] sm:$0xff]
    %v3768 = vld [vmem:[#allocation11 + $0xe0] sm:$0xff]
    %v3769 = vld [vmem:[#allocation11 + $0xe8] sm:$0xff]
    %v3770 = vld [vmem:[#allocation11 + $0xf0] sm:$0xff]
    %v3771 = vld [vmem:[#allocation11 + $0xf8] sm:$0xff]
    %v3772 = vld [vmem:[#allocation11 + $0x100] sm:$0xff]
    %v3773 = vld [vmem:[#allocation11 + $0x108] sm:$0xff]
    %v3774 = vld [vmem:[#allocation11 + $0x110] sm:$0xff]
    %v3775 = vld [vmem:[#allocation11 + $0x118] sm:$0xff]
    %v3776 = vld [vmem:[#allocation11 + $0x120] sm:$0xff]
    %v3777 = vld [vmem:[#allocation11 + $0x128] sm:$0xff]
    %v3778 = vld [vmem:[#allocation11 + $0x130] sm:$0xff]
    %v3779 = vld [vmem:[#allocation11 + $0x138] sm:$0xff]
    %v3780 = vld [vmem:[#allocation11 + $0x140] sm:$0xff]
    %v3781 = vld [vmem:[#allocation11 + $0x148] sm:$0xff]
    %v3782 = vld [vmem:[#allocation11 + $0x150] sm:$0xff]
    %v3783 = vld [vmem:[#allocation11 + $0x158] sm:$0xff]
    %v3784 = vld [vmem:[#allocation11 + $0x160] sm:$0xff]
    %v3785 = vld [vmem:[#allocation11 + $0x168] sm:$0xff]
    %v3786 = vld [vmem:[#allocation11 + $0x170] sm:$0xff]
    %v3787 = vld [vmem:[#allocation11 + $0x178] sm:$0xff]
    %v3788 = vld [vmem:[#allocation11 + $0x180] sm:$0xff]
    %v3789 = vld [vmem:[#allocation11 + $0x188] sm:$0xff]
    %v3790 = vld [vmem:[#allocation11 + $0x190] sm:$0xff]
    %v3791 = vld [vmem:[#allocation11 + $0x198] sm:$0xff]
    %v3792 = vld [vmem:[#allocation11 + $0x1a0] sm:$0xff]
    %v3793 = vld [vmem:[#allocation11 + $0x1a8] sm:$0xff]
    %v3794 = vld [vmem:[#allocation11 + $0x1b0] sm:$0xff]
    %v3795 = vld [vmem:[#allocation11 + $0x1b8] sm:$0xff]
    %v3796 = vld [vmem:[#allocation11 + $0x1c0] sm:$0xff]
    %v3797 = vld [vmem:[#allocation11 + $0x1c8] sm:$0xff]
    %v3798 = vld [vmem:[#allocation11 + $0x1d0] sm:$0xff]
    %v3799 = vld [vmem:[#allocation11 + $0x1d8] sm:$0xff]
    %v3800 = vld [vmem:[#allocation11 + $0x1e0] sm:$0xff]
    %v3801 = vld [vmem:[#allocation11 + $0x1e8] sm:$0xff]
    %v3802 = vld [vmem:[#allocation11 + $0x1f0] sm:$0xff]
    %v3803 = vld [vmem:[#allocation11 + $0x1f8] sm:$0xff]
    %3804 = vmatprep.subr.mxu0 %v3801
    %3805 = vmatpush1.msra.mxu0 %v3800
    %3806 = vmatprep.subr.mxu0 %v3797
    %3807 = vmatpush1.msra.mxu0 %v3796
    %3808 = vmatprep.subr.mxu0 %v3793
    %3809 = vmatpush1.msra.mxu0 %v3792
    %3810 = vmatprep.subr.mxu0 %v3789
    %3811 = vmatpush1.msra.mxu0 %v3788
    %3812 = vmatprep.subr.mxu0 %v3785
    %3813 = vmatpush1.msra.mxu0 %v3784
    %3814 = vmatprep.subr.mxu0 %v3781
    %3815 = vmatpush1.msra.mxu0 %v3780
    %3816 = vmatprep.subr.mxu0 %v3777
    %3817 = vmatpush1.msra.mxu0 %v3776
    %3818 = vmatprep.subr.mxu0 %v3773
    %3819 = vmatpush1.msra.mxu0 %v3772
    %3820 = vmatprep.subr.mxu0 %v3769
    %3821 = vmatpush1.msra.mxu0 %v3768
    %3822 = vmatprep.subr.mxu0 %v3765
    %3823 = vmatpush1.msra.mxu0 %v3764
    %3824 = vmatprep.subr.mxu0 %v3761
    %3825 = vmatpush1.msra.mxu0 %v3760
    %3826 = vmatprep.subr.mxu0 %v3757
    %3827 = vmatpush1.msra.mxu0 %v3756
    %3828 = vmatprep.subr.mxu0 %v3753
    %3829 = vmatpush1.msra.mxu0 %v3752
    %3830 = vmatprep.subr.mxu0 %v3749
    %3831 = vmatpush1.msra.mxu0 %v3748
    %3832 = vmatprep.subr.mxu0 %v3745
    %3833 = vmatpush1.msra.mxu0 %v3744
    %3834 = vmatprep.subr.mxu0 %v3741
    %3835 = vmatpush1.msra.mxu0 %v3740
    %3836 = vmatprep.subr.mxu0 0.0
    %3837 = vmatpush2.msra.mxu0 0.0
    %3838 = vmatprep.subr.mxu0 0.0
    %3839 = vmatpush2.msra.mxu0 0.0
    %3840 = vmatprep.subr.mxu0 0.0
    %3841 = vmatpush2.msra.mxu0 0.0
    %3842 = vmatprep.subr.mxu0 0.0
    %3843 = vmatpush2.msra.mxu0 0.0
    %3844 = vmatprep.subr.mxu0 0.0
    %3845 = vmatpush2.msra.mxu0 0.0
    %3846 = vmatprep.subr.mxu0 0.0
    %3847 = vmatpush2.msra.mxu0 0.0
    %3848 = vmatprep.subr.mxu0 0.0
    %3849 = vmatpush2.msra.mxu0 0.0
    %3850 = vmatprep.subr.mxu0 0.0
    %3851 = vmatpush2.msra.mxu0 0.0
    %3852 = vmatprep.subr.mxu0 0.0
    %3853 = vmatpush2.msra.mxu0 0.0
    %3854 = vmatprep.subr.mxu0 0.0
    %3855 = vmatpush2.msra.mxu0 0.0
    %3856 = vmatprep.subr.mxu0 0.0
    %3857 = vmatpush2.msra.mxu0 0.0
    %3858 = vmatprep.subr.mxu0 0.0
    %3859 = vmatpush2.msra.mxu0 0.0
    %3860 = vmatprep.subr.mxu0 0.0
    %3861 = vmatpush2.msra.mxu0 0.0
    %3862 = vmatprep.subr.mxu0 0.0
    %3863 = vmatpush2.msra.mxu0 0.0
    %3864 = vmatprep.subr.mxu0 0.0
    %3865 = vmatpush2.msra.mxu0 0.0
    %3866 = vmatprep.subr.mxu0 0.0
    %3867 = vmatpush2.msra.mxu0 0.0
    %3868 = vmatprep.mubr.f32.mxu0 0.0
    %3869 = vmatmul.mubr.f32.gmra.mxu0 %v3734
    %v3870 = vpop.f32.mrf.mxu0
    %v3871 = vadd.f32 0.0, %v3870
    %v3872 = vpop.f32.mrf.mxu0
    %v3873 = vadd.f32 0.0, %v3872
    %3874 = vdwg.mxu0
    %3875 = vmatprep.subr.mxu0 %v3803
    %3876 = vmatpush1.msra.mxu0 %v3802
    %3877 = vmatprep.subr.mxu0 %v3799
    %3878 = vmatpush1.msra.mxu0 %v3798
    %3879 = vmatprep.subr.mxu0 %v3795
    %3880 = vmatpush1.msra.mxu0 %v3794
    %3881 = vmatprep.subr.mxu0 %v3791
    %3882 = vmatpush1.msra.mxu0 %v3790
    %3883 = vmatprep.subr.mxu0 %v3787
    %3884 = vmatpush1.msra.mxu0 %v3786
    %3885 = vmatprep.subr.mxu0 %v3783
    %3886 = vmatpush1.msra.mxu0 %v3782
    %3887 = vmatprep.subr.mxu0 %v3779
    %3888 = vmatpush1.msra.mxu0 %v3778
    %3889 = vmatprep.subr.mxu0 %v3775
    %3890 = vmatpush1.msra.mxu0 %v3774
    %3891 = vmatprep.subr.mxu0 %v3771
    %3892 = vmatpush1.msra.mxu0 %v3770
    %3893 = vmatprep.subr.mxu0 %v3767
    %3894 = vmatpush1.msra.mxu0 %v3766
    %3895 = vmatprep.subr.mxu0 %v3763
    %3896 = vmatpush1.msra.mxu0 %v3762
    %3897 = vmatprep.subr.mxu0 %v3759
    %3898 = vmatpush1.msra.mxu0 %v3758
    %3899 = vmatprep.subr.mxu0 %v3755
    %3900 = vmatpush1.msra.mxu0 %v3754
    %3901 = vmatprep.subr.mxu0 %v3751
    %3902 = vmatpush1.msra.mxu0 %v3750
    %3903 = vmatprep.subr.mxu0 %v3747
    %3904 = vmatpush1.msra.mxu0 %v3746
    %3905 = vmatprep.subr.mxu0 %v3743
    %3906 = vmatpush1.msra.mxu0 %v3742
    %3907 = vmatprep.subr.mxu0 0.0
    %3908 = vmatpush2.msra.mxu0 0.0
    %3909 = vmatprep.subr.mxu0 0.0
    %3910 = vmatpush2.msra.mxu0 0.0
    %3911 = vmatprep.subr.mxu0 0.0
    %3912 = vmatpush2.msra.mxu0 0.0
    %3913 = vmatprep.subr.mxu0 0.0
    %3914 = vmatpush2.msra.mxu0 0.0
    %3915 = vmatprep.subr.mxu0 0.0
    %3916 = vmatpush2.msra.mxu0 0.0
    %3917 = vmatprep.subr.mxu0 0.0
    %3918 = vmatpush2.msra.mxu0 0.0
    %3919 = vmatprep.subr.mxu0 0.0
    %3920 = vmatpush2.msra.mxu0 0.0
    %3921 = vmatprep.subr.mxu0 0.0
    %3922 = vmatpush2.msra.mxu0 0.0
    %3923 = vmatprep.subr.mxu0 0.0
    %3924 = vmatpush2.msra.mxu0 0.0
    %3925 = vmatprep.subr.mxu0 0.0
    %3926 = vmatpush2.msra.mxu0 0.0
    %3927 = vmatprep.subr.mxu0 0.0
    %3928 = vmatpush2.msra.mxu0 0.0
    %3929 = vmatprep.subr.mxu0 0.0
    %3930 = vmatpush2.msra.mxu0 0.0
    %3931 = vmatprep.subr.mxu0 0.0
    %3932 = vmatpush2.msra.mxu0 0.0
    %3933 = vmatprep.subr.mxu0 0.0
    %3934 = vmatpush2.msra.mxu0 0.0
    %3935 = vmatprep.subr.mxu0 0.0
    %3936 = vmatpush2.msra.mxu0 0.0
    %3937 = vmatprep.subr.mxu0 0.0
    %3938 = vmatpush2.msra.mxu0 0.0
    %3939 = vmatprep.mubr.f32.mxu0 0.0
    %3940 = vmatmul.mubr.f32.gmra.mxu0 %v3734
    %v3941 = vpop.f32.mrf.mxu0
    %v3942 = vadd.f32 0.0, %v3941
    %v3943 = vpop.f32.mrf.mxu0
    %v3944 = vadd.f32 0.0, %v3943
    %3945 = vdwg.mxu0
    %v3946 = vadd.f32 %v3736, %v3871
    %v3947 = vadd.f32 %v3737, %v3873
    %v3948 = vadd.f32 %v3738, %v3942
    %v3949 = vadd.f32 %v3739, %v3944
    %v3950 = vxor.u32 %v3946, 2147483648
    %v3951 = vmul.f32 %v3950, 1.442695
    %v3952 = vpow.pop %v3951
    %v3953 = vadd.f32 %v3952, 1.0
    %v3954 = vrcp.pop %v3953
    %v3955 = vmul.f32 1.0, %v3954
    %v3956 = vxor.u32 %v3947, 2147483648
    %v3957 = vmul.f32 %v3956, 1.442695
    %v3958 = vpow.pop %v3957
    %v3959 = vadd.f32 %v3958, 1.0
    %v3960 = vrcp.pop %v3959
    %v3961 = vmul.f32 1.0, %v3960
    %v3962 = vtanh.pop %v3948
    %v3963 = vxor.u32 %v3949, 2147483648
    %v3964 = vmul.f32 %v3963, 1.442695
    %v3965 = vpow.pop %v3964
    %v3966 = vadd.f32 %v3965, 1.0
    %v3967 = vrcp.pop %v3966
    %v3968 = vmul.f32 1.0, %v3967
    %v3969 = vmul.f32 %v3961, %v3735
    %v3970 = vmul.f32 %v3955, %v3962
    %v3971 = vadd.f32 %v3969, %v3970
    %v3972 = vtanh.pop %v3971
    %v3973 = vmul.f32 %v3968, %v3972
    %3974 = vst [vmem:[#allocation5] sm:$0xff] %v3971
    %3975 = vst [vmem:[#allocation4] sm:$0xff] %v3973
    %v3976 = vld [vmem:[#allocation4] sm:$0xff]
    %v3977 = vld [vmem:[#allocation5] sm:$0xff]
    %v3978 = vld [vmem:[%s1679] sm:$0xff]
    %v3979 = vld [vmem:[%s1679 + $0x8] sm:$0xff]
    %v3980 = vld [vmem:[%s1679 + $0x10] sm:$0xff]
    %v3981 = vld [vmem:[%s1679 + $0x18] sm:$0xff]
    %v3982 = vld [vmem:[#allocation11] sm:$0xff]
    %v3983 = vld [vmem:[#allocation11 + $0x8] sm:$0xff]
    %v3984 = vld [vmem:[#allocation11 + $0x10] sm:$0xff]
    %v3985 = vld [vmem:[#allocation11 + $0x18] sm:$0xff]
    %v3986 = vld [vmem:[#allocation11 + $0x20] sm:$0xff]
    %v3987 = vld [vmem:[#allocation11 + $0x28] sm:$0xff]
    %v3988 = vld [vmem:[#allocation11 + $0x30] sm:$0xff]
    %v3989 = vld [vmem:[#allocation11 + $0x38] sm:$0xff]
    %v3990 = vld [vmem:[#allocation11 + $0x40] sm:$0xff]
    %v3991 = vld [vmem:[#allocation11 + $0x48] sm:$0xff]
    %v3992 = vld [vmem:[#allocation11 + $0x50] sm:$0xff]
    %v3993 = vld [vmem:[#allocation11 + $0x58] sm:$0xff]
    %v3994 = vld [vmem:[#allocation11 + $0x60] sm:$0xff]
    %v3995 = vld [vmem:[#allocation11 + $0x68] sm:$0xff]
    %v3996 = vld [vmem:[#allocation11 + $0x70] sm:$0xff]
    %v3997 = vld [vmem:[#allocation11 + $0x78] sm:$0xff]
    %v3998 = vld [vmem:[#allocation11 + $0x80] sm:$0xff]
    %v3999 = vld [vmem:[#allocation11 + $0x88] sm:$0xff]
    %v4000 = vld [vmem:[#allocation11 + $0x90] sm:$0xff]
    %v4001 = vld [vmem:[#allocation11 + $0x98] sm:$0xff]
    %v4002 = vld [vmem:[#allocation11 + $0xa0] sm:$0xff]
    %v4003 = vld [vmem:[#allocation11 + $0xa8] sm:$0xff]
    %v4004 = vld [vmem:[#allocation11 + $0xb0] sm:$0xff]
    %v4005 = vld [vmem:[#allocation11 + $0xb8] sm:$0xff]
    %v4006 = vld [vmem:[#allocation11 + $0xc0] sm:$0xff]
    %v4007 = vld [vmem:[#allocation11 + $0xc8] sm:$0xff]
    %v4008 = vld [vmem:[#allocation11 + $0xd0] sm:$0xff]
    %v4009 = vld [vmem:[#allocation11 + $0xd8] sm:$0xff]
    %v4010 = vld [vmem:[#allocation11 + $0xe0] sm:$0xff]
    %v4011 = vld [vmem:[#allocation11 + $0xe8] sm:$0xff]
    %v4012 = vld [vmem:[#allocation11 + $0xf0] sm:$0xff]
    %v4013 = vld [vmem:[#allocation11 + $0xf8] sm:$0xff]
    %v4014 = vld [vmem:[#allocation11 + $0x100] sm:$0xff]
    %v4015 = vld [vmem:[#allocation11 + $0x108] sm:$0xff]
    %v4016 = vld [vmem:[#allocation11 + $0x110] sm:$0xff]
    %v4017 = vld [vmem:[#allocation11 + $0x118] sm:$0xff]
    %v4018 = vld [vmem:[#allocation11 + $0x120] sm:$0xff]
    %v4019 = vld [vmem:[#allocation11 + $0x128] sm:$0xff]
    %v4020 = vld [vmem:[#allocation11 + $0x130] sm:$0xff]
    %v4021 = vld [vmem:[#allocation11 + $0x138] sm:$0xff]
    %v4022 = vld [vmem:[#allocation11 + $0x140] sm:$0xff]
    %v4023 = vld [vmem:[#allocation11 + $0x148] sm:$0xff]
    %v4024 = vld [vmem:[#allocation11 + $0x150] sm:$0xff]
    %v4025 = vld [vmem:[#allocation11 + $0x158] sm:$0xff]
    %v4026 = vld [vmem:[#allocation11 + $0x160] sm:$0xff]
    %v4027 = vld [vmem:[#allocation11 + $0x168] sm:$0xff]
    %v4028 = vld [vmem:[#allocation11 + $0x170] sm:$0xff]
    %v4029 = vld [vmem:[#allocation11 + $0x178] sm:$0xff]
    %v4030 = vld [vmem:[#allocation11 + $0x180] sm:$0xff]
    %v4031 = vld [vmem:[#allocation11 + $0x188] sm:$0xff]
    %v4032 = vld [vmem:[#allocation11 + $0x190] sm:$0xff]
    %v4033 = vld [vmem:[#allocation11 + $0x198] sm:$0xff]
    %v4034 = vld [vmem:[#allocation11 + $0x1a0] sm:$0xff]
    %v4035 = vld [vmem:[#allocation11 + $0x1a8] sm:$0xff]
    %v4036 = vld [vmem:[#allocation11 + $0x1b0] sm:$0xff]
    %v4037 = vld [vmem:[#allocation11 + $0x1b8] sm:$0xff]
    %v4038 = vld [vmem:[#allocation11 + $0x1c0] sm:$0xff]
    %v4039 = vld [vmem:[#allocation11 + $0x1c8] sm:$0xff]
    %v4040 = vld [vmem:[#allocation11 + $0x1d0] sm:$0xff]
    %v4041 = vld [vmem:[#allocation11 + $0x1d8] sm:$0xff]
    %v4042 = vld [vmem:[#allocation11 + $0x1e0] sm:$0xff]
    %v4043 = vld [vmem:[#allocation11 + $0x1e8] sm:$0xff]
    %v4044 = vld [vmem:[#allocation11 + $0x1f0] sm:$0xff]
    %v4045 = vld [vmem:[#allocation11 + $0x1f8] sm:$0xff]
    %4046 = vmatprep.subr.mxu0 %v4043
    %4047 = vmatpush1.msra.mxu0 %v4042
    %4048 = vmatprep.subr.mxu0 %v4039
    %4049 = vmatpush1.msra.mxu0 %v4038
    %4050 = vmatprep.subr.mxu0 %v4035
    %4051 = vmatpush1.msra.mxu0 %v4034
    %4052 = vmatprep.subr.mxu0 %v4031
    %4053 = vmatpush1.msra.mxu0 %v4030
    %4054 = vmatprep.subr.mxu0 %v4027
    %4055 = vmatpush1.msra.mxu0 %v4026
    %4056 = vmatprep.subr.mxu0 %v4023
    %4057 = vmatpush1.msra.mxu0 %v4022
    %4058 = vmatprep.subr.mxu0 %v4019
    %4059 = vmatpush1.msra.mxu0 %v4018
    %4060 = vmatprep.subr.mxu0 %v4015
    %4061 = vmatpush1.msra.mxu0 %v4014
    %4062 = vmatprep.subr.mxu0 %v4011
    %4063 = vmatpush1.msra.mxu0 %v4010
    %4064 = vmatprep.subr.mxu0 %v4007
    %4065 = vmatpush1.msra.mxu0 %v4006
    %4066 = vmatprep.subr.mxu0 %v4003
    %4067 = vmatpush1.msra.mxu0 %v4002
    %4068 = vmatprep.subr.mxu0 %v3999
    %4069 = vmatpush1.msra.mxu0 %v3998
    %4070 = vmatprep.subr.mxu0 %v3995
    %4071 = vmatpush1.msra.mxu0 %v3994
    %4072 = vmatprep.subr.mxu0 %v3991
    %4073 = vmatpush1.msra.mxu0 %v3990
    %4074 = vmatprep.subr.mxu0 %v3987
    %4075 = vmatpush1.msra.mxu0 %v3986
    %4076 = vmatprep.subr.mxu0 %v3983
    %4077 = vmatpush1.msra.mxu0 %v3982
    %4078 = vmatprep.subr.mxu0 0.0
    %4079 = vmatpush2.msra.mxu0 0.0
    %4080 = vmatprep.subr.mxu0 0.0
    %4081 = vmatpush2.msra.mxu0 0.0
    %4082 = vmatprep.subr.mxu0 0.0
    %4083 = vmatpush2.msra.mxu0 0.0
    %4084 = vmatprep.subr.mxu0 0.0
    %4085 = vmatpush2.msra.mxu0 0.0
    %4086 = vmatprep.subr.mxu0 0.0
    %4087 = vmatpush2.msra.mxu0 0.0
    %4088 = vmatprep.subr.mxu0 0.0
    %4089 = vmatpush2.msra.mxu0 0.0
    %4090 = vmatprep.subr.mxu0 0.0
    %4091 = vmatpush2.msra.mxu0 0.0
    %4092 = vmatprep.subr.mxu0 0.0
    %4093 = vmatpush2.msra.mxu0 0.0
    %4094 = vmatprep.subr.mxu0 0.0
    %4095 = vmatpush2.msra.mxu0 0.0
    %4096 = vmatprep.subr.mxu0 0.0
    %4097 = vmatpush2.msra.mxu0 0.0
    %4098 = vmatprep.subr.mxu0 0.0
    %4099 = vmatpush2.msra.mxu0 0.0
    %4100 = vmatprep.subr.mxu0 0.0
    %4101 = vmatpush2.msra.mxu0 0.0
    %4102 = vmatprep.subr.mxu0 0.0
    %4103 = vmatpush2.msra.mxu0 0.0
    %4104 = vmatprep.subr.mxu0 0.0
    %4105 = vmatpush2.msra.mxu0 0.0
    %4106 = vmatprep.subr.mxu0 0.0
    %4107 = vmatpush2.msra.mxu0 0.0
    %4108 = vmatprep.subr.mxu0 0.0
    %4109 = vmatpush2.msra.mxu0 0.0
    %4110 = vmatprep.mubr.f32.mxu0 0.0
    %4111 = vmatmul.mubr.f32.gmra.mxu0 %v3976
    %v4112 = vpop.f32.mrf.mxu0
    %v4113 = vadd.f32 0.0, %v4112
    %v4114 = vpop.f32.mrf.mxu0
    %v4115 = vadd.f32 0.0, %v4114
    %4116 = vdwg.mxu0
    %4117 = vmatprep.subr.mxu0 %v4045
    %4118 = vmatpush1.msra.mxu0 %v4044
    %4119 = vmatprep.subr.mxu0 %v4041
    %4120 = vmatpush1.msra.mxu0 %v4040
    %4121 = vmatprep.subr.mxu0 %v4037
    %4122 = vmatpush1.msra.mxu0 %v4036
    %4123 = vmatprep.subr.mxu0 %v4033
    %4124 = vmatpush1.msra.mxu0 %v4032
    %4125 = vmatprep.subr.mxu0 %v4029
    %4126 = vmatpush1.msra.mxu0 %v4028
    %4127 = vmatprep.subr.mxu0 %v4025
    %4128 = vmatpush1.msra.mxu0 %v4024
    %4129 = vmatprep.subr.mxu0 %v4021
    %4130 = vmatpush1.msra.mxu0 %v4020
    %4131 = vmatprep.subr.mxu0 %v4017
    %4132 = vmatpush1.msra.mxu0 %v4016
    %4133 = vmatprep.subr.mxu0 %v4013
    %4134 = vmatpush1.msra.mxu0 %v4012
    %4135 = vmatprep.subr.mxu0 %v4009
    %4136 = vmatpush1.msra.mxu0 %v4008
    %4137 = vmatprep.subr.mxu0 %v4005
    %4138 = vmatpush1.msra.mxu0 %v4004
    %4139 = vmatprep.subr.mxu0 %v4001
    %4140 = vmatpush1.msra.mxu0 %v4000
    %4141 = vmatprep.subr.mxu0 %v3997
    %4142 = vmatpush1.msra.mxu0 %v3996
    %4143 = vmatprep.subr.mxu0 %v3993
    %4144 = vmatpush1.msra.mxu0 %v3992
    %4145 = vmatprep.subr.mxu0 %v3989
    %4146 = vmatpush1.msra.mxu0 %v3988
    %4147 = vmatprep.subr.mxu0 %v3985
    %4148 = vmatpush1.msra.mxu0 %v3984
    %4149 = vmatprep.subr.mxu0 0.0
    %4150 = vmatpush2.msra.mxu0 0.0
    %4151 = vmatprep.subr.mxu0 0.0
    %4152 = vmatpush2.msra.mxu0 0.0
    %4153 = vmatprep.subr.mxu0 0.0
    %4154 = vmatpush2.msra.mxu0 0.0
    %4155 = vmatprep.subr.mxu0 0.0
    %4156 = vmatpush2.msra.mxu0 0.0
    %4157 = vmatprep.subr.mxu0 0.0
    %4158 = vmatpush2.msra.mxu0 0.0
    %4159 = vmatprep.subr.mxu0 0.0
    %4160 = vmatpush2.msra.mxu0 0.0
    %4161 = vmatprep.subr.mxu0 0.0
    %4162 = vmatpush2.msra.mxu0 0.0
    %4163 = vmatprep.subr.mxu0 0.0
    %4164 = vmatpush2.msra.mxu0 0.0
    %4165 = vmatprep.subr.mxu0 0.0
    %4166 = vmatpush2.msra.mxu0 0.0
    %4167 = vmatprep.subr.mxu0 0.0
    %4168 = vmatpush2.msra.mxu0 0.0
    %4169 = vmatprep.subr.mxu0 0.0
    %4170 = vmatpush2.msra.mxu0 0.0
    %4171 = vmatprep.subr.mxu0 0.0
    %4172 = vmatpush2.msra.mxu0 0.0
    %4173 = vmatprep.subr.mxu0 0.0
    %4174 = vmatpush2.msra.mxu0 0.0
    %4175 = vmatprep.subr.mxu0 0.0
    %4176 = vmatpush2.msra.mxu0 0.0
    %4177 = vmatprep.subr.mxu0 0.0
    %4178 = vmatpush2.msra.mxu0 0.0
    %4179 = vmatprep.subr.mxu0 0.0
    %4180 = vmatpush2.msra.mxu0 0.0
    %4181 = vmatprep.mubr.f32.mxu0 0.0
    %4182 = vmatmul.mubr.f32.gmra.mxu0 %v3976
    %v4183 = vpop.f32.mrf.mxu0
    %v4184 = vadd.f32 0.0, %v4183
    %v4185 = vpop.f32.mrf.mxu0
    %v4186 = vadd.f32 0.0, %v4185
    %4187 = vdwg.mxu0
    %v4188 = vadd.f32 %v3978, %v4113
    %v4189 = vadd.f32 %v3979, %v4115
    %v4190 = vadd.f32 %v3980, %v4184
    %v4191 = vadd.f32 %v3981, %v4186
    %v4192 = vxor.u32 %v4188, 2147483648
    %v4193 = vmul.f32 %v4192, 1.442695
    %v4194 = vpow.pop %v4193
    %v4195 = vadd.f32 %v4194, 1.0
    %v4196 = vrcp.pop %v4195
    %v4197 = vmul.f32 1.0, %v4196
    %v4198 = vxor.u32 %v4189, 2147483648
    %v4199 = vmul.f32 %v4198, 1.442695
    %v4200 = vpow.pop %v4199
    %v4201 = vadd.f32 %v4200, 1.0
    %v4202 = vrcp.pop %v4201
    %v4203 = vmul.f32 1.0, %v4202
    %v4204 = vtanh.pop %v4190
    %v4205 = vxor.u32 %v4191, 2147483648
    %v4206 = vmul.f32 %v4205, 1.442695
    %v4207 = vpow.pop %v4206
    %v4208 = vadd.f32 %v4207, 1.0
    %v4209 = vrcp.pop %v4208
    %v4210 = vmul.f32 1.0, %v4209
    %v4211 = vmul.f32 %v4203, %v3977
    %v4212 = vmul.f32 %v4197, %v4204
    %v4213 = vadd.f32 %v4211, %v4212
    %v4214 = vtanh.pop %v4213
    %v4215 = vmul.f32 %v4210, %v4214
    %4216 = vst [vmem:[#allocation5] sm:$0xff] %v4213
    %4217 = vst [vmem:[#allocation4] sm:$0xff] %v4215
    %v4218 = vld [vmem:[#allocation4] sm:$0xff]
    %v4219 = vld [vmem:[#allocation5] sm:$0xff]
    %v4220 = vld [vmem:[%s1924] sm:$0xff]
    %v4221 = vld [vmem:[%s1924 + $0x8] sm:$0xff]
    %v4222 = vld [vmem:[%s1924 + $0x10] sm:$0xff]
    %v4223 = vld [vmem:[%s1924 + $0x18] sm:$0xff]
    %v4224 = vld [vmem:[#allocation11] sm:$0xff]
    %v4225 = vld [vmem:[#allocation11 + $0x8] sm:$0xff]
    %v4226 = vld [vmem:[#allocation11 + $0x10] sm:$0xff]
    %v4227 = vld [vmem:[#allocation11 + $0x18] sm:$0xff]
    %v4228 = vld [vmem:[#allocation11 + $0x20] sm:$0xff]
    %v4229 = vld [vmem:[#allocation11 + $0x28] sm:$0xff]
    %v4230 = vld [vmem:[#allocation11 + $0x30] sm:$0xff]
    %v4231 = vld [vmem:[#allocation11 + $0x38] sm:$0xff]
    %v4232 = vld [vmem:[#allocation11 + $0x40] sm:$0xff]
    %v4233 = vld [vmem:[#allocation11 + $0x48] sm:$0xff]
    %v4234 = vld [vmem:[#allocation11 + $0x50] sm:$0xff]
    %v4235 = vld [vmem:[#allocation11 + $0x58] sm:$0xff]
    %v4236 = vld [vmem:[#allocation11 + $0x60] sm:$0xff]
    %v4237 = vld [vmem:[#allocation11 + $0x68] sm:$0xff]
    %v4238 = vld [vmem:[#allocation11 + $0x70] sm:$0xff]
    %v4239 = vld [vmem:[#allocation11 + $0x78] sm:$0xff]
    %v4240 = vld [vmem:[#allocation11 + $0x80] sm:$0xff]
    %v4241 = vld [vmem:[#allocation11 + $0x88] sm:$0xff]
    %v4242 = vld [vmem:[#allocation11 + $0x90] sm:$0xff]
    %v4243 = vld [vmem:[#allocation11 + $0x98] sm:$0xff]
    %v4244 = vld [vmem:[#allocation11 + $0xa0] sm:$0xff]
    %v4245 = vld [vmem:[#allocation11 + $0xa8] sm:$0xff]
    %v4246 = vld [vmem:[#allocation11 + $0xb0] sm:$0xff]
    %v4247 = vld [vmem:[#allocation11 + $0xb8] sm:$0xff]
    %v4248 = vld [vmem:[#allocation11 + $0xc0] sm:$0xff]
    %v4249 = vld [vmem:[#allocation11 + $0xc8] sm:$0xff]
    %v4250 = vld [vmem:[#allocation11 + $0xd0] sm:$0xff]
    %v4251 = vld [vmem:[#allocation11 + $0xd8] sm:$0xff]
    %v4252 = vld [vmem:[#allocation11 + $0xe0] sm:$0xff]
    %v4253 = vld [vmem:[#allocation11 + $0xe8] sm:$0xff]
    %v4254 = vld [vmem:[#allocation11 + $0xf0] sm:$0xff]
    %v4255 = vld [vmem:[#allocation11 + $0xf8] sm:$0xff]
    %v4256 = vld [vmem:[#allocation11 + $0x100] sm:$0xff]
    %v4257 = vld [vmem:[#allocation11 + $0x108] sm:$0xff]
    %v4258 = vld [vmem:[#allocation11 + $0x110] sm:$0xff]
    %v4259 = vld [vmem:[#allocation11 + $0x118] sm:$0xff]
    %v4260 = vld [vmem:[#allocation11 + $0x120] sm:$0xff]
    %v4261 = vld [vmem:[#allocation11 + $0x128] sm:$0xff]
    %v4262 = vld [vmem:[#allocation11 + $0x130] sm:$0xff]
    %v4263 = vld [vmem:[#allocation11 + $0x138] sm:$0xff]
    %v4264 = vld [vmem:[#allocation11 + $0x140] sm:$0xff]
    %v4265 = vld [vmem:[#allocation11 + $0x148] sm:$0xff]
    %v4266 = vld [vmem:[#allocation11 + $0x150] sm:$0xff]
    %v4267 = vld [vmem:[#allocation11 + $0x158] sm:$0xff]
    %v4268 = vld [vmem:[#allocation11 + $0x160] sm:$0xff]
    %v4269 = vld [vmem:[#allocation11 + $0x168] sm:$0xff]
    %v4270 = vld [vmem:[#allocation11 + $0x170] sm:$0xff]
    %v4271 = vld [vmem:[#allocation11 + $0x178] sm:$0xff]
    %v4272 = vld [vmem:[#allocation11 + $0x180] sm:$0xff]
    %v4273 = vld [vmem:[#allocation11 + $0x188] sm:$0xff]
    %v4274 = vld [vmem:[#allocation11 + $0x190] sm:$0xff]
    %v4275 = vld [vmem:[#allocation11 + $0x198] sm:$0xff]
    %v4276 = vld [vmem:[#allocation11 + $0x1a0] sm:$0xff]
    %v4277 = vld [vmem:[#allocation11 + $0x1a8] sm:$0xff]
    %v4278 = vld [vmem:[#allocation11 + $0x1b0] sm:$0xff]
    %v4279 = vld [vmem:[#allocation11 + $0x1b8] sm:$0xff]
    %v4280 = vld [vmem:[#allocation11 + $0x1c0] sm:$0xff]
    %v4281 = vld [vmem:[#allocation11 + $0x1c8] sm:$0xff]
    %v4282 = vld [vmem:[#allocation11 + $0x1d0] sm:$0xff]
    %v4283 = vld [vmem:[#allocation11 + $0x1d8] sm:$0xff]
    %v4284 = vld [vmem:[#allocation11 + $0x1e0] sm:$0xff]
    %v4285 = vld [vmem:[#allocation11 + $0x1e8] sm:$0xff]
    %v4286 = vld [vmem:[#allocation11 + $0x1f0] sm:$0xff]
    %v4287 = vld [vmem:[#allocation11 + $0x1f8] sm:$0xff]
    %4288 = vmatprep.subr.mxu0 %v4285
    %4289 = vmatpush1.msra.mxu0 %v4284
    %4290 = vmatprep.subr.mxu0 %v4281
    %4291 = vmatpush1.msra.mxu0 %v4280
    %4292 = vmatprep.subr.mxu0 %v4277
    %4293 = vmatpush1.msra.mxu0 %v4276
    %4294 = vmatprep.subr.mxu0 %v4273
    %4295 = vmatpush1.msra.mxu0 %v4272
    %4296 = vmatprep.subr.mxu0 %v4269
    %4297 = vmatpush1.msra.mxu0 %v4268
    %4298 = vmatprep.subr.mxu0 %v4265
    %4299 = vmatpush1.msra.mxu0 %v4264
    %4300 = vmatprep.subr.mxu0 %v4261
    %4301 = vmatpush1.msra.mxu0 %v4260
    %4302 = vmatprep.subr.mxu0 %v4257
    %4303 = vmatpush1.msra.mxu0 %v4256
    %4304 = vmatprep.subr.mxu0 %v4253
    %4305 = vmatpush1.msra.mxu0 %v4252
    %4306 = vmatprep.subr.mxu0 %v4249
    %4307 = vmatpush1.msra.mxu0 %v4248
    %4308 = vmatprep.subr.mxu0 %v4245
    %4309 = vmatpush1.msra.mxu0 %v4244
    %4310 = vmatprep.subr.mxu0 %v4241
    %4311 = vmatpush1.msra.mxu0 %v4240
    %4312 = vmatprep.subr.mxu0 %v4237
    %4313 = vmatpush1.msra.mxu0 %v4236
    %4314 = vmatprep.subr.mxu0 %v4233
    %4315 = vmatpush1.msra.mxu0 %v4232
    %4316 = vmatprep.subr.mxu0 %v4229
    %4317 = vmatpush1.msra.mxu0 %v4228
    %4318 = vmatprep.subr.mxu0 %v4225
    %4319 = vmatpush1.msra.mxu0 %v4224
    %4320 = vmatprep.subr.mxu0 0.0
    %4321 = vmatpush2.msra.mxu0 0.0
    %4322 = vmatprep.subr.mxu0 0.0
    %4323 = vmatpush2.msra.mxu0 0.0
    %4324 = vmatprep.subr.mxu0 0.0
    %4325 = vmatpush2.msra.mxu0 0.0
    %4326 = vmatprep.subr.mxu0 0.0
    %4327 = vmatpush2.msra.mxu0 0.0
    %4328 = vmatprep.subr.mxu0 0.0
    %4329 = vmatpush2.msra.mxu0 0.0
    %4330 = vmatprep.subr.mxu0 0.0
    %4331 = vmatpush2.msra.mxu0 0.0
    %4332 = vmatprep.subr.mxu0 0.0
    %4333 = vmatpush2.msra.mxu0 0.0
    %4334 = vmatprep.subr.mxu0 0.0
    %4335 = vmatpush2.msra.mxu0 0.0
    %4336 = vmatprep.subr.mxu0 0.0
    %4337 = vmatpush2.msra.mxu0 0.0
    %4338 = vmatprep.subr.mxu0 0.0
    %4339 = vmatpush2.msra.mxu0 0.0
    %4340 = vmatprep.subr.mxu0 0.0
    %4341 = vmatpush2.msra.mxu0 0.0
    %4342 = vmatprep.subr.mxu0 0.0
    %4343 = vmatpush2.msra.mxu0 0.0
    %4344 = vmatprep.subr.mxu0 0.0
    %4345 = vmatpush2.msra.mxu0 0.0
    %4346 = vmatprep.subr.mxu0 0.0
    %4347 = vmatpush2.msra.mxu0 0.0
    %4348 = vmatprep.subr.mxu0 0.0
    %4349 = vmatpush2.msra.mxu0 0.0
    %4350 = vmatprep.subr.mxu0 0.0
    %4351 = vmatpush2.msra.mxu0 0.0
    %4352 = vmatprep.mubr.f32.mxu0 0.0
    %4353 = vmatmul.mubr.f32.gmra.mxu0 %v4218
    %v4354 = vpop.f32.mrf.mxu0
    %v4355 = vadd.f32 0.0, %v4354
    %v4356 = vpop.f32.mrf.mxu0
    %v4357 = vadd.f32 0.0, %v4356
    %4358 = vdwg.mxu0
    %4359 = vmatprep.subr.mxu0 %v4287
    %4360 = vmatpush1.msra.mxu0 %v4286
    %4361 = vmatprep.subr.mxu0 %v4283
    %4362 = vmatpush1.msra.mxu0 %v4282
    %4363 = vmatprep.subr.mxu0 %v4279
    %4364 = vmatpush1.msra.mxu0 %v4278
    %4365 = vmatprep.subr.mxu0 %v4275
    %4366 = vmatpush1.msra.mxu0 %v4274
    %4367 = vmatprep.subr.mxu0 %v4271
    %4368 = vmatpush1.msra.mxu0 %v4270
    %4369 = vmatprep.subr.mxu0 %v4267
    %4370 = vmatpush1.msra.mxu0 %v4266
    %4371 = vmatprep.subr.mxu0 %v4263
    %4372 = vmatpush1.msra.mxu0 %v4262
    %4373 = vmatprep.subr.mxu0 %v4259
    %4374 = vmatpush1.msra.mxu0 %v4258
    %4375 = vmatprep.subr.mxu0 %v4255
    %4376 = vmatpush1.msra.mxu0 %v4254
    %4377 = vmatprep.subr.mxu0 %v4251
    %4378 = vmatpush1.msra.mxu0 %v4250
    %4379 = vmatprep.subr.mxu0 %v4247
    %4380 = vmatpush1.msra.mxu0 %v4246
    %4381 = vmatprep.subr.mxu0 %v4243
    %4382 = vmatpush1.msra.mxu0 %v4242
    %4383 = vmatprep.subr.mxu0 %v4239
    %4384 = vmatpush1.msra.mxu0 %v4238
    %4385 = vmatprep.subr.mxu0 %v4235
    %4386 = vmatpush1.msra.mxu0 %v4234
    %4387 = vmatprep.subr.mxu0 %v4231
    %4388 = vmatpush1.msra.mxu0 %v4230
    %4389 = vmatprep.subr.mxu0 %v4227
    %4390 = vmatpush1.msra.mxu0 %v4226
    %4391 = vmatprep.subr.mxu0 0.0
    %4392 = vmatpush2.msra.mxu0 0.0
    %4393 = vmatprep.subr.mxu0 0.0
    %4394 = vmatpush2.msra.mxu0 0.0
    %4395 = vmatprep.subr.mxu0 0.0
    %4396 = vmatpush2.msra.mxu0 0.0
    %4397 = vmatprep.subr.mxu0 0.0
    %4398 = vmatpush2.msra.mxu0 0.0
    %4399 = vmatprep.subr.mxu0 0.0
    %4400 = vmatpush2.msra.mxu0 0.0
    %4401 = vmatprep.subr.mxu0 0.0
    %4402 = vmatpush2.msra.mxu0 0.0
    %4403 = vmatprep.subr.mxu0 0.0
    %4404 = vmatpush2.msra.mxu0 0.0
    %4405 = vmatprep.subr.mxu0 0.0
    %4406 = vmatpush2.msra.mxu0 0.0
    %4407 = vmatprep.subr.mxu0 0.0
    %4408 = vmatpush2.msra.mxu0 0.0
    %4409 = vmatprep.subr.mxu0 0.0
    %4410 = vmatpush2.msra.mxu0 0.0
    %4411 = vmatprep.subr.mxu0 0.0
    %4412 = vmatpush2.msra.mxu0 0.0
    %4413 = vmatprep.subr.mxu0 0.0
    %4414 = vmatpush2.msra.mxu0 0.0
    %4415 = vmatprep.subr.mxu0 0.0
    %4416 = vmatpush2.msra.mxu0 0.0
    %4417 = vmatprep.subr.mxu0 0.0
    %4418 = vmatpush2.msra.mxu0 0.0
    %4419 = vmatprep.subr.mxu0 0.0
    %4420 = vmatpush2.msra.mxu0 0.0
    %4421 = vmatprep.subr.mxu0 0.0
    %4422 = vmatpush2.msra.mxu0 0.0
    %4423 = vmatprep.mubr.f32.mxu0 0.0
    %4424 = vmatmul.mubr.f32.gmra.mxu0 %v4218
    %v4425 = vpop.f32.mrf.mxu0
    %v4426 = vadd.f32 0.0, %v4425
    %v4427 = vpop.f32.mrf.mxu0
    %v4428 = vadd.f32 0.0, %v4427
    %4429 = vdwg.mxu0
    %v4430 = vadd.f32 %v4220, %v4355
    %v4431 = vadd.f32 %v4221, %v4357
    %v4432 = vadd.f32 %v4222, %v4426
    %v4433 = vadd.f32 %v4223, %v4428
    %v4434 = vxor.u32 %v4430, 2147483648
    %v4435 = vmul.f32 %v4434, 1.442695
    %v4436 = vpow.pop %v4435
    %v4437 = vadd.f32 %v4436, 1.0
    %v4438 = vrcp.pop %v4437
    %v4439 = vmul.f32 1.0, %v4438
    %v4440 = vxor.u32 %v4431, 2147483648
    %v4441 = vmul.f32 %v4440, 1.442695
    %v4442 = vpow.pop %v4441
    %v4443 = vadd.f32 %v4442, 1.0
    %v4444 = vrcp.pop %v4443
    %v4445 = vmul.f32 1.0, %v4444
    %v4446 = vtanh.pop %v4432
    %v4447 = vxor.u32 %v4433, 2147483648
    %v4448 = vmul.f32 %v4447, 1.442695
    %v4449 = vpow.pop %v4448
    %v4450 = vadd.f32 %v4449, 1.0
    %v4451 = vrcp.pop %v4450
    %v4452 = vmul.f32 1.0, %v4451
    %v4453 = vmul.f32 %v4445, %v4219
    %v4454 = vmul.f32 %v4439, %v4446
    %v4455 = vadd.f32 %v4453, %v4454
    %v4456 = vtanh.pop %v4455
    %v4457 = vmul.f32 %v4452, %v4456
    %4458 = vst [vmem:[#allocation5] sm:$0xff] %v4455
    %4459 = vst [vmem:[#allocation4] sm:$0xff] %v4457
    %v4460 = vld [vmem:[#allocation4] sm:$0xff]
    %v4461 = vld [vmem:[#allocation5] sm:$0xff]
    %v4462 = vld [vmem:[%s2169] sm:$0xff]
    %v4463 = vld [vmem:[%s2169 + $0x8] sm:$0xff]
    %v4464 = vld [vmem:[%s2169 + $0x10] sm:$0xff]
    %v4465 = vld [vmem:[%s2169 + $0x18] sm:$0xff]
    %v4466 = vld [vmem:[#allocation11] sm:$0xff]
    %v4467 = vld [vmem:[#allocation11 + $0x8] sm:$0xff]
    %v4468 = vld [vmem:[#allocation11 + $0x10] sm:$0xff]
    %v4469 = vld [vmem:[#allocation11 + $0x18] sm:$0xff]
    %v4470 = vld [vmem:[#allocation11 + $0x20] sm:$0xff]
    %v4471 = vld [vmem:[#allocation11 + $0x28] sm:$0xff]
    %v4472 = vld [vmem:[#allocation11 + $0x30] sm:$0xff]
    %v4473 = vld [vmem:[#allocation11 + $0x38] sm:$0xff]
    %v4474 = vld [vmem:[#allocation11 + $0x40] sm:$0xff]
    %v4475 = vld [vmem:[#allocation11 + $0x48] sm:$0xff]
    %v4476 = vld [vmem:[#allocation11 + $0x50] sm:$0xff]
    %v4477 = vld [vmem:[#allocation11 + $0x58] sm:$0xff]
    %v4478 = vld [vmem:[#allocation11 + $0x60] sm:$0xff]
    %v4479 = vld [vmem:[#allocation11 + $0x68] sm:$0xff]
    %v4480 = vld [vmem:[#allocation11 + $0x70] sm:$0xff]
    %v4481 = vld [vmem:[#allocation11 + $0x78] sm:$0xff]
    %v4482 = vld [vmem:[#allocation11 + $0x80] sm:$0xff]
    %v4483 = vld [vmem:[#allocation11 + $0x88] sm:$0xff]
    %v4484 = vld [vmem:[#allocation11 + $0x90] sm:$0xff]
    %v4485 = vld [vmem:[#allocation11 + $0x98] sm:$0xff]
    %v4486 = vld [vmem:[#allocation11 + $0xa0] sm:$0xff]
    %v4487 = vld [vmem:[#allocation11 + $0xa8] sm:$0xff]
    %v4488 = vld [vmem:[#allocation11 + $0xb0] sm:$0xff]
    %v4489 = vld [vmem:[#allocation11 + $0xb8] sm:$0xff]
    %v4490 = vld [vmem:[#allocation11 + $0xc0] sm:$0xff]
    %v4491 = vld [vmem:[#allocation11 + $0xc8] sm:$0xff]
    %v4492 = vld [vmem:[#allocation11 + $0xd0] sm:$0xff]
    %v4493 = vld [vmem:[#allocation11 + $0xd8] sm:$0xff]
    %v4494 = vld [vmem:[#allocation11 + $0xe0] sm:$0xff]
    %v4495 = vld [vmem:[#allocation11 + $0xe8] sm:$0xff]
    %v4496 = vld [vmem:[#allocation11 + $0xf0] sm:$0xff]
    %v4497 = vld [vmem:[#allocation11 + $0xf8] sm:$0xff]
    %v4498 = vld [vmem:[#allocation11 + $0x100] sm:$0xff]
    %v4499 = vld [vmem:[#allocation11 + $0x108] sm:$0xff]
    %v4500 = vld [vmem:[#allocation11 + $0x110] sm:$0xff]
    %v4501 = vld [vmem:[#allocation11 + $0x118] sm:$0xff]
    %v4502 = vld [vmem:[#allocation11 + $0x120] sm:$0xff]
    %v4503 = vld [vmem:[#allocation11 + $0x128] sm:$0xff]
    %v4504 = vld [vmem:[#allocation11 + $0x130] sm:$0xff]
    %v4505 = vld [vmem:[#allocation11 + $0x138] sm:$0xff]
    %v4506 = vld [vmem:[#allocation11 + $0x140] sm:$0xff]
    %v4507 = vld [vmem:[#allocation11 + $0x148] sm:$0xff]
    %v4508 = vld [vmem:[#allocation11 + $0x150] sm:$0xff]
    %v4509 = vld [vmem:[#allocation11 + $0x158] sm:$0xff]
    %v4510 = vld [vmem:[#allocation11 + $0x160] sm:$0xff]
    %v4511 = vld [vmem:[#allocation11 + $0x168] sm:$0xff]
    %v4512 = vld [vmem:[#allocation11 + $0x170] sm:$0xff]
    %v4513 = vld [vmem:[#allocation11 + $0x178] sm:$0xff]
    %v4514 = vld [vmem:[#allocation11 + $0x180] sm:$0xff]
    %v4515 = vld [vmem:[#allocation11 + $0x188] sm:$0xff]
    %v4516 = vld [vmem:[#allocation11 + $0x190] sm:$0xff]
    %v4517 = vld [vmem:[#allocation11 + $0x198] sm:$0xff]
    %v4518 = vld [vmem:[#allocation11 + $0x1a0] sm:$0xff]
    %v4519 = vld [vmem:[#allocation11 + $0x1a8] sm:$0xff]
    %v4520 = vld [vmem:[#allocation11 + $0x1b0] sm:$0xff]
    %v4521 = vld [vmem:[#allocation11 + $0x1b8] sm:$0xff]
    %v4522 = vld [vmem:[#allocation11 + $0x1c0] sm:$0xff]
    %v4523 = vld [vmem:[#allocation11 + $0x1c8] sm:$0xff]
    %v4524 = vld [vmem:[#allocation11 + $0x1d0] sm:$0xff]
    %v4525 = vld [vmem:[#allocation11 + $0x1d8] sm:$0xff]
    %v4526 = vld [vmem:[#allocation11 + $0x1e0] sm:$0xff]
    %v4527 = vld [vmem:[#allocation11 + $0x1e8] sm:$0xff]
    %v4528 = vld [vmem:[#allocation11 + $0x1f0] sm:$0xff]
    %v4529 = vld [vmem:[#allocation11 + $0x1f8] sm:$0xff]
    %4530 = vmatprep.subr.mxu0 %v4527
    %4531 = vmatpush1.msra.mxu0 %v4526
    %4532 = vmatprep.subr.mxu0 %v4523
    %4533 = vmatpush1.msra.mxu0 %v4522
    %4534 = vmatprep.subr.mxu0 %v4519
    %4535 = vmatpush1.msra.mxu0 %v4518
    %4536 = vmatprep.subr.mxu0 %v4515
    %4537 = vmatpush1.msra.mxu0 %v4514
    %4538 = vmatprep.subr.mxu0 %v4511
    %4539 = vmatpush1.msra.mxu0 %v4510
    %4540 = vmatprep.subr.mxu0 %v4507
    %4541 = vmatpush1.msra.mxu0 %v4506
    %4542 = vmatprep.subr.mxu0 %v4503
    %4543 = vmatpush1.msra.mxu0 %v4502
    %4544 = vmatprep.subr.mxu0 %v4499
    %4545 = vmatpush1.msra.mxu0 %v4498
    %4546 = vmatprep.subr.mxu0 %v4495
    %4547 = vmatpush1.msra.mxu0 %v4494
    %4548 = vmatprep.subr.mxu0 %v4491
    %4549 = vmatpush1.msra.mxu0 %v4490
    %4550 = vmatprep.subr.mxu0 %v4487
    %4551 = vmatpush1.msra.mxu0 %v4486
    %4552 = vmatprep.subr.mxu0 %v4483
    %4553 = vmatpush1.msra.mxu0 %v4482
    %4554 = vmatprep.subr.mxu0 %v4479
    %4555 = vmatpush1.msra.mxu0 %v4478
    %4556 = vmatprep.subr.mxu0 %v4475
    %4557 = vmatpush1.msra.mxu0 %v4474
    %4558 = vmatprep.subr.mxu0 %v4471
    %4559 = vmatpush1.msra.mxu0 %v4470
    %4560 = vmatprep.subr.mxu0 %v4467
    %4561 = vmatpush1.msra.mxu0 %v4466
    %4562 = vmatprep.subr.mxu0 0.0
    %4563 = vmatpush2.msra.mxu0 0.0
    %4564 = vmatprep.subr.mxu0 0.0
    %4565 = vmatpush2.msra.mxu0 0.0
    %4566 = vmatprep.subr.mxu0 0.0
    %4567 = vmatpush2.msra.mxu0 0.0
    %4568 = vmatprep.subr.mxu0 0.0
    %4569 = vmatpush2.msra.mxu0 0.0
    %4570 = vmatprep.subr.mxu0 0.0
    %4571 = vmatpush2.msra.mxu0 0.0
    %4572 = vmatprep.subr.mxu0 0.0
    %4573 = vmatpush2.msra.mxu0 0.0
    %4574 = vmatprep.subr.mxu0 0.0
    %4575 = vmatpush2.msra.mxu0 0.0
    %4576 = vmatprep.subr.mxu0 0.0
    %4577 = vmatpush2.msra.mxu0 0.0
    %4578 = vmatprep.subr.mxu0 0.0
    %4579 = vmatpush2.msra.mxu0 0.0
    %4580 = vmatprep.subr.mxu0 0.0
    %4581 = vmatpush2.msra.mxu0 0.0
    %4582 = vmatprep.subr.mxu0 0.0
    %4583 = vmatpush2.msra.mxu0 0.0
    %4584 = vmatprep.subr.mxu0 0.0
    %4585 = vmatpush2.msra.mxu0 0.0
    %4586 = vmatprep.subr.mxu0 0.0
    %4587 = vmatpush2.msra.mxu0 0.0
    %4588 = vmatprep.subr.mxu0 0.0
    %4589 = vmatpush2.msra.mxu0 0.0
    %4590 = vmatprep.subr.mxu0 0.0
    %4591 = vmatpush2.msra.mxu0 0.0
    %4592 = vmatprep.subr.mxu0 0.0
    %4593 = vmatpush2.msra.mxu0 0.0
    %4594 = vmatprep.mubr.f32.mxu0 0.0
    %4595 = vmatmul.mubr.f32.gmra.mxu0 %v4460
    %v4596 = vpop.f32.mrf.mxu0
    %v4597 = vadd.f32 0.0, %v4596
    %v4598 = vpop.f32.mrf.mxu0
    %v4599 = vadd.f32 0.0, %v4598
    %4600 = vdwg.mxu0
    %4601 = vmatprep.subr.mxu0 %v4529
    %4602 = vmatpush1.msra.mxu0 %v4528
    %4603 = vmatprep.subr.mxu0 %v4525
    %4604 = vmatpush1.msra.mxu0 %v4524
    %4605 = vmatprep.subr.mxu0 %v4521
    %4606 = vmatpush1.msra.mxu0 %v4520
    %4607 = vmatprep.subr.mxu0 %v4517
    %4608 = vmatpush1.msra.mxu0 %v4516
    %4609 = vmatprep.subr.mxu0 %v4513
    %4610 = vmatpush1.msra.mxu0 %v4512
    %4611 = vmatprep.subr.mxu0 %v4509
    %4612 = vmatpush1.msra.mxu0 %v4508
    %4613 = vmatprep.subr.mxu0 %v4505
    %4614 = vmatpush1.msra.mxu0 %v4504
    %4615 = vmatprep.subr.mxu0 %v4501
    %4616 = vmatpush1.msra.mxu0 %v4500
    %4617 = vmatprep.subr.mxu0 %v4497
    %4618 = vmatpush1.msra.mxu0 %v4496
    %4619 = vmatprep.subr.mxu0 %v4493
    %4620 = vmatpush1.msra.mxu0 %v4492
    %4621 = vmatprep.subr.mxu0 %v4489
    %4622 = vmatpush1.msra.mxu0 %v4488
    %4623 = vmatprep.subr.mxu0 %v4485
    %4624 = vmatpush1.msra.mxu0 %v4484
    %4625 = vmatprep.subr.mxu0 %v4481
    %4626 = vmatpush1.msra.mxu0 %v4480
    %4627 = vmatprep.subr.mxu0 %v4477
    %4628 = vmatpush1.msra.mxu0 %v4476
    %4629 = vmatprep.subr.mxu0 %v4473
    %4630 = vmatpush1.msra.mxu0 %v4472
    %4631 = vmatprep.subr.mxu0 %v4469
    %4632 = vmatpush1.msra.mxu0 %v4468
    %4633 = vmatprep.subr.mxu0 0.0
    %4634 = vmatpush2.msra.mxu0 0.0
    %4635 = vmatprep.subr.mxu0 0.0
    %4636 = vmatpush2.msra.mxu0 0.0
    %4637 = vmatprep.subr.mxu0 0.0
    %4638 = vmatpush2.msra.mxu0 0.0
    %4639 = vmatprep.subr.mxu0 0.0
    %4640 = vmatpush2.msra.mxu0 0.0
    %4641 = vmatprep.subr.mxu0 0.0
    %4642 = vmatpush2.msra.mxu0 0.0
    %4643 = vmatprep.subr.mxu0 0.0
    %4644 = vmatpush2.msra.mxu0 0.0
    %4645 = vmatprep.subr.mxu0 0.0
    %4646 = vmatpush2.msra.mxu0 0.0
    %4647 = vmatprep.subr.mxu0 0.0
    %4648 = vmatpush2.msra.mxu0 0.0
    %4649 = vmatprep.subr.mxu0 0.0
    %4650 = vmatpush2.msra.mxu0 0.0
    %4651 = vmatprep.subr.mxu0 0.0
    %4652 = vmatpush2.msra.mxu0 0.0
    %4653 = vmatprep.subr.mxu0 0.0
    %4654 = vmatpush2.msra.mxu0 0.0
    %4655 = vmatprep.subr.mxu0 0.0
    %4656 = vmatpush2.msra.mxu0 0.0
    %4657 = vmatprep.subr.mxu0 0.0
    %4658 = vmatpush2.msra.mxu0 0.0
    %4659 = vmatprep.subr.mxu0 0.0
    %4660 = vmatpush2.msra.mxu0 0.0
    %4661 = vmatprep.subr.mxu0 0.0
    %4662 = vmatpush2.msra.mxu0 0.0
    %4663 = vmatprep.subr.mxu0 0.0
    %4664 = vmatpush2.msra.mxu0 0.0
    %4665 = vmatprep.mubr.f32.mxu0 0.0
    %4666 = vmatmul.mubr.f32.gmra.mxu0 %v4460
    %v4667 = vpop.f32.mrf.mxu0
    %v4668 = vadd.f32 0.0, %v4667
    %v4669 = vpop.f32.mrf.mxu0
    %v4670 = vadd.f32 0.0, %v4669
    %4671 = vdwg.mxu0
    %v4672 = vadd.f32 %v4462, %v4597
    %v4673 = vadd.f32 %v4463, %v4599
    %v4674 = vadd.f32 %v4464, %v4668
    %v4675 = vadd.f32 %v4465, %v4670
    %v4676 = vxor.u32 %v4672, 2147483648
    %v4677 = vmul.f32 %v4676, 1.442695
    %v4678 = vpow.pop %v4677
    %v4679 = vadd.f32 %v4678, 1.0
    %v4680 = vrcp.pop %v4679
    %v4681 = vmul.f32 1.0, %v4680
    %v4682 = vxor.u32 %v4673, 2147483648
    %v4683 = vmul.f32 %v4682, 1.442695
    %v4684 = vpow.pop %v4683
    %v4685 = vadd.f32 %v4684, 1.0
    %v4686 = vrcp.pop %v4685
    %v4687 = vmul.f32 1.0, %v4686
    %v4688 = vtanh.pop %v4674
    %v4689 = vxor.u32 %v4675, 2147483648
    %v4690 = vmul.f32 %v4689, 1.442695
    %v4691 = vpow.pop %v4690
    %v4692 = vadd.f32 %v4691, 1.0
    %v4693 = vrcp.pop %v4692
    %v4694 = vmul.f32 1.0, %v4693
    %v4695 = vmul.f32 %v4687, %v4461
    %v4696 = vmul.f32 %v4681, %v4688
    %v4697 = vadd.f32 %v4695, %v4696
    %v4698 = vtanh.pop %v4697
    %v4699 = vmul.f32 %v4694, %v4698
    %4700 = vst [vmem:[#allocation5] sm:$0xff] %v4697
    %4701 = vst [vmem:[#allocation4] sm:$0xff] %v4699
    %v4702 = vld [vmem:[#allocation4] sm:$0xff]
    %v4703 = vld [vmem:[#allocation13] sm:$0xff]
    %v4704 = vld [vmem:[#allocation13 + $0x8] sm:$0xff]
    %v4705 = vld [vmem:[#allocation13 + $0x10] sm:$0xff]
    %v4706 = vld [vmem:[#allocation13 + $0x18] sm:$0xff]
    %v4707 = vld [vmem:[#allocation13 + $0x20] sm:$0xff]
    %v4708 = vld [vmem:[#allocation13 + $0x28] sm:$0xff]
    %v4709 = vld [vmem:[#allocation13 + $0x30] sm:$0xff]
    %v4710 = vld [vmem:[#allocation13 + $0x38] sm:$0xff]
    %v4711 = vld [vmem:[#allocation13 + $0x40] sm:$0xff]
    %v4712 = vld [vmem:[#allocation13 + $0x48] sm:$0xff]
    %v4713 = vld [vmem:[#allocation13 + $0x50] sm:$0xff]
    %v4714 = vld [vmem:[#allocation13 + $0x58] sm:$0xff]
    %v4715 = vld [vmem:[#allocation13 + $0x60] sm:$0xff]
    %v4716 = vld [vmem:[#allocation13 + $0x68] sm:$0xff]
    %v4717 = vld [vmem:[#allocation13 + $0x70] sm:$0xff]
    %v4718 = vld [vmem:[#allocation13 + $0x78] sm:$0xff]
    %v4719 = vld [vmem:[%s8] sm:$0x1]
    %v4721 = vlaneseq
    %v4722 = vshrl.u32 %v4721, 7
    %v4723 = vsub.s32 0, %v4722
    %v4724 = vrot.slane %v4719, %v4723
    %4726 = vmatprep.subr.mxu0 0.0
    %4727 = vmatpush1.msra.mxu0 %v4718
    %4728 = vmatprep.subr.mxu0 0.0
    %4729 = vmatpush1.msra.mxu0 %v4717
    %4730 = vmatprep.subr.mxu0 0.0
    %4731 = vmatpush1.msra.mxu0 %v4716
    %4732 = vmatprep.subr.mxu0 0.0
    %4733 = vmatpush1.msra.mxu0 %v4715
    %4734 = vmatprep.subr.mxu0 0.0
    %4735 = vmatpush1.msra.mxu0 %v4714
    %4736 = vmatprep.subr.mxu0 0.0
    %4737 = vmatpush1.msra.mxu0 %v4713
    %4738 = vmatprep.subr.mxu0 0.0
    %4739 = vmatpush1.msra.mxu0 %v4712
    %4740 = vmatprep.subr.mxu0 0.0
    %4741 = vmatpush1.msra.mxu0 %v4711
    %4742 = vmatprep.subr.mxu0 0.0
    %4743 = vmatpush1.msra.mxu0 %v4710
    %4744 = vmatprep.subr.mxu0 0.0
    %4745 = vmatpush1.msra.mxu0 %v4709
    %4746 = vmatprep.subr.mxu0 0.0
    %4747 = vmatpush1.msra.mxu0 %v4708
    %4748 = vmatprep.subr.mxu0 0.0
    %4749 = vmatpush1.msra.mxu0 %v4707
    %4750 = vmatprep.subr.mxu0 0.0
    %4751 = vmatpush1.msra.mxu0 %v4706
    %4752 = vmatprep.subr.mxu0 0.0
    %4753 = vmatpush1.msra.mxu0 %v4705
    %4754 = vmatprep.subr.mxu0 0.0
    %4755 = vmatpush1.msra.mxu0 %v4704
    %4756 = vmatprep.subr.mxu0 0.0
    %4757 = vmatpush1.msra.mxu0 %v4703
    %4758 = vmatprep.subr.mxu0 0.0
    %4759 = vmatpush2.msra.mxu0 0.0
    %4760 = vmatprep.subr.mxu0 0.0
    %4761 = vmatpush2.msra.mxu0 0.0
    %4762 = vmatprep.subr.mxu0 0.0
    %4763 = vmatpush2.msra.mxu0 0.0
    %4764 = vmatprep.subr.mxu0 0.0
    %4765 = vmatpush2.msra.mxu0 0.0
    %4766 = vmatprep.subr.mxu0 0.0
    %4767 = vmatpush2.msra.mxu0 0.0
    %4768 = vmatprep.subr.mxu0 0.0
    %4769 = vmatpush2.msra.mxu0 0.0
    %4770 = vmatprep.subr.mxu0 0.0
    %4771 = vmatpush2.msra.mxu0 0.0
    %4772 = vmatprep.subr.mxu0 0.0
    %4773 = vmatpush2.msra.mxu0 0.0
    %4774 = vmatprep.subr.mxu0 0.0
    %4775 = vmatpush2.msra.mxu0 0.0
    %4776 = vmatprep.subr.mxu0 0.0
    %4777 = vmatpush2.msra.mxu0 0.0
    %4778 = vmatprep.subr.mxu0 0.0
    %4779 = vmatpush2.msra.mxu0 0.0
    %4780 = vmatprep.subr.mxu0 0.0
    %4781 = vmatpush2.msra.mxu0 0.0
    %4782 = vmatprep.subr.mxu0 0.0
    %4783 = vmatpush2.msra.mxu0 0.0
    %4784 = vmatprep.subr.mxu0 0.0
    %4785 = vmatpush2.msra.mxu0 0.0
    %4786 = vmatprep.subr.mxu0 0.0
    %4787 = vmatpush2.msra.mxu0 0.0
    %4788 = vmatprep.subr.mxu0 0.0
    %4789 = vmatpush2.msra.mxu0 0.0
    %4790 = vmatprep.mubr.f32.mxu0 0.0
    %4791 = vmatmul.mubr.f32.gmra.mxu0 %v4702
    %v4792 = vpop.f32.mrf.mxu0
    %v4793 = vadd.f32 %v4724, %v4792
    %v4794 = vpop.f32.mrf.mxu0
    %4795 = vdwg.mxu0
    %4796 = vst [vmem:[%s9] sm:$0xff] %v4793
    // Predicated region
    $region58: #{lstm_network_forward.1} parent=1 // pred_check
      _
    $region59: #{lstm_network_forward.1} parent=1 // pred_check_branch
      %4798 = sbr.rel (0) target = $region61
    $region60: #{lstm_network_forward.1} parent=1 // pred_region
      _
    $region61: #{lstm_network_forward.1} parent=1 // pred_fallthru
      _
    // Predicated region
    $region62: #{lstm_network_forward.1} parent=1 // pred_check
      _
    $region63: #{lstm_network_forward.1} parent=1 // pred_check_branch
      %4800 = sbr.rel (0) target = $region65
    $region64: #{lstm_network_forward.1} parent=1 // pred_region
      _
    $region65: #{lstm_network_forward.1} parent=1 // pred_fallthru
      _
    %4801 = vsyncpa [#allocation7], 1
    %4802 = vsyncpa [#allocation9], 1
    %4803 = vsyncpa [#allocation12], 1

</llo_original>
